<compile_context>
chip_gen: v6e
topology: v6e:2x2x1
jax: 0.10.0
libtpu: 0.0.40
codegen_flags: <defaults>
</compile_context>

<pallas_src>
import jax
import jax.numpy as jnp
import numpy as np
from jax.experimental import pallas as pl
from jax.experimental.pallas import tpu as pltpu


def _vmem_caps():
    """Generation-aware VMEM sizing (v5e/v6e: 128 MiB, v7x: 64 MiB)."""
    cap = 64 * 1024 * 1024                       # conservative default (v7x)
    try:
        cap = int(pltpu.get_tpu_info().vmem_capacity_bytes)
    except Exception:
        pass
    limit = max(min(cap - 8 * 1024 * 1024, 100 * 1024 * 1024), 32 * 1024 * 1024)
    budget = min(int(0.40 * limit), 48 * 1024 * 1024)
    return budget, limit


_TILE_VMEM_BUDGET, _VMEM_LIMIT_BYTES = _vmem_caps()


def _choose_tile_h(n, h_out, w_out, c_in, c_out, s):
    """Largest output-row tile th (dividing h_out) that fits the VMEM budget."""
    k_eff = 3 * c_in if s == 1 else 12 * c_in
    cc = c_in if s == 1 else 2 * c_in

    def tile_bytes(th):
        m = th * w_out
        in_blk = s * th * w_out * cc * 2          # bf16 input block
        halo = 2 * w_out * cc * 2                 # 1-row halo blocks
        out_blk = m * c_out * 2                   # bf16 output block
        wgt = 9 * c_in * c_out * 2                # weight slab
        buf = ((th + 2) * w_out * k_eff * 2) if s == 1 else (m * k_eff * 2)
        lhs_tmp = m * k_eff * 2                   # materialized matmul LHS
        acc_tmp = 2 * m * c_out * 4               # f32 accumulator + epilogue
        return 2 * (in_blk + halo + out_blk + wgt) + buf + lhs_tmp + acc_tmp

    def aligned(t, a):
        return t == h_out or (t * w_out) % a == 0

    divisors = [t for t in range(h_out, 0, -1) if h_out % t == 0]
    cands = ([t for t in divisors if aligned(t, 16)]
             or [t for t in divisors if aligned(t, 8)]
             or [h_out])
    # Keep >=2 grid programs when possible so both v7x TensorCores get work.
    if any(n * (h_out // t) >= 2 for t in cands):
        cands = [t for t in cands if n * (h_out // t) >= 2]
    fitting = [t for t in cands if tile_bytes(t) <= _TILE_VMEM_BUDGET]
    if fitting:
        return fitting[0]           # largest tile that fits
    return cands[-1]                # nothing fits: smallest legal tile


def _make_s1_kernel(th, w_out, c_in, c_out, n_th):
    """Stride-1 ConvBNReLU row tile: tap-folded buffer + 3 MXU matmuls."""
    k_eff = 3 * c_in
    m = th * w_out

    def kernel(x_ref, up_ref, dn_ref, w_ref, scale_ref, bias_ref, o_ref, buf_ref):
        j = pl.program_id(1)

        # --- build the column-tap-folded LHS buffer directly from the refs ---
        # buf row r  <->  input row j*th - 1 + r ; lane block kx holds column
        # tap kx (source col = dst col + kx - 1).
        def put(rdst, src):
            if w_out > 1:
                buf_ref[rdst, 1:w_out, 0:c_in] = src[:, 0:w_out - 1, :]
                buf_ref[rdst, 0:w_out - 1, 2 * c_in:3 * c_in] = src[:, 1:w_out, :]
            buf_ref[rdst, :, c_in:2 * c_in] = src

        # zero left/right image-border columns of the kx=0 / kx=2 lane blocks
        buf_ref[:, 0:1, 0:c_in] = jnp.zeros((th + 2, 1, c_in), jnp.bfloat16)
        buf_ref[:, w_out - 1:w_out, 2 * c_in:3 * c_in] = jnp.zeros(
            (th + 2, 1, c_in), jnp.bfloat16)

        put(slice(1, th + 1), x_ref[0])        # main rows
        put(slice(0, 1), up_ref[0])            # row above the tile
        put(slice(th + 1, th + 2), dn_ref[0])  # row below the tile

        @pl.when(j == 0)
        def _():                               # top image border: row -1 is zero
            buf_ref[0:1, :, :] = jnp.zeros((1, w_out, k_eff), jnp.bfloat16)

        @pl.when(j == n_th - 1)
        def _():                               # bottom image border: row h is zero
            buf_ref[th + 1:th + 2, :, :] = jnp.zeros((1, w_out, k_eff), jnp.bfloat16)

        # --- 3 K-folded matmuls (one per kernel row), summed as values ---
        acc = None
        for ky in range(3):
            lhs = buf_ref[ky:ky + th, :, :].reshape(m, k_eff)
            part = jnp.dot(lhs, w_ref[ky], preferred_element_type=jnp.float32)
            acc = part if acc is None else acc + part

        # fused eval-mode BatchNorm + ReLU epilogue, single bf16 store
        y = acc * scale_ref[...] + bias_ref[...]
        o_ref[0] = jnp.maximum(y, 0.0).astype(o_ref.dtype)

    return kernel


def _make_s2_kernel(th, w_out, c_in, c_out, n_th):
    """Stride-2 ConvBNReLU row tile: all 9 taps folded along K, ONE matmul."""
    cc = 2 * c_in                # lane-merged W column pair
    k_eff = 6 * cc               # 3 ky x 2 merged column windows
    m = th * w_out

    def kernel(x_ref, up_ref, w_ref, scale_ref, bias_ref, o_ref, buf_ref):
        # x_ref: (1, th, 2, w_out, cc) -- H split into (row-pair, parity)
        j = pl.program_id(1)

        def put(ky, rdst, src):
            base = 2 * ky * cc
            if w_out > 1:
                # dx=0 window: merged col (c-1) -> original col 2c-1 (tap kx=0)
                buf_ref[rdst, 1:w_out, base:base + cc] = src[:, 0:w_out - 1, :]
            # dx=1 window: merged col c -> original cols 2c (kx=1), 2c+1 (kx=2)
            buf_ref[rdst, :, base + cc:base + 2 * cc] = src

        # zero the left image-border column of every dx=0 window
        for ky in range(3):
            base = 2 * ky * cc
            buf_ref[:, 0:1, base:base + cc] = jnp.zeros((th, 1, cc), jnp.bfloat16)

        # ky = 1: input rows 2i (even parity); ky = 2: rows 2i+1 (odd parity)
        put(1, slice(0, th), x_ref[0, :, 0])
        put(2, slice(0, th), x_ref[0, :, 1])
        # ky = 0: input rows 2i-1 -> odd parity shifted up by one row pair
        put(0, slice(0, 1), up_ref[0, 0])
        if th > 1:
            put(0, slice(1, th), x_ref[0, 0:th - 1, 1])

        @pl.when(j == 0)
        def _():                               # top image border: row -1 is zero
            buf_ref[0:1, :, 0:2 * cc] = jnp.zeros((1, w_out, 2 * cc), jnp.bfloat16)

        # single MXU matmul over all 9 folded taps
        lhs = buf_ref[...].reshape(m, k_eff)
        acc = jnp.dot(lhs, w_ref[...], preferred_element_type=jnp.float32)

        y = acc * scale_ref[...] + bias_ref[...]
        o_ref[0] = jnp.maximum(y, 0.0).astype(o_ref.dtype)

    return kernel


def conv_bn_relu(x, w, scale, bias, stride):
    """Conv2d(3x3, stride, padding=1, bias=False) + BatchNorm2d(eval) + ReLU.

    x: (N, H, W, Cin) NHWC.  w: (3, 3, Cin, Cout).  scale/bias: folded BN.
    Returns (N, Ho, Wo, Cout) bf16.
    """
    n, h, wd, c_in = x.shape
    c_out = w.shape[-1]
    s = stride

    x = x.astype(jnp.bfloat16)
    w = w.astype(jnp.bfloat16)
    scale = scale.astype(jnp.float32).reshape(1, c_out)
    bias = bias.astype(jnp.float32).reshape(1, c_out)

    if s == 1:
        h_out, w_out = h, wd
        th = _choose_tile_h(n, h_out, w_out, c_in, c_out, s)
        n_th = h_out // th
        kernel = _make_s1_kernel(th, w_out, c_in, c_out, n_th)
        w_eff = w.reshape(3, 3 * c_in, c_out)
        in_specs = [
            pl.BlockSpec((1, th, w_out, c_in), lambda b, j: (b, j, 0, 0)),
            pl.BlockSpec((1, 1, w_out, c_in),
                         lambda b, j: (b, jnp.maximum(j * th - 1, 0), 0, 0)),
            pl.BlockSpec((1, 1, w_out, c_in),
                         lambda b, j: (b, jnp.minimum((j + 1) * th, h - 1), 0, 0)),
            pl.BlockSpec((3, 3 * c_in, c_out), lambda b, j: (0, 0, 0)),
            pl.BlockSpec((1, c_out), lambda b, j: (0, 0)),
            pl.BlockSpec((1, c_out), lambda b, j: (0, 0)),
        ]
        operands = (x, x, x, w_eff, scale, bias)
        scratch = [pltpu.VMEM((th + 2, w_out, 3 * c_in), jnp.bfloat16)]
    else:
        # TODO(synk): odd H/W would need an extra border column/row of zeros.
        assert h % 2 == 0 and wd % 2 == 0, "stride-2 layers need even H and W"
        h_out, w_out = h // 2, wd // 2
        cc = 2 * c_in
        th = _choose_tile_h(n, h_out, w_out, c_in, c_out, s)
        n_th = h_out // th
        kernel = _make_s2_kernel(th, w_out, c_in, c_out, n_th)
        # Free HBM reshapes: merge W column pairs into lanes and split H into
        # (row pair, parity) so the kernel never needs strided loads.
        xr = x.reshape(n, h_out, 2, w_out, cc)
        # Weight slab (12*Cin, Cout): all 9 taps folded along K.  The merged
        # dx=0 window only uses its second half (tap kx=0); its first half
        # multiplies a zero block.
        blocks = []
        for ky in range(3):
            blocks.append(jnp.zeros((c_in, c_out), jnp.bfloat16))
            blocks.append(w[ky, 0])
            blocks.append(w[ky, 1])
            blocks.append(w[ky, 2])
        w_eff = jnp.concatenate(blocks, axis=0)          # (12*Cin, Cout)
        in_specs = [
            pl.BlockSpec((1, th, 2, w_out, cc), lambda b, j: (b, j, 0, 0, 0)),
            pl.BlockSpec((1, 1, 1, w_out, cc),
                         lambda b, j: (b, jnp.maximum(j * th - 1, 0), 1, 0, 0)),
            pl.BlockSpec((12 * c_in, c_out), lambda b, j: (0, 0)),
            pl.BlockSpec((1, c_out), lambda b, j: (0, 0)),
            pl.BlockSpec((1, c_out), lambda b, j: (0, 0)),
        ]
        operands = (xr, xr, w_eff, scale, bias)
        scratch = [pltpu.VMEM((th, w_out, 12 * c_in), jnp.bfloat16)]

    out = pl.pallas_call(
        kernel,
        out_shape=jax.ShapeDtypeStruct((n, h_out * w_out, c_out), jnp.bfloat16),
        grid=(n, n_th),
        in_specs=in_specs,
        out_specs=pl.BlockSpec((1, th * w_out, c_out), lambda b, j: (b, j, 0)),
        scratch_shapes=scratch,
        compiler_params=pltpu.CompilerParams(
            dimension_semantics=("parallel", "parallel"),
            vmem_limit_bytes=_VMEM_LIMIT_BYTES),
    )(*operands)
    return out.reshape(n, h_out, w_out, c_out)


# (in_chan, out_chan, stride) for the 8 ConvBNReLU layers of DetailBranch:
#   S1: (3->64, s2), (64->64, s1)
#   S2: (64->64, s2), (64->64, s1), (64->64, s1)
#   S3: (64->128, s2), (128->128, s1), (128->128, s1)
_LAYER_CFG = [
    (3, 64, 2), (64, 64, 1),
    (64, 64, 2), (64, 64, 1), (64, 64, 1),
    (64, 128, 2), (128, 128, 1), (128, 128, 1),
]


def init_detail_branch_params(key):
    """Deterministic synthetic parameters.  BatchNorm (eval mode) is folded
    into per-channel scale/bias; conv weights are stored bf16."""
    eps = 1e-5
    params = []
    for (c_in, c_out, _stride) in _LAYER_CFG:
        key, k_w, k_g, k_b, k_m, k_v = jax.random.split(key, 6)
        std = (2.0 / (9.0 * c_in)) ** 0.5
        w = (std * jax.random.normal(k_w, (3, 3, c_in, c_out), jnp.float32)
             ).astype(jnp.bfloat16)
        gamma = 1.0 + 0.1 * jax.random.normal(k_g, (c_out,), jnp.float32)
        beta = 0.1 * jax.random.normal(k_b, (c_out,), jnp.float32)
        r_mean = 0.1 * jax.random.normal(k_m, (c_out,), jnp.float32)
        r_var = 1.0 + 0.1 * jnp.abs(jax.random.normal(k_v, (c_out,), jnp.float32))
        scale = gamma / jnp.sqrt(r_var + eps)
        bias = beta - r_mean * scale
        params.append((w, scale.reshape(1, c_out), bias.reshape(1, c_out)))
    return params


@jax.jit
def detail_branch(x_nhwc, params):
    feat = x_nhwc.astype(jnp.bfloat16)
    # TODO(synk): fuse the stride-1 pairs of each stage into one pallas_call.
    for (w, scale, bias), (_, _, stride) in zip(params, _LAYER_CFG):
        feat = conv_bn_relu(feat, w, scale, bias, stride)
    return feat


@jax.jit
def detail_branch_ref(x_nhwc, params):
    """Pure-JAX reference with matching numerics (bf16 operands, f32 accum,
    bf16 inter-layer activations)."""
    feat = x_nhwc.astype(jnp.bfloat16)
    for (w, scale, bias), (_, _, stride) in zip(params, _LAYER_CFG):
        y = jax.lax.conv_general_dilated(
            feat, w.astype(jnp.bfloat16),
            window_strides=(stride, stride), padding=((1, 1), (1, 1)),
            dimension_numbers=("NHWC", "HWIO", "NHWC"),
            preferred_element_type=jnp.float32)
        y = y * scale.reshape(1, 1, 1, -1) + bias.reshape(1, 1, 1, -1)
        feat = jnp.maximum(y, 0.0).astype(jnp.bfloat16)
    return feat


if __name__ == "__main__":
    key = jax.random.PRNGKey(0)
    p_key, x_key = jax.random.split(key)
    params = init_detail_branch_params(p_key)

    # PyTorch-convention input: NCHW (2, 3, 16, 16)
    x_nchw = jax.random.normal(x_key, (2, 3, 16, 16), jnp.float32)
    x_nhwc = jnp.transpose(x_nchw, (0, 2, 3, 1))

    feat = detail_branch(x_nhwc, params)            # (2, 2, 2, 128) NHWC
    out_nchw = jnp.transpose(feat, (0, 3, 1, 2))    # (2, 128, 2, 2) NCHW
    jax.block_until_ready(out_nchw)
    assert out_nchw.shape == (2, 128, 2, 2), out_nchw.shape

    # sanity check against the pure-JAX reference
    ref = detail_branch_ref(x_nhwc, params)
    np.testing.assert_allclose(
        np.asarray(feat.astype(jnp.float32)),
        np.asarray(ref.astype(jnp.float32)),
        rtol=3e-2, atol=3e-2)

    print("KERNEL_OK")
</pallas_src>

<mosaic_0001>
module attributes {stable_mosaic.version = 11 : i64} {
  func.func @kernel(%arg0: i32, %arg1: i32, %arg2: memref<1x8x2x8x6xbf16, #tpu.memory_space<vmem>>, %arg3: memref<1x1x1x8x6xbf16, #tpu.memory_space<vmem>>, %arg4: memref<36x64xbf16, #tpu.memory_space<vmem>>, %arg5: memref<1x64xf32, #tpu.memory_space<vmem>>, %arg6: memref<1x64xf32, #tpu.memory_space<vmem>>, %arg7: memref<1x64x64xbf16, #tpu.memory_space<vmem>>, %arg8: memref<8x8x36xbf16, #tpu.memory_space<vmem>>) attributes {dimension_semantics = [#tpu.dimension_semantics<parallel>, #tpu.dimension_semantics<parallel>], iteration_bounds = array<i64: 2, 1>, scalar_prefetch = 0 : i64, scratch_operands = 1 : i64, tpu.core_type = #tpu.core_type<tc>, window_params = [{transform_indices = @transform_0, window_bounds = array<i64: 1, 8, 2, 8, 6>}, {transform_indices = @transform_1, window_bounds = array<i64: 1, 1, 1, 8, 6>}, {pipeline_mode = #tpu.pipeline_mode<synchronous>, transform_indices = @transform_2, window_bounds = array<i64: 36, 64>}, {pipeline_mode = #tpu.pipeline_mode<synchronous>, transform_indices = @transform_3, window_bounds = array<i64: 1, 64>}, {pipeline_mode = #tpu.pipeline_mode<synchronous>, transform_indices = @transform_4, window_bounds = array<i64: 1, 64>}, {transform_indices = @transform_5, window_bounds = array<i64: 1, 64, 64>}]} {
    %cst = arith.constant 0.000000e+00 : bf16
    %0 = vector.broadcast %cst : bf16 to vector<8x1x6xbf16>
    %c0 = arith.constant 0 : index
    %c0_0 = arith.constant 0 : index
    %c0_1 = arith.constant 0 : index
    %1 = vector.load %arg8[%c0, %c0_0, %c0_1] : memref<8x8x36xbf16, #tpu.memory_space<vmem>>, vector<8x1x6xbf16>
    tpu.vector_store %arg8[%c0, %c0_0, %c0_1], %0 {strides = array<i32>} : memref<8x8x36xbf16, #tpu.memory_space<vmem>>, vector<8x1x6xbf16>,
    %cst_2 = arith.constant 0.000000e+00 : bf16
    %2 = vector.broadcast %cst_2 : bf16 to vector<8x1x6xbf16>
    %c0_3 = arith.constant 0 : index
    %c0_4 = arith.constant 0 : index
    %c12 = arith.constant 12 : index
    %3 = vector.load %arg8[%c0_3, %c0_4, %c12] : memref<8x8x36xbf16, #tpu.memory_space<vmem>>, vector<8x1x6xbf16>
    tpu.vector_store %arg8[%c0_3, %c0_4, %c12], %2 {strides = array<i32>} : memref<8x8x36xbf16, #tpu.memory_space<vmem>>, vector<8x1x6xbf16>,
    %cst_5 = arith.constant 0.000000e+00 : bf16
    %4 = vector.broadcast %cst_5 : bf16 to vector<8x1x6xbf16>
    %c0_6 = arith.constant 0 : index
    %c0_7 = arith.constant 0 : index
    %c24 = arith.constant 24 : index
    %5 = vector.load %arg8[%c0_6, %c0_7, %c24] : memref<8x8x36xbf16, #tpu.memory_space<vmem>>, vector<8x1x6xbf16>
    tpu.vector_store %arg8[%c0_6, %c0_7, %c24], %4 {strides = array<i32>} : memref<8x8x36xbf16, #tpu.memory_space<vmem>>, vector<8x1x6xbf16>,
    %c0_8 = arith.constant 0 : index
    %c0_9 = arith.constant 0 : index
    %c0_10 = arith.constant 0 : index
    %c0_11 = arith.constant 0 : index
    %c0_12 = arith.constant 0 : index
    %6 = vector.load %arg2[%c0_8, %c0_9, %c0_10, %c0_11, %c0_12] : memref<1x8x2x8x6xbf16, #tpu.memory_space<vmem>>, vector<1x8x1x8x6xbf16>
    %7 = vector.shape_cast %6 : vector<1x8x1x8x6xbf16> to vector<8x8x6xbf16>
    %8 = vector.extract_strided_slice %7 {offsets = [0, 0, 0], sizes = [8, 7, 6], strides = [1, 1, 1]} : vector<8x8x6xbf16> to vector<8x7x6xbf16>
    %c0_13 = arith.constant 0 : index
    %c1 = arith.constant 1 : index
    %c12_14 = arith.constant 12 : index
    %9 = vector.load %arg8[%c0_13, %c1, %c12_14] : memref<8x8x36xbf16, #tpu.memory_space<vmem>>, vector<8x7x6xbf16>
    tpu.vector_store %arg8[%c0_13, %c1, %c12_14], %8 {strides = array<i32>} : memref<8x8x36xbf16, #tpu.memory_space<vmem>>, vector<8x7x6xbf16>,
    %c0_15 = arith.constant 0 : index
    %c0_16 = arith.constant 0 : index
    %c18 = arith.constant 18 : index
    %10 = vector.load %arg8[%c0_15, %c0_16, %c18] : memref<8x8x36xbf16, #tpu.memory_space<vmem>>, vector<8x8x6xbf16>
    tpu.vector_store %arg8[%c0_15, %c0_16, %c18], %7 {strides = array<i32>} : memref<8x8x36xbf16, #tpu.memory_space<vmem>>, vector<8x8x6xbf16>,
    %c0_17 = arith.constant 0 : index
    %c0_18 = arith.constant 0 : index
    %c1_19 = arith.constant 1 : index
    %c0_20 = arith.constant 0 : index
    %c0_21 = arith.constant 0 : index
    %11 = vector.load %arg2[%c0_17, %c0_18, %c1_19, %c0_20, %c0_21] : memref<1x8x2x8x6xbf16, #tpu.memory_space<vmem>>, vector<1x8x1x8x6xbf16>
    %12 = vector.shape_cast %11 : vector<1x8x1x8x6xbf16> to vector<8x8x6xbf16>
    %13 = vector.extract_strided_slice %12 {offsets = [0, 0, 0], sizes = [8, 7, 6], strides = [1, 1, 1]} : vector<8x8x6xbf16> to vector<8x7x6xbf16>
    %c0_22 = arith.constant 0 : index
    %c1_23 = arith.constant 1 : index
    %c24_24 = arith.constant 24 : index
    %14 = vector.load %arg8[%c0_22, %c1_23, %c24_24] : memref<8x8x36xbf16, #tpu.memory_space<vmem>>, vector<8x7x6xbf16>
    tpu.vector_store %arg8[%c0_22, %c1_23, %c24_24], %13 {strides = array<i32>} : memref<8x8x36xbf16, #tpu.memory_space<vmem>>, vector<8x7x6xbf16>,
    %c0_25 = arith.constant 0 : index
    %c0_26 = arith.constant 0 : index
    %c30 = arith.constant 30 : index
    %15 = vector.load %arg8[%c0_25, %c0_26, %c30] : memref<8x8x36xbf16, #tpu.memory_space<vmem>>, vector<8x8x6xbf16>
    tpu.vector_store %arg8[%c0_25, %c0_26, %c30], %12 {strides = array<i32>} : memref<8x8x36xbf16, #tpu.memory_space<vmem>>, vector<8x8x6xbf16>,
    %c0_27 = arith.constant 0 : index
    %c0_28 = arith.constant 0 : index
    %c0_29 = arith.constant 0 : index
    %c0_30 = arith.constant 0 : index
    %c0_31 = arith.constant 0 : index
    %16 = vector.load %arg3[%c0_27, %c0_28, %c0_29, %c0_30, %c0_31] : memref<1x1x1x8x6xbf16, #tpu.memory_space<vmem>>, vector<1x1x1x8x6xbf16>
    %17 = vector.shape_cast %16 : vector<1x1x1x8x6xbf16> to vector<1x8x6xbf16>
    %18 = vector.extract_strided_slice %17 {offsets = [0, 0, 0], sizes = [1, 7, 6], strides = [1, 1, 1]} : vector<1x8x6xbf16> to vector<1x7x6xbf16>
    %c0_32 = arith.constant 0 : index
    %c1_33 = arith.constant 1 : index
    %c0_34 = arith.constant 0 : index
    %19 = vector.load %arg8[%c0_32, %c1_33, %c0_34] : memref<8x8x36xbf16, #tpu.memory_space<vmem>>, vector<1x7x6xbf16>
    tpu.vector_store %arg8[%c0_32, %c1_33, %c0_34], %18 {strides = array<i32>} : memref<8x8x36xbf16, #tpu.memory_space<vmem>>, vector<1x7x6xbf16>,
    %c0_35 = arith.constant 0 : index
    %c0_36 = arith.constant 0 : index
    %c6 = arith.constant 6 : index
    %20 = vector.load %arg8[%c0_35, %c0_36, %c6] : memref<8x8x36xbf16, #tpu.memory_space<vmem>>, vector<1x8x6xbf16>
    tpu.vector_store %arg8[%c0_35, %c0_36, %c6], %17 {strides = array<i32>} : memref<8x8x36xbf16, #tpu.memory_space<vmem>>, vector<1x8x6xbf16>,
    %c0_37 = arith.constant 0 : index
    %c0_38 = arith.constant 0 : index
    %c1_39 = arith.constant 1 : index
    %c0_40 = arith.constant 0 : index
    %c0_41 = arith.constant 0 : index
    %21 = vector.load %arg2[%c0_37, %c0_38, %c1_39, %c0_40, %c0_41] : memref<1x8x2x8x6xbf16, #tpu.memory_space<vmem>>, vector<1x7x1x8x6xbf16>
    %22 = vector.shape_cast %21 : vector<1x7x1x8x6xbf16> to vector<7x8x6xbf16>
    %23 = vector.extract_strided_slice %22 {offsets = [0, 0, 0], sizes = [7, 7, 6], strides = [1, 1, 1]} : vector<7x8x6xbf16> to vector<7x7x6xbf16>
    %c1_42 = arith.constant 1 : index
    %c1_43 = arith.constant 1 : index
    %c0_44 = arith.constant 0 : index
    %24 = vector.load %arg8[%c1_42, %c1_43, %c0_44] : memref<8x8x36xbf16, #tpu.memory_space<vmem>>, vector<7x7x6xbf16>
    tpu.vector_store %arg8[%c1_42, %c1_43, %c0_44], %23 {strides = array<i32>} : memref<8x8x36xbf16, #tpu.memory_space<vmem>>, vector<7x7x6xbf16>,
    %c1_45 = arith.constant 1 : index
    %c0_46 = arith.constant 0 : index
    %c6_47 = arith.constant 6 : index
    %25 = vector.load %arg8[%c1_45, %c0_46, %c6_47] : memref<8x8x36xbf16, #tpu.memory_space<vmem>>, vector<7x8x6xbf16>
    tpu.vector_store %arg8[%c1_45, %c0_46, %c6_47], %22 {strides = array<i32>} : memref<8x8x36xbf16, #tpu.memory_space<vmem>>, vector<7x8x6xbf16>,
    %c0_i32 = arith.constant 0 : i32
    %26 = arith.cmpi eq, %arg1, %c0_i32 : i32
    %27 = arith.extui %26 : i1 to i32
    %c0_i32_48 = arith.constant 0 : i32
    %28 = arith.cmpi ne, %27, %c0_i32_48 : i32
    scf.if %28 {
      %cst_63 = arith.constant 0.000000e+00 : bf16
      %45 = vector.broadcast %cst_63 : bf16 to vector<1x8x12xbf16>
      %c0_64 = arith.constant 0 : index
      %c0_65 = arith.constant 0 : index
      %c0_66 = arith.constant 0 : index
      %46 = vector.load %arg8[%c0_64, %c0_65, %c0_66] : memref<8x8x36xbf16, #tpu.memory_space<vmem>>, vector<1x8x12xbf16>
      tpu.vector_store %arg8[%c0_64, %c0_65, %c0_66], %45 {strides = array<i32>} : memref<8x8x36xbf16, #tpu.memory_space<vmem>>, vector<1x8x12xbf16>,
    } else {
    }
    %c0_49 = arith.constant 0 : index
    %c0_50 = arith.constant 0 : index
    %c0_51 = arith.constant 0 : index
    %29 = vector.load %arg8[%c0_49, %c0_50, %c0_51] : memref<8x8x36xbf16, #tpu.memory_space<vmem>>, vector<8x8x36xbf16>
    %30 = vector.shape_cast %29 : vector<8x8x36xbf16> to vector<64x36xbf16>
    %c0_52 = arith.constant 0 : index
    %c0_53 = arith.constant 0 : index
    %31 = vector.load %arg4[%c0_52, %c0_53] : memref<36x64xbf16, #tpu.memory_space<vmem>>, vector<36x64xbf16>
    %cst_54 = arith.constant dense<0.000000e+00> : vector<64x64xf32>
    %32 = tpu.matmul %30, %31, %cst_54 {dimension_numbers = #tpu.dot_dimension_numbers<[1], [0], [0], [1], [0, 0, 1, 1], [], []>} : vector<64x36xbf16>, vector<36x64xbf16>, vector<64x64xf32> -> vector<64x64xf32>
    %c0_55 = arith.constant 0 : index
    %c0_56 = arith.constant 0 : index
    %33 = vector.load %arg5[%c0_55, %c0_56] : memref<1x64xf32, #tpu.memory_space<vmem>>, vector<1x64xf32>
    %34 = vector.broadcast %33 : vector<1x64xf32> to vector<64x64xf32>
    %35 = arith.mulf %32, %34 : vector<64x64xf32>
    %c0_57 = arith.constant 0 : index
    %c0_58 = arith.constant 0 : index
    %36 = vector.load %arg6[%c0_57, %c0_58] : memref<1x64xf32, #tpu.memory_space<vmem>>, vector<1x64xf32>
    %37 = vector.broadcast %36 : vector<1x64xf32> to vector<64x64xf32>
    %38 = arith.addf %35, %37 : vector<64x64xf32>
    %cst_59 = arith.constant 0.000000e+00 : f32
    %39 = vector.broadcast %cst_59 : f32 to vector<64x64xf32>
    %40 = arith.maximumf %38, %39 : vector<64x64xf32>
    %41 = arith.truncf %40 : vector<64x64xf32> to vector<64x64xbf16>
    %c0_60 = arith.constant 0 : index
    %c0_61 = arith.constant 0 : index
    %c0_62 = arith.constant 0 : index
    %42 = vector.load %arg7[%c0_60, %c0_61, %c0_62] : memref<1x64x64xbf16, #tpu.memory_space<vmem>>, vector<1x64x64xbf16>
    %43 = vector.shape_cast %42 : vector<1x64x64xbf16> to vector<64x64xbf16>
    %44 = vector.shape_cast %41 : vector<64x64xbf16> to vector<1x64x64xbf16>
    tpu.vector_store %arg7[%c0_60, %c0_61, %c0_62], %44 {strides = array<i32>} : memref<1x64x64xbf16, #tpu.memory_space<vmem>>, vector<1x64x64xbf16>,
    return
  }
  func.func @transform_0(%arg0: i32, %arg1: i32) -> (i32, i32, i32, i32, i32) {
    %c0_i32 = arith.constant 0 : i32
    %c0_i32_0 = arith.constant 0 : i32
    %c0_i32_1 = arith.constant 0 : i32
    %c0_i32_2 = arith.constant 0 : i32
    return %arg0, %arg1, %c0_i32, %c0_i32_0, %c0_i32_1 : i32, i32, i32, i32, i32
  }
  func.func @transform_1(%arg0: i32, %arg1: i32) -> (i32, i32, i32, i32, i32) {
    %c8_i32 = arith.constant 8 : i32
    %0 = arith.muli %arg1, %c8_i32 : i32
    %c1_i32 = arith.constant 1 : i32
    %1 = arith.subi %0, %c1_i32 : i32
    %c0_i32 = arith.constant 0 : i32
    %2 = arith.maxsi %1, %c0_i32 : i32
    %c1_i32_0 = arith.constant 1 : i32
    %c0_i32_1 = arith.constant 0 : i32
    %c0_i32_2 = arith.constant 0 : i32
    %c0_i32_3 = arith.constant 0 : i32
    return %arg0, %2, %c1_i32_0, %c0_i32_1, %c0_i32_2 : i32, i32, i32, i32, i32
  }
  func.func @transform_2(%arg0: i32, %arg1: i32) -> (i32, i32) {
    %c0_i32 = arith.constant 0 : i32
    %c0_i32_0 = arith.constant 0 : i32
    %c0_i32_1 = arith.constant 0 : i32
    return %c0_i32, %c0_i32_0 : i32, i32
  }
  func.func @transform_3(%arg0: i32, %arg1: i32) -> (i32, i32) {
    %c0_i32 = arith.constant 0 : i32
    %c0_i32_0 = arith.constant 0 : i32
    %c0_i32_1 = arith.constant 0 : i32
    return %c0_i32, %c0_i32_0 : i32, i32
  }
  func.func @transform_4(%arg0: i32, %arg1: i32) -> (i32, i32) {
    %c0_i32 = arith.constant 0 : i32
    %c0_i32_0 = arith.constant 0 : i32
    %c0_i32_1 = arith.constant 0 : i32
    return %c0_i32, %c0_i32_0 : i32, i32
  }
  func.func @transform_5(%arg0: i32, %arg1: i32) -> (i32, i32, i32) {
    %c0_i32 = arith.constant 0 : i32
    %c0_i32_0 = arith.constant 0 : i32
    return %arg0, %arg1, %c0_i32 : i32, i32, i32
  }
}

module attributes {stable_mosaic.version = 11 : i64} {
  func.func @kernel(%arg0: i32, %arg1: i32, %arg2: memref<1x8x8x64xbf16, #tpu.memory_space<vmem>>, %arg3: memref<1x1x8x64xbf16, #tpu.memory_space<vmem>>, %arg4: memref<1x1x8x64xbf16, #tpu.memory_space<vmem>>, %arg5: memref<3x192x64xbf16, #tpu.memory_space<vmem>>, %arg6: memref<1x64xf32, #tpu.memory_space<vmem>>, %arg7: memref<1x64xf32, #tpu.memory_space<vmem>>, %arg8: memref<1x64x64xbf16, #tpu.memory_space<vmem>>, %arg9: memref<10x8x192xbf16, #tpu.memory_space<vmem>>) attributes {dimension_semantics = [#tpu.dimension_semantics<parallel>, #tpu.dimension_semantics<parallel>], iteration_bounds = array<i64: 2, 1>, scalar_prefetch = 0 : i64, scratch_operands = 1 : i64, tpu.core_type = #tpu.core_type<tc>, window_params = [{transform_indices = @transform_0, window_bounds = array<i64: 1, 8, 8, 64>}, {transform_indices = @transform_1, window_bounds = array<i64: 1, 1, 8, 64>}, {transform_indices = @transform_2, window_bounds = array<i64: 1, 1, 8, 64>}, {pipeline_mode = #tpu.pipeline_mode<synchronous>, transform_indices = @transform_3, window_bounds = array<i64: 3, 192, 64>}, {pipeline_mode = #tpu.pipeline_mode<synchronous>, transform_indices = @transform_4, window_bounds = array<i64: 1, 64>}, {pipeline_mode = #tpu.pipeline_mode<synchronous>, transform_indices = @transform_5, window_bounds = array<i64: 1, 64>}, {transform_indices = @transform_6, window_bounds = array<i64: 1, 64, 64>}]} {
    %cst = arith.constant 0.000000e+00 : bf16
    %0 = vector.broadcast %cst : bf16 to vector<10x1x64xbf16>
    %c0 = arith.constant 0 : index
    %c0_0 = arith.constant 0 : index
    %c0_1 = arith.constant 0 : index
    %1 = vector.load %arg9[%c0, %c0_0, %c0_1] : memref<10x8x192xbf16, #tpu.memory_space<vmem>>, vector<10x1x64xbf16>
    tpu.vector_store %arg9[%c0, %c0_0, %c0_1], %0 {strides = array<i32>} : memref<10x8x192xbf16, #tpu.memory_space<vmem>>, vector<10x1x64xbf16>,
    %cst_2 = arith.constant 0.000000e+00 : bf16
    %2 = vector.broadcast %cst_2 : bf16 to vector<10x1x64xbf16>
    %c0_3 = arith.constant 0 : index
    %c7 = arith.constant 7 : index
    %c128 = arith.constant 128 : index
    %3 = vector.load %arg9[%c0_3, %c7, %c128] : memref<10x8x192xbf16, #tpu.memory_space<vmem>>, vector<10x1x64xbf16>
    tpu.vector_store %arg9[%c0_3, %c7, %c128], %2 {strides = array<i32>} : memref<10x8x192xbf16, #tpu.memory_space<vmem>>, vector<10x1x64xbf16>,
    %c0_4 = arith.constant 0 : index
    %c0_5 = arith.constant 0 : index
    %c0_6 = arith.constant 0 : index
    %c0_7 = arith.constant 0 : index
    %4 = vector.load %arg2[%c0_4, %c0_5, %c0_6, %c0_7] : memref<1x8x8x64xbf16, #tpu.memory_space<vmem>>, vector<1x8x8x64xbf16>
    %5 = vector.shape_cast %4 : vector<1x8x8x64xbf16> to vector<8x8x64xbf16>
    %6 = vector.extract_strided_slice %5 {offsets = [0, 0, 0], sizes = [8, 7, 64], strides = [1, 1, 1]} : vector<8x8x64xbf16> to vector<8x7x64xbf16>
    %c1 = arith.constant 1 : index
    %c1_8 = arith.constant 1 : index
    %c0_9 = arith.constant 0 : index
    %7 = vector.load %arg9[%c1, %c1_8, %c0_9] : memref<10x8x192xbf16, #tpu.memory_space<vmem>>, vector<8x7x64xbf16>
    tpu.vector_store %arg9[%c1, %c1_8, %c0_9], %6 {strides = array<i32>} : memref<10x8x192xbf16, #tpu.memory_space<vmem>>, vector<8x7x64xbf16>,
    %8 = vector.extract_strided_slice %5 {offsets = [0, 1, 0], sizes = [8, 7, 64], strides = [1, 1, 1]} : vector<8x8x64xbf16> to vector<8x7x64xbf16>
    %c1_10 = arith.constant 1 : index
    %c0_11 = arith.constant 0 : index
    %c128_12 = arith.constant 128 : index
    %9 = vector.load %arg9[%c1_10, %c0_11, %c128_12] : memref<10x8x192xbf16, #tpu.memory_space<vmem>>, vector<8x7x64xbf16>
    tpu.vector_store %arg9[%c1_10, %c0_11, %c128_12], %8 {strides = array<i32>} : memref<10x8x192xbf16, #tpu.memory_space<vmem>>, vector<8x7x64xbf16>,
    %c1_13 = arith.constant 1 : index
    %c0_14 = arith.constant 0 : index
    %c64 = arith.constant 64 : index
    %10 = vector.load %arg9[%c1_13, %c0_14, %c64] : memref<10x8x192xbf16, #tpu.memory_space<vmem>>, vector<8x8x64xbf16>
    tpu.vector_store %arg9[%c1_13, %c0_14, %c64], %5 {strides = array<i32>} : memref<10x8x192xbf16, #tpu.memory_space<vmem>>, vector<8x8x64xbf16>,
    %c0_15 = arith.constant 0 : index
    %c0_16 = arith.constant 0 : index
    %c0_17 = arith.constant 0 : index
    %c0_18 = arith.constant 0 : index
    %11 = vector.load %arg3[%c0_15, %c0_16, %c0_17, %c0_18] : memref<1x1x8x64xbf16, #tpu.memory_space<vmem>>, vector<1x1x8x64xbf16>
    %12 = vector.shape_cast %11 : vector<1x1x8x64xbf16> to vector<1x8x64xbf16>
    %13 = vector.extract_strided_slice %12 {offsets = [0, 0, 0], sizes = [1, 7, 64], strides = [1, 1, 1]} : vector<1x8x64xbf16> to vector<1x7x64xbf16>
    %c0_19 = arith.constant 0 : index
    %c1_20 = arith.constant 1 : index
    %c0_21 = arith.constant 0 : index
    %14 = vector.load %arg9[%c0_19, %c1_20, %c0_21] : memref<10x8x192xbf16, #tpu.memory_space<vmem>>, vector<1x7x64xbf16>
    tpu.vector_store %arg9[%c0_19, %c1_20, %c0_21], %13 {strides = array<i32>} : memref<10x8x192xbf16, #tpu.memory_space<vmem>>, vector<1x7x64xbf16>,
    %15 = vector.extract_strided_slice %12 {offsets = [0, 1, 0], sizes = [1, 7, 64], strides = [1, 1, 1]} : vector<1x8x64xbf16> to vector<1x7x64xbf16>
    %c0_22 = arith.constant 0 : index
    %c0_23 = arith.constant 0 : index
    %c128_24 = arith.constant 128 : index
    %16 = vector.load %arg9[%c0_22, %c0_23, %c128_24] : memref<10x8x192xbf16, #tpu.memory_space<vmem>>, vector<1x7x64xbf16>
    tpu.vector_store %arg9[%c0_22, %c0_23, %c128_24], %15 {strides = array<i32>} : memref<10x8x192xbf16, #tpu.memory_space<vmem>>, vector<1x7x64xbf16>,
    %c0_25 = arith.constant 0 : index
    %c0_26 = arith.constant 0 : index
    %c64_27 = arith.constant 64 : index
    %17 = vector.load %arg9[%c0_25, %c0_26, %c64_27] : memref<10x8x192xbf16, #tpu.memory_space<vmem>>, vector<1x8x64xbf16>
    tpu.vector_store %arg9[%c0_25, %c0_26, %c64_27], %12 {strides = array<i32>} : memref<10x8x192xbf16, #tpu.memory_space<vmem>>, vector<1x8x64xbf16>,
    %c0_28 = arith.constant 0 : index
    %c0_29 = arith.constant 0 : index
    %c0_30 = arith.constant 0 : index
    %c0_31 = arith.constant 0 : index
    %18 = vector.load %arg4[%c0_28, %c0_29, %c0_30, %c0_31] : memref<1x1x8x64xbf16, #tpu.memory_space<vmem>>, vector<1x1x8x64xbf16>
    %19 = vector.shape_cast %18 : vector<1x1x8x64xbf16> to vector<1x8x64xbf16>
    %20 = vector.extract_strided_slice %19 {offsets = [0, 0, 0], sizes = [1, 7, 64], strides = [1, 1, 1]} : vector<1x8x64xbf16> to vector<1x7x64xbf16>
    %c9 = arith.constant 9 : index
    %c1_32 = arith.constant 1 : index
    %c0_33 = arith.constant 0 : index
    %21 = vector.load %arg9[%c9, %c1_32, %c0_33] : memref<10x8x192xbf16, #tpu.memory_space<vmem>>, vector<1x7x64xbf16>
    tpu.vector_store %arg9[%c9, %c1_32, %c0_33], %20 {strides = array<i32>} : memref<10x8x192xbf16, #tpu.memory_space<vmem>>, vector<1x7x64xbf16>,
    %22 = vector.extract_strided_slice %19 {offsets = [0, 1, 0], sizes = [1, 7, 64], strides = [1, 1, 1]} : vector<1x8x64xbf16> to vector<1x7x64xbf16>
    %c9_34 = arith.constant 9 : index
    %c0_35 = arith.constant 0 : index
    %c128_36 = arith.constant 128 : index
    %23 = vector.load %arg9[%c9_34, %c0_35, %c128_36] : memref<10x8x192xbf16, #tpu.memory_space<vmem>>, vector<1x7x64xbf16>
    tpu.vector_store %arg9[%c9_34, %c0_35, %c128_36], %22 {strides = array<i32>} : memref<10x8x192xbf16, #tpu.memory_space<vmem>>, vector<1x7x64xbf16>,
    %c9_37 = arith.constant 9 : index
    %c0_38 = arith.constant 0 : index
    %c64_39 = arith.constant 64 : index
    %24 = vector.load %arg9[%c9_37, %c0_38, %c64_39] : memref<10x8x192xbf16, #tpu.memory_space<vmem>>, vector<1x8x64xbf16>
    tpu.vector_store %arg9[%c9_37, %c0_38, %c64_39], %19 {strides = array<i32>} : memref<10x8x192xbf16, #tpu.memory_space<vmem>>, vector<1x8x64xbf16>,
    %c0_i32 = arith.constant 0 : i32
    %25 = arith.cmpi eq, %arg1, %c0_i32 : i32
    %26 = arith.extui %25 : i1 to i32
    %c0_i32_40 = arith.constant 0 : i32
    %27 = arith.cmpi ne, %26, %c0_i32_40 : i32
    scf.if %27 {
      %cst_71 = arith.constant 0.000000e+00 : bf16
      %60 = vector.broadcast %cst_71 : bf16 to vector<1x8x192xbf16>
      %c0_72 = arith.constant 0 : index
      %c0_73 = arith.constant 0 : index
      %c0_74 = arith.constant 0 : index
      %61 = vector.load %arg9[%c0_72, %c0_73, %c0_74] : memref<10x8x192xbf16, #tpu.memory_space<vmem>>, vector<1x8x192xbf16>
      tpu.vector_store %arg9[%c0_72, %c0_73, %c0_74], %60 {strides = array<i32>} : memref<10x8x192xbf16, #tpu.memory_space<vmem>>, vector<1x8x192xbf16>,
    } else {
    }
    %c0_i32_41 = arith.constant 0 : i32
    %28 = arith.cmpi eq, %arg1, %c0_i32_41 : i32
    %29 = arith.extui %28 : i1 to i32
    %c0_i32_42 = arith.constant 0 : i32
    %30 = arith.cmpi ne, %29, %c0_i32_42 : i32
    scf.if %30 {
      %cst_71 = arith.constant 0.000000e+00 : bf16
      %60 = vector.broadcast %cst_71 : bf16 to vector<1x8x192xbf16>
      %c9_72 = arith.constant 9 : index
      %c0_73 = arith.constant 0 : index
      %c0_74 = arith.constant 0 : index
      %61 = vector.load %arg9[%c9_72, %c0_73, %c0_74] : memref<10x8x192xbf16, #tpu.memory_space<vmem>>, vector<1x8x192xbf16>
      tpu.vector_store %arg9[%c9_72, %c0_73, %c0_74], %60 {strides = array<i32>} : memref<10x8x192xbf16, #tpu.memory_space<vmem>>, vector<1x8x192xbf16>,
    } else {
    }
    %c0_43 = arith.constant 0 : index
    %c0_44 = arith.constant 0 : index
    %c0_45 = arith.constant 0 : index
    %31 = vector.load %arg9[%c0_43, %c0_44, %c0_45] : memref<10x8x192xbf16, #tpu.memory_space<vmem>>, vector<8x8x192xbf16>
    %32 = vector.shape_cast %31 : vector<8x8x192xbf16> to vector<64x192xbf16>
    %c0_46 = arith.constant 0 : index
    %c0_47 = arith.constant 0 : index
    %c0_48 = arith.constant 0 : index
    %33 = vector.load %arg5[%c0_46, %c0_47, %c0_48] : memref<3x192x64xbf16, #tpu.memory_space<vmem>>, vector<1x192x64xbf16>
    %34 = vector.shape_cast %33 : vector<1x192x64xbf16> to vector<192x64xbf16>
    %cst_49 = arith.constant dense<0.000000e+00> : vector<64x64xf32>
    %35 = tpu.matmul %32, %34, %cst_49 {dimension_numbers = #tpu.dot_dimension_numbers<[1], [0], [0], [1], [0, 0, 1, 1], [], []>} : vector<64x192xbf16>, vector<192x64xbf16>, vector<64x64xf32> -> vector<64x64xf32>
    %c1_50 = arith.constant 1 : index
    %c0_51 = arith.constant 0 : index
    %c0_52 = arith.constant 0 : index
    %36 = vector.load %arg9[%c1_50, %c0_51, %c0_52] : memref<10x8x192xbf16, #tpu.memory_space<vmem>>, vector<8x8x192xbf16>
    %37 = vector.shape_cast %36 : vector<8x8x192xbf16> to vector<64x192xbf16>
    %c1_53 = arith.constant 1 : index
    %c0_54 = arith.constant 0 : index
    %c0_55 = arith.constant 0 : index
    %38 = vector.load %arg5[%c1_53, %c0_54, %c0_55] : memref<3x192x64xbf16, #tpu.memory_space<vmem>>, vector<1x192x64xbf16>
    %39 = vector.shape_cast %38 : vector<1x192x64xbf16> to vector<192x64xbf16>
    %cst_56 = arith.constant dense<0.000000e+00> : vector<64x64xf32>
    %40 = tpu.matmul %37, %39, %cst_56 {dimension_numbers = #tpu.dot_dimension_numbers<[1], [0], [0], [1], [0, 0, 1, 1], [], []>} : vector<64x192xbf16>, vector<192x64xbf16>, vector<64x64xf32> -> vector<64x64xf32>
    %41 = arith.addf %35, %40 : vector<64x64xf32>
    %c2 = arith.constant 2 : index
    %c0_57 = arith.constant 0 : index
    %c0_58 = arith.constant 0 : index
    %42 = vector.load %arg9[%c2, %c0_57, %c0_58] : memref<10x8x192xbf16, #tpu.memory_space<vmem>>, vector<8x8x192xbf16>
    %43 = vector.shape_cast %42 : vector<8x8x192xbf16> to vector<64x192xbf16>
    %c2_59 = arith.constant 2 : index
    %c0_60 = arith.constant 0 : index
    %c0_61 = arith.constant 0 : index
    %44 = vector.load %arg5[%c2_59, %c0_60, %c0_61] : memref<3x192x64xbf16, #tpu.memory_space<vmem>>, vector<1x192x64xbf16>
    %45 = vector.shape_cast %44 : vector<1x192x64xbf16> to vector<192x64xbf16>
    %cst_62 = arith.constant dense<0.000000e+00> : vector<64x64xf32>
    %46 = tpu.matmul %43, %45, %cst_62 {dimension_numbers = #tpu.dot_dimension_numbers<[1], [0], [0], [1], [0, 0, 1, 1], [], []>} : vector<64x192xbf16>, vector<192x64xbf16>, vector<64x64xf32> -> vector<64x64xf32>
    %47 = arith.addf %41, %46 : vector<64x64xf32>
    %c0_63 = arith.constant 0 : index
    %c0_64 = arith.constant 0 : index
    %48 = vector.load %arg6[%c0_63, %c0_64] : memref<1x64xf32, #tpu.memory_space<vmem>>, vector<1x64xf32>
    %49 = vector.broadcast %48 : vector<1x64xf32> to vector<64x64xf32>
    %50 = arith.mulf %47, %49 : vector<64x64xf32>
    %c0_65 = arith.constant 0 : index
    %c0_66 = arith.constant 0 : index
    %51 = vector.load %arg7[%c0_65, %c0_66] : memref<1x64xf32, #tpu.memory_space<vmem>>, vector<1x64xf32>
    %52 = vector.broadcast %51 : vector<1x64xf32> to vector<64x64xf32>
    %53 = arith.addf %50, %52 : vector<64x64xf32>
    %cst_67 = arith.constant 0.000000e+00 : f32
    %54 = vector.broadcast %cst_67 : f32 to vector<64x64xf32>
    %55 = arith.maximumf %53, %54 : vector<64x64xf32>
    %56 = arith.truncf %55 : vector<64x64xf32> to vector<64x64xbf16>
    %c0_68 = arith.constant 0 : index
    %c0_69 = arith.constant 0 : index
    %c0_70 = arith.constant 0 : index
    %57 = vector.load %arg8[%c0_68, %c0_69, %c0_70] : memref<1x64x64xbf16, #tpu.memory_space<vmem>>, vector<1x64x64xbf16>
    %58 = vector.shape_cast %57 : vector<1x64x64xbf16> to vector<64x64xbf16>
    %59 = vector.shape_cast %56 : vector<64x64xbf16> to vector<1x64x64xbf16>
    tpu.vector_store %arg8[%c0_68, %c0_69, %c0_70], %59 {strides = array<i32>} : memref<1x64x64xbf16, #tpu.memory_space<vmem>>, vector<1x64x64xbf16>,
    return
  }
  func.func @transform_0(%arg0: i32, %arg1: i32) -> (i32, i32, i32, i32) {
    %c0_i32 = arith.constant 0 : i32
    %c0_i32_0 = arith.constant 0 : i32
    %c0_i32_1 = arith.constant 0 : i32
    return %arg0, %arg1, %c0_i32, %c0_i32_0 : i32, i32, i32, i32
  }
  func.func @transform_1(%arg0: i32, %arg1: i32) -> (i32, i32, i32, i32) {
    %c8_i32 = arith.constant 8 : i32
    %0 = arith.muli %arg1, %c8_i32 : i32
    %c1_i32 = arith.constant 1 : i32
    %1 = arith.subi %0, %c1_i32 : i32
    %c0_i32 = arith.constant 0 : i32
    %2 = arith.maxsi %1, %c0_i32 : i32
    %c0_i32_0 = arith.constant 0 : i32
    %c0_i32_1 = arith.constant 0 : i32
    %c0_i32_2 = arith.constant 0 : i32
    return %arg0, %2, %c0_i32_0, %c0_i32_1 : i32, i32, i32, i32
  }
  func.func @transform_2(%arg0: i32, %arg1: i32) -> (i32, i32, i32, i32) {
    %c1_i32 = arith.constant 1 : i32
    %0 = arith.addi %arg1, %c1_i32 : i32
    %c8_i32 = arith.constant 8 : i32
    %1 = arith.muli %0, %c8_i32 : i32
    %c7_i32 = arith.constant 7 : i32
    %2 = arith.minsi %1, %c7_i32 : i32
    %c0_i32 = arith.constant 0 : i32
    %c0_i32_0 = arith.constant 0 : i32
    %c0_i32_1 = arith.constant 0 : i32
    return %arg0, %2, %c0_i32, %c0_i32_0 : i32, i32, i32, i32
  }
  func.func @transform_3(%arg0: i32, %arg1: i32) -> (i32, i32, i32) {
    %c0_i32 = arith.constant 0 : i32
    %c0_i32_0 = arith.constant 0 : i32
    %c0_i32_1 = arith.constant 0 : i32
    %c0_i32_2 = arith.constant 0 : i32
    return %c0_i32, %c0_i32_0, %c0_i32_1 : i32, i32, i32
  }
  func.func @transform_4(%arg0: i32, %arg1: i32) -> (i32, i32) {
    %c0_i32 = arith.constant 0 : i32
    %c0_i32_0 = arith.constant 0 : i32
    %c0_i32_1 = arith.constant 0 : i32
    return %c0_i32, %c0_i32_0 : i32, i32
  }
  func.func @transform_5(%arg0: i32, %arg1: i32) -> (i32, i32) {
    %c0_i32 = arith.constant 0 : i32
    %c0_i32_0 = arith.constant 0 : i32
    %c0_i32_1 = arith.constant 0 : i32
    return %c0_i32, %c0_i32_0 : i32, i32
  }
  func.func @transform_6(%arg0: i32, %arg1: i32) -> (i32, i32, i32) {
    %c0_i32 = arith.constant 0 : i32
    %c0_i32_0 = arith.constant 0 : i32
    return %arg0, %arg1, %c0_i32 : i32, i32, i32
  }
}

module attributes {stable_mosaic.version = 11 : i64} {
  func.func @kernel(%arg0: i32, %arg1: i32, %arg2: memref<1x4x2x4x128xbf16, #tpu.memory_space<vmem>>, %arg3: memref<1x1x1x4x128xbf16, #tpu.memory_space<vmem>>, %arg4: memref<768x64xbf16, #tpu.memory_space<vmem>>, %arg5: memref<1x64xf32, #tpu.memory_space<vmem>>, %arg6: memref<1x64xf32, #tpu.memory_space<vmem>>, %arg7: memref<1x16x64xbf16, #tpu.memory_space<vmem>>, %arg8: memref<4x4x768xbf16, #tpu.memory_space<vmem>>) attributes {dimension_semantics = [#tpu.dimension_semantics<parallel>, #tpu.dimension_semantics<parallel>], iteration_bounds = array<i64: 2, 1>, scalar_prefetch = 0 : i64, scratch_operands = 1 : i64, tpu.core_type = #tpu.core_type<tc>, window_params = [{transform_indices = @transform_0, window_bounds = array<i64: 1, 4, 2, 4, 128>}, {transform_indices = @transform_1, window_bounds = array<i64: 1, 1, 1, 4, 128>}, {pipeline_mode = #tpu.pipeline_mode<synchronous>, transform_indices = @transform_2, window_bounds = array<i64: 768, 64>}, {pipeline_mode = #tpu.pipeline_mode<synchronous>, transform_indices = @transform_3, window_bounds = array<i64: 1, 64>}, {pipeline_mode = #tpu.pipeline_mode<synchronous>, transform_indices = @transform_4, window_bounds = array<i64: 1, 64>}, {transform_indices = @transform_5, window_bounds = array<i64: 1, 16, 64>}]} {
    %cst = arith.constant 0.000000e+00 : bf16
    %0 = vector.broadcast %cst : bf16 to vector<4x1x128xbf16>
    %c0 = arith.constant 0 : index
    %c0_0 = arith.constant 0 : index
    %c0_1 = arith.constant 0 : index
    %1 = vector.load %arg8[%c0, %c0_0, %c0_1] : memref<4x4x768xbf16, #tpu.memory_space<vmem>>, vector<4x1x128xbf16>
    tpu.vector_store %arg8[%c0, %c0_0, %c0_1], %0 {strides = array<i32>} : memref<4x4x768xbf16, #tpu.memory_space<vmem>>, vector<4x1x128xbf16>,
    %cst_2 = arith.constant 0.000000e+00 : bf16
    %2 = vector.broadcast %cst_2 : bf16 to vector<4x1x128xbf16>
    %c0_3 = arith.constant 0 : index
    %c0_4 = arith.constant 0 : index
    %c256 = arith.constant 256 : index
    %3 = vector.load %arg8[%c0_3, %c0_4, %c256] : memref<4x4x768xbf16, #tpu.memory_space<vmem>>, vector<4x1x128xbf16>
    tpu.vector_store %arg8[%c0_3, %c0_4, %c256], %2 {strides = array<i32>} : memref<4x4x768xbf16, #tpu.memory_space<vmem>>, vector<4x1x128xbf16>,
    %cst_5 = arith.constant 0.000000e+00 : bf16
    %4 = vector.broadcast %cst_5 : bf16 to vector<4x1x128xbf16>
    %c0_6 = arith.constant 0 : index
    %c0_7 = arith.constant 0 : index
    %c512 = arith.constant 512 : index
    %5 = vector.load %arg8[%c0_6, %c0_7, %c512] : memref<4x4x768xbf16, #tpu.memory_space<vmem>>, vector<4x1x128xbf16>
    tpu.vector_store %arg8[%c0_6, %c0_7, %c512], %4 {strides = array<i32>} : memref<4x4x768xbf16, #tpu.memory_space<vmem>>, vector<4x1x128xbf16>,
    %c0_8 = arith.constant 0 : index
    %c0_9 = arith.constant 0 : index
    %c0_10 = arith.constant 0 : index
    %c0_11 = arith.constant 0 : index
    %c0_12 = arith.constant 0 : index
    %6 = vector.load %arg2[%c0_8, %c0_9, %c0_10, %c0_11, %c0_12] : memref<1x4x2x4x128xbf16, #tpu.memory_space<vmem>>, vector<1x4x1x4x128xbf16>
    %7 = vector.shape_cast %6 : vector<1x4x1x4x128xbf16> to vector<4x4x128xbf16>
    %8 = vector.extract_strided_slice %7 {offsets = [0, 0, 0], sizes = [4, 3, 128], strides = [1, 1, 1]} : vector<4x4x128xbf16> to vector<4x3x128xbf16>
    %c0_13 = arith.constant 0 : index
    %c1 = arith.constant 1 : index
    %c256_14 = arith.constant 256 : index
    %9 = vector.load %arg8[%c0_13, %c1, %c256_14] : memref<4x4x768xbf16, #tpu.memory_space<vmem>>, vector<4x3x128xbf16>
    tpu.vector_store %arg8[%c0_13, %c1, %c256_14], %8 {strides = array<i32>} : memref<4x4x768xbf16, #tpu.memory_space<vmem>>, vector<4x3x128xbf16>,
    %c0_15 = arith.constant 0 : index
    %c0_16 = arith.constant 0 : index
    %c384 = arith.constant 384 : index
    %10 = vector.load %arg8[%c0_15, %c0_16, %c384] : memref<4x4x768xbf16, #tpu.memory_space<vmem>>, vector<4x4x128xbf16>
    tpu.vector_store %arg8[%c0_15, %c0_16, %c384], %7 {strides = array<i32>} : memref<4x4x768xbf16, #tpu.memory_space<vmem>>, vector<4x4x128xbf16>,
    %c0_17 = arith.constant 0 : index
    %c0_18 = arith.constant 0 : index
    %c1_19 = arith.constant 1 : index
    %c0_20 = arith.constant 0 : index
    %c0_21 = arith.constant 0 : index
    %11 = vector.load %arg2[%c0_17, %c0_18, %c1_19, %c0_20, %c0_21] : memref<1x4x2x4x128xbf16, #tpu.memory_space<vmem>>, vector<1x4x1x4x128xbf16>
    %12 = vector.shape_cast %11 : vector<1x4x1x4x128xbf16> to vector<4x4x128xbf16>
    %13 = vector.extract_strided_slice %12 {offsets = [0, 0, 0], sizes = [4, 3, 128], strides = [1, 1, 1]} : vector<4x4x128xbf16> to vector<4x3x128xbf16>
    %c0_22 = arith.constant 0 : index
    %c1_23 = arith.constant 1 : index
    %c512_24 = arith.constant 512 : index
    %14 = vector.load %arg8[%c0_22, %c1_23, %c512_24] : memref<4x4x768xbf16, #tpu.memory_space<vmem>>, vector<4x3x128xbf16>
    tpu.vector_store %arg8[%c0_22, %c1_23, %c512_24], %13 {strides = array<i32>} : memref<4x4x768xbf16, #tpu.memory_space<vmem>>, vector<4x3x128xbf16>,
    %c0_25 = arith.constant 0 : index
    %c0_26 = arith.constant 0 : index
    %c640 = arith.constant 640 : index
    %15 = vector.load %arg8[%c0_25, %c0_26, %c640] : memref<4x4x768xbf16, #tpu.memory_space<vmem>>, vector<4x4x128xbf16>
    tpu.vector_store %arg8[%c0_25, %c0_26, %c640], %12 {strides = array<i32>} : memref<4x4x768xbf16, #tpu.memory_space<vmem>>, vector<4x4x128xbf16>,
    %c0_27 = arith.constant 0 : index
    %c0_28 = arith.constant 0 : index
    %c0_29 = arith.constant 0 : index
    %c0_30 = arith.constant 0 : index
    %c0_31 = arith.constant 0 : index
    %16 = vector.load %arg3[%c0_27, %c0_28, %c0_29, %c0_30, %c0_31] : memref<1x1x1x4x128xbf16, #tpu.memory_space<vmem>>, vector<1x1x1x4x128xbf16>
    %17 = vector.shape_cast %16 : vector<1x1x1x4x128xbf16> to vector<1x4x128xbf16>
    %18 = vector.extract_strided_slice %17 {offsets = [0, 0, 0], sizes = [1, 3, 128], strides = [1, 1, 1]} : vector<1x4x128xbf16> to vector<1x3x128xbf16>
    %c0_32 = arith.constant 0 : index
    %c1_33 = arith.constant 1 : index
    %c0_34 = arith.constant 0 : index
    %19 = vector.load %arg8[%c0_32, %c1_33, %c0_34] : memref<4x4x768xbf16, #tpu.memory_space<vmem>>, vector<1x3x128xbf16>
    tpu.vector_store %arg8[%c0_32, %c1_33, %c0_34], %18 {strides = array<i32>} : memref<4x4x768xbf16, #tpu.memory_space<vmem>>, vector<1x3x128xbf16>,
    %c0_35 = arith.constant 0 : index
    %c0_36 = arith.constant 0 : index
    %c128 = arith.constant 128 : index
    %20 = vector.load %arg8[%c0_35, %c0_36, %c128] : memref<4x4x768xbf16, #tpu.memory_space<vmem>>, vector<1x4x128xbf16>
    tpu.vector_store %arg8[%c0_35, %c0_36, %c128], %17 {strides = array<i32>} : memref<4x4x768xbf16, #tpu.memory_space<vmem>>, vector<1x4x128xbf16>,
    %c0_37 = arith.constant 0 : index
    %c0_38 = arith.constant 0 : index
    %c1_39 = arith.constant 1 : index
    %c0_40 = arith.constant 0 : index
    %c0_41 = arith.constant 0 : index
    %21 = vector.load %arg2[%c0_37, %c0_38, %c1_39, %c0_40, %c0_41] : memref<1x4x2x4x128xbf16, #tpu.memory_space<vmem>>, vector<1x3x1x4x128xbf16>
    %22 = vector.shape_cast %21 : vector<1x3x1x4x128xbf16> to vector<3x4x128xbf16>
    %23 = vector.extract_strided_slice %22 {offsets = [0, 0, 0], sizes = [3, 3, 128], strides = [1, 1, 1]} : vector<3x4x128xbf16> to vector<3x3x128xbf16>
    %c1_42 = arith.constant 1 : index
    %c1_43 = arith.constant 1 : index
    %c0_44 = arith.constant 0 : index
    %24 = vector.load %arg8[%c1_42, %c1_43, %c0_44] : memref<4x4x768xbf16, #tpu.memory_space<vmem>>, vector<3x3x128xbf16>
    tpu.vector_store %arg8[%c1_42, %c1_43, %c0_44], %23 {strides = array<i32>} : memref<4x4x768xbf16, #tpu.memory_space<vmem>>, vector<3x3x128xbf16>,
    %c1_45 = arith.constant 1 : index
    %c0_46 = arith.constant 0 : index
    %c128_47 = arith.constant 128 : index
    %25 = vector.load %arg8[%c1_45, %c0_46, %c128_47] : memref<4x4x768xbf16, #tpu.memory_space<vmem>>, vector<3x4x128xbf16>
    tpu.vector_store %arg8[%c1_45, %c0_46, %c128_47], %22 {strides = array<i32>} : memref<4x4x768xbf16, #tpu.memory_space<vmem>>, vector<3x4x128xbf16>,
    %c0_i32 = arith.constant 0 : i32
    %26 = arith.cmpi eq, %arg1, %c0_i32 : i32
    %27 = arith.extui %26 : i1 to i32
    %c0_i32_48 = arith.constant 0 : i32
    %28 = arith.cmpi ne, %27, %c0_i32_48 : i32
    scf.if %28 {
      %cst_63 = arith.constant 0.000000e+00 : bf16
      %45 = vector.broadcast %cst_63 : bf16 to vector<1x4x256xbf16>
      %c0_64 = arith.constant 0 : index
      %c0_65 = arith.constant 0 : index
      %c0_66 = arith.constant 0 : index
      %46 = vector.load %arg8[%c0_64, %c0_65, %c0_66] : memref<4x4x768xbf16, #tpu.memory_space<vmem>>, vector<1x4x256xbf16>
      tpu.vector_store %arg8[%c0_64, %c0_65, %c0_66], %45 {strides = array<i32>} : memref<4x4x768xbf16, #tpu.memory_space<vmem>>, vector<1x4x256xbf16>,
    } else {
    }
    %c0_49 = arith.constant 0 : index
    %c0_50 = arith.constant 0 : index
    %c0_51 = arith.constant 0 : index
    %29 = vector.load %arg8[%c0_49, %c0_50, %c0_51] : memref<4x4x768xbf16, #tpu.memory_space<vmem>>, vector<4x4x768xbf16>
    %30 = vector.shape_cast %29 : vector<4x4x768xbf16> to vector<16x768xbf16>
    %c0_52 = arith.constant 0 : index
    %c0_53 = arith.constant 0 : index
    %31 = vector.load %arg4[%c0_52, %c0_53] : memref<768x64xbf16, #tpu.memory_space<vmem>>, vector<768x64xbf16>
    %cst_54 = arith.constant dense<0.000000e+00> : vector<16x64xf32>
    %32 = tpu.matmul %30, %31, %cst_54 {dimension_numbers = #tpu.dot_dimension_numbers<[1], [0], [0], [1], [0, 0, 1, 1], [], []>} : vector<16x768xbf16>, vector<768x64xbf16>, vector<16x64xf32> -> vector<16x64xf32>
    %c0_55 = arith.constant 0 : index
    %c0_56 = arith.constant 0 : index
    %33 = vector.load %arg5[%c0_55, %c0_56] : memref<1x64xf32, #tpu.memory_space<vmem>>, vector<1x64xf32>
    %34 = vector.broadcast %33 : vector<1x64xf32> to vector<16x64xf32>
    %35 = arith.mulf %32, %34 : vector<16x64xf32>
    %c0_57 = arith.constant 0 : index
    %c0_58 = arith.constant 0 : index
    %36 = vector.load %arg6[%c0_57, %c0_58] : memref<1x64xf32, #tpu.memory_space<vmem>>, vector<1x64xf32>
    %37 = vector.broadcast %36 : vector<1x64xf32> to vector<16x64xf32>
    %38 = arith.addf %35, %37 : vector<16x64xf32>
    %cst_59 = arith.constant 0.000000e+00 : f32
    %39 = vector.broadcast %cst_59 : f32 to vector<16x64xf32>
    %40 = arith.maximumf %38, %39 : vector<16x64xf32>
    %41 = arith.truncf %40 : vector<16x64xf32> to vector<16x64xbf16>
    %c0_60 = arith.constant 0 : index
    %c0_61 = arith.constant 0 : index
    %c0_62 = arith.constant 0 : index
    %42 = vector.load %arg7[%c0_60, %c0_61, %c0_62] : memref<1x16x64xbf16, #tpu.memory_space<vmem>>, vector<1x16x64xbf16>
    %43 = vector.shape_cast %42 : vector<1x16x64xbf16> to vector<16x64xbf16>
    %44 = vector.shape_cast %41 : vector<16x64xbf16> to vector<1x16x64xbf16>
    tpu.vector_store %arg7[%c0_60, %c0_61, %c0_62], %44 {strides = array<i32>} : memref<1x16x64xbf16, #tpu.memory_space<vmem>>, vector<1x16x64xbf16>,
    return
  }
  func.func @transform_0(%arg0: i32, %arg1: i32) -> (i32, i32, i32, i32, i32) {
    %c0_i32 = arith.constant 0 : i32
    %c0_i32_0 = arith.constant 0 : i32
    %c0_i32_1 = arith.constant 0 : i32
    %c0_i32_2 = arith.constant 0 : i32
    return %arg0, %arg1, %c0_i32, %c0_i32_0, %c0_i32_1 : i32, i32, i32, i32, i32
  }
  func.func @transform_1(%arg0: i32, %arg1: i32) -> (i32, i32, i32, i32, i32) {
    %c4_i32 = arith.constant 4 : i32
    %0 = arith.muli %arg1, %c4_i32 : i32
    %c1_i32 = arith.constant 1 : i32
    %1 = arith.subi %0, %c1_i32 : i32
    %c0_i32 = arith.constant 0 : i32
    %2 = arith.maxsi %1, %c0_i32 : i32
    %c1_i32_0 = arith.constant 1 : i32
    %c0_i32_1 = arith.constant 0 : i32
    %c0_i32_2 = arith.constant 0 : i32
    %c0_i32_3 = arith.constant 0 : i32
    return %arg0, %2, %c1_i32_0, %c0_i32_1, %c0_i32_2 : i32, i32, i32, i32, i32
  }
  func.func @transform_2(%arg0: i32, %arg1: i32) -> (i32, i32) {
    %c0_i32 = arith.constant 0 : i32
    %c0_i32_0 = arith.constant 0 : i32
    %c0_i32_1 = arith.constant 0 : i32
    return %c0_i32, %c0_i32_0 : i32, i32
  }
  func.func @transform_3(%arg0: i32, %arg1: i32) -> (i32, i32) {
    %c0_i32 = arith.constant 0 : i32
    %c0_i32_0 = arith.constant 0 : i32
    %c0_i32_1 = arith.constant 0 : i32
    return %c0_i32, %c0_i32_0 : i32, i32
  }
  func.func @transform_4(%arg0: i32, %arg1: i32) -> (i32, i32) {
    %c0_i32 = arith.constant 0 : i32
    %c0_i32_0 = arith.constant 0 : i32
    %c0_i32_1 = arith.constant 0 : i32
    return %c0_i32, %c0_i32_0 : i32, i32
  }
  func.func @transform_5(%arg0: i32, %arg1: i32) -> (i32, i32, i32) {
    %c0_i32 = arith.constant 0 : i32
    %c0_i32_0 = arith.constant 0 : i32
    return %arg0, %arg1, %c0_i32 : i32, i32, i32
  }
}

module attributes {stable_mosaic.version = 11 : i64} {
  func.func @kernel(%arg0: i32, %arg1: i32, %arg2: memref<1x4x4x64xbf16, #tpu.memory_space<vmem>>, %arg3: memref<1x1x4x64xbf16, #tpu.memory_space<vmem>>, %arg4: memref<1x1x4x64xbf16, #tpu.memory_space<vmem>>, %arg5: memref<3x192x64xbf16, #tpu.memory_space<vmem>>, %arg6: memref<1x64xf32, #tpu.memory_space<vmem>>, %arg7: memref<1x64xf32, #tpu.memory_space<vmem>>, %arg8: memref<1x16x64xbf16, #tpu.memory_space<vmem>>, %arg9: memref<6x4x192xbf16, #tpu.memory_space<vmem>>) attributes {dimension_semantics = [#tpu.dimension_semantics<parallel>, #tpu.dimension_semantics<parallel>], iteration_bounds = array<i64: 2, 1>, scalar_prefetch = 0 : i64, scratch_operands = 1 : i64, tpu.core_type = #tpu.core_type<tc>, window_params = [{transform_indices = @transform_0, window_bounds = array<i64: 1, 4, 4, 64>}, {transform_indices = @transform_1, window_bounds = array<i64: 1, 1, 4, 64>}, {transform_indices = @transform_2, window_bounds = array<i64: 1, 1, 4, 64>}, {pipeline_mode = #tpu.pipeline_mode<synchronous>, transform_indices = @transform_3, window_bounds = array<i64: 3, 192, 64>}, {pipeline_mode = #tpu.pipeline_mode<synchronous>, transform_indices = @transform_4, window_bounds = array<i64: 1, 64>}, {pipeline_mode = #tpu.pipeline_mode<synchronous>, transform_indices = @transform_5, window_bounds = array<i64: 1, 64>}, {transform_indices = @transform_6, window_bounds = array<i64: 1, 16, 64>}]} {
    %cst = arith.constant 0.000000e+00 : bf16
    %0 = vector.broadcast %cst : bf16 to vector<6x1x64xbf16>
    %c0 = arith.constant 0 : index
    %c0_0 = arith.constant 0 : index
    %c0_1 = arith.constant 0 : index
    %1 = vector.load %arg9[%c0, %c0_0, %c0_1] : memref<6x4x192xbf16, #tpu.memory_space<vmem>>, vector<6x1x64xbf16>
    tpu.vector_store %arg9[%c0, %c0_0, %c0_1], %0 {strides = array<i32>} : memref<6x4x192xbf16, #tpu.memory_space<vmem>>, vector<6x1x64xbf16>,
    %cst_2 = arith.constant 0.000000e+00 : bf16
    %2 = vector.broadcast %cst_2 : bf16 to vector<6x1x64xbf16>
    %c0_3 = arith.constant 0 : index
    %c3 = arith.constant 3 : index
    %c128 = arith.constant 128 : index
    %3 = vector.load %arg9[%c0_3, %c3, %c128] : memref<6x4x192xbf16, #tpu.memory_space<vmem>>, vector<6x1x64xbf16>
    tpu.vector_store %arg9[%c0_3, %c3, %c128], %2 {strides = array<i32>} : memref<6x4x192xbf16, #tpu.memory_space<vmem>>, vector<6x1x64xbf16>,
    %c0_4 = arith.constant 0 : index
    %c0_5 = arith.constant 0 : index
    %c0_6 = arith.constant 0 : index
    %c0_7 = arith.constant 0 : index
    %4 = vector.load %arg2[%c0_4, %c0_5, %c0_6, %c0_7] : memref<1x4x4x64xbf16, #tpu.memory_space<vmem>>, vector<1x4x4x64xbf16>
    %5 = vector.shape_cast %4 : vector<1x4x4x64xbf16> to vector<4x4x64xbf16>
    %6 = vector.extract_strided_slice %5 {offsets = [0, 0, 0], sizes = [4, 3, 64], strides = [1, 1, 1]} : vector<4x4x64xbf16> to vector<4x3x64xbf16>
    %c1 = arith.constant 1 : index
    %c1_8 = arith.constant 1 : index
    %c0_9 = arith.constant 0 : index
    %7 = vector.load %arg9[%c1, %c1_8, %c0_9] : memref<6x4x192xbf16, #tpu.memory_space<vmem>>, vector<4x3x64xbf16>
    tpu.vector_store %arg9[%c1, %c1_8, %c0_9], %6 {strides = array<i32>} : memref<6x4x192xbf16, #tpu.memory_space<vmem>>, vector<4x3x64xbf16>,
    %8 = vector.extract_strided_slice %5 {offsets = [0, 1, 0], sizes = [4, 3, 64], strides = [1, 1, 1]} : vector<4x4x64xbf16> to vector<4x3x64xbf16>
    %c1_10 = arith.constant 1 : index
    %c0_11 = arith.constant 0 : index
    %c128_12 = arith.constant 128 : index
    %9 = vector.load %arg9[%c1_10, %c0_11, %c128_12] : memref<6x4x192xbf16, #tpu.memory_space<vmem>>, vector<4x3x64xbf16>
    tpu.vector_store %arg9[%c1_10, %c0_11, %c128_12], %8 {strides = array<i32>} : memref<6x4x192xbf16, #tpu.memory_space<vmem>>, vector<4x3x64xbf16>,
    %c1_13 = arith.constant 1 : index
    %c0_14 = arith.constant 0 : index
    %c64 = arith.constant 64 : index
    %10 = vector.load %arg9[%c1_13, %c0_14, %c64] : memref<6x4x192xbf16, #tpu.memory_space<vmem>>, vector<4x4x64xbf16>
    tpu.vector_store %arg9[%c1_13, %c0_14, %c64], %5 {strides = array<i32>} : memref<6x4x192xbf16, #tpu.memory_space<vmem>>, vector<4x4x64xbf16>,
    %c0_15 = arith.constant 0 : index
    %c0_16 = arith.constant 0 : index
    %c0_17 = arith.constant 0 : index
    %c0_18 = arith.constant 0 : index
    %11 = vector.load %arg3[%c0_15, %c0_16, %c0_17, %c0_18] : memref<1x1x4x64xbf16, #tpu.memory_space<vmem>>, vector<1x1x4x64xbf16>
    %12 = vector.shape_cast %11 : vector<1x1x4x64xbf16> to vector<1x4x64xbf16>
    %13 = vector.extract_strided_slice %12 {offsets = [0, 0, 0], sizes = [1, 3, 64], strides = [1, 1, 1]} : vector<1x4x64xbf16> to vector<1x3x64xbf16>
    %c0_19 = arith.constant 0 : index
    %c1_20 = arith.constant 1 : index
    %c0_21 = arith.constant 0 : index
    %14 = vector.load %arg9[%c0_19, %c1_20, %c0_21] : memref<6x4x192xbf16, #tpu.memory_space<vmem>>, vector<1x3x64xbf16>
    tpu.vector_store %arg9[%c0_19, %c1_20, %c0_21], %13 {strides = array<i32>} : memref<6x4x192xbf16, #tpu.memory_space<vmem>>, vector<1x3x64xbf16>,
    %15 = vector.extract_strided_slice %12 {offsets = [0, 1, 0], sizes = [1, 3, 64], strides = [1, 1, 1]} : vector<1x4x64xbf16> to vector<1x3x64xbf16>
    %c0_22 = arith.constant 0 : index
    %c0_23 = arith.constant 0 : index
    %c128_24 = arith.constant 128 : index
    %16 = vector.load %arg9[%c0_22, %c0_23, %c128_24] : memref<6x4x192xbf16, #tpu.memory_space<vmem>>, vector<1x3x64xbf16>
    tpu.vector_store %arg9[%c0_22, %c0_23, %c128_24], %15 {strides = array<i32>} : memref<6x4x192xbf16, #tpu.memory_space<vmem>>, vector<1x3x64xbf16>,
    %c0_25 = arith.constant 0 : index
    %c0_26 = arith.constant 0 : index
    %c64_27 = arith.constant 64 : index
    %17 = vector.load %arg9[%c0_25, %c0_26, %c64_27] : memref<6x4x192xbf16, #tpu.memory_space<vmem>>, vector<1x4x64xbf16>
    tpu.vector_store %arg9[%c0_25, %c0_26, %c64_27], %12 {strides = array<i32>} : memref<6x4x192xbf16, #tpu.memory_space<vmem>>, vector<1x4x64xbf16>,
    %c0_28 = arith.constant 0 : index
    %c0_29 = arith.constant 0 : index
    %c0_30 = arith.constant 0 : index
    %c0_31 = arith.constant 0 : index
    %18 = vector.load %arg4[%c0_28, %c0_29, %c0_30, %c0_31] : memref<1x1x4x64xbf16, #tpu.memory_space<vmem>>, vector<1x1x4x64xbf16>
    %19 = vector.shape_cast %18 : vector<1x1x4x64xbf16> to vector<1x4x64xbf16>
    %20 = vector.extract_strided_slice %19 {offsets = [0, 0, 0], sizes = [1, 3, 64], strides = [1, 1, 1]} : vector<1x4x64xbf16> to vector<1x3x64xbf16>
    %c5 = arith.constant 5 : index
    %c1_32 = arith.constant 1 : index
    %c0_33 = arith.constant 0 : index
    %21 = vector.load %arg9[%c5, %c1_32, %c0_33] : memref<6x4x192xbf16, #tpu.memory_space<vmem>>, vector<1x3x64xbf16>
    tpu.vector_store %arg9[%c5, %c1_32, %c0_33], %20 {strides = array<i32>} : memref<6x4x192xbf16, #tpu.memory_space<vmem>>, vector<1x3x64xbf16>,
    %22 = vector.extract_strided_slice %19 {offsets = [0, 1, 0], sizes = [1, 3, 64], strides = [1, 1, 1]} : vector<1x4x64xbf16> to vector<1x3x64xbf16>
    %c5_34 = arith.constant 5 : index
    %c0_35 = arith.constant 0 : index
    %c128_36 = arith.constant 128 : index
    %23 = vector.load %arg9[%c5_34, %c0_35, %c128_36] : memref<6x4x192xbf16, #tpu.memory_space<vmem>>, vector<1x3x64xbf16>
    tpu.vector_store %arg9[%c5_34, %c0_35, %c128_36], %22 {strides = array<i32>} : memref<6x4x192xbf16, #tpu.memory_space<vmem>>, vector<1x3x64xbf16>,
    %c5_37 = arith.constant 5 : index
    %c0_38 = arith.constant 0 : index
    %c64_39 = arith.constant 64 : index
    %24 = vector.load %arg9[%c5_37, %c0_38, %c64_39] : memref<6x4x192xbf16, #tpu.memory_space<vmem>>, vector<1x4x64xbf16>
    tpu.vector_store %arg9[%c5_37, %c0_38, %c64_39], %19 {strides = array<i32>} : memref<6x4x192xbf16, #tpu.memory_space<vmem>>, vector<1x4x64xbf16>,
    %c0_i32 = arith.constant 0 : i32
    %25 = arith.cmpi eq, %arg1, %c0_i32 : i32
    %26 = arith.extui %25 : i1 to i32
    %c0_i32_40 = arith.constant 0 : i32
    %27 = arith.cmpi ne, %26, %c0_i32_40 : i32
    scf.if %27 {
      %cst_71 = arith.constant 0.000000e+00 : bf16
      %60 = vector.broadcast %cst_71 : bf16 to vector<1x4x192xbf16>
      %c0_72 = arith.constant 0 : index
      %c0_73 = arith.constant 0 : index
      %c0_74 = arith.constant 0 : index
      %61 = vector.load %arg9[%c0_72, %c0_73, %c0_74] : memref<6x4x192xbf16, #tpu.memory_space<vmem>>, vector<1x4x192xbf16>
      tpu.vector_store %arg9[%c0_72, %c0_73, %c0_74], %60 {strides = array<i32>} : memref<6x4x192xbf16, #tpu.memory_space<vmem>>, vector<1x4x192xbf16>,
    } else {
    }
    %c0_i32_41 = arith.constant 0 : i32
    %28 = arith.cmpi eq, %arg1, %c0_i32_41 : i32
    %29 = arith.extui %28 : i1 to i32
    %c0_i32_42 = arith.constant 0 : i32
    %30 = arith.cmpi ne, %29, %c0_i32_42 : i32
    scf.if %30 {
      %cst_71 = arith.constant 0.000000e+00 : bf16
      %60 = vector.broadcast %cst_71 : bf16 to vector<1x4x192xbf16>
      %c5_72 = arith.constant 5 : index
      %c0_73 = arith.constant 0 : index
      %c0_74 = arith.constant 0 : index
      %61 = vector.load %arg9[%c5_72, %c0_73, %c0_74] : memref<6x4x192xbf16, #tpu.memory_space<vmem>>, vector<1x4x192xbf16>
      tpu.vector_store %arg9[%c5_72, %c0_73, %c0_74], %60 {strides = array<i32>} : memref<6x4x192xbf16, #tpu.memory_space<vmem>>, vector<1x4x192xbf16>,
    } else {
    }
    %c0_43 = arith.constant 0 : index
    %c0_44 = arith.constant 0 : index
    %c0_45 = arith.constant 0 : index
    %31 = vector.load %arg9[%c0_43, %c0_44, %c0_45] : memref<6x4x192xbf16, #tpu.memory_space<vmem>>, vector<4x4x192xbf16>
    %32 = vector.shape_cast %31 : vector<4x4x192xbf16> to vector<16x192xbf16>
    %c0_46 = arith.constant 0 : index
    %c0_47 = arith.constant 0 : index
    %c0_48 = arith.constant 0 : index
    %33 = vector.load %arg5[%c0_46, %c0_47, %c0_48] : memref<3x192x64xbf16, #tpu.memory_space<vmem>>, vector<1x192x64xbf16>
    %34 = vector.shape_cast %33 : vector<1x192x64xbf16> to vector<192x64xbf16>
    %cst_49 = arith.constant dense<0.000000e+00> : vector<16x64xf32>
    %35 = tpu.matmul %32, %34, %cst_49 {dimension_numbers = #tpu.dot_dimension_numbers<[1], [0], [0], [1], [0, 0, 1, 1], [], []>} : vector<16x192xbf16>, vector<192x64xbf16>, vector<16x64xf32> -> vector<16x64xf32>
    %c1_50 = arith.constant 1 : index
    %c0_51 = arith.constant 0 : index
    %c0_52 = arith.constant 0 : index
    %36 = vector.load %arg9[%c1_50, %c0_51, %c0_52] : memref<6x4x192xbf16, #tpu.memory_space<vmem>>, vector<4x4x192xbf16>
    %37 = vector.shape_cast %36 : vector<4x4x192xbf16> to vector<16x192xbf16>
    %c1_53 = arith.constant 1 : index
    %c0_54 = arith.constant 0 : index
    %c0_55 = arith.constant 0 : index
    %38 = vector.load %arg5[%c1_53, %c0_54, %c0_55] : memref<3x192x64xbf16, #tpu.memory_space<vmem>>, vector<1x192x64xbf16>
    %39 = vector.shape_cast %38 : vector<1x192x64xbf16> to vector<192x64xbf16>
    %cst_56 = arith.constant dense<0.000000e+00> : vector<16x64xf32>
    %40 = tpu.matmul %37, %39, %cst_56 {dimension_numbers = #tpu.dot_dimension_numbers<[1], [0], [0], [1], [0, 0, 1, 1], [], []>} : vector<16x192xbf16>, vector<192x64xbf16>, vector<16x64xf32> -> vector<16x64xf32>
    %41 = arith.addf %35, %40 : vector<16x64xf32>
    %c2 = arith.constant 2 : index
    %c0_57 = arith.constant 0 : index
    %c0_58 = arith.constant 0 : index
    %42 = vector.load %arg9[%c2, %c0_57, %c0_58] : memref<6x4x192xbf16, #tpu.memory_space<vmem>>, vector<4x4x192xbf16>
    %43 = vector.shape_cast %42 : vector<4x4x192xbf16> to vector<16x192xbf16>
    %c2_59 = arith.constant 2 : index
    %c0_60 = arith.constant 0 : index
    %c0_61 = arith.constant 0 : index
    %44 = vector.load %arg5[%c2_59, %c0_60, %c0_61] : memref<3x192x64xbf16, #tpu.memory_space<vmem>>, vector<1x192x64xbf16>
    %45 = vector.shape_cast %44 : vector<1x192x64xbf16> to vector<192x64xbf16>
    %cst_62 = arith.constant dense<0.000000e+00> : vector<16x64xf32>
    %46 = tpu.matmul %43, %45, %cst_62 {dimension_numbers = #tpu.dot_dimension_numbers<[1], [0], [0], [1], [0, 0, 1, 1], [], []>} : vector<16x192xbf16>, vector<192x64xbf16>, vector<16x64xf32> -> vector<16x64xf32>
    %47 = arith.addf %41, %46 : vector<16x64xf32>
    %c0_63 = arith.constant 0 : index
    %c0_64 = arith.constant 0 : index
    %48 = vector.load %arg6[%c0_63, %c0_64] : memref<1x64xf32, #tpu.memory_space<vmem>>, vector<1x64xf32>
    %49 = vector.broadcast %48 : vector<1x64xf32> to vector<16x64xf32>
    %50 = arith.mulf %47, %49 : vector<16x64xf32>
    %c0_65 = arith.constant 0 : index
    %c0_66 = arith.constant 0 : index
    %51 = vector.load %arg7[%c0_65, %c0_66] : memref<1x64xf32, #tpu.memory_space<vmem>>, vector<1x64xf32>
    %52 = vector.broadcast %51 : vector<1x64xf32> to vector<16x64xf32>
    %53 = arith.addf %50, %52 : vector<16x64xf32>
    %cst_67 = arith.constant 0.000000e+00 : f32
    %54 = vector.broadcast %cst_67 : f32 to vector<16x64xf32>
    %55 = arith.maximumf %53, %54 : vector<16x64xf32>
    %56 = arith.truncf %55 : vector<16x64xf32> to vector<16x64xbf16>
    %c0_68 = arith.constant 0 : index
    %c0_69 = arith.constant 0 : index
    %c0_70 = arith.constant 0 : index
    %57 = vector.load %arg8[%c0_68, %c0_69, %c0_70] : memref<1x16x64xbf16, #tpu.memory_space<vmem>>, vector<1x16x64xbf16>
    %58 = vector.shape_cast %57 : vector<1x16x64xbf16> to vector<16x64xbf16>
    %59 = vector.shape_cast %56 : vector<16x64xbf16> to vector<1x16x64xbf16>
    tpu.vector_store %arg8[%c0_68, %c0_69, %c0_70], %59 {strides = array<i32>} : memref<1x16x64xbf16, #tpu.memory_space<vmem>>, vector<1x16x64xbf16>,
    return
  }
  func.func @transform_0(%arg0: i32, %arg1: i32) -> (i32, i32, i32, i32) {
    %c0_i32 = arith.constant 0 : i32
    %c0_i32_0 = arith.constant 0 : i32
    %c0_i32_1 = arith.constant 0 : i32
    return %arg0, %arg1, %c0_i32, %c0_i32_0 : i32, i32, i32, i32
  }
  func.func @transform_1(%arg0: i32, %arg1: i32) -> (i32, i32, i32, i32) {
    %c4_i32 = arith.constant 4 : i32
    %0 = arith.muli %arg1, %c4_i32 : i32
    %c1_i32 = arith.constant 1 : i32
    %1 = arith.subi %0, %c1_i32 : i32
    %c0_i32 = arith.constant 0 : i32
    %2 = arith.maxsi %1, %c0_i32 : i32
    %c0_i32_0 = arith.constant 0 : i32
    %c0_i32_1 = arith.constant 0 : i32
    %c0_i32_2 = arith.constant 0 : i32
    return %arg0, %2, %c0_i32_0, %c0_i32_1 : i32, i32, i32, i32
  }
  func.func @transform_2(%arg0: i32, %arg1: i32) -> (i32, i32, i32, i32) {
    %c1_i32 = arith.constant 1 : i32
    %0 = arith.addi %arg1, %c1_i32 : i32
    %c4_i32 = arith.constant 4 : i32
    %1 = arith.muli %0, %c4_i32 : i32
    %c3_i32 = arith.constant 3 : i32
    %2 = arith.minsi %1, %c3_i32 : i32
    %c0_i32 = arith.constant 0 : i32
    %c0_i32_0 = arith.constant 0 : i32
    %c0_i32_1 = arith.constant 0 : i32
    return %arg0, %2, %c0_i32, %c0_i32_0 : i32, i32, i32, i32
  }
  func.func @transform_3(%arg0: i32, %arg1: i32) -> (i32, i32, i32) {
    %c0_i32 = arith.constant 0 : i32
    %c0_i32_0 = arith.constant 0 : i32
    %c0_i32_1 = arith.constant 0 : i32
    %c0_i32_2 = arith.constant 0 : i32
    return %c0_i32, %c0_i32_0, %c0_i32_1 : i32, i32, i32
  }
  func.func @transform_4(%arg0: i32, %arg1: i32) -> (i32, i32) {
    %c0_i32 = arith.constant 0 : i32
    %c0_i32_0 = arith.constant 0 : i32
    %c0_i32_1 = arith.constant 0 : i32
    return %c0_i32, %c0_i32_0 : i32, i32
  }
  func.func @transform_5(%arg0: i32, %arg1: i32) -> (i32, i32) {
    %c0_i32 = arith.constant 0 : i32
    %c0_i32_0 = arith.constant 0 : i32
    %c0_i32_1 = arith.constant 0 : i32
    return %c0_i32, %c0_i32_0 : i32, i32
  }
  func.func @transform_6(%arg0: i32, %arg1: i32) -> (i32, i32, i32) {
    %c0_i32 = arith.constant 0 : i32
    %c0_i32_0 = arith.constant 0 : i32
    return %arg0, %arg1, %c0_i32 : i32, i32, i32
  }
}

module attributes {stable_mosaic.version = 11 : i64} {
  func.func @kernel(%arg0: i32, %arg1: i32, %arg2: memref<1x2x2x128xbf16, #tpu.memory_space<vmem>>, %arg3: memref<1x1x2x128xbf16, #tpu.memory_space<vmem>>, %arg4: memref<1x1x2x128xbf16, #tpu.memory_space<vmem>>, %arg5: memref<3x384x128xbf16, #tpu.memory_space<vmem>>, %arg6: memref<1x128xf32, #tpu.memory_space<vmem>>, %arg7: memref<1x128xf32, #tpu.memory_space<vmem>>, %arg8: memref<1x4x128xbf16, #tpu.memory_space<vmem>>, %arg9: memref<4x2x384xbf16, #tpu.memory_space<vmem>>) attributes {dimension_semantics = [#tpu.dimension_semantics<parallel>, #tpu.dimension_semantics<parallel>], iteration_bounds = array<i64: 2, 1>, scalar_prefetch = 0 : i64, scratch_operands = 1 : i64, tpu.core_type = #tpu.core_type<tc>, window_params = [{transform_indices = @transform_0, window_bounds = array<i64: 1, 2, 2, 128>}, {transform_indices = @transform_1, window_bounds = array<i64: 1, 1, 2, 128>}, {transform_indices = @transform_2, window_bounds = array<i64: 1, 1, 2, 128>}, {pipeline_mode = #tpu.pipeline_mode<synchronous>, transform_indices = @transform_3, window_bounds = array<i64: 3, 384, 128>}, {pipeline_mode = #tpu.pipeline_mode<synchronous>, transform_indices = @transform_4, window_bounds = array<i64: 1, 128>}, {pipeline_mode = #tpu.pipeline_mode<synchronous>, transform_indices = @transform_5, window_bounds = array<i64: 1, 128>}, {transform_indices = @transform_6, window_bounds = array<i64: 1, 4, 128>}]} {
    %cst = arith.constant 0.000000e+00 : bf16
    %0 = vector.broadcast %cst : bf16 to vector<4x1x128xbf16>
    %c0 = arith.constant 0 : index
    %c0_0 = arith.constant 0 : index
    %c0_1 = arith.constant 0 : index
    %1 = vector.load %arg9[%c0, %c0_0, %c0_1] : memref<4x2x384xbf16, #tpu.memory_space<vmem>>, vector<4x1x128xbf16>
    tpu.vector_store %arg9[%c0, %c0_0, %c0_1], %0 {strides = array<i32>} : memref<4x2x384xbf16, #tpu.memory_space<vmem>>, vector<4x1x128xbf16>,
    %cst_2 = arith.constant 0.000000e+00 : bf16
    %2 = vector.broadcast %cst_2 : bf16 to vector<4x1x128xbf16>
    %c0_3 = arith.constant 0 : index
    %c1 = arith.constant 1 : index
    %c256 = arith.constant 256 : index
    %3 = vector.load %arg9[%c0_3, %c1, %c256] : memref<4x2x384xbf16, #tpu.memory_space<vmem>>, vector<4x1x128xbf16>
    tpu.vector_store %arg9[%c0_3, %c1, %c256], %2 {strides = array<i32>} : memref<4x2x384xbf16, #tpu.memory_space<vmem>>, vector<4x1x128xbf16>,
    %c0_4 = arith.constant 0 : index
    %c0_5 = arith.constant 0 : index
    %c0_6 = arith.constant 0 : index
    %c0_7 = arith.constant 0 : index
    %4 = vector.load %arg2[%c0_4, %c0_5, %c0_6, %c0_7] : memref<1x2x2x128xbf16, #tpu.memory_space<vmem>>, vector<1x2x2x128xbf16>
    %5 = vector.shape_cast %4 : vector<1x2x2x128xbf16> to vector<2x2x128xbf16>
    %6 = vector.extract_strided_slice %5 {offsets = [0, 0, 0], sizes = [2, 1, 128], strides = [1, 1, 1]} : vector<2x2x128xbf16> to vector<2x1x128xbf16>
    %c1_8 = arith.constant 1 : index
    %c1_9 = arith.constant 1 : index
    %c0_10 = arith.constant 0 : index
    %7 = vector.load %arg9[%c1_8, %c1_9, %c0_10] : memref<4x2x384xbf16, #tpu.memory_space<vmem>>, vector<2x1x128xbf16>
    tpu.vector_store %arg9[%c1_8, %c1_9, %c0_10], %6 {strides = array<i32>} : memref<4x2x384xbf16, #tpu.memory_space<vmem>>, vector<2x1x128xbf16>,
    %8 = vector.extract_strided_slice %5 {offsets = [0, 1, 0], sizes = [2, 1, 128], strides = [1, 1, 1]} : vector<2x2x128xbf16> to vector<2x1x128xbf16>
    %c1_11 = arith.constant 1 : index
    %c0_12 = arith.constant 0 : index
    %c256_13 = arith.constant 256 : index
    %9 = vector.load %arg9[%c1_11, %c0_12, %c256_13] : memref<4x2x384xbf16, #tpu.memory_space<vmem>>, vector<2x1x128xbf16>
    tpu.vector_store %arg9[%c1_11, %c0_12, %c256_13], %8 {strides = array<i32>} : memref<4x2x384xbf16, #tpu.memory_space<vmem>>, vector<2x1x128xbf16>,
    %c1_14 = arith.constant 1 : index
    %c0_15 = arith.constant 0 : index
    %c128 = arith.constant 128 : index
    %10 = vector.load %arg9[%c1_14, %c0_15, %c128] : memref<4x2x384xbf16, #tpu.memory_space<vmem>>, vector<2x2x128xbf16>
    tpu.vector_store %arg9[%c1_14, %c0_15, %c128], %5 {strides = array<i32>} : memref<4x2x384xbf16, #tpu.memory_space<vmem>>, vector<2x2x128xbf16>,
    %c0_16 = arith.constant 0 : index
    %c0_17 = arith.constant 0 : index
    %c0_18 = arith.constant 0 : index
    %c0_19 = arith.constant 0 : index
    %11 = vector.load %arg3[%c0_16, %c0_17, %c0_18, %c0_19] : memref<1x1x2x128xbf16, #tpu.memory_space<vmem>>, vector<1x1x2x128xbf16>
    %12 = vector.shape_cast %11 : vector<1x1x2x128xbf16> to vector<1x2x128xbf16>
    %13 = vector.extract_strided_slice %12 {offsets = [0, 0, 0], sizes = [1, 1, 128], strides = [1, 1, 1]} : vector<1x2x128xbf16> to vector<1x1x128xbf16>
    %c0_20 = arith.constant 0 : index
    %c1_21 = arith.constant 1 : index
    %c0_22 = arith.constant 0 : index
    %14 = vector.load %arg9[%c0_20, %c1_21, %c0_22] : memref<4x2x384xbf16, #tpu.memory_space<vmem>>, vector<1x1x128xbf16>
    tpu.vector_store %arg9[%c0_20, %c1_21, %c0_22], %13 {strides = array<i32>} : memref<4x2x384xbf16, #tpu.memory_space<vmem>>, vector<1x1x128xbf16>,
    %15 = vector.extract_strided_slice %12 {offsets = [0, 1, 0], sizes = [1, 1, 128], strides = [1, 1, 1]} : vector<1x2x128xbf16> to vector<1x1x128xbf16>
    %c0_23 = arith.constant 0 : index
    %c0_24 = arith.constant 0 : index
    %c256_25 = arith.constant 256 : index
    %16 = vector.load %arg9[%c0_23, %c0_24, %c256_25] : memref<4x2x384xbf16, #tpu.memory_space<vmem>>, vector<1x1x128xbf16>
    tpu.vector_store %arg9[%c0_23, %c0_24, %c256_25], %15 {strides = array<i32>} : memref<4x2x384xbf16, #tpu.memory_space<vmem>>, vector<1x1x128xbf16>,
    %c0_26 = arith.constant 0 : index
    %c0_27 = arith.constant 0 : index
    %c128_28 = arith.constant 128 : index
    %17 = vector.load %arg9[%c0_26, %c0_27, %c128_28] : memref<4x2x384xbf16, #tpu.memory_space<vmem>>, vector<1x2x128xbf16>
    tpu.vector_store %arg9[%c0_26, %c0_27, %c128_28], %12 {strides = array<i32>} : memref<4x2x384xbf16, #tpu.memory_space<vmem>>, vector<1x2x128xbf16>,
    %c0_29 = arith.constant 0 : index
    %c0_30 = arith.constant 0 : index
    %c0_31 = arith.constant 0 : index
    %c0_32 = arith.constant 0 : index
    %18 = vector.load %arg4[%c0_29, %c0_30, %c0_31, %c0_32] : memref<1x1x2x128xbf16, #tpu.memory_space<vmem>>, vector<1x1x2x128xbf16>
    %19 = vector.shape_cast %18 : vector<1x1x2x128xbf16> to vector<1x2x128xbf16>
    %20 = vector.extract_strided_slice %19 {offsets = [0, 0, 0], sizes = [1, 1, 128], strides = [1, 1, 1]} : vector<1x2x128xbf16> to vector<1x1x128xbf16>
    %c3 = arith.constant 3 : index
    %c1_33 = arith.constant 1 : index
    %c0_34 = arith.constant 0 : index
    %21 = vector.load %arg9[%c3, %c1_33, %c0_34] : memref<4x2x384xbf16, #tpu.memory_space<vmem>>, vector<1x1x128xbf16>
    tpu.vector_store %arg9[%c3, %c1_33, %c0_34], %20 {strides = array<i32>} : memref<4x2x384xbf16, #tpu.memory_space<vmem>>, vector<1x1x128xbf16>,
    %22 = vector.extract_strided_slice %19 {offsets = [0, 1, 0], sizes = [1, 1, 128], strides = [1, 1, 1]} : vector<1x2x128xbf16> to vector<1x1x128xbf16>
    %c3_35 = arith.constant 3 : index
    %c0_36 = arith.constant 0 : index
    %c256_37 = arith.constant 256 : index
    %23 = vector.load %arg9[%c3_35, %c0_36, %c256_37] : memref<4x2x384xbf16, #tpu.memory_space<vmem>>, vector<1x1x128xbf16>
    tpu.vector_store %arg9[%c3_35, %c0_36, %c256_37], %22 {strides = array<i32>} : memref<4x2x384xbf16, #tpu.memory_space<vmem>>, vector<1x1x128xbf16>,
    %c3_38 = arith.constant 3 : index
    %c0_39 = arith.constant 0 : index
    %c128_40 = arith.constant 128 : index
    %24 = vector.load %arg9[%c3_38, %c0_39, %c128_40] : memref<4x2x384xbf16, #tpu.memory_space<vmem>>, vector<1x2x128xbf16>
    tpu.vector_store %arg9[%c3_38, %c0_39, %c128_40], %19 {strides = array<i32>} : memref<4x2x384xbf16, #tpu.memory_space<vmem>>, vector<1x2x128xbf16>,
    %c0_i32 = arith.constant 0 : i32
    %25 = arith.cmpi eq, %arg1, %c0_i32 : i32
    %26 = arith.extui %25 : i1 to i32
    %c0_i32_41 = arith.constant 0 : i32
    %27 = arith.cmpi ne, %26, %c0_i32_41 : i32
    scf.if %27 {
      %cst_72 = arith.constant 0.000000e+00 : bf16
      %60 = vector.broadcast %cst_72 : bf16 to vector<1x2x384xbf16>
      %c0_73 = arith.constant 0 : index
      %c0_74 = arith.constant 0 : index
      %c0_75 = arith.constant 0 : index
      %61 = vector.load %arg9[%c0_73, %c0_74, %c0_75] : memref<4x2x384xbf16, #tpu.memory_space<vmem>>, vector<1x2x384xbf16>
      tpu.vector_store %arg9[%c0_73, %c0_74, %c0_75], %60 {strides = array<i32>} : memref<4x2x384xbf16, #tpu.memory_space<vmem>>, vector<1x2x384xbf16>,
    } else {
    }
    %c0_i32_42 = arith.constant 0 : i32
    %28 = arith.cmpi eq, %arg1, %c0_i32_42 : i32
    %29 = arith.extui %28 : i1 to i32
    %c0_i32_43 = arith.constant 0 : i32
    %30 = arith.cmpi ne, %29, %c0_i32_43 : i32
    scf.if %30 {
      %cst_72 = arith.constant 0.000000e+00 : bf16
      %60 = vector.broadcast %cst_72 : bf16 to vector<1x2x384xbf16>
      %c3_73 = arith.constant 3 : index
      %c0_74 = arith.constant 0 : index
      %c0_75 = arith.constant 0 : index
      %61 = vector.load %arg9[%c3_73, %c0_74, %c0_75] : memref<4x2x384xbf16, #tpu.memory_space<vmem>>, vector<1x2x384xbf16>
      tpu.vector_store %arg9[%c3_73, %c0_74, %c0_75], %60 {strides = array<i32>} : memref<4x2x384xbf16, #tpu.memory_space<vmem>>, vector<1x2x384xbf16>,
    } else {
    }
    %c0_44 = arith.constant 0 : index
    %c0_45 = arith.constant 0 : index
    %c0_46 = arith.constant 0 : index
    %31 = vector.load %arg9[%c0_44, %c0_45, %c0_46] : memref<4x2x384xbf16, #tpu.memory_space<vmem>>, vector<2x2x384xbf16>
    %32 = vector.shape_cast %31 : vector<2x2x384xbf16> to vector<4x384xbf16>
    %c0_47 = arith.constant 0 : index
    %c0_48 = arith.constant 0 : index
    %c0_49 = arith.constant 0 : index
    %33 = vector.load %arg5[%c0_47, %c0_48, %c0_49] : memref<3x384x128xbf16, #tpu.memory_space<vmem>>, vector<1x384x128xbf16>
    %34 = vector.shape_cast %33 : vector<1x384x128xbf16> to vector<384x128xbf16>
    %cst_50 = arith.constant dense<0.000000e+00> : vector<4x128xf32>
    %35 = tpu.matmul %32, %34, %cst_50 {dimension_numbers = #tpu.dot_dimension_numbers<[1], [0], [0], [1], [0, 0, 1, 1], [], []>} : vector<4x384xbf16>, vector<384x128xbf16>, vector<4x128xf32> -> vector<4x128xf32>
    %c1_51 = arith.constant 1 : index
    %c0_52 = arith.constant 0 : index
    %c0_53 = arith.constant 0 : index
    %36 = vector.load %arg9[%c1_51, %c0_52, %c0_53] : memref<4x2x384xbf16, #tpu.memory_space<vmem>>, vector<2x2x384xbf16>
    %37 = vector.shape_cast %36 : vector<2x2x384xbf16> to vector<4x384xbf16>
    %c1_54 = arith.constant 1 : index
    %c0_55 = arith.constant 0 : index
    %c0_56 = arith.constant 0 : index
    %38 = vector.load %arg5[%c1_54, %c0_55, %c0_56] : memref<3x384x128xbf16, #tpu.memory_space<vmem>>, vector<1x384x128xbf16>
    %39 = vector.shape_cast %38 : vector<1x384x128xbf16> to vector<384x128xbf16>
    %cst_57 = arith.constant dense<0.000000e+00> : vector<4x128xf32>
    %40 = tpu.matmul %37, %39, %cst_57 {dimension_numbers = #tpu.dot_dimension_numbers<[1], [0], [0], [1], [0, 0, 1, 1], [], []>} : vector<4x384xbf16>, vector<384x128xbf16>, vector<4x128xf32> -> vector<4x128xf32>
    %41 = arith.addf %35, %40 : vector<4x128xf32>
    %c2 = arith.constant 2 : index
    %c0_58 = arith.constant 0 : index
    %c0_59 = arith.constant 0 : index
    %42 = vector.load %arg9[%c2, %c0_58, %c0_59] : memref<4x2x384xbf16, #tpu.memory_space<vmem>>, vector<2x2x384xbf16>
    %43 = vector.shape_cast %42 : vector<2x2x384xbf16> to vector<4x384xbf16>
    %c2_60 = arith.constant 2 : index
    %c0_61 = arith.constant 0 : index
    %c0_62 = arith.constant 0 : index
    %44 = vector.load %arg5[%c2_60, %c0_61, %c0_62] : memref<3x384x128xbf16, #tpu.memory_space<vmem>>, vector<1x384x128xbf16>
    %45 = vector.shape_cast %44 : vector<1x384x128xbf16> to vector<384x128xbf16>
    %cst_63 = arith.constant dense<0.000000e+00> : vector<4x128xf32>
    %46 = tpu.matmul %43, %45, %cst_63 {dimension_numbers = #tpu.dot_dimension_numbers<[1], [0], [0], [1], [0, 0, 1, 1], [], []>} : vector<4x384xbf16>, vector<384x128xbf16>, vector<4x128xf32> -> vector<4x128xf32>
    %47 = arith.addf %41, %46 : vector<4x128xf32>
    %c0_64 = arith.constant 0 : index
    %c0_65 = arith.constant 0 : index
    %48 = vector.load %arg6[%c0_64, %c0_65] : memref<1x128xf32, #tpu.memory_space<vmem>>, vector<1x128xf32>
    %49 = vector.broadcast %48 : vector<1x128xf32> to vector<4x128xf32>
    %50 = arith.mulf %47, %49 : vector<4x128xf32>
    %c0_66 = arith.constant 0 : index
    %c0_67 = arith.constant 0 : index
    %51 = vector.load %arg7[%c0_66, %c0_67] : memref<1x128xf32, #tpu.memory_space<vmem>>, vector<1x128xf32>
    %52 = vector.broadcast %51 : vector<1x128xf32> to vector<4x128xf32>
    %53 = arith.addf %50, %52 : vector<4x128xf32>
    %cst_68 = arith.constant 0.000000e+00 : f32
    %54 = vector.broadcast %cst_68 : f32 to vector<4x128xf32>
    %55 = arith.maximumf %53, %54 : vector<4x128xf32>
    %56 = arith.truncf %55 : vector<4x128xf32> to vector<4x128xbf16>
    %c0_69 = arith.constant 0 : index
    %c0_70 = arith.constant 0 : index
    %c0_71 = arith.constant 0 : index
    %57 = vector.load %arg8[%c0_69, %c0_70, %c0_71] : memref<1x4x128xbf16, #tpu.memory_space<vmem>>, vector<1x4x128xbf16>
    %58 = vector.shape_cast %57 : vector<1x4x128xbf16> to vector<4x128xbf16>
    %59 = vector.shape_cast %56 : vector<4x128xbf16> to vector<1x4x128xbf16>
    tpu.vector_store %arg8[%c0_69, %c0_70, %c0_71], %59 {strides = array<i32>} : memref<1x4x128xbf16, #tpu.memory_space<vmem>>, vector<1x4x128xbf16>,
    return
  }
  func.func @transform_0(%arg0: i32, %arg1: i32) -> (i32, i32, i32, i32) {
    %c0_i32 = arith.constant 0 : i32
    %c0_i32_0 = arith.constant 0 : i32
    %c0_i32_1 = arith.constant 0 : i32
    return %arg0, %arg1, %c0_i32, %c0_i32_0 : i32, i32, i32, i32
  }
  func.func @transform_1(%arg0: i32, %arg1: i32) -> (i32, i32, i32, i32) {
    %c2_i32 = arith.constant 2 : i32
    %0 = arith.muli %arg1, %c2_i32 : i32
    %c1_i32 = arith.constant 1 : i32
    %1 = arith.subi %0, %c1_i32 : i32
    %c0_i32 = arith.constant 0 : i32
    %2 = arith.maxsi %1, %c0_i32 : i32
    %c0_i32_0 = arith.constant 0 : i32
    %c0_i32_1 = arith.constant 0 : i32
    %c0_i32_2 = arith.constant 0 : i32
    return %arg0, %2, %c0_i32_0, %c0_i32_1 : i32, i32, i32, i32
  }
  func.func @transform_2(%arg0: i32, %arg1: i32) -> (i32, i32, i32, i32) {
    %c1_i32 = arith.constant 1 : i32
    %0 = arith.addi %arg1, %c1_i32 : i32
    %c2_i32 = arith.constant 2 : i32
    %1 = arith.muli %0, %c2_i32 : i32
    %c1_i32_0 = arith.constant 1 : i32
    %2 = arith.minsi %1, %c1_i32_0 : i32
    %c0_i32 = arith.constant 0 : i32
    %c0_i32_1 = arith.constant 0 : i32
    %c0_i32_2 = arith.constant 0 : i32
    return %arg0, %2, %c0_i32, %c0_i32_1 : i32, i32, i32, i32
  }
  func.func @transform_3(%arg0: i32, %arg1: i32) -> (i32, i32, i32) {
    %c0_i32 = arith.constant 0 : i32
    %c0_i32_0 = arith.constant 0 : i32
    %c0_i32_1 = arith.constant 0 : i32
    %c0_i32_2 = arith.constant 0 : i32
    return %c0_i32, %c0_i32_0, %c0_i32_1 : i32, i32, i32
  }
  func.func @transform_4(%arg0: i32, %arg1: i32) -> (i32, i32) {
    %c0_i32 = arith.constant 0 : i32
    %c0_i32_0 = arith.constant 0 : i32
    %c0_i32_1 = arith.constant 0 : i32
    return %c0_i32, %c0_i32_0 : i32, i32
  }
  func.func @transform_5(%arg0: i32, %arg1: i32) -> (i32, i32) {
    %c0_i32 = arith.constant 0 : i32
    %c0_i32_0 = arith.constant 0 : i32
    %c0_i32_1 = arith.constant 0 : i32
    return %c0_i32, %c0_i32_0 : i32, i32
  }
  func.func @transform_6(%arg0: i32, %arg1: i32) -> (i32, i32, i32) {
    %c0_i32 = arith.constant 0 : i32
    %c0_i32_0 = arith.constant 0 : i32
    return %arg0, %arg1, %c0_i32 : i32, i32, i32
  }
}

module attributes {stable_mosaic.version = 11 : i64} {
  func.func @kernel(%arg0: i32, %arg1: i32, %arg2: memref<1x2x2x2x128xbf16, #tpu.memory_space<vmem>>, %arg3: memref<1x1x1x2x128xbf16, #tpu.memory_space<vmem>>, %arg4: memref<768x128xbf16, #tpu.memory_space<vmem>>, %arg5: memref<1x128xf32, #tpu.memory_space<vmem>>, %arg6: memref<1x128xf32, #tpu.memory_space<vmem>>, %arg7: memref<1x4x128xbf16, #tpu.memory_space<vmem>>, %arg8: memref<2x2x768xbf16, #tpu.memory_space<vmem>>) attributes {dimension_semantics = [#tpu.dimension_semantics<parallel>, #tpu.dimension_semantics<parallel>], iteration_bounds = array<i64: 2, 1>, scalar_prefetch = 0 : i64, scratch_operands = 1 : i64, tpu.core_type = #tpu.core_type<tc>, window_params = [{transform_indices = @transform_0, window_bounds = array<i64: 1, 2, 2, 2, 128>}, {transform_indices = @transform_1, window_bounds = array<i64: 1, 1, 1, 2, 128>}, {pipeline_mode = #tpu.pipeline_mode<synchronous>, transform_indices = @transform_2, window_bounds = array<i64: 768, 128>}, {pipeline_mode = #tpu.pipeline_mode<synchronous>, transform_indices = @transform_3, window_bounds = array<i64: 1, 128>}, {pipeline_mode = #tpu.pipeline_mode<synchronous>, transform_indices = @transform_4, window_bounds = array<i64: 1, 128>}, {transform_indices = @transform_5, window_bounds = array<i64: 1, 4, 128>}]} {
    %cst = arith.constant 0.000000e+00 : bf16
    %0 = vector.broadcast %cst : bf16 to vector<2x1x128xbf16>
    %c0 = arith.constant 0 : index
    %c0_0 = arith.constant 0 : index
    %c0_1 = arith.constant 0 : index
    %1 = vector.load %arg8[%c0, %c0_0, %c0_1] : memref<2x2x768xbf16, #tpu.memory_space<vmem>>, vector<2x1x128xbf16>
    tpu.vector_store %arg8[%c0, %c0_0, %c0_1], %0 {strides = array<i32>} : memref<2x2x768xbf16, #tpu.memory_space<vmem>>, vector<2x1x128xbf16>,
    %cst_2 = arith.constant 0.000000e+00 : bf16
    %2 = vector.broadcast %cst_2 : bf16 to vector<2x1x128xbf16>
    %c0_3 = arith.constant 0 : index
    %c0_4 = arith.constant 0 : index
    %c256 = arith.constant 256 : index
    %3 = vector.load %arg8[%c0_3, %c0_4, %c256] : memref<2x2x768xbf16, #tpu.memory_space<vmem>>, vector<2x1x128xbf16>
    tpu.vector_store %arg8[%c0_3, %c0_4, %c256], %2 {strides = array<i32>} : memref<2x2x768xbf16, #tpu.memory_space<vmem>>, vector<2x1x128xbf16>,
    %cst_5 = arith.constant 0.000000e+00 : bf16
    %4 = vector.broadcast %cst_5 : bf16 to vector<2x1x128xbf16>
    %c0_6 = arith.constant 0 : index
    %c0_7 = arith.constant 0 : index
    %c512 = arith.constant 512 : index
    %5 = vector.load %arg8[%c0_6, %c0_7, %c512] : memref<2x2x768xbf16, #tpu.memory_space<vmem>>, vector<2x1x128xbf16>
    tpu.vector_store %arg8[%c0_6, %c0_7, %c512], %4 {strides = array<i32>} : memref<2x2x768xbf16, #tpu.memory_space<vmem>>, vector<2x1x128xbf16>,
    %c0_8 = arith.constant 0 : index
    %c0_9 = arith.constant 0 : index
    %c0_10 = arith.constant 0 : index
    %c0_11 = arith.constant 0 : index
    %c0_12 = arith.constant 0 : index
    %6 = vector.load %arg2[%c0_8, %c0_9, %c0_10, %c0_11, %c0_12] : memref<1x2x2x2x128xbf16, #tpu.memory_space<vmem>>, vector<1x2x1x2x128xbf16>
    %7 = vector.shape_cast %6 : vector<1x2x1x2x128xbf16> to vector<2x2x128xbf16>
    %8 = vector.extract_strided_slice %7 {offsets = [0, 0, 0], sizes = [2, 1, 128], strides = [1, 1, 1]} : vector<2x2x128xbf16> to vector<2x1x128xbf16>
    %c0_13 = arith.constant 0 : index
    %c1 = arith.constant 1 : index
    %c256_14 = arith.constant 256 : index
    %9 = vector.load %arg8[%c0_13, %c1, %c256_14] : memref<2x2x768xbf16, #tpu.memory_space<vmem>>, vector<2x1x128xbf16>
    tpu.vector_store %arg8[%c0_13, %c1, %c256_14], %8 {strides = array<i32>} : memref<2x2x768xbf16, #tpu.memory_space<vmem>>, vector<2x1x128xbf16>,
    %c0_15 = arith.constant 0 : index
    %c0_16 = arith.constant 0 : index
    %c384 = arith.constant 384 : index
    %10 = vector.load %arg8[%c0_15, %c0_16, %c384] : memref<2x2x768xbf16, #tpu.memory_space<vmem>>, vector<2x2x128xbf16>
    tpu.vector_store %arg8[%c0_15, %c0_16, %c384], %7 {strides = array<i32>} : memref<2x2x768xbf16, #tpu.memory_space<vmem>>, vector<2x2x128xbf16>,
    %c0_17 = arith.constant 0 : index
    %c0_18 = arith.constant 0 : index
    %c1_19 = arith.constant 1 : index
    %c0_20 = arith.constant 0 : index
    %c0_21 = arith.constant 0 : index
    %11 = vector.load %arg2[%c0_17, %c0_18, %c1_19, %c0_20, %c0_21] : memref<1x2x2x2x128xbf16, #tpu.memory_space<vmem>>, vector<1x2x1x2x128xbf16>
    %12 = vector.shape_cast %11 : vector<1x2x1x2x128xbf16> to vector<2x2x128xbf16>
    %13 = vector.extract_strided_slice %12 {offsets = [0, 0, 0], sizes = [2, 1, 128], strides = [1, 1, 1]} : vector<2x2x128xbf16> to vector<2x1x128xbf16>
    %c0_22 = arith.constant 0 : index
    %c1_23 = arith.constant 1 : index
    %c512_24 = arith.constant 512 : index
    %14 = vector.load %arg8[%c0_22, %c1_23, %c512_24] : memref<2x2x768xbf16, #tpu.memory_space<vmem>>, vector<2x1x128xbf16>
    tpu.vector_store %arg8[%c0_22, %c1_23, %c512_24], %13 {strides = array<i32>} : memref<2x2x768xbf16, #tpu.memory_space<vmem>>, vector<2x1x128xbf16>,
    %c0_25 = arith.constant 0 : index
    %c0_26 = arith.constant 0 : index
    %c640 = arith.constant 640 : index
    %15 = vector.load %arg8[%c0_25, %c0_26, %c640] : memref<2x2x768xbf16, #tpu.memory_space<vmem>>, vector<2x2x128xbf16>
    tpu.vector_store %arg8[%c0_25, %c0_26, %c640], %12 {strides = array<i32>} : memref<2x2x768xbf16, #tpu.memory_space<vmem>>, vector<2x2x128xbf16>,
    %c0_27 = arith.constant 0 : index
    %c0_28 = arith.constant 0 : index
    %c0_29 = arith.constant 0 : index
    %c0_30 = arith.constant 0 : index
    %c0_31 = arith.constant 0 : index
    %16 = vector.load %arg3[%c0_27, %c0_28, %c0_29, %c0_30, %c0_31] : memref<1x1x1x2x128xbf16, #tpu.memory_space<vmem>>, vector<1x1x1x2x128xbf16>
    %17 = vector.shape_cast %16 : vector<1x1x1x2x128xbf16> to vector<1x2x128xbf16>
    %18 = vector.extract_strided_slice %17 {offsets = [0, 0, 0], sizes = [1, 1, 128], strides = [1, 1, 1]} : vector<1x2x128xbf16> to vector<1x1x128xbf16>
    %c0_32 = arith.constant 0 : index
    %c1_33 = arith.constant 1 : index
    %c0_34 = arith.constant 0 : index
    %19 = vector.load %arg8[%c0_32, %c1_33, %c0_34] : memref<2x2x768xbf16, #tpu.memory_space<vmem>>, vector<1x1x128xbf16>
    tpu.vector_store %arg8[%c0_32, %c1_33, %c0_34], %18 {strides = array<i32>} : memref<2x2x768xbf16, #tpu.memory_space<vmem>>, vector<1x1x128xbf16>,
    %c0_35 = arith.constant 0 : index
    %c0_36 = arith.constant 0 : index
    %c128 = arith.constant 128 : index
    %20 = vector.load %arg8[%c0_35, %c0_36, %c128] : memref<2x2x768xbf16, #tpu.memory_space<vmem>>, vector<1x2x128xbf16>
    tpu.vector_store %arg8[%c0_35, %c0_36, %c128], %17 {strides = array<i32>} : memref<2x2x768xbf16, #tpu.memory_space<vmem>>, vector<1x2x128xbf16>,
    %c0_37 = arith.constant 0 : index
    %c0_38 = arith.constant 0 : index
    %c1_39 = arith.constant 1 : index
    %c0_40 = arith.constant 0 : index
    %c0_41 = arith.constant 0 : index
    %21 = vector.load %arg2[%c0_37, %c0_38, %c1_39, %c0_40, %c0_41] : memref<1x2x2x2x128xbf16, #tpu.memory_space<vmem>>, vector<1x1x1x2x128xbf16>
    %22 = vector.shape_cast %21 : vector<1x1x1x2x128xbf16> to vector<1x2x128xbf16>
    %23 = vector.extract_strided_slice %22 {offsets = [0, 0, 0], sizes = [1, 1, 128], strides = [1, 1, 1]} : vector<1x2x128xbf16> to vector<1x1x128xbf16>
    %c1_42 = arith.constant 1 : index
    %c1_43 = arith.constant 1 : index
    %c0_44 = arith.constant 0 : index
    %24 = vector.load %arg8[%c1_42, %c1_43, %c0_44] : memref<2x2x768xbf16, #tpu.memory_space<vmem>>, vector<1x1x128xbf16>
    tpu.vector_store %arg8[%c1_42, %c1_43, %c0_44], %23 {strides = array<i32>} : memref<2x2x768xbf16, #tpu.memory_space<vmem>>, vector<1x1x128xbf16>,
    %c1_45 = arith.constant 1 : index
    %c0_46 = arith.constant 0 : index
    %c128_47 = arith.constant 128 : index
    %25 = vector.load %arg8[%c1_45, %c0_46, %c128_47] : memref<2x2x768xbf16, #tpu.memory_space<vmem>>, vector<1x2x128xbf16>
    tpu.vector_store %arg8[%c1_45, %c0_46, %c128_47], %22 {strides = array<i32>} : memref<2x2x768xbf16, #tpu.memory_space<vmem>>, vector<1x2x128xbf16>,
    %c0_i32 = arith.constant 0 : i32
    %26 = arith.cmpi eq, %arg1, %c0_i32 : i32
    %27 = arith.extui %26 : i1 to i32
    %c0_i32_48 = arith.constant 0 : i32
    %28 = arith.cmpi ne, %27, %c0_i32_48 : i32
    scf.if %28 {
      %cst_63 = arith.constant 0.000000e+00 : bf16
      %45 = vector.broadcast %cst_63 : bf16 to vector<1x2x256xbf16>
      %c0_64 = arith.constant 0 : index
      %c0_65 = arith.constant 0 : index
      %c0_66 = arith.constant 0 : index
      %46 = vector.load %arg8[%c0_64, %c0_65, %c0_66] : memref<2x2x768xbf16, #tpu.memory_space<vmem>>, vector<1x2x256xbf16>
      tpu.vector_store %arg8[%c0_64, %c0_65, %c0_66], %45 {strides = array<i32>} : memref<2x2x768xbf16, #tpu.memory_space<vmem>>, vector<1x2x256xbf16>,
    } else {
    }
    %c0_49 = arith.constant 0 : index
    %c0_50 = arith.constant 0 : index
    %c0_51 = arith.constant 0 : index
    %29 = vector.load %arg8[%c0_49, %c0_50, %c0_51] : memref<2x2x768xbf16, #tpu.memory_space<vmem>>, vector<2x2x768xbf16>
    %30 = vector.shape_cast %29 : vector<2x2x768xbf16> to vector<4x768xbf16>
    %c0_52 = arith.constant 0 : index
    %c0_53 = arith.constant 0 : index
    %31 = vector.load %arg4[%c0_52, %c0_53] : memref<768x128xbf16, #tpu.memory_space<vmem>>, vector<768x128xbf16>
    %cst_54 = arith.constant dense<0.000000e+00> : vector<4x128xf32>
    %32 = tpu.matmul %30, %31, %cst_54 {dimension_numbers = #tpu.dot_dimension_numbers<[1], [0], [0], [1], [0, 0, 1, 1], [], []>} : vector<4x768xbf16>, vector<768x128xbf16>, vector<4x128xf32> -> vector<4x128xf32>
    %c0_55 = arith.constant 0 : index
    %c0_56 = arith.constant 0 : index
    %33 = vector.load %arg5[%c0_55, %c0_56] : memref<1x128xf32, #tpu.memory_space<vmem>>, vector<1x128xf32>
    %34 = vector.broadcast %33 : vector<1x128xf32> to vector<4x128xf32>
    %35 = arith.mulf %32, %34 : vector<4x128xf32>
    %c0_57 = arith.constant 0 : index
    %c0_58 = arith.constant 0 : index
    %36 = vector.load %arg6[%c0_57, %c0_58] : memref<1x128xf32, #tpu.memory_space<vmem>>, vector<1x128xf32>
    %37 = vector.broadcast %36 : vector<1x128xf32> to vector<4x128xf32>
    %38 = arith.addf %35, %37 : vector<4x128xf32>
    %cst_59 = arith.constant 0.000000e+00 : f32
    %39 = vector.broadcast %cst_59 : f32 to vector<4x128xf32>
    %40 = arith.maximumf %38, %39 : vector<4x128xf32>
    %41 = arith.truncf %40 : vector<4x128xf32> to vector<4x128xbf16>
    %c0_60 = arith.constant 0 : index
    %c0_61 = arith.constant 0 : index
    %c0_62 = arith.constant 0 : index
    %42 = vector.load %arg7[%c0_60, %c0_61, %c0_62] : memref<1x4x128xbf16, #tpu.memory_space<vmem>>, vector<1x4x128xbf16>
    %43 = vector.shape_cast %42 : vector<1x4x128xbf16> to vector<4x128xbf16>
    %44 = vector.shape_cast %41 : vector<4x128xbf16> to vector<1x4x128xbf16>
    tpu.vector_store %arg7[%c0_60, %c0_61, %c0_62], %44 {strides = array<i32>} : memref<1x4x128xbf16, #tpu.memory_space<vmem>>, vector<1x4x128xbf16>,
    return
  }
  func.func @transform_0(%arg0: i32, %arg1: i32) -> (i32, i32, i32, i32, i32) {
    %c0_i32 = arith.constant 0 : i32
    %c0_i32_0 = arith.constant 0 : i32
    %c0_i32_1 = arith.constant 0 : i32
    %c0_i32_2 = arith.constant 0 : i32
    return %arg0, %arg1, %c0_i32, %c0_i32_0, %c0_i32_1 : i32, i32, i32, i32, i32
  }
  func.func @transform_1(%arg0: i32, %arg1: i32) -> (i32, i32, i32, i32, i32) {
    %c2_i32 = arith.constant 2 : i32
    %0 = arith.muli %arg1, %c2_i32 : i32
    %c1_i32 = arith.constant 1 : i32
    %1 = arith.subi %0, %c1_i32 : i32
    %c0_i32 = arith.constant 0 : i32
    %2 = arith.maxsi %1, %c0_i32 : i32
    %c1_i32_0 = arith.constant 1 : i32
    %c0_i32_1 = arith.constant 0 : i32
    %c0_i32_2 = arith.constant 0 : i32
    %c0_i32_3 = arith.constant 0 : i32
    return %arg0, %2, %c1_i32_0, %c0_i32_1, %c0_i32_2 : i32, i32, i32, i32, i32
  }
  func.func @transform_2(%arg0: i32, %arg1: i32) -> (i32, i32) {
    %c0_i32 = arith.constant 0 : i32
    %c0_i32_0 = arith.constant 0 : i32
    %c0_i32_1 = arith.constant 0 : i32
    return %c0_i32, %c0_i32_0 : i32, i32
  }
  func.func @transform_3(%arg0: i32, %arg1: i32) -> (i32, i32) {
    %c0_i32 = arith.constant 0 : i32
    %c0_i32_0 = arith.constant 0 : i32
    %c0_i32_1 = arith.constant 0 : i32
    return %c0_i32, %c0_i32_0 : i32, i32
  }
  func.func @transform_4(%arg0: i32, %arg1: i32) -> (i32, i32) {
    %c0_i32 = arith.constant 0 : i32
    %c0_i32_0 = arith.constant 0 : i32
    %c0_i32_1 = arith.constant 0 : i32
    return %c0_i32, %c0_i32_0 : i32, i32
  }
  func.func @transform_5(%arg0: i32, %arg1: i32) -> (i32, i32, i32) {
    %c0_i32 = arith.constant 0 : i32
    %c0_i32_0 = arith.constant 0 : i32
    return %arg0, %arg1, %c0_i32 : i32, i32, i32
  }
}

module attributes {stable_mosaic.version = 11 : i64} {
  func.func @kernel(%arg0: i32, %arg1: i32, %arg2: memref<1x2x2x128xbf16, #tpu.memory_space<vmem>>, %arg3: memref<1x1x2x128xbf16, #tpu.memory_space<vmem>>, %arg4: memref<1x1x2x128xbf16, #tpu.memory_space<vmem>>, %arg5: memref<3x384x128xbf16, #tpu.memory_space<vmem>>, %arg6: memref<1x128xf32, #tpu.memory_space<vmem>>, %arg7: memref<1x128xf32, #tpu.memory_space<vmem>>, %arg8: memref<1x4x128xbf16, #tpu.memory_space<vmem>>, %arg9: memref<4x2x384xbf16, #tpu.memory_space<vmem>>) attributes {dimension_semantics = [#tpu.dimension_semantics<parallel>, #tpu.dimension_semantics<parallel>], iteration_bounds = array<i64: 2, 1>, scalar_prefetch = 0 : i64, scratch_operands = 1 : i64, tpu.core_type = #tpu.core_type<tc>, window_params = [{transform_indices = @transform_0, window_bounds = array<i64: 1, 2, 2, 128>}, {transform_indices = @transform_1, window_bounds = array<i64: 1, 1, 2, 128>}, {transform_indices = @transform_2, window_bounds = array<i64: 1, 1, 2, 128>}, {pipeline_mode = #tpu.pipeline_mode<synchronous>, transform_indices = @transform_3, window_bounds = array<i64: 3, 384, 128>}, {pipeline_mode = #tpu.pipeline_mode<synchronous>, transform_indices = @transform_4, window_bounds = array<i64: 1, 128>}, {pipeline_mode = #tpu.pipeline_mode<synchronous>, transform_indices = @transform_5, window_bounds = array<i64: 1, 128>}, {transform_indices = @transform_6, window_bounds = array<i64: 1, 4, 128>}]} {
    %cst = arith.constant 0.000000e+00 : bf16
    %0 = vector.broadcast %cst : bf16 to vector<4x1x128xbf16>
    %c0 = arith.constant 0 : index
    %c0_0 = arith.constant 0 : index
    %c0_1 = arith.constant 0 : index
    %1 = vector.load %arg9[%c0, %c0_0, %c0_1] : memref<4x2x384xbf16, #tpu.memory_space<vmem>>, vector<4x1x128xbf16>
    tpu.vector_store %arg9[%c0, %c0_0, %c0_1], %0 {strides = array<i32>} : memref<4x2x384xbf16, #tpu.memory_space<vmem>>, vector<4x1x128xbf16>,
    %cst_2 = arith.constant 0.000000e+00 : bf16
    %2 = vector.broadcast %cst_2 : bf16 to vector<4x1x128xbf16>
    %c0_3 = arith.constant 0 : index
    %c1 = arith.constant 1 : index
    %c256 = arith.constant 256 : index
    %3 = vector.load %arg9[%c0_3, %c1, %c256] : memref<4x2x384xbf16, #tpu.memory_space<vmem>>, vector<4x1x128xbf16>
    tpu.vector_store %arg9[%c0_3, %c1, %c256], %2 {strides = array<i32>} : memref<4x2x384xbf16, #tpu.memory_space<vmem>>, vector<4x1x128xbf16>,
    %c0_4 = arith.constant 0 : index
    %c0_5 = arith.constant 0 : index
    %c0_6 = arith.constant 0 : index
    %c0_7 = arith.constant 0 : index
    %4 = vector.load %arg2[%c0_4, %c0_5, %c0_6, %c0_7] : memref<1x2x2x128xbf16, #tpu.memory_space<vmem>>, vector<1x2x2x128xbf16>
    %5 = vector.shape_cast %4 : vector<1x2x2x128xbf16> to vector<2x2x128xbf16>
    %6 = vector.extract_strided_slice %5 {offsets = [0, 0, 0], sizes = [2, 1, 128], strides = [1, 1, 1]} : vector<2x2x128xbf16> to vector<2x1x128xbf16>
    %c1_8 = arith.constant 1 : index
    %c1_9 = arith.constant 1 : index
    %c0_10 = arith.constant 0 : index
    %7 = vector.load %arg9[%c1_8, %c1_9, %c0_10] : memref<4x2x384xbf16, #tpu.memory_space<vmem>>, vector<2x1x128xbf16>
    tpu.vector_store %arg9[%c1_8, %c1_9, %c0_10], %6 {strides = array<i32>} : memref<4x2x384xbf16, #tpu.memory_space<vmem>>, vector<2x1x128xbf16>,
    %8 = vector.extract_strided_slice %5 {offsets = [0, 1, 0], sizes = [2, 1, 128], strides = [1, 1, 1]} : vector<2x2x128xbf16> to vector<2x1x128xbf16>
    %c1_11 = arith.constant 1 : index
    %c0_12 = arith.constant 0 : index
    %c256_13 = arith.constant 256 : index
    %9 = vector.load %arg9[%c1_11, %c0_12, %c256_13] : memref<4x2x384xbf16, #tpu.memory_space<vmem>>, vector<2x1x128xbf16>
    tpu.vector_store %arg9[%c1_11, %c0_12, %c256_13], %8 {strides = array<i32>} : memref<4x2x384xbf16, #tpu.memory_space<vmem>>, vector<2x1x128xbf16>,
    %c1_14 = arith.constant 1 : index
    %c0_15 = arith.constant 0 : index
    %c128 = arith.constant 128 : index
    %10 = vector.load %arg9[%c1_14, %c0_15, %c128] : memref<4x2x384xbf16, #tpu.memory_space<vmem>>, vector<2x2x128xbf16>
    tpu.vector_store %arg9[%c1_14, %c0_15, %c128], %5 {strides = array<i32>} : memref<4x2x384xbf16, #tpu.memory_space<vmem>>, vector<2x2x128xbf16>,
    %c0_16 = arith.constant 0 : index
    %c0_17 = arith.constant 0 : index
    %c0_18 = arith.constant 0 : index
    %c0_19 = arith.constant 0 : index
    %11 = vector.load %arg3[%c0_16, %c0_17, %c0_18, %c0_19] : memref<1x1x2x128xbf16, #tpu.memory_space<vmem>>, vector<1x1x2x128xbf16>
    %12 = vector.shape_cast %11 : vector<1x1x2x128xbf16> to vector<1x2x128xbf16>
    %13 = vector.extract_strided_slice %12 {offsets = [0, 0, 0], sizes = [1, 1, 128], strides = [1, 1, 1]} : vector<1x2x128xbf16> to vector<1x1x128xbf16>
    %c0_20 = arith.constant 0 : index
    %c1_21 = arith.constant 1 : index
    %c0_22 = arith.constant 0 : index
    %14 = vector.load %arg9[%c0_20, %c1_21, %c0_22] : memref<4x2x384xbf16, #tpu.memory_space<vmem>>, vector<1x1x128xbf16>
    tpu.vector_store %arg9[%c0_20, %c1_21, %c0_22], %13 {strides = array<i32>} : memref<4x2x384xbf16, #tpu.memory_space<vmem>>, vector<1x1x128xbf16>,
    %15 = vector.extract_strided_slice %12 {offsets = [0, 1, 0], sizes = [1, 1, 128], strides = [1, 1, 1]} : vector<1x2x128xbf16> to vector<1x1x128xbf16>
    %c0_23 = arith.constant 0 : index
    %c0_24 = arith.constant 0 : index
    %c256_25 = arith.constant 256 : index
    %16 = vector.load %arg9[%c0_23, %c0_24, %c256_25] : memref<4x2x384xbf16, #tpu.memory_space<vmem>>, vector<1x1x128xbf16>
    tpu.vector_store %arg9[%c0_23, %c0_24, %c256_25], %15 {strides = array<i32>} : memref<4x2x384xbf16, #tpu.memory_space<vmem>>, vector<1x1x128xbf16>,
    %c0_26 = arith.constant 0 : index
    %c0_27 = arith.constant 0 : index
    %c128_28 = arith.constant 128 : index
    %17 = vector.load %arg9[%c0_26, %c0_27, %c128_28] : memref<4x2x384xbf16, #tpu.memory_space<vmem>>, vector<1x2x128xbf16>
    tpu.vector_store %arg9[%c0_26, %c0_27, %c128_28], %12 {strides = array<i32>} : memref<4x2x384xbf16, #tpu.memory_space<vmem>>, vector<1x2x128xbf16>,
    %c0_29 = arith.constant 0 : index
    %c0_30 = arith.constant 0 : index
    %c0_31 = arith.constant 0 : index
    %c0_32 = arith.constant 0 : index
    %18 = vector.load %arg4[%c0_29, %c0_30, %c0_31, %c0_32] : memref<1x1x2x128xbf16, #tpu.memory_space<vmem>>, vector<1x1x2x128xbf16>
    %19 = vector.shape_cast %18 : vector<1x1x2x128xbf16> to vector<1x2x128xbf16>
    %20 = vector.extract_strided_slice %19 {offsets = [0, 0, 0], sizes = [1, 1, 128], strides = [1, 1, 1]} : vector<1x2x128xbf16> to vector<1x1x128xbf16>
    %c3 = arith.constant 3 : index
    %c1_33 = arith.constant 1 : index
    %c0_34 = arith.constant 0 : index
    %21 = vector.load %arg9[%c3, %c1_33, %c0_34] : memref<4x2x384xbf16, #tpu.memory_space<vmem>>, vector<1x1x128xbf16>
    tpu.vector_store %arg9[%c3, %c1_33, %c0_34], %20 {strides = array<i32>} : memref<4x2x384xbf16, #tpu.memory_space<vmem>>, vector<1x1x128xbf16>,
    %22 = vector.extract_strided_slice %19 {offsets = [0, 1, 0], sizes = [1, 1, 128], strides = [1, 1, 1]} : vector<1x2x128xbf16> to vector<1x1x128xbf16>
    %c3_35 = arith.constant 3 : index
    %c0_36 = arith.constant 0 : index
    %c256_37 = arith.constant 256 : index
    %23 = vector.load %arg9[%c3_35, %c0_36, %c256_37] : memref<4x2x384xbf16, #tpu.memory_space<vmem>>, vector<1x1x128xbf16>
    tpu.vector_store %arg9[%c3_35, %c0_36, %c256_37], %22 {strides = array<i32>} : memref<4x2x384xbf16, #tpu.memory_space<vmem>>, vector<1x1x128xbf16>,
    %c3_38 = arith.constant 3 : index
    %c0_39 = arith.constant 0 : index
    %c128_40 = arith.constant 128 : index
    %24 = vector.load %arg9[%c3_38, %c0_39, %c128_40] : memref<4x2x384xbf16, #tpu.memory_space<vmem>>, vector<1x2x128xbf16>
    tpu.vector_store %arg9[%c3_38, %c0_39, %c128_40], %19 {strides = array<i32>} : memref<4x2x384xbf16, #tpu.memory_space<vmem>>, vector<1x2x128xbf16>,
    %c0_i32 = arith.constant 0 : i32
    %25 = arith.cmpi eq, %arg1, %c0_i32 : i32
    %26 = arith.extui %25 : i1 to i32
    %c0_i32_41 = arith.constant 0 : i32
    %27 = arith.cmpi ne, %26, %c0_i32_41 : i32
    scf.if %27 {
      %cst_72 = arith.constant 0.000000e+00 : bf16
      %60 = vector.broadcast %cst_72 : bf16 to vector<1x2x384xbf16>
      %c0_73 = arith.constant 0 : index
      %c0_74 = arith.constant 0 : index
      %c0_75 = arith.constant 0 : index
      %61 = vector.load %arg9[%c0_73, %c0_74, %c0_75] : memref<4x2x384xbf16, #tpu.memory_space<vmem>>, vector<1x2x384xbf16>
      tpu.vector_store %arg9[%c0_73, %c0_74, %c0_75], %60 {strides = array<i32>} : memref<4x2x384xbf16, #tpu.memory_space<vmem>>, vector<1x2x384xbf16>,
    } else {
    }
    %c0_i32_42 = arith.constant 0 : i32
    %28 = arith.cmpi eq, %arg1, %c0_i32_42 : i32
    %29 = arith.extui %28 : i1 to i32
    %c0_i32_43 = arith.constant 0 : i32
    %30 = arith.cmpi ne, %29, %c0_i32_43 : i32
    scf.if %30 {
      %cst_72 = arith.constant 0.000000e+00 : bf16
      %60 = vector.broadcast %cst_72 : bf16 to vector<1x2x384xbf16>
      %c3_73 = arith.constant 3 : index
      %c0_74 = arith.constant 0 : index
      %c0_75 = arith.constant 0 : index
      %61 = vector.load %arg9[%c3_73, %c0_74, %c0_75] : memref<4x2x384xbf16, #tpu.memory_space<vmem>>, vector<1x2x384xbf16>
      tpu.vector_store %arg9[%c3_73, %c0_74, %c0_75], %60 {strides = array<i32>} : memref<4x2x384xbf16, #tpu.memory_space<vmem>>, vector<1x2x384xbf16>,
    } else {
    }
    %c0_44 = arith.constant 0 : index
    %c0_45 = arith.constant 0 : index
    %c0_46 = arith.constant 0 : index
    %31 = vector.load %arg9[%c0_44, %c0_45, %c0_46] : memref<4x2x384xbf16, #tpu.memory_space<vmem>>, vector<2x2x384xbf16>
    %32 = vector.shape_cast %31 : vector<2x2x384xbf16> to vector<4x384xbf16>
    %c0_47 = arith.constant 0 : index
    %c0_48 = arith.constant 0 : index
    %c0_49 = arith.constant 0 : index
    %33 = vector.load %arg5[%c0_47, %c0_48, %c0_49] : memref<3x384x128xbf16, #tpu.memory_space<vmem>>, vector<1x384x128xbf16>
    %34 = vector.shape_cast %33 : vector<1x384x128xbf16> to vector<384x128xbf16>
    %cst_50 = arith.constant dense<0.000000e+00> : vector<4x128xf32>
    %35 = tpu.matmul %32, %34, %cst_50 {dimension_numbers = #tpu.dot_dimension_numbers<[1], [0], [0], [1], [0, 0, 1, 1], [], []>} : vector<4x384xbf16>, vector<384x128xbf16>, vector<4x128xf32> -> vector<4x128xf32>
    %c1_51 = arith.constant 1 : index
    %c0_52 = arith.constant 0 : index
    %c0_53 = arith.constant 0 : index
    %36 = vector.load %arg9[%c1_51, %c0_52, %c0_53] : memref<4x2x384xbf16, #tpu.memory_space<vmem>>, vector<2x2x384xbf16>
    %37 = vector.shape_cast %36 : vector<2x2x384xbf16> to vector<4x384xbf16>
    %c1_54 = arith.constant 1 : index
    %c0_55 = arith.constant 0 : index
    %c0_56 = arith.constant 0 : index
    %38 = vector.load %arg5[%c1_54, %c0_55, %c0_56] : memref<3x384x128xbf16, #tpu.memory_space<vmem>>, vector<1x384x128xbf16>
    %39 = vector.shape_cast %38 : vector<1x384x128xbf16> to vector<384x128xbf16>
    %cst_57 = arith.constant dense<0.000000e+00> : vector<4x128xf32>
    %40 = tpu.matmul %37, %39, %cst_57 {dimension_numbers = #tpu.dot_dimension_numbers<[1], [0], [0], [1], [0, 0, 1, 1], [], []>} : vector<4x384xbf16>, vector<384x128xbf16>, vector<4x128xf32> -> vector<4x128xf32>
    %41 = arith.addf %35, %40 : vector<4x128xf32>
    %c2 = arith.constant 2 : index
    %c0_58 = arith.constant 0 : index
    %c0_59 = arith.constant 0 : index
    %42 = vector.load %arg9[%c2, %c0_58, %c0_59] : memref<4x2x384xbf16, #tpu.memory_space<vmem>>, vector<2x2x384xbf16>
    %43 = vector.shape_cast %42 : vector<2x2x384xbf16> to vector<4x384xbf16>
    %c2_60 = arith.constant 2 : index
    %c0_61 = arith.constant 0 : index
    %c0_62 = arith.constant 0 : index
    %44 = vector.load %arg5[%c2_60, %c0_61, %c0_62] : memref<3x384x128xbf16, #tpu.memory_space<vmem>>, vector<1x384x128xbf16>
    %45 = vector.shape_cast %44 : vector<1x384x128xbf16> to vector<384x128xbf16>
    %cst_63 = arith.constant dense<0.000000e+00> : vector<4x128xf32>
    %46 = tpu.matmul %43, %45, %cst_63 {dimension_numbers = #tpu.dot_dimension_numbers<[1], [0], [0], [1], [0, 0, 1, 1], [], []>} : vector<4x384xbf16>, vector<384x128xbf16>, vector<4x128xf32> -> vector<4x128xf32>
    %47 = arith.addf %41, %46 : vector<4x128xf32>
    %c0_64 = arith.constant 0 : index
    %c0_65 = arith.constant 0 : index
    %48 = vector.load %arg6[%c0_64, %c0_65] : memref<1x128xf32, #tpu.memory_space<vmem>>, vector<1x128xf32>
    %49 = vector.broadcast %48 : vector<1x128xf32> to vector<4x128xf32>
    %50 = arith.mulf %47, %49 : vector<4x128xf32>
    %c0_66 = arith.constant 0 : index
    %c0_67 = arith.constant 0 : index
    %51 = vector.load %arg7[%c0_66, %c0_67] : memref<1x128xf32, #tpu.memory_space<vmem>>, vector<1x128xf32>
    %52 = vector.broadcast %51 : vector<1x128xf32> to vector<4x128xf32>
    %53 = arith.addf %50, %52 : vector<4x128xf32>
    %cst_68 = arith.constant 0.000000e+00 : f32
    %54 = vector.broadcast %cst_68 : f32 to vector<4x128xf32>
    %55 = arith.maximumf %53, %54 : vector<4x128xf32>
    %56 = arith.truncf %55 : vector<4x128xf32> to vector<4x128xbf16>
    %c0_69 = arith.constant 0 : index
    %c0_70 = arith.constant 0 : index
    %c0_71 = arith.constant 0 : index
    %57 = vector.load %arg8[%c0_69, %c0_70, %c0_71] : memref<1x4x128xbf16, #tpu.memory_space<vmem>>, vector<1x4x128xbf16>
    %58 = vector.shape_cast %57 : vector<1x4x128xbf16> to vector<4x128xbf16>
    %59 = vector.shape_cast %56 : vector<4x128xbf16> to vector<1x4x128xbf16>
    tpu.vector_store %arg8[%c0_69, %c0_70, %c0_71], %59 {strides = array<i32>} : memref<1x4x128xbf16, #tpu.memory_space<vmem>>, vector<1x4x128xbf16>,
    return
  }
  func.func @transform_0(%arg0: i32, %arg1: i32) -> (i32, i32, i32, i32) {
    %c0_i32 = arith.constant 0 : i32
    %c0_i32_0 = arith.constant 0 : i32
    %c0_i32_1 = arith.constant 0 : i32
    return %arg0, %arg1, %c0_i32, %c0_i32_0 : i32, i32, i32, i32
  }
  func.func @transform_1(%arg0: i32, %arg1: i32) -> (i32, i32, i32, i32) {
    %c2_i32 = arith.constant 2 : i32
    %0 = arith.muli %arg1, %c2_i32 : i32
    %c1_i32 = arith.constant 1 : i32
    %1 = arith.subi %0, %c1_i32 : i32
    %c0_i32 = arith.constant 0 : i32
    %2 = arith.maxsi %1, %c0_i32 : i32
    %c0_i32_0 = arith.constant 0 : i32
    %c0_i32_1 = arith.constant 0 : i32
    %c0_i32_2 = arith.constant 0 : i32
    return %arg0, %2, %c0_i32_0, %c0_i32_1 : i32, i32, i32, i32
  }
  func.func @transform_2(%arg0: i32, %arg1: i32) -> (i32, i32, i32, i32) {
    %c1_i32 = arith.constant 1 : i32
    %0 = arith.addi %arg1, %c1_i32 : i32
    %c2_i32 = arith.constant 2 : i32
    %1 = arith.muli %0, %c2_i32 : i32
    %c1_i32_0 = arith.constant 1 : i32
    %2 = arith.minsi %1, %c1_i32_0 : i32
    %c0_i32 = arith.constant 0 : i32
    %c0_i32_1 = arith.constant 0 : i32
    %c0_i32_2 = arith.constant 0 : i32
    return %arg0, %2, %c0_i32, %c0_i32_1 : i32, i32, i32, i32
  }
  func.func @transform_3(%arg0: i32, %arg1: i32) -> (i32, i32, i32) {
    %c0_i32 = arith.constant 0 : i32
    %c0_i32_0 = arith.constant 0 : i32
    %c0_i32_1 = arith.constant 0 : i32
    %c0_i32_2 = arith.constant 0 : i32
    return %c0_i32, %c0_i32_0, %c0_i32_1 : i32, i32, i32
  }
  func.func @transform_4(%arg0: i32, %arg1: i32) -> (i32, i32) {
    %c0_i32 = arith.constant 0 : i32
    %c0_i32_0 = arith.constant 0 : i32
    %c0_i32_1 = arith.constant 0 : i32
    return %c0_i32, %c0_i32_0 : i32, i32
  }
  func.func @transform_5(%arg0: i32, %arg1: i32) -> (i32, i32) {
    %c0_i32 = arith.constant 0 : i32
    %c0_i32_0 = arith.constant 0 : i32
    %c0_i32_1 = arith.constant 0 : i32
    return %c0_i32, %c0_i32_0 : i32, i32
  }
  func.func @transform_6(%arg0: i32, %arg1: i32) -> (i32, i32, i32) {
    %c0_i32 = arith.constant 0 : i32
    %c0_i32_0 = arith.constant 0 : i32
    return %arg0, %arg1, %c0_i32 : i32, i32, i32
  }
}

</mosaic_0001>

<llo_original>
// kernel: detail_branch.8
$region0: #{detail_branch.8}
  #allocation0 [shape = 'u32[]', space=smem, size = 0x4, offset = 0x4, fixed_abs, tag = 'smem constant byte address 0x4 - core index']
  #allocation1 [shape = 'u32[144,128]{1,0:T(1,128)}', space=vmem, size = 0x12000, scoped, tag = 'internal scratch']
  #allocation2 [shape = 'bf16[8,8,36]{2,1,0:T(8,128)(2,1)}', space=vmem, size = 0x4000, scoped, tag = 'scratch operand']
  %s0 = inlined_call_operand.vmem [shape: bf16[2,8,2,8,6], index: 0, kind: input, shape index: {}, may-alias: {0,1}]
  %s1 = inlined_call_operand.vmem [shape: bf16[2,8,2,8,6], index: 1, kind: input, shape index: {}, may-alias: {0,1}]
  %s2 = inlined_call_operand.vmem [shape: bf16[36,64], index: 2, kind: input, shape index: {}]
  %s3 = inlined_call_operand.vmem [shape: f32[1,64], index: 3, kind: input, shape index: {}]
  %s4 = inlined_call_operand.vmem [shape: f32[1,64], index: 4, kind: input, shape index: {}]
  %s5 = inlined_call_operand.vmem [shape: bf16[2,64,64], index: 5, kind: output, shape index: {}]
  %s6 = sld [smem:[#allocation0]]
  $region57: #{detail_branch.8} parent=0
    _
  %s8 = ssub.s32 1, %s6
  %s9 = scalar_select 0, %s8, %s6
  loop: start=0, step=1, limit=4
  $region2: #{detail_branch.8} parent=0 // loop_pre_header
    _
  $region3: #{detail_branch.8} parent=0 // loop_header
    %s11 = sphi 0, %s15
    %p12 = scmp.ge.s32.totalorder %s11, 4
    %s18 = sphi 0, %s30
    %s19 = sphi 0, %s26
    %s20 = sphi 0, %s18
    %s21 = sphi 0, %s19
    %s22 = sphi 0, %s20
    %s23 = sphi 0, %s21
    %s35 = sphi 0, %s37
    %s38 = sphi 0, %s35
    %s39 = sphi 0, %s38
    %s55 = sphi 0, %s39
    %s71 = sphi 0, %s73
    %s74 = sphi 0, %s71
    %s75 = sphi 0, %s74
    %s91 = sphi 0, %s75
    %s95 = sphi 0, %s95
    %s97 = sphi 0, %s95
    %s98 = sphi 0, %s97
    %s112 = sphi 0, %s98
    %s116 = sphi 0, %s116
    %s118 = sphi 0, %s116
    %s119 = sphi 0, %s118
    %s133 = sphi 0, %s119
    %s137 = sphi 0, %s137
    %s139 = sphi 0, %s137
    %s140 = sphi 0, %s139
    %s154 = sphi 0, %s140
    %s162 = sphi 0, %s164
    %s165 = sphi 0, %s162
    %s166 = sphi 0, %s165
    %s182 = sphi 0, %s166
  $region4: #{detail_branch.8} parent=0 // loop_header_branch
    %14 = sbr.rel (%p12) target = $region8
  $region5: #{detail_branch.8} parent=0 // loop_body
    %s16 = ssub.s32 %s11, 1
    %s17 = ssub.s32 %s11, 2
    %s24 = sadd.s32 1, %s19
    %p25 = scmp.ge.s32.totalorder %s24, 1
    %s26 = scalar_select %p25, 0, %s24
    %s27 = sadd.s32 1, %s18
    %s28 = scalar_select %p25, %s27, %s18
    %p29 = scmp.ge.s32.totalorder %s28, 2
    %s30 = scalar_select %p29, 0, %s28
    %s31 = ssub.s32 %s18, %s30
    %s32 = ssub.s32 %s19, %s26
    %s33 = sor.u32 %s31, %s32
    %p34 = scmp.eq.s32.totalorder %s33, 0
    %s36 = sadd.s32 %s35, 1
    %s37 = scalar_select %p34, %s35, %s36
    %p40 = pneg %p34
    %p41 = scmp.eq.s32.totalorder %s11, 1
    %p42 = por %p40, %p41
    %p43 = scmp.ne.s32.totalorder %s35, %s38
    %p44 = scmp.eq.s32.totalorder %s11, 0
    %p45 = por %p43, %p44
    %p46 = scmp.ne.s32.totalorder %s35, %s38
    %p47 = scmp.eq.s32.totalorder %s16, 1
    %p48 = por %p46, %p47
    %p49 = scmp.ne.s32.totalorder %s38, %s39
    %p50 = scmp.eq.s32.totalorder %s16, 0
    %p51 = por %p49, %p50
    %p52 = scmp.ne.s32.totalorder %s38, %s39
    %p53 = scmp.eq.s32.totalorder %s17, 1
    %p54 = por %p52, %p53
    %p56 = scmp.ne.s32.totalorder %s39, %s55
    %p57 = scmp.eq.s32.totalorder %s17, 0
    %p58 = por %p56, %p57
    %s59 = smul.u32 %s19, 8
    %s60 = ssub.s32 %s59, 1
    %p61 = scmp.gt.s32.totalorder %s60, 0
    %s62 = scalar_select %p61, %s60, 0
    %s63 = smul.u32 %s26, 8
    %s64 = ssub.s32 %s63, 1
    %p65 = scmp.gt.s32.totalorder %s64, 0
    %s66 = scalar_select %p65, %s64, 0
    %s67 = ssub.s32 %s18, %s30
    %s68 = ssub.s32 %s62, %s66
    %s69 = sor.u32 %s67, %s68
    %p70 = scmp.eq.s32.totalorder %s69, 0
    %s72 = sadd.s32 %s71, 1
    %s73 = scalar_select %p70, %s71, %s72
    %p76 = pneg %p70
    %p77 = scmp.eq.s32.totalorder %s11, 1
    %p78 = por %p76, %p77
    %p79 = scmp.ne.s32.totalorder %s71, %s74
    %p80 = scmp.eq.s32.totalorder %s11, 0
    %p81 = por %p79, %p80
    %p82 = scmp.ne.s32.totalorder %s71, %s74
    %p83 = scmp.eq.s32.totalorder %s16, 1
    %p84 = por %p82, %p83
    %p85 = scmp.ne.s32.totalorder %s74, %s75
    %p86 = scmp.eq.s32.totalorder %s16, 0
    %p87 = por %p85, %p86
    %p88 = scmp.ne.s32.totalorder %s74, %s75
    %p89 = scmp.eq.s32.totalorder %s17, 1
    %p90 = por %p88, %p89
    %p92 = scmp.ne.s32.totalorder %s75, %s91
    %p93 = scmp.eq.s32.totalorder %s17, 0
    %p94 = por %p92, %p93
    %s96 = sadd.s32 %s95, 1
    %p99 = scmp.eq.s32.totalorder %s11, 1
    %p100 = scmp.ne.s32.totalorder %s95, %s97
    %p101 = scmp.eq.s32.totalorder %s11, 0
    %p102 = por %p100, %p101
    %p103 = scmp.ne.s32.totalorder %s95, %s97
    %p104 = scmp.eq.s32.totalorder %s16, 1
    %p105 = por %p103, %p104
    %p106 = scmp.ne.s32.totalorder %s97, %s98
    %p107 = scmp.eq.s32.totalorder %s16, 0
    %p108 = por %p106, %p107
    %p109 = scmp.ne.s32.totalorder %s97, %s98
    %p110 = scmp.eq.s32.totalorder %s17, 1
    %p111 = por %p109, %p110
    %p113 = scmp.ne.s32.totalorder %s98, %s112
    %p114 = scmp.eq.s32.totalorder %s17, 0
    %p115 = por %p113, %p114
    %s117 = sadd.s32 %s116, 1
    %p120 = scmp.eq.s32.totalorder %s11, 1
    %p121 = scmp.ne.s32.totalorder %s116, %s118
    %p122 = scmp.eq.s32.totalorder %s11, 0
    %p123 = por %p121, %p122
    %p124 = scmp.ne.s32.totalorder %s116, %s118
    %p125 = scmp.eq.s32.totalorder %s16, 1
    %p126 = por %p124, %p125
    %p127 = scmp.ne.s32.totalorder %s118, %s119
    %p128 = scmp.eq.s32.totalorder %s16, 0
    %p129 = por %p127, %p128
    %p130 = scmp.ne.s32.totalorder %s118, %s119
    %p131 = scmp.eq.s32.totalorder %s17, 1
    %p132 = por %p130, %p131
    %p134 = scmp.ne.s32.totalorder %s119, %s133
    %p135 = scmp.eq.s32.totalorder %s17, 0
    %p136 = por %p134, %p135
    %s138 = sadd.s32 %s137, 1
    %p141 = scmp.eq.s32.totalorder %s11, 1
    %p142 = scmp.ne.s32.totalorder %s137, %s139
    %p143 = scmp.eq.s32.totalorder %s11, 0
    %p144 = por %p142, %p143
    %p145 = scmp.ne.s32.totalorder %s137, %s139
    %p146 = scmp.eq.s32.totalorder %s16, 1
    %p147 = por %p145, %p146
    %p148 = scmp.ne.s32.totalorder %s139, %s140
    %p149 = scmp.eq.s32.totalorder %s16, 0
    %p150 = por %p148, %p149
    %p151 = scmp.ne.s32.totalorder %s139, %s140
    %p152 = scmp.eq.s32.totalorder %s17, 1
    %p153 = por %p151, %p152
    %p155 = scmp.ne.s32.totalorder %s140, %s154
    %p156 = scmp.eq.s32.totalorder %s17, 0
    %p157 = por %p155, %p156
    %s158 = ssub.s32 %s18, %s30
    %s159 = ssub.s32 %s19, %s26
    %s160 = sor.u32 %s158, %s159
    %p161 = scmp.eq.s32.totalorder %s160, 0
    %s163 = sadd.s32 %s162, 1
    %s164 = scalar_select %p161, %s162, %s163
    %p167 = pneg %p161
    %p168 = scmp.eq.s32.totalorder %s11, 1
    %p169 = por %p167, %p168
    %p170 = scmp.ne.s32.totalorder %s162, %s165
    %p171 = scmp.eq.s32.totalorder %s11, 0
    %p172 = por %p170, %p171
    %p173 = scmp.ne.s32.totalorder %s162, %s165
    %p174 = scmp.eq.s32.totalorder %s16, 1
    %p175 = por %p173, %p174
    %p176 = scmp.ne.s32.totalorder %s165, %s166
    %p177 = scmp.eq.s32.totalorder %s16, 0
    %p178 = por %p176, %p177
    %p179 = scmp.ne.s32.totalorder %s165, %s166
    %p180 = scmp.eq.s32.totalorder %s17, 1
    %p181 = por %p179, %p180
    %p183 = scmp.ne.s32.totalorder %s166, %s182
    %p184 = scmp.eq.s32.totalorder %s17, 0
    %p185 = por %p183, %p184
    %p186 = scmp.le.s32.totalorder 1, %s11
    %p187 = scmp.lt.s32.totalorder %s11, 3
    %p188 = pnand %p186, %p187
    %p189 = pneg %p188
    // Predicated region
    $region9: #{detail_branch.8} parent=5 // pred_check
      _
    $region10: #{detail_branch.8} parent=5 // pred_check_branch
      %191 = sbr.rel (%p188) target = $region12
    $region11: #{detail_branch.8} parent=5 // pred_region
      %s192 = ssub.s32 %s11, 1
      // Predicated region
      $region13: #{detail_branch.8} parent=11 // pred_check
        %p193 = pneg %p108
      $region14: #{detail_branch.8} parent=11 // pred_check_branch
        %195 = sbr.rel (%p193) target = $region16
      $region15: #{detail_branch.8} parent=11 // pred_region
        _
      $region16: #{detail_branch.8} parent=11 // pred_fallthru
        _
      // Predicated region
      $region17: #{detail_branch.8} parent=11 // pred_check
        %p196 = pneg %p129
      $region18: #{detail_branch.8} parent=11 // pred_check_branch
        %198 = sbr.rel (%p196) target = $region20
      $region19: #{detail_branch.8} parent=11 // pred_region
        _
      $region20: #{detail_branch.8} parent=11 // pred_fallthru
        _
      // Predicated region
      $region21: #{detail_branch.8} parent=11 // pred_check
        %p199 = pneg %p150
      $region22: #{detail_branch.8} parent=11 // pred_check_branch
        %201 = sbr.rel (%p199) target = $region24
      $region23: #{detail_branch.8} parent=11 // pred_region
        _
      $region24: #{detail_branch.8} parent=11 // pred_fallthru
        _
    $region12: #{detail_branch.8} parent=5 // pred_fallthru
      _
    %p202 = scmp.lt.s32.totalorder %s11, 2
    // Predicated region
    $region25: #{detail_branch.8} parent=5 // pred_check
      %p203 = pneg %p202
    $region26: #{detail_branch.8} parent=5 // pred_check_branch
      %205 = sbr.rel (%p203) target = $region28
    $region27: #{detail_branch.8} parent=5 // pred_region
      // Predicated region
      $region29: #{detail_branch.8} parent=27 // pred_check
        %p206 = pneg %p45
      $region30: #{detail_branch.8} parent=27 // pred_check_branch
        %208 = sbr.rel (%p206) target = $region32
      $region31: #{detail_branch.8} parent=27 // pred_region
        %s209 = smul.u32 8, %s19
        %p210 = scmp.lt.s32.totalorder %s18, 1
        %s211 = scalar_select %p210, %s18, 1
        %p212 = scmp.lt.s32.totalorder %s209, 7
        %s213 = scalar_select %p212, %s209, 7
        %s214 = smul.addr %s213, 2
        %s215 = smul.addr %s211, 16
        %s216 = sadd.s32 %s214, %s215
        %s217 = smul.addr %s216, 4
        %s218 = scalar_lea.vmem %s0, %s217
        %s219 = smul.u32 8, %s19
      $region32: #{detail_branch.8} parent=27 // pred_fallthru
        _
      // Predicated region
      $region33: #{detail_branch.8} parent=27 // pred_check
        %p220 = pneg %p81
      $region34: #{detail_branch.8} parent=27 // pred_check_branch
        %222 = sbr.rel (%p220) target = $region36
      $region35: #{detail_branch.8} parent=27 // pred_region
        %s223 = smul.u32 %s19, 8
        %s224 = ssub.s32 %s223, 1
        %p225 = scmp.gt.s32.totalorder %s224, 0
        %s226 = scalar_select %p225, %s224, 0
        %p227 = scmp.lt.s32.totalorder %s18, 1
        %s228 = scalar_select %p227, %s18, 1
        %p229 = scmp.lt.s32.totalorder %s226, 7
        %s230 = scalar_select %p229, %s226, 7
        %s231 = smul.addr %s230, 2
        %s232 = sadd.s32 1, %s231
        %s233 = smul.addr %s228, 16
        %s234 = sadd.s32 %s232, %s233
        %s235 = smul.addr %s234, 4
        %s236 = scalar_lea.vmem %s1, %s235
        %s237 = smul.u32 %s19, 8
        %s238 = ssub.s32 %s237, 1
        %p239 = scmp.gt.s32.totalorder %s238, 0
        %s240 = scalar_select %p239, %s238, 0
      $region36: #{detail_branch.8} parent=27 // pred_fallthru
        _
    $region28: #{detail_branch.8} parent=5 // pred_fallthru
      _
    %p241 = scmp.le.s32.totalorder 1, %s11
    %p242 = scmp.lt.s32.totalorder %s11, 3
    %p243 = pnand %p241, %p242
    %p244 = pneg %p243
    // Predicated region
    $region37: #{detail_branch.8} parent=5 // pred_check
      _
    $region38: #{detail_branch.8} parent=5 // pred_check_branch
      %246 = sbr.rel (%p243) target = $region40
    $region39: #{detail_branch.8} parent=5 // pred_region
      %s247 = ssub.s32 %s11, 1
      %s248 = smul.u32 8, %s21
      %p249 = scmp.lt.s32.totalorder %s20, 1
      %s250 = scalar_select %p249, %s20, 1
      %p251 = scmp.lt.s32.totalorder %s248, 7
      %s252 = scalar_select %p251, %s248, 7
      %s253 = smul.addr %s252, 2
      %s254 = smul.addr %s250, 16
      %s255 = sadd.s32 %s253, %s254
      %s256 = smul.addr %s255, 4
      %s257 = scalar_lea.vmem %s0, %s256
      %p258 = pneg %p51
      %p259 = pneg %p48
      %s260 = smul.u32 %s21, 8
      %s261 = ssub.s32 %s260, 1
      %p262 = scmp.gt.s32.totalorder %s261, 0
      %s263 = scalar_select %p262, %s261, 0
      %p264 = scmp.lt.s32.totalorder %s20, 1
      %s265 = scalar_select %p264, %s20, 1
      %p266 = scmp.lt.s32.totalorder %s263, 7
      %s267 = scalar_select %p266, %s263, 7
      %s268 = smul.addr %s267, 2
      %s269 = sadd.s32 1, %s268
      %s270 = smul.addr %s265, 16
      %s271 = sadd.s32 %s269, %s270
      %s272 = smul.addr %s271, 4
      %s273 = scalar_lea.vmem %s1, %s272
      %p274 = pneg %p87
      %p275 = pneg %p84
      %p276 = pneg %p108
      %p277 = pneg %p105
      %p278 = pneg %p129
      %p279 = pneg %p126
      %p280 = pneg %p150
      %p281 = pneg %p147
      %p282 = pneg %p178
      %p283 = pneg %p175
      %s284 = smul.u32 8, %s21
      %p285 = scmp.lt.s32.totalorder %s20, 1
      %s286 = scalar_select %p285, %s20, 1
      %p287 = scmp.lt.s32.totalorder %s284, 7
      %s288 = scalar_select %p287, %s284, 7
      %s289 = smul.addr %s286, 8
      %s290 = sadd.s32 %s288, %s289
      %s291 = smul.addr %s290, 4
      %s292 = scalar_lea.vmem %s5, %s291
      %s293 = smul.u32 8, %s21
      %p294 = scmp.lt.s32.totalorder %s20, 1
      %s295 = scalar_select %p294, %s20, 1
      %p296 = scmp.lt.s32.totalorder %s293, 7
      %s297 = scalar_select %p296, %s293, 7
      %s298 = smul.addr %s297, 2
      %s299 = smul.addr %s295, 16
      %s300 = sadd.s32 %s298, %s299
      %s301 = smul.addr %s300, 4
      %s302 = scalar_lea.vmem %s0, %s301
      %s303 = smul.u32 8, %s21
      %s304 = smul.u32 %s21, 8
      %s305 = ssub.s32 %s304, 1
      %p306 = scmp.gt.s32.totalorder %s305, 0
      %s307 = scalar_select %p306, %s305, 0
      %p308 = scmp.lt.s32.totalorder %s20, 1
      %s309 = scalar_select %p308, %s20, 1
      %p310 = scmp.lt.s32.totalorder %s307, 7
      %s311 = scalar_select %p310, %s307, 7
      %s312 = smul.addr %s311, 2
      %s313 = sadd.s32 1, %s312
      %s314 = smul.addr %s309, 16
      %s315 = sadd.s32 %s313, %s314
      %s316 = smul.addr %s315, 4
      %s317 = scalar_lea.vmem %s1, %s316
      %s318 = smul.u32 %s21, 8
      %s319 = ssub.s32 %s318, 1
      %p320 = scmp.gt.s32.totalorder %s319, 0
      %s321 = scalar_select %p320, %s319, 0
      %s322 = smul.u32 8, %s21
      %p323 = scmp.lt.s32.totalorder %s20, 1
      %s324 = scalar_select %p323, %s20, 1
      %p325 = scmp.lt.s32.totalorder %s322, 7
      %s326 = scalar_select %p325, %s322, 7
      %s327 = smul.addr %s324, 8
      %s328 = sadd.s32 %s326, %s327
      %s329 = smul.addr %s328, 4
      %s330 = scalar_lea.vmem %s5, %s329
      %s331 = smul.u32 8, %s21
      %vm333 = vcmask 40960
      %vm334 = vsmask.f32 256
      %vm335 = vmand %vm333, %vm334
      %v336 = vld [vmem:[#allocation2] sm:$0x1]
      %v337 = vsel %vm335, 0, %v336
      %338 = vst [vmem:[#allocation2] sm:$0x1] %v337
      %v339 = vld [vmem:[#allocation2 + $0x4] sm:$0x1]
      %v340 = vsel %vm335, 0, %v339
      %341 = vst [vmem:[#allocation2 + $0x4] sm:$0x1] %v340
      %v342 = vld [vmem:[#allocation2 + $0x8] sm:$0x1]
      %v343 = vsel %vm335, 0, %v342
      %344 = vst [vmem:[#allocation2 + $0x8] sm:$0x1] %v343
      %v345 = vld [vmem:[#allocation2 + $0xc] sm:$0x1]
      %v346 = vsel %vm335, 0, %v345
      %347 = vst [vmem:[#allocation2 + $0xc] sm:$0x1] %v346
      %v348 = vld [vmem:[#allocation2 + $0x10] sm:$0x1]
      %v349 = vsel %vm335, 0, %v348
      %350 = vst [vmem:[#allocation2 + $0x10] sm:$0x1] %v349
      %v351 = vld [vmem:[#allocation2 + $0x14] sm:$0x1]
      %v352 = vsel %vm335, 0, %v351
      %353 = vst [vmem:[#allocation2 + $0x14] sm:$0x1] %v352
      %v354 = vld [vmem:[#allocation2 + $0x18] sm:$0x1]
      %v355 = vsel %vm335, 0, %v354
      %356 = vst [vmem:[#allocation2 + $0x18] sm:$0x1] %v355
      %v357 = vld [vmem:[#allocation2 + $0x1c] sm:$0x1]
      %v358 = vsel %vm335, 0, %v357
      %359 = vst [vmem:[#allocation2 + $0x1c] sm:$0x1] %v358
      %vm360 = vcmask 139360
      %vm361 = vmand %vm360, %vm334
      %v362 = vld [vmem:[#allocation2] sm:$0x1]
      %v363 = vsel %vm361, 0, %v362
      %364 = vst [vmem:[#allocation2] sm:$0x1] %v363
      %v365 = vld [vmem:[#allocation2 + $0x4] sm:$0x1]
      %v366 = vsel %vm361, 0, %v365
      %367 = vst [vmem:[#allocation2 + $0x4] sm:$0x1] %v366
      %v368 = vld [vmem:[#allocation2 + $0x8] sm:$0x1]
      %v369 = vsel %vm361, 0, %v368
      %370 = vst [vmem:[#allocation2 + $0x8] sm:$0x1] %v369
      %v371 = vld [vmem:[#allocation2 + $0xc] sm:$0x1]
      %v372 = vsel %vm361, 0, %v371
      %373 = vst [vmem:[#allocation2 + $0xc] sm:$0x1] %v372
      %v374 = vld [vmem:[#allocation2 + $0x10] sm:$0x1]
      %v375 = vsel %vm361, 0, %v374
      %376 = vst [vmem:[#allocation2 + $0x10] sm:$0x1] %v375
      %v377 = vld [vmem:[#allocation2 + $0x14] sm:$0x1]
      %v378 = vsel %vm361, 0, %v377
      %379 = vst [vmem:[#allocation2 + $0x14] sm:$0x1] %v378
      %v380 = vld [vmem:[#allocation2 + $0x18] sm:$0x1]
      %v381 = vsel %vm361, 0, %v380
      %382 = vst [vmem:[#allocation2 + $0x18] sm:$0x1] %v381
      %v383 = vld [vmem:[#allocation2 + $0x1c] sm:$0x1]
      %v384 = vsel %vm361, 0, %v383
      %385 = vst [vmem:[#allocation2 + $0x1c] sm:$0x1] %v384
      %vm386 = vcmask 237760
      %vm387 = vmand %vm386, %vm334
      %v388 = vld [vmem:[#allocation2] sm:$0x1]
      %v389 = vsel %vm387, 0, %v388
      %390 = vst [vmem:[#allocation2] sm:$0x1] %v389
      %v391 = vld [vmem:[#allocation2 + $0x4] sm:$0x1]
      %v392 = vsel %vm387, 0, %v391
      %393 = vst [vmem:[#allocation2 + $0x4] sm:$0x1] %v392
      %v394 = vld [vmem:[#allocation2 + $0x8] sm:$0x1]
      %v395 = vsel %vm387, 0, %v394
      %396 = vst [vmem:[#allocation2 + $0x8] sm:$0x1] %v395
      %v397 = vld [vmem:[#allocation2 + $0xc] sm:$0x1]
      %v398 = vsel %vm387, 0, %v397
      %399 = vst [vmem:[#allocation2 + $0xc] sm:$0x1] %v398
      %v400 = vld [vmem:[#allocation2 + $0x10] sm:$0x1]
      %v401 = vsel %vm387, 0, %v400
      %402 = vst [vmem:[#allocation2 + $0x10] sm:$0x1] %v401
      %v403 = vld [vmem:[#allocation2 + $0x14] sm:$0x1]
      %v404 = vsel %vm387, 0, %v403
      %405 = vst [vmem:[#allocation2 + $0x14] sm:$0x1] %v404
      %v406 = vld [vmem:[#allocation2 + $0x18] sm:$0x1]
      %v407 = vsel %vm387, 0, %v406
      %408 = vst [vmem:[#allocation2 + $0x18] sm:$0x1] %v407
      %v409 = vld [vmem:[#allocation2 + $0x1c] sm:$0x1]
      %v410 = vsel %vm387, 0, %v409
      %411 = vst [vmem:[#allocation2 + $0x1c] sm:$0x1] %v410
      %v412 = vld [vmem:[%s302] sm:$0xf]
      %v413 = vld [vmem:[%s302 + $0x8] sm:$0xf]
      %v414 = vld [vmem:[%s302 + $0x10] sm:$0xf]
      %v415 = vld [vmem:[%s302 + $0x18] sm:$0xf]
      %v416 = vld [vmem:[%s302 + $0x20] sm:$0xf]
      %v417 = vld [vmem:[%s302 + $0x28] sm:$0xf]
      %v418 = vld [vmem:[%s302 + $0x30] sm:$0xf]
      %v419 = vld [vmem:[%s302 + $0x38] sm:$0xf]
      %v421 = vshrl.u32 %v412, 16
      %v423 = vrot.slane %v421, 7
      %v424 = vshll.u32 %v412, 16
      %v426 = vor.u32 %v423, %v424
      %v428 = vshrl.u32 %v413, 16
      %v430 = vrot.slane %v428, 7
      %v431 = vshll.u32 %v413, 16
      %v433 = vor.u32 %v430, %v431
      %v435 = vshrl.u32 %v414, 16
      %v437 = vrot.slane %v435, 7
      %v438 = vshll.u32 %v414, 16
      %v440 = vor.u32 %v437, %v438
      %v442 = vshrl.u32 %v415, 16
      %v444 = vrot.slane %v442, 7
      %v445 = vshll.u32 %v415, 16
      %v447 = vor.u32 %v444, %v445
      %v449 = vshrl.u32 %v416, 16
      %v451 = vrot.slane %v449, 7
      %v452 = vshll.u32 %v416, 16
      %v454 = vor.u32 %v451, %v452
      %v456 = vshrl.u32 %v417, 16
      %v458 = vrot.slane %v456, 7
      %v459 = vshll.u32 %v417, 16
      %v461 = vor.u32 %v458, %v459
      %v463 = vshrl.u32 %v418, 16
      %v465 = vrot.slane %v463, 7
      %v466 = vshll.u32 %v418, 16
      %v468 = vor.u32 %v465, %v466
      %v470 = vshrl.u32 %v419, 16
      %v472 = vrot.slane %v470, 7
      %v473 = vshll.u32 %v419, 16
      %v475 = vor.u32 %v472, %v473
      %476 = vrot.lane.b32.xlu0 %v426, 12
      %v477 = vpop.permute.xlu0 %476
      %478 = vrot.lane.b32.xlu0 %v433, 12
      %v479 = vpop.permute.xlu0 %478
      %480 = vrot.lane.b32.xlu0 %v440, 12
      %v481 = vpop.permute.xlu0 %480
      %482 = vrot.lane.b32.xlu0 %v447, 12
      %v483 = vpop.permute.xlu0 %482
      %484 = vrot.lane.b32.xlu0 %v454, 12
      %v485 = vpop.permute.xlu0 %484
      %486 = vrot.lane.b32.xlu0 %v461, 12
      %v487 = vpop.permute.xlu0 %486
      %488 = vrot.lane.b32.xlu0 %v468, 12
      %v489 = vpop.permute.xlu0 %488
      %490 = vrot.lane.b32.xlu0 %v475, 12
      %v491 = vpop.permute.xlu0 %490
      %vm500 = vcmask 142432
      %vm501 = vsmask.f32 7938
      %vm502 = vmand %vm500, %vm501
      %v503 = vld [vmem:[#allocation2] sm:$0xf]
      %v504 = vsel %vm502, %v477, %v503
      %505 = vst [vmem:[#allocation2] sm:$0xf] %v504
      %v506 = vld [vmem:[#allocation2 + $0x4] sm:$0xf]
      %v507 = vsel %vm502, %v479, %v506
      %508 = vst [vmem:[#allocation2 + $0x4] sm:$0xf] %v507
      %v509 = vld [vmem:[#allocation2 + $0x8] sm:$0xf]
      %v510 = vsel %vm502, %v481, %v509
      %511 = vst [vmem:[#allocation2 + $0x8] sm:$0xf] %v510
      %v512 = vld [vmem:[#allocation2 + $0xc] sm:$0xf]
      %v513 = vsel %vm502, %v483, %v512
      %514 = vst [vmem:[#allocation2 + $0xc] sm:$0xf] %v513
      %v515 = vld [vmem:[#allocation2 + $0x10] sm:$0xf]
      %v516 = vsel %vm502, %v485, %v515
      %517 = vst [vmem:[#allocation2 + $0x10] sm:$0xf] %v516
      %v518 = vld [vmem:[#allocation2 + $0x14] sm:$0xf]
      %v519 = vsel %vm502, %v487, %v518
      %520 = vst [vmem:[#allocation2 + $0x14] sm:$0xf] %v519
      %v521 = vld [vmem:[#allocation2 + $0x18] sm:$0xf]
      %v522 = vsel %vm502, %v489, %v521
      %523 = vst [vmem:[#allocation2 + $0x18] sm:$0xf] %v522
      %v524 = vld [vmem:[#allocation2 + $0x1c] sm:$0xf]
      %v525 = vsel %vm502, %v491, %v524
      %526 = vst [vmem:[#allocation2 + $0x1c] sm:$0xf] %v525
      %535 = vrot.lane.b32.xlu0 %v412, 18
      %v536 = vpop.permute.xlu0 %535
      %537 = vrot.lane.b32.xlu0 %v413, 18
      %v538 = vpop.permute.xlu0 %537
      %539 = vrot.lane.b32.xlu0 %v414, 18
      %v540 = vpop.permute.xlu0 %539
      %541 = vrot.lane.b32.xlu0 %v415, 18
      %v542 = vpop.permute.xlu0 %541
      %543 = vrot.lane.b32.xlu0 %v416, 18
      %v544 = vpop.permute.xlu0 %543
      %545 = vrot.lane.b32.xlu0 %v417, 18
      %v546 = vpop.permute.xlu0 %545
      %547 = vrot.lane.b32.xlu0 %v418, 18
      %v548 = vpop.permute.xlu0 %547
      %549 = vrot.lane.b32.xlu0 %v419, 18
      %v550 = vpop.permute.xlu0 %549
      %vm559 = vcmask 191632
      %560 = vst.msk [vmem:[#allocation2] sm:$0xf] %vm559, %v536
      %561 = vst.msk [vmem:[#allocation2 + $0x4] sm:$0xf] %vm559, %v538
      %562 = vst.msk [vmem:[#allocation2 + $0x8] sm:$0xf] %vm559, %v540
      %563 = vst.msk [vmem:[#allocation2 + $0xc] sm:$0xf] %vm559, %v542
      %564 = vst.msk [vmem:[#allocation2 + $0x10] sm:$0xf] %vm559, %v544
      %565 = vst.msk [vmem:[#allocation2 + $0x14] sm:$0xf] %vm559, %v546
      %566 = vst.msk [vmem:[#allocation2 + $0x18] sm:$0xf] %vm559, %v548
      %567 = vst.msk [vmem:[#allocation2 + $0x1c] sm:$0xf] %vm559, %v550
      %s568 = scalar_lea.vmem %s302, 4
      %v569 = vld [vmem:[%s568] sm:$0xf]
      %v570 = vld [vmem:[%s568 + $0x8] sm:$0xf]
      %v571 = vld [vmem:[%s568 + $0x10] sm:$0xf]
      %v572 = vld [vmem:[%s568 + $0x18] sm:$0xf]
      %v573 = vld [vmem:[%s568 + $0x20] sm:$0xf]
      %v574 = vld [vmem:[%s568 + $0x28] sm:$0xf]
      %v575 = vld [vmem:[%s568 + $0x30] sm:$0xf]
      %v576 = vld [vmem:[%s568 + $0x38] sm:$0xf]
      %v578 = vshrl.u32 %v569, 16
      %v580 = vrot.slane %v578, 7
      %v581 = vshll.u32 %v569, 16
      %v583 = vor.u32 %v580, %v581
      %v585 = vshrl.u32 %v570, 16
      %v587 = vrot.slane %v585, 7
      %v588 = vshll.u32 %v570, 16
      %v590 = vor.u32 %v587, %v588
      %v592 = vshrl.u32 %v571, 16
      %v594 = vrot.slane %v592, 7
      %v595 = vshll.u32 %v571, 16
      %v597 = vor.u32 %v594, %v595
      %v599 = vshrl.u32 %v572, 16
      %v601 = vrot.slane %v599, 7
      %v602 = vshll.u32 %v572, 16
      %v604 = vor.u32 %v601, %v602
      %v606 = vshrl.u32 %v573, 16
      %v608 = vrot.slane %v606, 7
      %v609 = vshll.u32 %v573, 16
      %v611 = vor.u32 %v608, %v609
      %v613 = vshrl.u32 %v574, 16
      %v615 = vrot.slane %v613, 7
      %v616 = vshll.u32 %v574, 16
      %v618 = vor.u32 %v615, %v616
      %v620 = vshrl.u32 %v575, 16
      %v622 = vrot.slane %v620, 7
      %v623 = vshll.u32 %v575, 16
      %v625 = vor.u32 %v622, %v623
      %v627 = vshrl.u32 %v576, 16
      %v629 = vrot.slane %v627, 7
      %v630 = vshll.u32 %v576, 16
      %v632 = vor.u32 %v629, %v630
      %633 = vrot.lane.b32.xlu0 %v583, 24
      %v634 = vpop.permute.xlu0 %633
      %635 = vrot.lane.b32.xlu0 %v590, 24
      %v636 = vpop.permute.xlu0 %635
      %637 = vrot.lane.b32.xlu0 %v597, 24
      %v638 = vpop.permute.xlu0 %637
      %639 = vrot.lane.b32.xlu0 %v604, 24
      %v640 = vpop.permute.xlu0 %639
      %641 = vrot.lane.b32.xlu0 %v611, 24
      %v642 = vpop.permute.xlu0 %641
      %643 = vrot.lane.b32.xlu0 %v618, 24
      %v644 = vpop.permute.xlu0 %643
      %645 = vrot.lane.b32.xlu0 %v625, 24
      %v646 = vpop.permute.xlu0 %645
      %647 = vrot.lane.b32.xlu0 %v632, 24
      %v648 = vpop.permute.xlu0 %647
      %vm657 = vcmask 240832
      %vm658 = vmand %vm657, %vm501
      %v659 = vld [vmem:[#allocation2] sm:$0xf]
      %v660 = vsel %vm658, %v634, %v659
      %661 = vst [vmem:[#allocation2] sm:$0xf] %v660
      %v662 = vld [vmem:[#allocation2 + $0x4] sm:$0xf]
      %v663 = vsel %vm658, %v636, %v662
      %664 = vst [vmem:[#allocation2 + $0x4] sm:$0xf] %v663
      %v665 = vld [vmem:[#allocation2 + $0x8] sm:$0xf]
      %v666 = vsel %vm658, %v638, %v665
      %667 = vst [vmem:[#allocation2 + $0x8] sm:$0xf] %v666
      %v668 = vld [vmem:[#allocation2 + $0xc] sm:$0xf]
      %v669 = vsel %vm658, %v640, %v668
      %670 = vst [vmem:[#allocation2 + $0xc] sm:$0xf] %v669
      %v671 = vld [vmem:[#allocation2 + $0x10] sm:$0xf]
      %v672 = vsel %vm658, %v642, %v671
      %673 = vst [vmem:[#allocation2 + $0x10] sm:$0xf] %v672
      %v674 = vld [vmem:[#allocation2 + $0x14] sm:$0xf]
      %v675 = vsel %vm658, %v644, %v674
      %676 = vst [vmem:[#allocation2 + $0x14] sm:$0xf] %v675
      %v677 = vld [vmem:[#allocation2 + $0x18] sm:$0xf]
      %v678 = vsel %vm658, %v646, %v677
      %679 = vst [vmem:[#allocation2 + $0x18] sm:$0xf] %v678
      %v680 = vld [vmem:[#allocation2 + $0x1c] sm:$0xf]
      %v681 = vsel %vm658, %v648, %v680
      %682 = vst [vmem:[#allocation2 + $0x1c] sm:$0xf] %v681
      %691 = vrot.lane.b32.xlu0 %v569, 30
      %v692 = vpop.permute.xlu0 %691
      %693 = vrot.lane.b32.xlu0 %v570, 30
      %v694 = vpop.permute.xlu0 %693
      %695 = vrot.lane.b32.xlu0 %v571, 30
      %v696 = vpop.permute.xlu0 %695
      %697 = vrot.lane.b32.xlu0 %v572, 30
      %v698 = vpop.permute.xlu0 %697
      %699 = vrot.lane.b32.xlu0 %v573, 30
      %v700 = vpop.permute.xlu0 %699
      %701 = vrot.lane.b32.xlu0 %v574, 30
      %v702 = vpop.permute.xlu0 %701
      %703 = vrot.lane.b32.xlu0 %v575, 30
      %v704 = vpop.permute.xlu0 %703
      %705 = vrot.lane.b32.xlu0 %v576, 30
      %v706 = vpop.permute.xlu0 %705
      %vm715 = vcmask 290032
      %716 = vst.msk [vmem:[#allocation2] sm:$0xf] %vm715, %v692
      %717 = vst.msk [vmem:[#allocation2 + $0x4] sm:$0xf] %vm715, %v694
      %718 = vst.msk [vmem:[#allocation2 + $0x8] sm:$0xf] %vm715, %v696
      %719 = vst.msk [vmem:[#allocation2 + $0xc] sm:$0xf] %vm715, %v698
      %720 = vst.msk [vmem:[#allocation2 + $0x10] sm:$0xf] %vm715, %v700
      %721 = vst.msk [vmem:[#allocation2 + $0x14] sm:$0xf] %vm715, %v702
      %722 = vst.msk [vmem:[#allocation2 + $0x18] sm:$0xf] %vm715, %v704
      %723 = vst.msk [vmem:[#allocation2 + $0x1c] sm:$0xf] %vm715, %v706
      %v724 = vld [vmem:[%s317] sm:$0xf]
      %v726 = vshrl.u32 %v724, 16
      %v728 = vrot.slane %v726, 7
      %v729 = vshll.u32 %v724, 16
      %v731 = vor.u32 %v728, %v729
      %vm733 = vcmask 44032
      %vm734 = vmand %vm733, %vm501
      %v735 = vld [vmem:[#allocation2] sm:$0xf]
      %v736 = vsel %vm734, %v731, %v735
      %737 = vst [vmem:[#allocation2] sm:$0xf] %v736
      %739 = vrot.lane.b32.xlu0 %v724, 6
      %v740 = vpop.permute.xlu0 %739
      %vm742 = vcmask 93232
      %743 = vst.msk [vmem:[#allocation2] sm:$0xf] %vm742, %v740
      %v744 = vld [vmem:[%s568] sm:$0xf]
      %v745 = vld [vmem:[%s568 + $0x8] sm:$0xf]
      %v746 = vld [vmem:[%s568 + $0x10] sm:$0xf]
      %v747 = vld [vmem:[%s568 + $0x18] sm:$0xf]
      %v748 = vld [vmem:[%s568 + $0x20] sm:$0xf]
      %v749 = vld [vmem:[%s568 + $0x28] sm:$0xf]
      %v750 = vld [vmem:[%s568 + $0x30] sm:$0xf]
      %v752 = vshrl.u32 %v744, 16
      %v754 = vrot.slane %v752, 7
      %v755 = vshll.u32 %v744, 16
      %v757 = vor.u32 %v754, %v755
      %v759 = vshrl.u32 %v745, 16
      %v761 = vrot.slane %v759, 7
      %v762 = vshll.u32 %v745, 16
      %v764 = vor.u32 %v761, %v762
      %v766 = vshrl.u32 %v746, 16
      %v768 = vrot.slane %v766, 7
      %v769 = vshll.u32 %v746, 16
      %v771 = vor.u32 %v768, %v769
      %v773 = vshrl.u32 %v747, 16
      %v775 = vrot.slane %v773, 7
      %v776 = vshll.u32 %v747, 16
      %v778 = vor.u32 %v775, %v776
      %v780 = vshrl.u32 %v748, 16
      %v782 = vrot.slane %v780, 7
      %v783 = vshll.u32 %v748, 16
      %v785 = vor.u32 %v782, %v783
      %v787 = vshrl.u32 %v749, 16
      %v789 = vrot.slane %v787, 7
      %v790 = vshll.u32 %v749, 16
      %v792 = vor.u32 %v789, %v790
      %v794 = vshrl.u32 %v750, 16
      %v796 = vrot.slane %v794, 7
      %v797 = vshll.u32 %v750, 16
      %v799 = vor.u32 %v796, %v797
      %s807 = scalar_lea.vmem [#allocation2], 4
      %v808 = vld [vmem:[%s807] sm:$0xf]
      %v809 = vsel %vm734, %v757, %v808
      %810 = vst [vmem:[%s807] sm:$0xf] %v809
      %v811 = vld [vmem:[%s807 + $0x4] sm:$0xf]
      %v812 = vsel %vm734, %v764, %v811
      %813 = vst [vmem:[%s807 + $0x4] sm:$0xf] %v812
      %v814 = vld [vmem:[%s807 + $0x8] sm:$0xf]
      %v815 = vsel %vm734, %v771, %v814
      %816 = vst [vmem:[%s807 + $0x8] sm:$0xf] %v815
      %v817 = vld [vmem:[%s807 + $0xc] sm:$0xf]
      %v818 = vsel %vm734, %v778, %v817
      %819 = vst [vmem:[%s807 + $0xc] sm:$0xf] %v818
      %v820 = vld [vmem:[%s807 + $0x10] sm:$0xf]
      %v821 = vsel %vm734, %v785, %v820
      %822 = vst [vmem:[%s807 + $0x10] sm:$0xf] %v821
      %v823 = vld [vmem:[%s807 + $0x14] sm:$0xf]
      %v824 = vsel %vm734, %v792, %v823
      %825 = vst [vmem:[%s807 + $0x14] sm:$0xf] %v824
      %v826 = vld [vmem:[%s807 + $0x18] sm:$0xf]
      %v827 = vsel %vm734, %v799, %v826
      %828 = vst [vmem:[%s807 + $0x18] sm:$0xf] %v827
      %836 = vrot.lane.b32.xlu0 %v744, 6
      %v837 = vpop.permute.xlu0 %836
      %838 = vrot.lane.b32.xlu0 %v745, 6
      %v839 = vpop.permute.xlu0 %838
      %840 = vrot.lane.b32.xlu0 %v746, 6
      %v841 = vpop.permute.xlu0 %840
      %842 = vrot.lane.b32.xlu0 %v747, 6
      %v843 = vpop.permute.xlu0 %842
      %844 = vrot.lane.b32.xlu0 %v748, 6
      %v845 = vpop.permute.xlu0 %844
      %846 = vrot.lane.b32.xlu0 %v749, 6
      %v847 = vpop.permute.xlu0 %846
      %848 = vrot.lane.b32.xlu0 %v750, 6
      %v849 = vpop.permute.xlu0 %848
      %857 = vst.msk [vmem:[%s807] sm:$0xf] %vm742, %v837
      %858 = vst.msk [vmem:[%s807 + $0x4] sm:$0xf] %vm742, %v839
      %859 = vst.msk [vmem:[%s807 + $0x8] sm:$0xf] %vm742, %v841
      %860 = vst.msk [vmem:[%s807 + $0xc] sm:$0xf] %vm742, %v843
      %861 = vst.msk [vmem:[%s807 + $0x10] sm:$0xf] %vm742, %v845
      %862 = vst.msk [vmem:[%s807 + $0x14] sm:$0xf] %vm742, %v847
      %863 = vst.msk [vmem:[%s807 + $0x18] sm:$0xf] %vm742, %v849
      %p864 = scmp.eq.s32.totalorder %s21, 0
      // Predicated region
      $region41: #{detail_branch.8} parent=39 // pred_check
        %p865 = pneg %p864
      $region42: #{detail_branch.8} parent=39 // pred_check_branch
        %867 = sbr.rel (%p865) target = $region44
      $region43: #{detail_branch.8} parent=39 // pred_region
        %vm868 = vcmask 93184
        %869 = vst.msk [vmem:[#allocation2] sm:$0xf] %vm868, 0
      $region44: #{detail_branch.8} parent=39 // pred_fallthru
        _
      %v870 = vld [vmem:[#allocation2] sm:$0xf]
      %v871 = vld [vmem:[#allocation2 + $0x4] sm:$0xf]
      %v872 = vld [vmem:[#allocation2 + $0x8] sm:$0xf]
      %v873 = vld [vmem:[#allocation2 + $0xc] sm:$0xf]
      %v874 = vld [vmem:[#allocation2 + $0x10] sm:$0xf]
      %v875 = vld [vmem:[#allocation2 + $0x14] sm:$0xf]
      %v876 = vld [vmem:[#allocation2 + $0x18] sm:$0xf]
      %v877 = vld [vmem:[#allocation2 + $0x1c] sm:$0xf]
      %v878 = vld [vmem:[%s2] sm:$0xf]
      %v879 = vld [vmem:[%s2 + $0x4] sm:$0xf]
      %v880 = vld [vmem:[%s2 + $0x8] sm:$0xf]
      %v881 = vld [vmem:[%s2 + $0xc] sm:$0xf]
      %v882 = vld [vmem:[%s2 + $0x10] sm:$0x3]
      %v891 = vunpack.c.l.b16 %v870
      %v892 = vunpack.c.l.b16 %v871
      %v893 = vunpack.c.l.b16 %v872
      %v894 = vunpack.c.l.b16 %v873
      %v895 = vunpack.c.l.b16 %v874
      %v896 = vunpack.c.l.b16 %v875
      %v897 = vunpack.c.l.b16 %v876
      %v898 = vunpack.c.l.b16 %v877
      %v899 = vpack.c.b16 %v892, %v891
      %v900 = vpack.c.b16 %v894, %v893
      %v901 = vpack.c.b16 %v896, %v895
      %v902 = vpack.c.b16 %v898, %v897
      %v908 = vunpack.c.l.b16 %v878
      %v909 = vunpack.c.l.b16 %v879
      %v910 = vunpack.c.l.b16 %v880
      %v911 = vunpack.c.l.b16 %v881
      %v912 = vunpack.c.l.b16 %v882
      %v913 = vpack.c.b16 %v909, %v908
      %v914 = vpack.c.b16 %v911, %v910
      %v915 = vpack.c.b16 %v912, %v912
      %vm918 = vcmask 293888
      %v920 = vsel %vm918, %v899, 0
      %v923 = vsel %vm918, %v900, 0
      %v926 = vsel %vm918, %v901, 0
      %v929 = vsel %vm918, %v902, 0
      %vm931 = vcmask 1041408
      %v933 = vsel %vm931, %v915, 0
      %935 = vmatprep.subr.bf16.mxu0 0
      %936 = vmatpush1.bf16.msra.mxu0 0
      %937 = vmatprep.subr.bf16.mxu0 0
      %938 = vmatpush1.bf16.msra.mxu0 0
      %939 = vmatprep.subr.bf16.mxu0 0
      %940 = vmatpush1.bf16.msra.mxu0 0
      %941 = vmatprep.subr.bf16.mxu0 0
      %942 = vmatpush1.bf16.msra.mxu0 0
      %943 = vmatprep.subr.bf16.mxu0 0
      %944 = vmatpush1.bf16.msra.mxu0 0
      %945 = vmatprep.subr.bf16.mxu0 0
      %946 = vmatpush1.bf16.msra.mxu0 %v933
      %947 = vmatprep.subr.bf16.mxu0 0
      %948 = vmatpush1.bf16.msra.mxu0 %v914
      %949 = vmatprep.subr.bf16.mxu0 0
      %950 = vmatpush1.bf16.msra.mxu0 %v913
      %951 = vmatprep.subr.bf16.mxu0 0
      %952 = vmatpush2.bf16.msra.mxu0 0
      %953 = vmatprep.subr.bf16.mxu0 0
      %954 = vmatpush2.bf16.msra.mxu0 0
      %955 = vmatprep.subr.bf16.mxu0 0
      %956 = vmatpush2.bf16.msra.mxu0 0
      %957 = vmatprep.subr.bf16.mxu0 0
      %958 = vmatpush2.bf16.msra.mxu0 0
      %959 = vmatprep.subr.bf16.mxu0 0
      %960 = vmatpush2.bf16.msra.mxu0 0
      %961 = vmatprep.subr.bf16.mxu0 0
      %962 = vmatpush2.bf16.msra.mxu0 0
      %963 = vmatprep.subr.bf16.mxu0 0
      %964 = vmatpush2.bf16.msra.mxu0 0
      %965 = vmatprep.subr.bf16.mxu0 0
      %966 = vmatpush2.bf16.msra.mxu0 0
      %967 = vmatprep.mubr.bf16.mxu0 0
      %968 = vmatmul.mubr.bf16.gmra.mxu0 %v920
      %v969 = vpop.f32.mrf.mxu0
      %v970 = vadd.f32 0.0, %v969
      %v971 = vpop.f32.mrf.mxu0
      %v972 = vpop.f32.mrf.mxu0
      %v973 = vadd.f32 0.0, %v972
      %v974 = vpop.f32.mrf.mxu0
      %975 = vmatprep.mubr.bf16.mxu0 0
      %976 = vmatmul.mubr.bf16.gmra.mxu0 %v923
      %v977 = vpop.f32.mrf.mxu0
      %v978 = vadd.f32 0.0, %v977
      %v979 = vpop.f32.mrf.mxu0
      %v980 = vpop.f32.mrf.mxu0
      %v981 = vadd.f32 0.0, %v980
      %v982 = vpop.f32.mrf.mxu0
      %983 = vmatprep.mubr.bf16.mxu0 0
      %984 = vmatmul.mubr.bf16.gmra.mxu0 %v926
      %v985 = vpop.f32.mrf.mxu0
      %v986 = vadd.f32 0.0, %v985
      %v987 = vpop.f32.mrf.mxu0
      %v988 = vpop.f32.mrf.mxu0
      %v989 = vadd.f32 0.0, %v988
      %v990 = vpop.f32.mrf.mxu0
      %991 = vmatprep.mubr.bf16.mxu0 0
      %992 = vmatmul.mubr.bf16.gmra.mxu0 %v929
      %v993 = vpop.f32.mrf.mxu0
      %v994 = vadd.f32 0.0, %v993
      %v995 = vpop.f32.mrf.mxu0
      %v996 = vpop.f32.mrf.mxu0
      %v997 = vadd.f32 0.0, %v996
      %v998 = vpop.f32.mrf.mxu0
      %999 = vdwg.mxu0
      %v1000 = vld [vmem:[%s3] sm:$0x1]
      %v1002 = vlaneseq
      %v1003 = vshrl.u32 %v1002, 7
      %v1004 = vsub.s32 0, %v1003
      %v1005 = vrot.slane %v1000, %v1004
      %v1007 = vmul.f32 %v970, %v1005
      %v1008 = vmul.f32 %v973, %v1005
      %v1009 = vmul.f32 %v978, %v1005
      %v1010 = vmul.f32 %v981, %v1005
      %v1011 = vmul.f32 %v986, %v1005
      %v1012 = vmul.f32 %v989, %v1005
      %v1013 = vmul.f32 %v994, %v1005
      %v1014 = vmul.f32 %v997, %v1005
      %v1015 = vld [vmem:[%s4] sm:$0x1]
      %v1017 = vlaneseq
      %v1018 = vshrl.u32 %v1017, 7
      %v1019 = vsub.s32 0, %v1018
      %v1020 = vrot.slane %v1015, %v1019
      %v1022 = vadd.f32 %v1007, %v1020
      %v1023 = vadd.f32 %v1008, %v1020
      %v1024 = vadd.f32 %v1009, %v1020
      %v1025 = vadd.f32 %v1010, %v1020
      %v1026 = vadd.f32 %v1011, %v1020
      %v1027 = vadd.f32 %v1012, %v1020
      %v1028 = vadd.f32 %v1013, %v1020
      %v1029 = vadd.f32 %v1014, %v1020
      %v1030 = vmax.f32 %v1022, 0.0
      %v1031 = vmax.f32 %v1023, 0.0
      %v1032 = vmax.f32 %v1024, 0.0
      %v1033 = vmax.f32 %v1025, 0.0
      %v1034 = vmax.f32 %v1026, 0.0
      %v1035 = vmax.f32 %v1027, 0.0
      %v1036 = vmax.f32 %v1028, 0.0
      %v1037 = vmax.f32 %v1029, 0.0
      %v1038 = vpack.c.bf16 %v1031, %v1030
      %v1039 = vpack.c.bf16 %v1033, %v1032
      %v1040 = vpack.c.bf16 %v1035, %v1034
      %v1041 = vpack.c.bf16 %v1037, %v1036
      %v1046 = vunpack.c.l.b16 %v1038
      %v1047 = vunpack.c.h.b16 %v1038
      %v1048 = vunpack.c.l.b16 %v1039
      %v1049 = vunpack.c.h.b16 %v1039
      %v1050 = vunpack.c.l.b16 %v1040
      %v1051 = vunpack.c.h.b16 %v1040
      %v1052 = vunpack.c.l.b16 %v1041
      %v1053 = vunpack.c.h.b16 %v1041
      %v1054 = vpack.c.b16 %v1046, %v1046
      %v1055 = vpack.c.b16 %v1047, %v1047
      %v1056 = vpack.c.b16 %v1048, %v1048
      %v1057 = vpack.c.b16 %v1049, %v1049
      %v1058 = vpack.c.b16 %v1050, %v1050
      %v1059 = vpack.c.b16 %v1051, %v1051
      %v1060 = vpack.c.b16 %v1052, %v1052
      %v1061 = vpack.c.b16 %v1053, %v1053
      %vm1070 = vcmask 519168
      %1071 = vst.msk [vmem:[%s330] sm:$0xf] %vm1070, %v1054
      %1072 = vst.msk [vmem:[%s330 + $0x4] sm:$0xf] %vm1070, %v1055
      %1073 = vst.msk [vmem:[%s330 + $0x8] sm:$0xf] %vm1070, %v1056
      %1074 = vst.msk [vmem:[%s330 + $0xc] sm:$0xf] %vm1070, %v1057
      %1075 = vst.msk [vmem:[%s330 + $0x10] sm:$0xf] %vm1070, %v1058
      %1076 = vst.msk [vmem:[%s330 + $0x14] sm:$0xf] %vm1070, %v1059
      %1077 = vst.msk [vmem:[%s330 + $0x18] sm:$0xf] %vm1070, %v1060
      %1078 = vst.msk [vmem:[%s330 + $0x1c] sm:$0xf] %vm1070, %v1061
      %s1079 = smul.u32 8, %s21
      %p1080 = scmp.lt.s32.totalorder %s20, 1
      %s1081 = scalar_select %p1080, %s20, 1
      %p1082 = scmp.lt.s32.totalorder %s1079, 7
      %s1083 = scalar_select %p1082, %s1079, 7
      %s1084 = smul.addr %s1081, 8
      %s1085 = sadd.s32 %s1083, %s1084
      %s1086 = smul.addr %s1085, 4
      %s1087 = scalar_lea.vmem %s5, %s1086
      // Predicated region
      $region45: #{detail_branch.8} parent=39 // pred_check
        %p1088 = pneg %p175
      $region46: #{detail_branch.8} parent=39 // pred_check_branch
        %1090 = sbr.rel (%p1088) target = $region48
      $region47: #{detail_branch.8} parent=39 // pred_region
        %s1091 = smul.u32 8, %s21
      $region48: #{detail_branch.8} parent=39 // pred_fallthru
        _
    $region40: #{detail_branch.8} parent=5 // pred_fallthru
      _
    %p1092 = scmp.le.s32.totalorder 2, %s11
    // Predicated region
    $region49: #{detail_branch.8} parent=5 // pred_check
      %p1093 = pneg %p1092
    $region50: #{detail_branch.8} parent=5 // pred_check_branch
      %1095 = sbr.rel (%p1093) target = $region52
    $region51: #{detail_branch.8} parent=5 // pred_region
      %s1096 = ssub.s32 %s11, 2
      // Predicated region
      $region53: #{detail_branch.8} parent=51 // pred_check
        %p1097 = pneg %p181
      $region54: #{detail_branch.8} parent=51 // pred_check_branch
        %1099 = sbr.rel (%p1097) target = $region56
      $region55: #{detail_branch.8} parent=51 // pred_region
        %s1100 = smul.u32 8, %s23
        %p1101 = scmp.lt.s32.totalorder %s22, 1
        %s1102 = scalar_select %p1101, %s22, 1
        %p1103 = scmp.lt.s32.totalorder %s1100, 7
        %s1104 = scalar_select %p1103, %s1100, 7
        %s1105 = smul.addr %s1102, 8
        %s1106 = sadd.s32 %s1104, %s1105
        %s1107 = smul.addr %s1106, 4
        %s1108 = scalar_lea.vmem %s5, %s1107
      $region56: #{detail_branch.8} parent=51 // pred_fallthru
        _
    $region52: #{detail_branch.8} parent=5 // pred_fallthru
      _
  $region6: #{detail_branch.8} parent=0 // loop_footer
    %s15 = sadd.s32 1, %s11
  $region7: #{detail_branch.8} parent=0 // loop_footer_branch
    %10 = sbr.rel target = $region3
  $region8: #{detail_branch.8} parent=0 // loop_exit
    _

// kernel: detail_branch.9
$region0: #{detail_branch.9}
  #allocation0 [shape = 'u32[]', space=smem, size = 0x4, offset = 0x4, fixed_abs, tag = 'smem constant byte address 0x4 - core index']
  #allocation1 [shape = 'u32[144,128]{1,0:T(1,128)}', space=vmem, size = 0x12000, scoped, tag = 'internal scratch']
  #allocation2 [shape = 'bf16[10,8,192]{2,1,0:T(8,128)(2,1)}', space=vmem, size = 0xa000, scoped, tag = 'scratch operand']
  %s0 = inlined_call_operand.vmem [shape: bf16[2,8,8,64], index: 0, kind: input, shape index: {}, may-alias: {0,1,2}]
  %s1 = inlined_call_operand.vmem [shape: bf16[2,8,8,64], index: 1, kind: input, shape index: {}, may-alias: {0,1,2}]
  %s2 = inlined_call_operand.vmem [shape: bf16[2,8,8,64], index: 2, kind: input, shape index: {}, may-alias: {0,1,2}]
  %s3 = inlined_call_operand.vmem [shape: bf16[3,192,64], index: 3, kind: input, shape index: {}]
  %s4 = inlined_call_operand.vmem [shape: f32[1,64], index: 4, kind: input, shape index: {}]
  %s5 = inlined_call_operand.vmem [shape: f32[1,64], index: 5, kind: input, shape index: {}]
  %s6 = inlined_call_operand.vmem [shape: bf16[2,64,64], index: 6, kind: output, shape index: {}]
  %s7 = sld [smem:[#allocation0]]
  $region61: #{detail_branch.9} parent=0
    _
  %s9 = ssub.s32 1, %s7
  %s10 = scalar_select 0, %s9, %s7
  loop: start=0, step=1, limit=4
  $region2: #{detail_branch.9} parent=0 // loop_pre_header
    _
  $region3: #{detail_branch.9} parent=0 // loop_header
    %s12 = sphi 0, %s16
    %p13 = scmp.ge.s32.totalorder %s12, 4
    %s19 = sphi 0, %s31
    %s20 = sphi 0, %s27
    %s21 = sphi 0, %s19
    %s22 = sphi 0, %s20
    %s23 = sphi 0, %s21
    %s24 = sphi 0, %s22
    %s36 = sphi 0, %s38
    %s39 = sphi 0, %s36
    %s40 = sphi 0, %s39
    %s56 = sphi 0, %s40
    %s72 = sphi 0, %s74
    %s75 = sphi 0, %s72
    %s76 = sphi 0, %s75
    %s92 = sphi 0, %s76
    %s108 = sphi 0, %s110
    %s111 = sphi 0, %s108
    %s112 = sphi 0, %s111
    %s128 = sphi 0, %s112
    %s132 = sphi 0, %s132
    %s134 = sphi 0, %s132
    %s135 = sphi 0, %s134
    %s149 = sphi 0, %s135
    %s153 = sphi 0, %s153
    %s155 = sphi 0, %s153
    %s156 = sphi 0, %s155
    %s170 = sphi 0, %s156
    %s174 = sphi 0, %s174
    %s176 = sphi 0, %s174
    %s177 = sphi 0, %s176
    %s191 = sphi 0, %s177
    %s199 = sphi 0, %s201
    %s202 = sphi 0, %s199
    %s203 = sphi 0, %s202
    %s219 = sphi 0, %s203
  $region4: #{detail_branch.9} parent=0 // loop_header_branch
    %15 = sbr.rel (%p13) target = $region8
  $region5: #{detail_branch.9} parent=0 // loop_body
    %s17 = ssub.s32 %s12, 1
    %s18 = ssub.s32 %s12, 2
    %s25 = sadd.s32 1, %s20
    %p26 = scmp.ge.s32.totalorder %s25, 1
    %s27 = scalar_select %p26, 0, %s25
    %s28 = sadd.s32 1, %s19
    %s29 = scalar_select %p26, %s28, %s19
    %p30 = scmp.ge.s32.totalorder %s29, 2
    %s31 = scalar_select %p30, 0, %s29
    %s32 = ssub.s32 %s19, %s31
    %s33 = ssub.s32 %s20, %s27
    %s34 = sor.u32 %s32, %s33
    %p35 = scmp.eq.s32.totalorder %s34, 0
    %s37 = sadd.s32 %s36, 1
    %s38 = scalar_select %p35, %s36, %s37
    %p41 = pneg %p35
    %p42 = scmp.eq.s32.totalorder %s12, 1
    %p43 = por %p41, %p42
    %p44 = scmp.ne.s32.totalorder %s36, %s39
    %p45 = scmp.eq.s32.totalorder %s12, 0
    %p46 = por %p44, %p45
    %p47 = scmp.ne.s32.totalorder %s36, %s39
    %p48 = scmp.eq.s32.totalorder %s17, 1
    %p49 = por %p47, %p48
    %p50 = scmp.ne.s32.totalorder %s39, %s40
    %p51 = scmp.eq.s32.totalorder %s17, 0
    %p52 = por %p50, %p51
    %p53 = scmp.ne.s32.totalorder %s39, %s40
    %p54 = scmp.eq.s32.totalorder %s18, 1
    %p55 = por %p53, %p54
    %p57 = scmp.ne.s32.totalorder %s40, %s56
    %p58 = scmp.eq.s32.totalorder %s18, 0
    %p59 = por %p57, %p58
    %s60 = smul.u32 %s20, 8
    %s61 = ssub.s32 %s60, 1
    %p62 = scmp.gt.s32.totalorder %s61, 0
    %s63 = scalar_select %p62, %s61, 0
    %s64 = smul.u32 %s27, 8
    %s65 = ssub.s32 %s64, 1
    %p66 = scmp.gt.s32.totalorder %s65, 0
    %s67 = scalar_select %p66, %s65, 0
    %s68 = ssub.s32 %s19, %s31
    %s69 = ssub.s32 %s63, %s67
    %s70 = sor.u32 %s68, %s69
    %p71 = scmp.eq.s32.totalorder %s70, 0
    %s73 = sadd.s32 %s72, 1
    %s74 = scalar_select %p71, %s72, %s73
    %p77 = pneg %p71
    %p78 = scmp.eq.s32.totalorder %s12, 1
    %p79 = por %p77, %p78
    %p80 = scmp.ne.s32.totalorder %s72, %s75
    %p81 = scmp.eq.s32.totalorder %s12, 0
    %p82 = por %p80, %p81
    %p83 = scmp.ne.s32.totalorder %s72, %s75
    %p84 = scmp.eq.s32.totalorder %s17, 1
    %p85 = por %p83, %p84
    %p86 = scmp.ne.s32.totalorder %s75, %s76
    %p87 = scmp.eq.s32.totalorder %s17, 0
    %p88 = por %p86, %p87
    %p89 = scmp.ne.s32.totalorder %s75, %s76
    %p90 = scmp.eq.s32.totalorder %s18, 1
    %p91 = por %p89, %p90
    %p93 = scmp.ne.s32.totalorder %s76, %s92
    %p94 = scmp.eq.s32.totalorder %s18, 0
    %p95 = por %p93, %p94
    %s96 = sadd.s32 %s20, 1
    %s97 = smul.u32 %s96, 8
    %p98 = scmp.lt.s32.totalorder %s97, 7
    %s99 = scalar_select %p98, %s97, 7
    %s100 = sadd.s32 %s27, 1
    %s101 = smul.u32 %s100, 8
    %p102 = scmp.lt.s32.totalorder %s101, 7
    %s103 = scalar_select %p102, %s101, 7
    %s104 = ssub.s32 %s19, %s31
    %s105 = ssub.s32 %s99, %s103
    %s106 = sor.u32 %s104, %s105
    %p107 = scmp.eq.s32.totalorder %s106, 0
    %s109 = sadd.s32 %s108, 1
    %s110 = scalar_select %p107, %s108, %s109
    %p113 = pneg %p107
    %p114 = scmp.eq.s32.totalorder %s12, 1
    %p115 = por %p113, %p114
    %p116 = scmp.ne.s32.totalorder %s108, %s111
    %p117 = scmp.eq.s32.totalorder %s12, 0
    %p118 = por %p116, %p117
    %p119 = scmp.ne.s32.totalorder %s108, %s111
    %p120 = scmp.eq.s32.totalorder %s17, 1
    %p121 = por %p119, %p120
    %p122 = scmp.ne.s32.totalorder %s111, %s112
    %p123 = scmp.eq.s32.totalorder %s17, 0
    %p124 = por %p122, %p123
    %p125 = scmp.ne.s32.totalorder %s111, %s112
    %p126 = scmp.eq.s32.totalorder %s18, 1
    %p127 = por %p125, %p126
    %p129 = scmp.ne.s32.totalorder %s112, %s128
    %p130 = scmp.eq.s32.totalorder %s18, 0
    %p131 = por %p129, %p130
    %s133 = sadd.s32 %s132, 1
    %p136 = scmp.eq.s32.totalorder %s12, 1
    %p137 = scmp.ne.s32.totalorder %s132, %s134
    %p138 = scmp.eq.s32.totalorder %s12, 0
    %p139 = por %p137, %p138
    %p140 = scmp.ne.s32.totalorder %s132, %s134
    %p141 = scmp.eq.s32.totalorder %s17, 1
    %p142 = por %p140, %p141
    %p143 = scmp.ne.s32.totalorder %s134, %s135
    %p144 = scmp.eq.s32.totalorder %s17, 0
    %p145 = por %p143, %p144
    %p146 = scmp.ne.s32.totalorder %s134, %s135
    %p147 = scmp.eq.s32.totalorder %s18, 1
    %p148 = por %p146, %p147
    %p150 = scmp.ne.s32.totalorder %s135, %s149
    %p151 = scmp.eq.s32.totalorder %s18, 0
    %p152 = por %p150, %p151
    %s154 = sadd.s32 %s153, 1
    %p157 = scmp.eq.s32.totalorder %s12, 1
    %p158 = scmp.ne.s32.totalorder %s153, %s155
    %p159 = scmp.eq.s32.totalorder %s12, 0
    %p160 = por %p158, %p159
    %p161 = scmp.ne.s32.totalorder %s153, %s155
    %p162 = scmp.eq.s32.totalorder %s17, 1
    %p163 = por %p161, %p162
    %p164 = scmp.ne.s32.totalorder %s155, %s156
    %p165 = scmp.eq.s32.totalorder %s17, 0
    %p166 = por %p164, %p165
    %p167 = scmp.ne.s32.totalorder %s155, %s156
    %p168 = scmp.eq.s32.totalorder %s18, 1
    %p169 = por %p167, %p168
    %p171 = scmp.ne.s32.totalorder %s156, %s170
    %p172 = scmp.eq.s32.totalorder %s18, 0
    %p173 = por %p171, %p172
    %s175 = sadd.s32 %s174, 1
    %p178 = scmp.eq.s32.totalorder %s12, 1
    %p179 = scmp.ne.s32.totalorder %s174, %s176
    %p180 = scmp.eq.s32.totalorder %s12, 0
    %p181 = por %p179, %p180
    %p182 = scmp.ne.s32.totalorder %s174, %s176
    %p183 = scmp.eq.s32.totalorder %s17, 1
    %p184 = por %p182, %p183
    %p185 = scmp.ne.s32.totalorder %s176, %s177
    %p186 = scmp.eq.s32.totalorder %s17, 0
    %p187 = por %p185, %p186
    %p188 = scmp.ne.s32.totalorder %s176, %s177
    %p189 = scmp.eq.s32.totalorder %s18, 1
    %p190 = por %p188, %p189
    %p192 = scmp.ne.s32.totalorder %s177, %s191
    %p193 = scmp.eq.s32.totalorder %s18, 0
    %p194 = por %p192, %p193
    %s195 = ssub.s32 %s19, %s31
    %s196 = ssub.s32 %s20, %s27
    %s197 = sor.u32 %s195, %s196
    %p198 = scmp.eq.s32.totalorder %s197, 0
    %s200 = sadd.s32 %s199, 1
    %s201 = scalar_select %p198, %s199, %s200
    %p204 = pneg %p198
    %p205 = scmp.eq.s32.totalorder %s12, 1
    %p206 = por %p204, %p205
    %p207 = scmp.ne.s32.totalorder %s199, %s202
    %p208 = scmp.eq.s32.totalorder %s12, 0
    %p209 = por %p207, %p208
    %p210 = scmp.ne.s32.totalorder %s199, %s202
    %p211 = scmp.eq.s32.totalorder %s17, 1
    %p212 = por %p210, %p211
    %p213 = scmp.ne.s32.totalorder %s202, %s203
    %p214 = scmp.eq.s32.totalorder %s17, 0
    %p215 = por %p213, %p214
    %p216 = scmp.ne.s32.totalorder %s202, %s203
    %p217 = scmp.eq.s32.totalorder %s18, 1
    %p218 = por %p216, %p217
    %p220 = scmp.ne.s32.totalorder %s203, %s219
    %p221 = scmp.eq.s32.totalorder %s18, 0
    %p222 = por %p220, %p221
    %p223 = scmp.le.s32.totalorder 1, %s12
    %p224 = scmp.lt.s32.totalorder %s12, 3
    %p225 = pnand %p223, %p224
    %p226 = pneg %p225
    // Predicated region
    $region9: #{detail_branch.9} parent=5 // pred_check
      _
    $region10: #{detail_branch.9} parent=5 // pred_check_branch
      %228 = sbr.rel (%p225) target = $region12
    $region11: #{detail_branch.9} parent=5 // pred_region
      %s229 = ssub.s32 %s12, 1
      // Predicated region
      $region13: #{detail_branch.9} parent=11 // pred_check
        %p230 = pneg %p145
      $region14: #{detail_branch.9} parent=11 // pred_check_branch
        %232 = sbr.rel (%p230) target = $region16
      $region15: #{detail_branch.9} parent=11 // pred_region
        _
      $region16: #{detail_branch.9} parent=11 // pred_fallthru
        _
      // Predicated region
      $region17: #{detail_branch.9} parent=11 // pred_check
        %p233 = pneg %p166
      $region18: #{detail_branch.9} parent=11 // pred_check_branch
        %235 = sbr.rel (%p233) target = $region20
      $region19: #{detail_branch.9} parent=11 // pred_region
        _
      $region20: #{detail_branch.9} parent=11 // pred_fallthru
        _
      // Predicated region
      $region21: #{detail_branch.9} parent=11 // pred_check
        %p236 = pneg %p187
      $region22: #{detail_branch.9} parent=11 // pred_check_branch
        %238 = sbr.rel (%p236) target = $region24
      $region23: #{detail_branch.9} parent=11 // pred_region
        _
      $region24: #{detail_branch.9} parent=11 // pred_fallthru
        _
    $region12: #{detail_branch.9} parent=5 // pred_fallthru
      _
    %p239 = scmp.lt.s32.totalorder %s12, 2
    // Predicated region
    $region25: #{detail_branch.9} parent=5 // pred_check
      %p240 = pneg %p239
    $region26: #{detail_branch.9} parent=5 // pred_check_branch
      %242 = sbr.rel (%p240) target = $region28
    $region27: #{detail_branch.9} parent=5 // pred_region
      // Predicated region
      $region29: #{detail_branch.9} parent=27 // pred_check
        %p243 = pneg %p46
      $region30: #{detail_branch.9} parent=27 // pred_check_branch
        %245 = sbr.rel (%p243) target = $region32
      $region31: #{detail_branch.9} parent=27 // pred_region
        %s246 = smul.u32 8, %s20
        %p247 = scmp.lt.s32.totalorder %s19, 1
        %s248 = scalar_select %p247, %s19, 1
        %p249 = scmp.lt.s32.totalorder %s246, 7
        %s250 = scalar_select %p249, %s246, 7
        %s251 = smul.addr %s248, 8
        %s252 = sadd.s32 %s250, %s251
        %s253 = smul.addr %s252, 4
        %s254 = scalar_lea.vmem %s0, %s253
        %s255 = smul.u32 8, %s20
      $region32: #{detail_branch.9} parent=27 // pred_fallthru
        _
      // Predicated region
      $region33: #{detail_branch.9} parent=27 // pred_check
        %p256 = pneg %p82
      $region34: #{detail_branch.9} parent=27 // pred_check_branch
        %258 = sbr.rel (%p256) target = $region36
      $region35: #{detail_branch.9} parent=27 // pred_region
        %s259 = smul.u32 %s20, 8
        %s260 = ssub.s32 %s259, 1
        %p261 = scmp.gt.s32.totalorder %s260, 0
        %s262 = scalar_select %p261, %s260, 0
        %p263 = scmp.lt.s32.totalorder %s19, 1
        %s264 = scalar_select %p263, %s19, 1
        %p265 = scmp.lt.s32.totalorder %s262, 7
        %s266 = scalar_select %p265, %s262, 7
        %s267 = smul.addr %s264, 8
        %s268 = sadd.s32 %s266, %s267
        %s269 = smul.addr %s268, 4
        %s270 = scalar_lea.vmem %s1, %s269
        %s271 = smul.u32 %s20, 8
        %s272 = ssub.s32 %s271, 1
        %p273 = scmp.gt.s32.totalorder %s272, 0
        %s274 = scalar_select %p273, %s272, 0
      $region36: #{detail_branch.9} parent=27 // pred_fallthru
        _
      // Predicated region
      $region37: #{detail_branch.9} parent=27 // pred_check
        %p275 = pneg %p118
      $region38: #{detail_branch.9} parent=27 // pred_check_branch
        %277 = sbr.rel (%p275) target = $region40
      $region39: #{detail_branch.9} parent=27 // pred_region
        %s278 = sadd.s32 %s20, 1
        %s279 = smul.u32 %s278, 8
        %p280 = scmp.lt.s32.totalorder %s279, 7
        %s281 = scalar_select %p280, %s279, 7
        %p282 = scmp.lt.s32.totalorder %s19, 1
        %s283 = scalar_select %p282, %s19, 1
        %p284 = scmp.lt.s32.totalorder %s281, 7
        %s285 = scalar_select %p284, %s281, 7
        %s286 = smul.addr %s283, 8
        %s287 = sadd.s32 %s285, %s286
        %s288 = smul.addr %s287, 4
        %s289 = scalar_lea.vmem %s2, %s288
        %s290 = sadd.s32 %s20, 1
        %s291 = smul.u32 %s290, 8
        %p292 = scmp.lt.s32.totalorder %s291, 7
        %s293 = scalar_select %p292, %s291, 7
      $region40: #{detail_branch.9} parent=27 // pred_fallthru
        _
    $region28: #{detail_branch.9} parent=5 // pred_fallthru
      _
    %p294 = scmp.le.s32.totalorder 1, %s12
    %p295 = scmp.lt.s32.totalorder %s12, 3
    %p296 = pnand %p294, %p295
    %p297 = pneg %p296
    // Predicated region
    $region41: #{detail_branch.9} parent=5 // pred_check
      _
    $region42: #{detail_branch.9} parent=5 // pred_check_branch
      %299 = sbr.rel (%p296) target = $region44
    $region43: #{detail_branch.9} parent=5 // pred_region
      %s300 = ssub.s32 %s12, 1
      %s301 = smul.u32 8, %s22
      %p302 = scmp.lt.s32.totalorder %s21, 1
      %s303 = scalar_select %p302, %s21, 1
      %p304 = scmp.lt.s32.totalorder %s301, 7
      %s305 = scalar_select %p304, %s301, 7
      %s306 = smul.addr %s303, 8
      %s307 = sadd.s32 %s305, %s306
      %s308 = smul.addr %s307, 4
      %s309 = scalar_lea.vmem %s0, %s308
      %p310 = pneg %p52
      %p311 = pneg %p49
      %s312 = smul.u32 %s22, 8
      %s313 = ssub.s32 %s312, 1
      %p314 = scmp.gt.s32.totalorder %s313, 0
      %s315 = scalar_select %p314, %s313, 0
      %p316 = scmp.lt.s32.totalorder %s21, 1
      %s317 = scalar_select %p316, %s21, 1
      %p318 = scmp.lt.s32.totalorder %s315, 7
      %s319 = scalar_select %p318, %s315, 7
      %s320 = smul.addr %s317, 8
      %s321 = sadd.s32 %s319, %s320
      %s322 = smul.addr %s321, 4
      %s323 = scalar_lea.vmem %s1, %s322
      %p324 = pneg %p88
      %p325 = pneg %p85
      %s326 = sadd.s32 %s22, 1
      %s327 = smul.u32 %s326, 8
      %p328 = scmp.lt.s32.totalorder %s327, 7
      %s329 = scalar_select %p328, %s327, 7
      %p330 = scmp.lt.s32.totalorder %s21, 1
      %s331 = scalar_select %p330, %s21, 1
      %p332 = scmp.lt.s32.totalorder %s329, 7
      %s333 = scalar_select %p332, %s329, 7
      %s334 = smul.addr %s331, 8
      %s335 = sadd.s32 %s333, %s334
      %s336 = smul.addr %s335, 4
      %s337 = scalar_lea.vmem %s2, %s336
      %p338 = pneg %p124
      %p339 = pneg %p121
      %p340 = pneg %p145
      %p341 = pneg %p142
      %p342 = pneg %p166
      %p343 = pneg %p163
      %p344 = pneg %p187
      %p345 = pneg %p184
      %p346 = pneg %p215
      %p347 = pneg %p212
      %s348 = smul.u32 8, %s22
      %p349 = scmp.lt.s32.totalorder %s21, 1
      %s350 = scalar_select %p349, %s21, 1
      %p351 = scmp.lt.s32.totalorder %s348, 7
      %s352 = scalar_select %p351, %s348, 7
      %s353 = smul.addr %s350, 8
      %s354 = sadd.s32 %s352, %s353
      %s355 = smul.addr %s354, 4
      %s356 = scalar_lea.vmem %s6, %s355
      %s357 = smul.u32 8, %s22
      %p358 = scmp.lt.s32.totalorder %s21, 1
      %s359 = scalar_select %p358, %s21, 1
      %p360 = scmp.lt.s32.totalorder %s357, 7
      %s361 = scalar_select %p360, %s357, 7
      %s362 = smul.addr %s359, 8
      %s363 = sadd.s32 %s361, %s362
      %s364 = smul.addr %s363, 4
      %s365 = scalar_lea.vmem %s0, %s364
      %s366 = smul.u32 8, %s22
      %s367 = smul.u32 %s22, 8
      %s368 = ssub.s32 %s367, 1
      %p369 = scmp.gt.s32.totalorder %s368, 0
      %s370 = scalar_select %p369, %s368, 0
      %p371 = scmp.lt.s32.totalorder %s21, 1
      %s372 = scalar_select %p371, %s21, 1
      %p373 = scmp.lt.s32.totalorder %s370, 7
      %s374 = scalar_select %p373, %s370, 7
      %s375 = smul.addr %s372, 8
      %s376 = sadd.s32 %s374, %s375
      %s377 = smul.addr %s376, 4
      %s378 = scalar_lea.vmem %s1, %s377
      %s379 = smul.u32 %s22, 8
      %s380 = ssub.s32 %s379, 1
      %p381 = scmp.gt.s32.totalorder %s380, 0
      %s382 = scalar_select %p381, %s380, 0
      %s383 = sadd.s32 %s22, 1
      %s384 = smul.u32 %s383, 8
      %p385 = scmp.lt.s32.totalorder %s384, 7
      %s386 = scalar_select %p385, %s384, 7
      %p387 = scmp.lt.s32.totalorder %s21, 1
      %s388 = scalar_select %p387, %s21, 1
      %p389 = scmp.lt.s32.totalorder %s386, 7
      %s390 = scalar_select %p389, %s386, 7
      %s391 = smul.addr %s388, 8
      %s392 = sadd.s32 %s390, %s391
      %s393 = smul.addr %s392, 4
      %s394 = scalar_lea.vmem %s2, %s393
      %s395 = sadd.s32 %s22, 1
      %s396 = smul.u32 %s395, 8
      %p397 = scmp.lt.s32.totalorder %s396, 7
      %s398 = scalar_select %p397, %s396, 7
      %s399 = smul.u32 8, %s22
      %p400 = scmp.lt.s32.totalorder %s21, 1
      %s401 = scalar_select %p400, %s21, 1
      %p402 = scmp.lt.s32.totalorder %s399, 7
      %s403 = scalar_select %p402, %s399, 7
      %s404 = smul.addr %s401, 8
      %s405 = sadd.s32 %s403, %s404
      %s406 = smul.addr %s405, 4
      %s407 = scalar_lea.vmem %s6, %s406
      %s408 = smul.u32 8, %s22
      %vm410 = vcmask 516096
      %vm411 = vsmask.f32 256
      %vm412 = vmand %vm410, %vm411
      %v413 = vld [vmem:[#allocation2] sm:$0x1]
      %v414 = vsel %vm412, 0, %v413
      %415 = vst [vmem:[#allocation2] sm:$0x1] %v414
      %v416 = vld [vmem:[#allocation2 + $0x8] sm:$0x1]
      %v417 = vsel %vm412, 0, %v416
      %418 = vst [vmem:[#allocation2 + $0x8] sm:$0x1] %v417
      %v419 = vld [vmem:[#allocation2 + $0x10] sm:$0x1]
      %v420 = vsel %vm412, 0, %v419
      %421 = vst [vmem:[#allocation2 + $0x10] sm:$0x1] %v420
      %v422 = vld [vmem:[#allocation2 + $0x18] sm:$0x1]
      %v423 = vsel %vm412, 0, %v422
      %424 = vst [vmem:[#allocation2 + $0x18] sm:$0x1] %v423
      %v425 = vld [vmem:[#allocation2 + $0x20] sm:$0x1]
      %v426 = vsel %vm412, 0, %v425
      %427 = vst [vmem:[#allocation2 + $0x20] sm:$0x1] %v426
      %v428 = vld [vmem:[#allocation2 + $0x28] sm:$0x1]
      %v429 = vsel %vm412, 0, %v428
      %430 = vst [vmem:[#allocation2 + $0x28] sm:$0x1] %v429
      %v431 = vld [vmem:[#allocation2 + $0x30] sm:$0x1]
      %v432 = vsel %vm412, 0, %v431
      %433 = vst [vmem:[#allocation2 + $0x30] sm:$0x1] %v432
      %v434 = vld [vmem:[#allocation2 + $0x38] sm:$0x1]
      %v435 = vsel %vm412, 0, %v434
      %436 = vst [vmem:[#allocation2 + $0x38] sm:$0x1] %v435
      %v437 = vld [vmem:[#allocation2 + $0x40] sm:$0x1]
      %v438 = vsel %vm412, 0, %v437
      %439 = vst [vmem:[#allocation2 + $0x40] sm:$0x1] %v438
      %v440 = vld [vmem:[#allocation2 + $0x48] sm:$0x1]
      %v441 = vsel %vm412, 0, %v440
      %442 = vst [vmem:[#allocation2 + $0x48] sm:$0x1] %v441
      %vm443 = vcmask 519171
      %vm444 = vsmask.f32 7950
      %vm445 = vmand %vm443, %vm444
      %v446 = vld [vmem:[#allocation2 + $0x4] sm:$0x8]
      %v447 = vsel %vm445, 0, %v446
      %448 = vst [vmem:[#allocation2 + $0x4] sm:$0x8] %v447
      %v449 = vld [vmem:[#allocation2 + $0xc] sm:$0x8]
      %v450 = vsel %vm445, 0, %v449
      %451 = vst [vmem:[#allocation2 + $0xc] sm:$0x8] %v450
      %v452 = vld [vmem:[#allocation2 + $0x14] sm:$0x8]
      %v453 = vsel %vm445, 0, %v452
      %454 = vst [vmem:[#allocation2 + $0x14] sm:$0x8] %v453
      %v455 = vld [vmem:[#allocation2 + $0x1c] sm:$0x8]
      %v456 = vsel %vm445, 0, %v455
      %457 = vst [vmem:[#allocation2 + $0x1c] sm:$0x8] %v456
      %v458 = vld [vmem:[#allocation2 + $0x24] sm:$0x8]
      %v459 = vsel %vm445, 0, %v458
      %460 = vst [vmem:[#allocation2 + $0x24] sm:$0x8] %v459
      %v461 = vld [vmem:[#allocation2 + $0x2c] sm:$0x8]
      %v462 = vsel %vm445, 0, %v461
      %463 = vst [vmem:[#allocation2 + $0x2c] sm:$0x8] %v462
      %v464 = vld [vmem:[#allocation2 + $0x34] sm:$0x8]
      %v465 = vsel %vm445, 0, %v464
      %466 = vst [vmem:[#allocation2 + $0x34] sm:$0x8] %v465
      %v467 = vld [vmem:[#allocation2 + $0x3c] sm:$0x8]
      %v468 = vsel %vm445, 0, %v467
      %469 = vst [vmem:[#allocation2 + $0x3c] sm:$0x8] %v468
      %v470 = vld [vmem:[#allocation2 + $0x44] sm:$0x8]
      %v471 = vsel %vm445, 0, %v470
      %472 = vst [vmem:[#allocation2 + $0x44] sm:$0x8] %v471
      %v473 = vld [vmem:[#allocation2 + $0x4c] sm:$0x8]
      %v474 = vsel %vm445, 0, %v473
      %475 = vst [vmem:[#allocation2 + $0x4c] sm:$0x8] %v474
      %v476 = vld [vmem:[%s365] sm:$0xf]
      %v477 = vld [vmem:[%s365 + $0x4] sm:$0xf]
      %v478 = vld [vmem:[%s365 + $0x8] sm:$0xf]
      %v479 = vld [vmem:[%s365 + $0xc] sm:$0xf]
      %v480 = vld [vmem:[%s365 + $0x10] sm:$0xf]
      %v481 = vld [vmem:[%s365 + $0x14] sm:$0xf]
      %v482 = vld [vmem:[%s365 + $0x18] sm:$0xf]
      %v483 = vld [vmem:[%s365 + $0x1c] sm:$0xf]
      %v485 = vshrl.u32 %v476, 16
      %v487 = vrot.slane %v485, 7
      %v488 = vshll.u32 %v476, 16
      %v490 = vor.u32 %v487, %v488
      %v492 = vshrl.u32 %v477, 16
      %v494 = vrot.slane %v492, 7
      %v495 = vshll.u32 %v477, 16
      %v497 = vor.u32 %v494, %v495
      %v499 = vshrl.u32 %v478, 16
      %v501 = vrot.slane %v499, 7
      %v502 = vshll.u32 %v478, 16
      %v504 = vor.u32 %v501, %v502
      %v506 = vshrl.u32 %v479, 16
      %v508 = vrot.slane %v506, 7
      %v509 = vshll.u32 %v479, 16
      %v511 = vor.u32 %v508, %v509
      %v513 = vshrl.u32 %v480, 16
      %v515 = vrot.slane %v513, 7
      %v516 = vshll.u32 %v480, 16
      %v518 = vor.u32 %v515, %v516
      %v520 = vshrl.u32 %v481, 16
      %v522 = vrot.slane %v520, 7
      %v523 = vshll.u32 %v481, 16
      %v525 = vor.u32 %v522, %v523
      %v527 = vshrl.u32 %v482, 16
      %v529 = vrot.slane %v527, 7
      %v530 = vshll.u32 %v482, 16
      %v532 = vor.u32 %v529, %v530
      %v534 = vshrl.u32 %v483, 16
      %v536 = vrot.slane %v534, 7
      %v537 = vshll.u32 %v483, 16
      %v539 = vor.u32 %v536, %v537
      %s548 = scalar_lea.vmem [#allocation2], 8
      %vm549 = vcmask 519168
      %vm550 = vsmask.f32 7938
      %vm551 = vmand %vm549, %vm550
      %v552 = vld [vmem:[%s548] sm:$0xf]
      %v553 = vsel %vm551, %v490, %v552
      %554 = vst [vmem:[%s548] sm:$0xf] %v553
      %v555 = vld [vmem:[%s548 + $0x8] sm:$0xf]
      %v556 = vsel %vm551, %v497, %v555
      %557 = vst [vmem:[%s548 + $0x8] sm:$0xf] %v556
      %v558 = vld [vmem:[%s548 + $0x10] sm:$0xf]
      %v559 = vsel %vm551, %v504, %v558
      %560 = vst [vmem:[%s548 + $0x10] sm:$0xf] %v559
      %v561 = vld [vmem:[%s548 + $0x18] sm:$0xf]
      %v562 = vsel %vm551, %v511, %v561
      %563 = vst [vmem:[%s548 + $0x18] sm:$0xf] %v562
      %v564 = vld [vmem:[%s548 + $0x20] sm:$0xf]
      %v565 = vsel %vm551, %v518, %v564
      %566 = vst [vmem:[%s548 + $0x20] sm:$0xf] %v565
      %v567 = vld [vmem:[%s548 + $0x28] sm:$0xf]
      %v568 = vsel %vm551, %v525, %v567
      %569 = vst [vmem:[%s548 + $0x28] sm:$0xf] %v568
      %v570 = vld [vmem:[%s548 + $0x30] sm:$0xf]
      %v571 = vsel %vm551, %v532, %v570
      %572 = vst [vmem:[%s548 + $0x30] sm:$0xf] %v571
      %v573 = vld [vmem:[%s548 + $0x38] sm:$0xf]
      %v574 = vsel %vm551, %v539, %v573
      %575 = vst [vmem:[%s548 + $0x38] sm:$0xf] %v574
      %v576 = vrot.slane %v485, 4
      %v577 = vrot.slane %v488, 5
      %v578 = vor.u32 %v576, %v577
      %v579 = vrot.slane %v578, 4
      %v580 = vrot.slane %v492, 4
      %v581 = vrot.slane %v495, 5
      %v582 = vor.u32 %v580, %v581
      %v583 = vrot.slane %v582, 4
      %v584 = vrot.slane %v499, 4
      %v585 = vrot.slane %v502, 5
      %v586 = vor.u32 %v584, %v585
      %v587 = vrot.slane %v586, 4
      %v588 = vrot.slane %v506, 4
      %v589 = vrot.slane %v509, 5
      %v590 = vor.u32 %v588, %v589
      %v591 = vrot.slane %v590, 4
      %v592 = vrot.slane %v513, 4
      %v593 = vrot.slane %v516, 5
      %v594 = vor.u32 %v592, %v593
      %v595 = vrot.slane %v594, 4
      %v596 = vrot.slane %v520, 4
      %v597 = vrot.slane %v523, 5
      %v598 = vor.u32 %v596, %v597
      %v599 = vrot.slane %v598, 4
      %v600 = vrot.slane %v527, 4
      %v601 = vrot.slane %v530, 5
      %v602 = vor.u32 %v600, %v601
      %v603 = vrot.slane %v602, 4
      %v604 = vrot.slane %v534, 4
      %v605 = vrot.slane %v537, 5
      %v606 = vor.u32 %v604, %v605
      %v607 = vrot.slane %v606, 4
      %vm616 = vsmask.f32 3328
      %vm617 = vmand %vm549, %vm616
      %v618 = vld [vmem:[%s548 + $0x4] sm:$0xf]
      %v619 = vsel %vm617, %v579, %v618
      %620 = vst [vmem:[%s548 + $0x4] sm:$0xf] %v619
      %v621 = vld [vmem:[%s548 + $0xc] sm:$0xf]
      %v622 = vsel %vm617, %v583, %v621
      %623 = vst [vmem:[%s548 + $0xc] sm:$0xf] %v622
      %v624 = vld [vmem:[%s548 + $0x14] sm:$0xf]
      %v625 = vsel %vm617, %v587, %v624
      %626 = vst [vmem:[%s548 + $0x14] sm:$0xf] %v625
      %v627 = vld [vmem:[%s548 + $0x1c] sm:$0xf]
      %v628 = vsel %vm617, %v591, %v627
      %629 = vst [vmem:[%s548 + $0x1c] sm:$0xf] %v628
      %v630 = vld [vmem:[%s548 + $0x24] sm:$0xf]
      %v631 = vsel %vm617, %v595, %v630
      %632 = vst [vmem:[%s548 + $0x24] sm:$0xf] %v631
      %v633 = vld [vmem:[%s548 + $0x2c] sm:$0xf]
      %v634 = vsel %vm617, %v599, %v633
      %635 = vst [vmem:[%s548 + $0x2c] sm:$0xf] %v634
      %v636 = vld [vmem:[%s548 + $0x34] sm:$0xf]
      %v637 = vsel %vm617, %v603, %v636
      %638 = vst [vmem:[%s548 + $0x34] sm:$0xf] %v637
      %v639 = vld [vmem:[%s548 + $0x3c] sm:$0xf]
      %v640 = vsel %vm617, %v607, %v639
      %641 = vst [vmem:[%s548 + $0x3c] sm:$0xf] %v640
      %650 = vrot.lane.b32.xlu0 %v476, 64
      %v651 = vpop.permute.xlu0 %650
      %652 = vrot.lane.b32.xlu0 %v477, 64
      %v653 = vpop.permute.xlu0 %652
      %654 = vrot.lane.b32.xlu0 %v478, 64
      %v655 = vpop.permute.xlu0 %654
      %656 = vrot.lane.b32.xlu0 %v479, 64
      %v657 = vpop.permute.xlu0 %656
      %658 = vrot.lane.b32.xlu0 %v480, 64
      %v659 = vpop.permute.xlu0 %658
      %660 = vrot.lane.b32.xlu0 %v481, 64
      %v661 = vpop.permute.xlu0 %660
      %662 = vrot.lane.b32.xlu0 %v482, 64
      %v663 = vpop.permute.xlu0 %662
      %664 = vrot.lane.b32.xlu0 %v483, 64
      %v665 = vpop.permute.xlu0 %664
      %vm674 = vcmask 1043968
      %675 = vst.msk [vmem:[%s548] sm:$0xf] %vm674, %v651
      %676 = vst.msk [vmem:[%s548 + $0x8] sm:$0xf] %vm674, %v653
      %677 = vst.msk [vmem:[%s548 + $0x10] sm:$0xf] %vm674, %v655
      %678 = vst.msk [vmem:[%s548 + $0x18] sm:$0xf] %vm674, %v657
      %679 = vst.msk [vmem:[%s548 + $0x20] sm:$0xf] %vm674, %v659
      %680 = vst.msk [vmem:[%s548 + $0x28] sm:$0xf] %vm674, %v661
      %681 = vst.msk [vmem:[%s548 + $0x30] sm:$0xf] %vm674, %v663
      %682 = vst.msk [vmem:[%s548 + $0x38] sm:$0xf] %vm674, %v665
      %v683 = vld [vmem:[%s378] sm:$0xf]
      %v685 = vshrl.u32 %v683, 16
      %v687 = vrot.slane %v685, 7
      %v688 = vshll.u32 %v683, 16
      %v690 = vor.u32 %v687, %v688
      %v692 = vld [vmem:[#allocation2] sm:$0xf]
      %v693 = vsel %vm551, %v690, %v692
      %694 = vst [vmem:[#allocation2] sm:$0xf] %v693
      %v695 = vrot.slane %v685, 4
      %v696 = vrot.slane %v688, 5
      %v697 = vor.u32 %v695, %v696
      %v698 = vrot.slane %v697, 4
      %v700 = vld [vmem:[#allocation2 + $0x4] sm:$0xf]
      %v701 = vsel %vm617, %v698, %v700
      %702 = vst [vmem:[#allocation2 + $0x4] sm:$0xf] %v701
      %704 = vrot.lane.b32.xlu0 %v683, 64
      %v705 = vpop.permute.xlu0 %704
      %707 = vst.msk [vmem:[#allocation2] sm:$0xf] %vm674, %v705
      %v708 = vld [vmem:[%s394] sm:$0xf]
      %v710 = vshrl.u32 %v708, 16
      %v712 = vrot.slane %v710, 7
      %v713 = vshll.u32 %v708, 16
      %v715 = vor.u32 %v712, %v713
      %s717 = scalar_lea.vmem [#allocation2], 72
      %v718 = vld [vmem:[%s717] sm:$0xf]
      %v719 = vsel %vm551, %v715, %v718
      %720 = vst [vmem:[%s717] sm:$0xf] %v719
      %v721 = vrot.slane %v710, 4
      %v722 = vrot.slane %v713, 5
      %v723 = vor.u32 %v721, %v722
      %v724 = vrot.slane %v723, 4
      %v726 = vld [vmem:[%s717 + $0x4] sm:$0xf]
      %v727 = vsel %vm617, %v724, %v726
      %728 = vst [vmem:[%s717 + $0x4] sm:$0xf] %v727
      %730 = vrot.lane.b32.xlu0 %v708, 64
      %v731 = vpop.permute.xlu0 %730
      %733 = vst.msk [vmem:[%s717] sm:$0xf] %vm674, %v731
      %p734 = scmp.eq.s32.totalorder %s22, 0
      // Predicated region
      $region45: #{detail_branch.9} parent=43 // pred_check
        %p735 = pneg %p734
      $region46: #{detail_branch.9} parent=43 // pred_check_branch
        %737 = sbr.rel (%p735) target = $region48
      $region47: #{detail_branch.9} parent=43 // pred_region
        %vm738 = vcmask 1043456
        %vm739 = vcmask 523268
        %vm740 = vmor %vm739, %vm738
        %741 = vst.msk [vmem:[#allocation2] sm:$0xff] %vm740, 0
        %742 = vst.msk [vmem:[%s717] sm:$0xff] %vm740, 0
      $region48: #{detail_branch.9} parent=43 // pred_fallthru
        _
      %v743 = vld [vmem:[#allocation2] sm:$0xff]
      %v744 = vld [vmem:[#allocation2 + $0x8] sm:$0xff]
      %v745 = vld [vmem:[#allocation2 + $0x10] sm:$0xff]
      %v746 = vld [vmem:[#allocation2 + $0x18] sm:$0xff]
      %v747 = vld [vmem:[#allocation2 + $0x20] sm:$0xff]
      %v748 = vld [vmem:[#allocation2 + $0x28] sm:$0xff]
      %v749 = vld [vmem:[#allocation2 + $0x30] sm:$0xff]
      %v750 = vld [vmem:[#allocation2 + $0x38] sm:$0xff]
      %v751 = vld [vmem:[%s3] sm:$0xf]
      %v752 = vld [vmem:[%s3 + $0x4] sm:$0xf]
      %v753 = vld [vmem:[%s3 + $0x8] sm:$0xf]
      %v754 = vld [vmem:[%s3 + $0xc] sm:$0xf]
      %v755 = vld [vmem:[%s3 + $0x10] sm:$0xf]
      %v756 = vld [vmem:[%s3 + $0x14] sm:$0xf]
      %v757 = vld [vmem:[%s3 + $0x18] sm:$0xf]
      %v758 = vld [vmem:[%s3 + $0x1c] sm:$0xf]
      %v759 = vld [vmem:[%s3 + $0x20] sm:$0xf]
      %v760 = vld [vmem:[%s3 + $0x24] sm:$0xf]
      %v761 = vld [vmem:[%s3 + $0x28] sm:$0xf]
      %v762 = vld [vmem:[%s3 + $0x2c] sm:$0xf]
      %v763 = vld [vmem:[%s3 + $0x30] sm:$0xf]
      %v764 = vld [vmem:[%s3 + $0x34] sm:$0xf]
      %v765 = vld [vmem:[%s3 + $0x38] sm:$0xf]
      %v766 = vld [vmem:[%s3 + $0x3c] sm:$0xf]
      %v767 = vld [vmem:[%s3 + $0x40] sm:$0xf]
      %v768 = vld [vmem:[%s3 + $0x44] sm:$0xf]
      %v769 = vld [vmem:[%s3 + $0x48] sm:$0xf]
      %v770 = vld [vmem:[%s3 + $0x4c] sm:$0xf]
      %v771 = vld [vmem:[%s3 + $0x50] sm:$0xf]
      %v772 = vld [vmem:[%s3 + $0x54] sm:$0xf]
      %v773 = vld [vmem:[%s3 + $0x58] sm:$0xf]
      %v774 = vld [vmem:[%s3 + $0x5c] sm:$0xf]
      %v775 = vld [vmem:[%s548] sm:$0xff]
      %v776 = vld [vmem:[%s548 + $0x8] sm:$0xff]
      %v777 = vld [vmem:[%s548 + $0x10] sm:$0xff]
      %v778 = vld [vmem:[%s548 + $0x18] sm:$0xff]
      %v779 = vld [vmem:[%s548 + $0x20] sm:$0xff]
      %v780 = vld [vmem:[%s548 + $0x28] sm:$0xff]
      %v781 = vld [vmem:[%s548 + $0x30] sm:$0xff]
      %v782 = vld [vmem:[%s548 + $0x38] sm:$0xff]
      %s783 = scalar_lea.vmem %s3, 96
      %v784 = vld [vmem:[%s783] sm:$0xf]
      %v785 = vld [vmem:[%s783 + $0x4] sm:$0xf]
      %v786 = vld [vmem:[%s783 + $0x8] sm:$0xf]
      %v787 = vld [vmem:[%s783 + $0xc] sm:$0xf]
      %v788 = vld [vmem:[%s783 + $0x10] sm:$0xf]
      %v789 = vld [vmem:[%s783 + $0x14] sm:$0xf]
      %v790 = vld [vmem:[%s783 + $0x18] sm:$0xf]
      %v791 = vld [vmem:[%s783 + $0x1c] sm:$0xf]
      %v792 = vld [vmem:[%s783 + $0x20] sm:$0xf]
      %v793 = vld [vmem:[%s783 + $0x24] sm:$0xf]
      %v794 = vld [vmem:[%s783 + $0x28] sm:$0xf]
      %v795 = vld [vmem:[%s783 + $0x2c] sm:$0xf]
      %v796 = vld [vmem:[%s783 + $0x30] sm:$0xf]
      %v797 = vld [vmem:[%s783 + $0x34] sm:$0xf]
      %v798 = vld [vmem:[%s783 + $0x38] sm:$0xf]
      %v799 = vld [vmem:[%s783 + $0x3c] sm:$0xf]
      %v800 = vld [vmem:[%s783 + $0x40] sm:$0xf]
      %v801 = vld [vmem:[%s783 + $0x44] sm:$0xf]
      %v802 = vld [vmem:[%s783 + $0x48] sm:$0xf]
      %v803 = vld [vmem:[%s783 + $0x4c] sm:$0xf]
      %v804 = vld [vmem:[%s783 + $0x50] sm:$0xf]
      %v805 = vld [vmem:[%s783 + $0x54] sm:$0xf]
      %v806 = vld [vmem:[%s783 + $0x58] sm:$0xf]
      %v807 = vld [vmem:[%s783 + $0x5c] sm:$0xf]
      %v816 = vunpack.c.l.b16 %v775
      %v817 = vunpack.c.h.b16 %v775
      %v818 = vunpack.c.l.b16 %v776
      %v819 = vunpack.c.h.b16 %v776
      %v820 = vunpack.c.l.b16 %v777
      %v821 = vunpack.c.h.b16 %v777
      %v822 = vunpack.c.l.b16 %v778
      %v823 = vunpack.c.h.b16 %v778
      %v824 = vunpack.c.l.b16 %v779
      %v825 = vunpack.c.h.b16 %v779
      %v826 = vunpack.c.l.b16 %v780
      %v827 = vunpack.c.h.b16 %v780
      %v828 = vunpack.c.l.b16 %v781
      %v829 = vunpack.c.h.b16 %v781
      %v830 = vunpack.c.l.b16 %v782
      %v831 = vunpack.c.h.b16 %v782
      %v832 = vpack.c.b16 %v818, %v816
      %v833 = vpack.c.b16 %v819, %v817
      %v834 = vpack.c.b16 %v822, %v820
      %v835 = vpack.c.b16 %v823, %v821
      %v836 = vpack.c.b16 %v826, %v824
      %v837 = vpack.c.b16 %v827, %v825
      %v838 = vpack.c.b16 %v830, %v828
      %v839 = vpack.c.b16 %v831, %v829
      %v868 = vunpack.c.l.b16 %v784
      %v869 = vunpack.c.l.b16 %v785
      %v870 = vunpack.c.l.b16 %v786
      %v871 = vunpack.c.l.b16 %v787
      %v872 = vunpack.c.l.b16 %v788
      %v873 = vunpack.c.l.b16 %v789
      %v874 = vunpack.c.l.b16 %v790
      %v875 = vunpack.c.l.b16 %v791
      %v876 = vunpack.c.l.b16 %v792
      %v877 = vunpack.c.l.b16 %v793
      %v878 = vunpack.c.l.b16 %v794
      %v879 = vunpack.c.l.b16 %v795
      %v880 = vunpack.c.l.b16 %v796
      %v881 = vunpack.c.l.b16 %v797
      %v882 = vunpack.c.l.b16 %v798
      %v883 = vunpack.c.l.b16 %v799
      %v884 = vunpack.c.l.b16 %v800
      %v885 = vunpack.c.l.b16 %v801
      %v886 = vunpack.c.l.b16 %v802
      %v887 = vunpack.c.l.b16 %v803
      %v888 = vunpack.c.l.b16 %v804
      %v889 = vunpack.c.l.b16 %v805
      %v890 = vunpack.c.l.b16 %v806
      %v891 = vunpack.c.l.b16 %v807
      %v892 = vpack.c.b16 %v869, %v868
      %v893 = vpack.c.b16 %v871, %v870
      %v894 = vpack.c.b16 %v873, %v872
      %v895 = vpack.c.b16 %v875, %v874
      %v896 = vpack.c.b16 %v877, %v876
      %v897 = vpack.c.b16 %v879, %v878
      %v898 = vpack.c.b16 %v881, %v880
      %v899 = vpack.c.b16 %v883, %v882
      %v900 = vpack.c.b16 %v885, %v884
      %v901 = vpack.c.b16 %v887, %v886
      %v902 = vpack.c.b16 %v889, %v888
      %v903 = vpack.c.b16 %v891, %v890
      %vm916 = vcmask 523264
      %v918 = vsel %vm916, %v833, 0
      %v921 = vsel %vm916, %v835, 0
      %v924 = vsel %vm916, %v837, 0
      %v927 = vsel %vm916, %v839, 0
      %929 = vmatprep.subr.bf16.mxu0 0
      %930 = vmatpush1.bf16.msra.mxu0 %v899
      %931 = vmatprep.subr.bf16.mxu0 0
      %932 = vmatpush1.bf16.msra.mxu0 %v898
      %933 = vmatprep.subr.bf16.mxu0 0
      %934 = vmatpush1.bf16.msra.mxu0 %v897
      %935 = vmatprep.subr.bf16.mxu0 0
      %936 = vmatpush1.bf16.msra.mxu0 %v896
      %937 = vmatprep.subr.bf16.mxu0 0
      %938 = vmatpush1.bf16.msra.mxu0 %v895
      %939 = vmatprep.subr.bf16.mxu0 0
      %940 = vmatpush1.bf16.msra.mxu0 %v894
      %941 = vmatprep.subr.bf16.mxu0 0
      %942 = vmatpush1.bf16.msra.mxu0 %v893
      %943 = vmatprep.subr.bf16.mxu0 0
      %944 = vmatpush1.bf16.msra.mxu0 %v892
      %945 = vmatprep.subr.bf16.mxu0 0
      %946 = vmatpush2.bf16.msra.mxu0 0
      %947 = vmatprep.subr.bf16.mxu0 0
      %948 = vmatpush2.bf16.msra.mxu0 0
      %949 = vmatprep.subr.bf16.mxu0 0
      %950 = vmatpush2.bf16.msra.mxu0 0
      %951 = vmatprep.subr.bf16.mxu0 0
      %952 = vmatpush2.bf16.msra.mxu0 0
      %953 = vmatprep.subr.bf16.mxu0 0
      %954 = vmatpush2.bf16.msra.mxu0 %v903
      %955 = vmatprep.subr.bf16.mxu0 0
      %956 = vmatpush2.bf16.msra.mxu0 %v902
      %957 = vmatprep.subr.bf16.mxu0 0
      %958 = vmatpush2.bf16.msra.mxu0 %v901
      %959 = vmatprep.subr.bf16.mxu0 0
      %960 = vmatpush2.bf16.msra.mxu0 %v900
      %961 = vmatprep.mubr.bf16.mxu0 %v918
      %962 = vmatmul.mubr.bf16.gmra.mxu0 %v832
      %v963 = vpop.f32.mrf.mxu0
      %v964 = vadd.f32 0.0, %v963
      %v965 = vpop.f32.mrf.mxu0
      %v966 = vpop.f32.mrf.mxu0
      %v967 = vadd.f32 0.0, %v966
      %v968 = vpop.f32.mrf.mxu0
      %969 = vmatprep.mubr.bf16.mxu0 %v921
      %970 = vmatmul.mubr.bf16.gmra.mxu0 %v834
      %v971 = vpop.f32.mrf.mxu0
      %v972 = vadd.f32 0.0, %v971
      %v973 = vpop.f32.mrf.mxu0
      %v974 = vpop.f32.mrf.mxu0
      %v975 = vadd.f32 0.0, %v974
      %v976 = vpop.f32.mrf.mxu0
      %977 = vmatprep.mubr.bf16.mxu0 %v924
      %978 = vmatmul.mubr.bf16.gmra.mxu0 %v836
      %v979 = vpop.f32.mrf.mxu0
      %v980 = vadd.f32 0.0, %v979
      %v981 = vpop.f32.mrf.mxu0
      %v982 = vpop.f32.mrf.mxu0
      %v983 = vadd.f32 0.0, %v982
      %v984 = vpop.f32.mrf.mxu0
      %985 = vmatprep.mubr.bf16.mxu0 %v927
      %986 = vmatmul.mubr.bf16.gmra.mxu0 %v838
      %v987 = vpop.f32.mrf.mxu0
      %v988 = vadd.f32 0.0, %v987
      %v989 = vpop.f32.mrf.mxu0
      %v990 = vpop.f32.mrf.mxu0
      %v991 = vadd.f32 0.0, %v990
      %v992 = vpop.f32.mrf.mxu0
      %993 = vdwg.mxu0
      %v1002 = vunpack.c.l.b16 %v743
      %v1003 = vunpack.c.h.b16 %v743
      %v1004 = vunpack.c.l.b16 %v744
      %v1005 = vunpack.c.h.b16 %v744
      %v1006 = vunpack.c.l.b16 %v745
      %v1007 = vunpack.c.h.b16 %v745
      %v1008 = vunpack.c.l.b16 %v746
      %v1009 = vunpack.c.h.b16 %v746
      %v1010 = vunpack.c.l.b16 %v747
      %v1011 = vunpack.c.h.b16 %v747
      %v1012 = vunpack.c.l.b16 %v748
      %v1013 = vunpack.c.h.b16 %v748
      %v1014 = vunpack.c.l.b16 %v749
      %v1015 = vunpack.c.h.b16 %v749
      %v1016 = vunpack.c.l.b16 %v750
      %v1017 = vunpack.c.h.b16 %v750
      %v1018 = vpack.c.b16 %v1004, %v1002
      %v1019 = vpack.c.b16 %v1005, %v1003
      %v1020 = vpack.c.b16 %v1008, %v1006
      %v1021 = vpack.c.b16 %v1009, %v1007
      %v1022 = vpack.c.b16 %v1012, %v1010
      %v1023 = vpack.c.b16 %v1013, %v1011
      %v1024 = vpack.c.b16 %v1016, %v1014
      %v1025 = vpack.c.b16 %v1017, %v1015
      %v1054 = vunpack.c.l.b16 %v751
      %v1055 = vunpack.c.l.b16 %v752
      %v1056 = vunpack.c.l.b16 %v753
      %v1057 = vunpack.c.l.b16 %v754
      %v1058 = vunpack.c.l.b16 %v755
      %v1059 = vunpack.c.l.b16 %v756
      %v1060 = vunpack.c.l.b16 %v757
      %v1061 = vunpack.c.l.b16 %v758
      %v1062 = vunpack.c.l.b16 %v759
      %v1063 = vunpack.c.l.b16 %v760
      %v1064 = vunpack.c.l.b16 %v761
      %v1065 = vunpack.c.l.b16 %v762
      %v1066 = vunpack.c.l.b16 %v763
      %v1067 = vunpack.c.l.b16 %v764
      %v1068 = vunpack.c.l.b16 %v765
      %v1069 = vunpack.c.l.b16 %v766
      %v1070 = vunpack.c.l.b16 %v767
      %v1071 = vunpack.c.l.b16 %v768
      %v1072 = vunpack.c.l.b16 %v769
      %v1073 = vunpack.c.l.b16 %v770
      %v1074 = vunpack.c.l.b16 %v771
      %v1075 = vunpack.c.l.b16 %v772
      %v1076 = vunpack.c.l.b16 %v773
      %v1077 = vunpack.c.l.b16 %v774
      %v1078 = vpack.c.b16 %v1055, %v1054
      %v1079 = vpack.c.b16 %v1057, %v1056
      %v1080 = vpack.c.b16 %v1059, %v1058
      %v1081 = vpack.c.b16 %v1061, %v1060
      %v1082 = vpack.c.b16 %v1063, %v1062
      %v1083 = vpack.c.b16 %v1065, %v1064
      %v1084 = vpack.c.b16 %v1067, %v1066
      %v1085 = vpack.c.b16 %v1069, %v1068
      %v1086 = vpack.c.b16 %v1071, %v1070
      %v1087 = vpack.c.b16 %v1073, %v1072
      %v1088 = vpack.c.b16 %v1075, %v1074
      %v1089 = vpack.c.b16 %v1077, %v1076
      %v1103 = vsel %vm916, %v1019, 0
      %v1106 = vsel %vm916, %v1021, 0
      %v1109 = vsel %vm916, %v1023, 0
      %v1112 = vsel %vm916, %v1025, 0
      %1114 = vmatprep.subr.bf16.mxu0 0
      %1115 = vmatpush1.bf16.msra.mxu0 %v1085
      %1116 = vmatprep.subr.bf16.mxu0 0
      %1117 = vmatpush1.bf16.msra.mxu0 %v1084
      %1118 = vmatprep.subr.bf16.mxu0 0
      %1119 = vmatpush1.bf16.msra.mxu0 %v1083
      %1120 = vmatprep.subr.bf16.mxu0 0
      %1121 = vmatpush1.bf16.msra.mxu0 %v1082
      %1122 = vmatprep.subr.bf16.mxu0 0
      %1123 = vmatpush1.bf16.msra.mxu0 %v1081
      %1124 = vmatprep.subr.bf16.mxu0 0
      %1125 = vmatpush1.bf16.msra.mxu0 %v1080
      %1126 = vmatprep.subr.bf16.mxu0 0
      %1127 = vmatpush1.bf16.msra.mxu0 %v1079
      %1128 = vmatprep.subr.bf16.mxu0 0
      %1129 = vmatpush1.bf16.msra.mxu0 %v1078
      %1130 = vmatprep.subr.bf16.mxu0 0
      %1131 = vmatpush2.bf16.msra.mxu0 0
      %1132 = vmatprep.subr.bf16.mxu0 0
      %1133 = vmatpush2.bf16.msra.mxu0 0
      %1134 = vmatprep.subr.bf16.mxu0 0
      %1135 = vmatpush2.bf16.msra.mxu0 0
      %1136 = vmatprep.subr.bf16.mxu0 0
      %1137 = vmatpush2.bf16.msra.mxu0 0
      %1138 = vmatprep.subr.bf16.mxu0 0
      %1139 = vmatpush2.bf16.msra.mxu0 %v1089
      %1140 = vmatprep.subr.bf16.mxu0 0
      %1141 = vmatpush2.bf16.msra.mxu0 %v1088
      %1142 = vmatprep.subr.bf16.mxu0 0
      %1143 = vmatpush2.bf16.msra.mxu0 %v1087
      %1144 = vmatprep.subr.bf16.mxu0 0
      %1145 = vmatpush2.bf16.msra.mxu0 %v1086
      %1146 = vmatprep.mubr.bf16.mxu0 %v1103
      %1147 = vmatmul.mubr.bf16.gmra.mxu0 %v1018
      %v1148 = vpop.f32.mrf.mxu0
      %v1149 = vadd.f32 %v964, %v1148
      %v1150 = vpop.f32.mrf.mxu0
      %v1151 = vpop.f32.mrf.mxu0
      %v1152 = vadd.f32 %v967, %v1151
      %v1153 = vpop.f32.mrf.mxu0
      %1154 = vmatprep.mubr.bf16.mxu0 %v1106
      %1155 = vmatmul.mubr.bf16.gmra.mxu0 %v1020
      %v1156 = vpop.f32.mrf.mxu0
      %v1157 = vadd.f32 %v972, %v1156
      %v1158 = vpop.f32.mrf.mxu0
      %v1159 = vpop.f32.mrf.mxu0
      %v1160 = vadd.f32 %v975, %v1159
      %v1161 = vpop.f32.mrf.mxu0
      %1162 = vmatprep.mubr.bf16.mxu0 %v1109
      %1163 = vmatmul.mubr.bf16.gmra.mxu0 %v1022
      %v1164 = vpop.f32.mrf.mxu0
      %v1165 = vadd.f32 %v980, %v1164
      %v1166 = vpop.f32.mrf.mxu0
      %v1167 = vpop.f32.mrf.mxu0
      %v1168 = vadd.f32 %v983, %v1167
      %v1169 = vpop.f32.mrf.mxu0
      %1170 = vmatprep.mubr.bf16.mxu0 %v1112
      %1171 = vmatmul.mubr.bf16.gmra.mxu0 %v1024
      %v1172 = vpop.f32.mrf.mxu0
      %v1173 = vadd.f32 %v988, %v1172
      %v1174 = vpop.f32.mrf.mxu0
      %v1175 = vpop.f32.mrf.mxu0
      %v1176 = vadd.f32 %v991, %v1175
      %v1177 = vpop.f32.mrf.mxu0
      %1178 = vdwg.mxu0
      %s1179 = scalar_lea.vmem [#allocation2], 16
      %v1180 = vld [vmem:[%s1179] sm:$0xff]
      %v1181 = vld [vmem:[%s1179 + $0x8] sm:$0xff]
      %v1182 = vld [vmem:[%s1179 + $0x10] sm:$0xff]
      %v1183 = vld [vmem:[%s1179 + $0x18] sm:$0xff]
      %v1184 = vld [vmem:[%s1179 + $0x20] sm:$0xff]
      %v1185 = vld [vmem:[%s1179 + $0x28] sm:$0xff]
      %v1186 = vld [vmem:[%s1179 + $0x30] sm:$0xff]
      %v1187 = vld [vmem:[%s1179 + $0x38] sm:$0xff]
      %s1188 = scalar_lea.vmem %s3, 192
      %v1189 = vld [vmem:[%s1188] sm:$0xf]
      %v1190 = vld [vmem:[%s1188 + $0x4] sm:$0xf]
      %v1191 = vld [vmem:[%s1188 + $0x8] sm:$0xf]
      %v1192 = vld [vmem:[%s1188 + $0xc] sm:$0xf]
      %v1193 = vld [vmem:[%s1188 + $0x10] sm:$0xf]
      %v1194 = vld [vmem:[%s1188 + $0x14] sm:$0xf]
      %v1195 = vld [vmem:[%s1188 + $0x18] sm:$0xf]
      %v1196 = vld [vmem:[%s1188 + $0x1c] sm:$0xf]
      %v1197 = vld [vmem:[%s1188 + $0x20] sm:$0xf]
      %v1198 = vld [vmem:[%s1188 + $0x24] sm:$0xf]
      %v1199 = vld [vmem:[%s1188 + $0x28] sm:$0xf]
      %v1200 = vld [vmem:[%s1188 + $0x2c] sm:$0xf]
      %v1201 = vld [vmem:[%s1188 + $0x30] sm:$0xf]
      %v1202 = vld [vmem:[%s1188 + $0x34] sm:$0xf]
      %v1203 = vld [vmem:[%s1188 + $0x38] sm:$0xf]
      %v1204 = vld [vmem:[%s1188 + $0x3c] sm:$0xf]
      %v1205 = vld [vmem:[%s1188 + $0x40] sm:$0xf]
      %v1206 = vld [vmem:[%s1188 + $0x44] sm:$0xf]
      %v1207 = vld [vmem:[%s1188 + $0x48] sm:$0xf]
      %v1208 = vld [vmem:[%s1188 + $0x4c] sm:$0xf]
      %v1209 = vld [vmem:[%s1188 + $0x50] sm:$0xf]
      %v1210 = vld [vmem:[%s1188 + $0x54] sm:$0xf]
      %v1211 = vld [vmem:[%s1188 + $0x58] sm:$0xf]
      %v1212 = vld [vmem:[%s1188 + $0x5c] sm:$0xf]
      %v1221 = vunpack.c.l.b16 %v1180
      %v1222 = vunpack.c.h.b16 %v1180
      %v1223 = vunpack.c.l.b16 %v1181
      %v1224 = vunpack.c.h.b16 %v1181
      %v1225 = vunpack.c.l.b16 %v1182
      %v1226 = vunpack.c.h.b16 %v1182
      %v1227 = vunpack.c.l.b16 %v1183
      %v1228 = vunpack.c.h.b16 %v1183
      %v1229 = vunpack.c.l.b16 %v1184
      %v1230 = vunpack.c.h.b16 %v1184
      %v1231 = vunpack.c.l.b16 %v1185
      %v1232 = vunpack.c.h.b16 %v1185
      %v1233 = vunpack.c.l.b16 %v1186
      %v1234 = vunpack.c.h.b16 %v1186
      %v1235 = vunpack.c.l.b16 %v1187
      %v1236 = vunpack.c.h.b16 %v1187
      %v1237 = vpack.c.b16 %v1223, %v1221
      %v1238 = vpack.c.b16 %v1224, %v1222
      %v1239 = vpack.c.b16 %v1227, %v1225
      %v1240 = vpack.c.b16 %v1228, %v1226
      %v1241 = vpack.c.b16 %v1231, %v1229
      %v1242 = vpack.c.b16 %v1232, %v1230
      %v1243 = vpack.c.b16 %v1235, %v1233
      %v1244 = vpack.c.b16 %v1236, %v1234
      %v1273 = vunpack.c.l.b16 %v1189
      %v1274 = vunpack.c.l.b16 %v1190
      %v1275 = vunpack.c.l.b16 %v1191
      %v1276 = vunpack.c.l.b16 %v1192
      %v1277 = vunpack.c.l.b16 %v1193
      %v1278 = vunpack.c.l.b16 %v1194
      %v1279 = vunpack.c.l.b16 %v1195
      %v1280 = vunpack.c.l.b16 %v1196
      %v1281 = vunpack.c.l.b16 %v1197
      %v1282 = vunpack.c.l.b16 %v1198
      %v1283 = vunpack.c.l.b16 %v1199
      %v1284 = vunpack.c.l.b16 %v1200
      %v1285 = vunpack.c.l.b16 %v1201
      %v1286 = vunpack.c.l.b16 %v1202
      %v1287 = vunpack.c.l.b16 %v1203
      %v1288 = vunpack.c.l.b16 %v1204
      %v1289 = vunpack.c.l.b16 %v1205
      %v1290 = vunpack.c.l.b16 %v1206
      %v1291 = vunpack.c.l.b16 %v1207
      %v1292 = vunpack.c.l.b16 %v1208
      %v1293 = vunpack.c.l.b16 %v1209
      %v1294 = vunpack.c.l.b16 %v1210
      %v1295 = vunpack.c.l.b16 %v1211
      %v1296 = vunpack.c.l.b16 %v1212
      %v1297 = vpack.c.b16 %v1274, %v1273
      %v1298 = vpack.c.b16 %v1276, %v1275
      %v1299 = vpack.c.b16 %v1278, %v1277
      %v1300 = vpack.c.b16 %v1280, %v1279
      %v1301 = vpack.c.b16 %v1282, %v1281
      %v1302 = vpack.c.b16 %v1284, %v1283
      %v1303 = vpack.c.b16 %v1286, %v1285
      %v1304 = vpack.c.b16 %v1288, %v1287
      %v1305 = vpack.c.b16 %v1290, %v1289
      %v1306 = vpack.c.b16 %v1292, %v1291
      %v1307 = vpack.c.b16 %v1294, %v1293
      %v1308 = vpack.c.b16 %v1296, %v1295
      %v1322 = vsel %vm916, %v1238, 0
      %v1325 = vsel %vm916, %v1240, 0
      %v1328 = vsel %vm916, %v1242, 0
      %v1331 = vsel %vm916, %v1244, 0
      %1333 = vmatprep.subr.bf16.mxu0 0
      %1334 = vmatpush1.bf16.msra.mxu0 %v1304
      %1335 = vmatprep.subr.bf16.mxu0 0
      %1336 = vmatpush1.bf16.msra.mxu0 %v1303
      %1337 = vmatprep.subr.bf16.mxu0 0
      %1338 = vmatpush1.bf16.msra.mxu0 %v1302
      %1339 = vmatprep.subr.bf16.mxu0 0
      %1340 = vmatpush1.bf16.msra.mxu0 %v1301
      %1341 = vmatprep.subr.bf16.mxu0 0
      %1342 = vmatpush1.bf16.msra.mxu0 %v1300
      %1343 = vmatprep.subr.bf16.mxu0 0
      %1344 = vmatpush1.bf16.msra.mxu0 %v1299
      %1345 = vmatprep.subr.bf16.mxu0 0
      %1346 = vmatpush1.bf16.msra.mxu0 %v1298
      %1347 = vmatprep.subr.bf16.mxu0 0
      %1348 = vmatpush1.bf16.msra.mxu0 %v1297
      %1349 = vmatprep.subr.bf16.mxu0 0
      %1350 = vmatpush2.bf16.msra.mxu0 0
      %1351 = vmatprep.subr.bf16.mxu0 0
      %1352 = vmatpush2.bf16.msra.mxu0 0
      %1353 = vmatprep.subr.bf16.mxu0 0
      %1354 = vmatpush2.bf16.msra.mxu0 0
      %1355 = vmatprep.subr.bf16.mxu0 0
      %1356 = vmatpush2.bf16.msra.mxu0 0
      %1357 = vmatprep.subr.bf16.mxu0 0
      %1358 = vmatpush2.bf16.msra.mxu0 %v1308
      %1359 = vmatprep.subr.bf16.mxu0 0
      %1360 = vmatpush2.bf16.msra.mxu0 %v1307
      %1361 = vmatprep.subr.bf16.mxu0 0
      %1362 = vmatpush2.bf16.msra.mxu0 %v1306
      %1363 = vmatprep.subr.bf16.mxu0 0
      %1364 = vmatpush2.bf16.msra.mxu0 %v1305
      %1365 = vmatprep.mubr.bf16.mxu0 %v1322
      %1366 = vmatmul.mubr.bf16.gmra.mxu0 %v1237
      %v1367 = vpop.f32.mrf.mxu0
      %v1368 = vadd.f32 0.0, %v1367
      %v1369 = vpop.f32.mrf.mxu0
      %v1370 = vpop.f32.mrf.mxu0
      %v1371 = vadd.f32 0.0, %v1370
      %v1372 = vpop.f32.mrf.mxu0
      %1373 = vmatprep.mubr.bf16.mxu0 %v1325
      %1374 = vmatmul.mubr.bf16.gmra.mxu0 %v1239
      %v1375 = vpop.f32.mrf.mxu0
      %v1376 = vadd.f32 0.0, %v1375
      %v1377 = vpop.f32.mrf.mxu0
      %v1378 = vpop.f32.mrf.mxu0
      %v1379 = vadd.f32 0.0, %v1378
      %v1380 = vpop.f32.mrf.mxu0
      %1381 = vmatprep.mubr.bf16.mxu0 %v1328
      %1382 = vmatmul.mubr.bf16.gmra.mxu0 %v1241
      %v1383 = vpop.f32.mrf.mxu0
      %v1384 = vadd.f32 0.0, %v1383
      %v1385 = vpop.f32.mrf.mxu0
      %v1386 = vpop.f32.mrf.mxu0
      %v1387 = vadd.f32 0.0, %v1386
      %v1388 = vpop.f32.mrf.mxu0
      %1389 = vmatprep.mubr.bf16.mxu0 %v1331
      %1390 = vmatmul.mubr.bf16.gmra.mxu0 %v1243
      %v1391 = vpop.f32.mrf.mxu0
      %v1392 = vadd.f32 0.0, %v1391
      %v1393 = vpop.f32.mrf.mxu0
      %v1394 = vpop.f32.mrf.mxu0
      %v1395 = vadd.f32 0.0, %v1394
      %v1396 = vpop.f32.mrf.mxu0
      %1397 = vdwg.mxu0
      %v1398 = vadd.f32 %v1149, %v1368
      %v1399 = vadd.f32 %v1152, %v1371
      %v1400 = vadd.f32 %v1157, %v1376
      %v1401 = vadd.f32 %v1160, %v1379
      %v1402 = vadd.f32 %v1165, %v1384
      %v1403 = vadd.f32 %v1168, %v1387
      %v1404 = vadd.f32 %v1173, %v1392
      %v1405 = vadd.f32 %v1176, %v1395
      %v1406 = vld [vmem:[%s4] sm:$0x1]
      %v1408 = vlaneseq
      %v1409 = vshrl.u32 %v1408, 7
      %v1410 = vsub.s32 0, %v1409
      %v1411 = vrot.slane %v1406, %v1410
      %v1413 = vmul.f32 %v1398, %v1411
      %v1414 = vmul.f32 %v1399, %v1411
      %v1415 = vmul.f32 %v1400, %v1411
      %v1416 = vmul.f32 %v1401, %v1411
      %v1417 = vmul.f32 %v1402, %v1411
      %v1418 = vmul.f32 %v1403, %v1411
      %v1419 = vmul.f32 %v1404, %v1411
      %v1420 = vmul.f32 %v1405, %v1411
      %v1421 = vld [vmem:[%s5] sm:$0x1]
      %v1423 = vlaneseq
      %v1424 = vshrl.u32 %v1423, 7
      %v1425 = vsub.s32 0, %v1424
      %v1426 = vrot.slane %v1421, %v1425
      %v1428 = vadd.f32 %v1413, %v1426
      %v1429 = vadd.f32 %v1414, %v1426
      %v1430 = vadd.f32 %v1415, %v1426
      %v1431 = vadd.f32 %v1416, %v1426
      %v1432 = vadd.f32 %v1417, %v1426
      %v1433 = vadd.f32 %v1418, %v1426
      %v1434 = vadd.f32 %v1419, %v1426
      %v1435 = vadd.f32 %v1420, %v1426
      %v1436 = vmax.f32 %v1428, 0.0
      %v1437 = vmax.f32 %v1429, 0.0
      %v1438 = vmax.f32 %v1430, 0.0
      %v1439 = vmax.f32 %v1431, 0.0
      %v1440 = vmax.f32 %v1432, 0.0
      %v1441 = vmax.f32 %v1433, 0.0
      %v1442 = vmax.f32 %v1434, 0.0
      %v1443 = vmax.f32 %v1435, 0.0
      %v1444 = vpack.c.bf16 %v1437, %v1436
      %v1445 = vpack.c.bf16 %v1439, %v1438
      %v1446 = vpack.c.bf16 %v1441, %v1440
      %v1447 = vpack.c.bf16 %v1443, %v1442
      %v1452 = vunpack.c.l.b16 %v1444
      %v1453 = vunpack.c.h.b16 %v1444
      %v1454 = vunpack.c.l.b16 %v1445
      %v1455 = vunpack.c.h.b16 %v1445
      %v1456 = vunpack.c.l.b16 %v1446
      %v1457 = vunpack.c.h.b16 %v1446
      %v1458 = vunpack.c.l.b16 %v1447
      %v1459 = vunpack.c.h.b16 %v1447
      %v1460 = vpack.c.b16 %v1452, %v1452
      %v1461 = vpack.c.b16 %v1453, %v1453
      %v1462 = vpack.c.b16 %v1454, %v1454
      %v1463 = vpack.c.b16 %v1455, %v1455
      %v1464 = vpack.c.b16 %v1456, %v1456
      %v1465 = vpack.c.b16 %v1457, %v1457
      %v1466 = vpack.c.b16 %v1458, %v1458
      %v1467 = vpack.c.b16 %v1459, %v1459
      %vm1476 = vcmask 519168
      %1477 = vst.msk [vmem:[%s407] sm:$0xf] %vm1476, %v1460
      %1478 = vst.msk [vmem:[%s407 + $0x4] sm:$0xf] %vm1476, %v1461
      %1479 = vst.msk [vmem:[%s407 + $0x8] sm:$0xf] %vm1476, %v1462
      %1480 = vst.msk [vmem:[%s407 + $0xc] sm:$0xf] %vm1476, %v1463
      %1481 = vst.msk [vmem:[%s407 + $0x10] sm:$0xf] %vm1476, %v1464
      %1482 = vst.msk [vmem:[%s407 + $0x14] sm:$0xf] %vm1476, %v1465
      %1483 = vst.msk [vmem:[%s407 + $0x18] sm:$0xf] %vm1476, %v1466
      %1484 = vst.msk [vmem:[%s407 + $0x1c] sm:$0xf] %vm1476, %v1467
      %s1485 = smul.u32 8, %s22
      %p1486 = scmp.lt.s32.totalorder %s21, 1
      %s1487 = scalar_select %p1486, %s21, 1
      %p1488 = scmp.lt.s32.totalorder %s1485, 7
      %s1489 = scalar_select %p1488, %s1485, 7
      %s1490 = smul.addr %s1487, 8
      %s1491 = sadd.s32 %s1489, %s1490
      %s1492 = smul.addr %s1491, 4
      %s1493 = scalar_lea.vmem %s6, %s1492
      // Predicated region
      $region49: #{detail_branch.9} parent=43 // pred_check
        %p1494 = pneg %p212
      $region50: #{detail_branch.9} parent=43 // pred_check_branch
        %1496 = sbr.rel (%p1494) target = $region52
      $region51: #{detail_branch.9} parent=43 // pred_region
        %s1497 = smul.u32 8, %s22
      $region52: #{detail_branch.9} parent=43 // pred_fallthru
        _
    $region44: #{detail_branch.9} parent=5 // pred_fallthru
      _
    %p1498 = scmp.le.s32.totalorder 2, %s12
    // Predicated region
    $region53: #{detail_branch.9} parent=5 // pred_check
      %p1499 = pneg %p1498
    $region54: #{detail_branch.9} parent=5 // pred_check_branch
      %1501 = sbr.rel (%p1499) target = $region56
    $region55: #{detail_branch.9} parent=5 // pred_region
      %s1502 = ssub.s32 %s12, 2
      // Predicated region
      $region57: #{detail_branch.9} parent=55 // pred_check
        %p1503 = pneg %p218
      $region58: #{detail_branch.9} parent=55 // pred_check_branch
        %1505 = sbr.rel (%p1503) target = $region60
      $region59: #{detail_branch.9} parent=55 // pred_region
        %s1506 = smul.u32 8, %s24
        %p1507 = scmp.lt.s32.totalorder %s23, 1
        %s1508 = scalar_select %p1507, %s23, 1
        %p1509 = scmp.lt.s32.totalorder %s1506, 7
        %s1510 = scalar_select %p1509, %s1506, 7
        %s1511 = smul.addr %s1508, 8
        %s1512 = sadd.s32 %s1510, %s1511
        %s1513 = smul.addr %s1512, 4
        %s1514 = scalar_lea.vmem %s6, %s1513
      $region60: #{detail_branch.9} parent=55 // pred_fallthru
        _
    $region56: #{detail_branch.9} parent=5 // pred_fallthru
      _
  $region6: #{detail_branch.9} parent=0 // loop_footer
    %s16 = sadd.s32 1, %s12
  $region7: #{detail_branch.9} parent=0 // loop_footer_branch
    %11 = sbr.rel target = $region3
  $region8: #{detail_branch.9} parent=0 // loop_exit
    _

// kernel: detail_branch.11
$region0: #{detail_branch.11}
  #allocation0 [shape = 'u32[]', space=smem, size = 0x4, offset = 0x4, fixed_abs, tag = 'smem constant byte address 0x4 - core index']
  #allocation1 [shape = 'u32[144,128]{1,0:T(1,128)}', space=vmem, size = 0x12000, scoped, tag = 'internal scratch']
  #allocation2 [shape = 'bf16[6,4,192]{2,1,0:T(4,128)(2,1)}', space=vmem, size = 0x3000, scoped, tag = 'scratch operand']
  %s0 = inlined_call_operand.vmem [shape: bf16[2,4,4,64], index: 0, kind: input, shape index: {}, may-alias: {0,1,2}]
  %s1 = inlined_call_operand.vmem [shape: bf16[2,4,4,64], index: 1, kind: input, shape index: {}, may-alias: {0,1,2}]
  %s2 = inlined_call_operand.vmem [shape: bf16[2,4,4,64], index: 2, kind: input, shape index: {}, may-alias: {0,1,2}]
  %s3 = inlined_call_operand.vmem [shape: bf16[3,192,64], index: 3, kind: input, shape index: {}]
  %s4 = inlined_call_operand.vmem [shape: f32[1,64], index: 4, kind: input, shape index: {}]
  %s5 = inlined_call_operand.vmem [shape: f32[1,64], index: 5, kind: input, shape index: {}]
  %s6 = inlined_call_operand.vmem [shape: bf16[2,16,64], index: 6, kind: output, shape index: {}]
  %s7 = sld [smem:[#allocation0]]
  $region61: #{detail_branch.11} parent=0
    _
  %s9 = ssub.s32 1, %s7
  %s10 = scalar_select 0, %s9, %s7
  loop: start=0, step=1, limit=4
  $region2: #{detail_branch.11} parent=0 // loop_pre_header
    _
  $region3: #{detail_branch.11} parent=0 // loop_header
    %s12 = sphi 0, %s16
    %p13 = scmp.ge.s32.totalorder %s12, 4
    %s19 = sphi 0, %s31
    %s20 = sphi 0, %s27
    %s21 = sphi 0, %s19
    %s22 = sphi 0, %s20
    %s23 = sphi 0, %s21
    %s24 = sphi 0, %s22
    %s36 = sphi 0, %s38
    %s39 = sphi 0, %s36
    %s40 = sphi 0, %s39
    %s56 = sphi 0, %s40
    %s72 = sphi 0, %s74
    %s75 = sphi 0, %s72
    %s76 = sphi 0, %s75
    %s92 = sphi 0, %s76
    %s108 = sphi 0, %s110
    %s111 = sphi 0, %s108
    %s112 = sphi 0, %s111
    %s128 = sphi 0, %s112
    %s132 = sphi 0, %s132
    %s134 = sphi 0, %s132
    %s135 = sphi 0, %s134
    %s149 = sphi 0, %s135
    %s153 = sphi 0, %s153
    %s155 = sphi 0, %s153
    %s156 = sphi 0, %s155
    %s170 = sphi 0, %s156
    %s174 = sphi 0, %s174
    %s176 = sphi 0, %s174
    %s177 = sphi 0, %s176
    %s191 = sphi 0, %s177
    %s199 = sphi 0, %s201
    %s202 = sphi 0, %s199
    %s203 = sphi 0, %s202
    %s219 = sphi 0, %s203
  $region4: #{detail_branch.11} parent=0 // loop_header_branch
    %15 = sbr.rel (%p13) target = $region8
  $region5: #{detail_branch.11} parent=0 // loop_body
    %s17 = ssub.s32 %s12, 1
    %s18 = ssub.s32 %s12, 2
    %s25 = sadd.s32 1, %s20
    %p26 = scmp.ge.s32.totalorder %s25, 1
    %s27 = scalar_select %p26, 0, %s25
    %s28 = sadd.s32 1, %s19
    %s29 = scalar_select %p26, %s28, %s19
    %p30 = scmp.ge.s32.totalorder %s29, 2
    %s31 = scalar_select %p30, 0, %s29
    %s32 = ssub.s32 %s19, %s31
    %s33 = ssub.s32 %s20, %s27
    %s34 = sor.u32 %s32, %s33
    %p35 = scmp.eq.s32.totalorder %s34, 0
    %s37 = sadd.s32 %s36, 1
    %s38 = scalar_select %p35, %s36, %s37
    %p41 = pneg %p35
    %p42 = scmp.eq.s32.totalorder %s12, 1
    %p43 = por %p41, %p42
    %p44 = scmp.ne.s32.totalorder %s36, %s39
    %p45 = scmp.eq.s32.totalorder %s12, 0
    %p46 = por %p44, %p45
    %p47 = scmp.ne.s32.totalorder %s36, %s39
    %p48 = scmp.eq.s32.totalorder %s17, 1
    %p49 = por %p47, %p48
    %p50 = scmp.ne.s32.totalorder %s39, %s40
    %p51 = scmp.eq.s32.totalorder %s17, 0
    %p52 = por %p50, %p51
    %p53 = scmp.ne.s32.totalorder %s39, %s40
    %p54 = scmp.eq.s32.totalorder %s18, 1
    %p55 = por %p53, %p54
    %p57 = scmp.ne.s32.totalorder %s40, %s56
    %p58 = scmp.eq.s32.totalorder %s18, 0
    %p59 = por %p57, %p58
    %s60 = smul.u32 %s20, 4
    %s61 = ssub.s32 %s60, 1
    %p62 = scmp.gt.s32.totalorder %s61, 0
    %s63 = scalar_select %p62, %s61, 0
    %s64 = smul.u32 %s27, 4
    %s65 = ssub.s32 %s64, 1
    %p66 = scmp.gt.s32.totalorder %s65, 0
    %s67 = scalar_select %p66, %s65, 0
    %s68 = ssub.s32 %s19, %s31
    %s69 = ssub.s32 %s63, %s67
    %s70 = sor.u32 %s68, %s69
    %p71 = scmp.eq.s32.totalorder %s70, 0
    %s73 = sadd.s32 %s72, 1
    %s74 = scalar_select %p71, %s72, %s73
    %p77 = pneg %p71
    %p78 = scmp.eq.s32.totalorder %s12, 1
    %p79 = por %p77, %p78
    %p80 = scmp.ne.s32.totalorder %s72, %s75
    %p81 = scmp.eq.s32.totalorder %s12, 0
    %p82 = por %p80, %p81
    %p83 = scmp.ne.s32.totalorder %s72, %s75
    %p84 = scmp.eq.s32.totalorder %s17, 1
    %p85 = por %p83, %p84
    %p86 = scmp.ne.s32.totalorder %s75, %s76
    %p87 = scmp.eq.s32.totalorder %s17, 0
    %p88 = por %p86, %p87
    %p89 = scmp.ne.s32.totalorder %s75, %s76
    %p90 = scmp.eq.s32.totalorder %s18, 1
    %p91 = por %p89, %p90
    %p93 = scmp.ne.s32.totalorder %s76, %s92
    %p94 = scmp.eq.s32.totalorder %s18, 0
    %p95 = por %p93, %p94
    %s96 = sadd.s32 %s20, 1
    %s97 = smul.u32 %s96, 4
    %p98 = scmp.lt.s32.totalorder %s97, 3
    %s99 = scalar_select %p98, %s97, 3
    %s100 = sadd.s32 %s27, 1
    %s101 = smul.u32 %s100, 4
    %p102 = scmp.lt.s32.totalorder %s101, 3
    %s103 = scalar_select %p102, %s101, 3
    %s104 = ssub.s32 %s19, %s31
    %s105 = ssub.s32 %s99, %s103
    %s106 = sor.u32 %s104, %s105
    %p107 = scmp.eq.s32.totalorder %s106, 0
    %s109 = sadd.s32 %s108, 1
    %s110 = scalar_select %p107, %s108, %s109
    %p113 = pneg %p107
    %p114 = scmp.eq.s32.totalorder %s12, 1
    %p115 = por %p113, %p114
    %p116 = scmp.ne.s32.totalorder %s108, %s111
    %p117 = scmp.eq.s32.totalorder %s12, 0
    %p118 = por %p116, %p117
    %p119 = scmp.ne.s32.totalorder %s108, %s111
    %p120 = scmp.eq.s32.totalorder %s17, 1
    %p121 = por %p119, %p120
    %p122 = scmp.ne.s32.totalorder %s111, %s112
    %p123 = scmp.eq.s32.totalorder %s17, 0
    %p124 = por %p122, %p123
    %p125 = scmp.ne.s32.totalorder %s111, %s112
    %p126 = scmp.eq.s32.totalorder %s18, 1
    %p127 = por %p125, %p126
    %p129 = scmp.ne.s32.totalorder %s112, %s128
    %p130 = scmp.eq.s32.totalorder %s18, 0
    %p131 = por %p129, %p130
    %s133 = sadd.s32 %s132, 1
    %p136 = scmp.eq.s32.totalorder %s12, 1
    %p137 = scmp.ne.s32.totalorder %s132, %s134
    %p138 = scmp.eq.s32.totalorder %s12, 0
    %p139 = por %p137, %p138
    %p140 = scmp.ne.s32.totalorder %s132, %s134
    %p141 = scmp.eq.s32.totalorder %s17, 1
    %p142 = por %p140, %p141
    %p143 = scmp.ne.s32.totalorder %s134, %s135
    %p144 = scmp.eq.s32.totalorder %s17, 0
    %p145 = por %p143, %p144
    %p146 = scmp.ne.s32.totalorder %s134, %s135
    %p147 = scmp.eq.s32.totalorder %s18, 1
    %p148 = por %p146, %p147
    %p150 = scmp.ne.s32.totalorder %s135, %s149
    %p151 = scmp.eq.s32.totalorder %s18, 0
    %p152 = por %p150, %p151
    %s154 = sadd.s32 %s153, 1
    %p157 = scmp.eq.s32.totalorder %s12, 1
    %p158 = scmp.ne.s32.totalorder %s153, %s155
    %p159 = scmp.eq.s32.totalorder %s12, 0
    %p160 = por %p158, %p159
    %p161 = scmp.ne.s32.totalorder %s153, %s155
    %p162 = scmp.eq.s32.totalorder %s17, 1
    %p163 = por %p161, %p162
    %p164 = scmp.ne.s32.totalorder %s155, %s156
    %p165 = scmp.eq.s32.totalorder %s17, 0
    %p166 = por %p164, %p165
    %p167 = scmp.ne.s32.totalorder %s155, %s156
    %p168 = scmp.eq.s32.totalorder %s18, 1
    %p169 = por %p167, %p168
    %p171 = scmp.ne.s32.totalorder %s156, %s170
    %p172 = scmp.eq.s32.totalorder %s18, 0
    %p173 = por %p171, %p172
    %s175 = sadd.s32 %s174, 1
    %p178 = scmp.eq.s32.totalorder %s12, 1
    %p179 = scmp.ne.s32.totalorder %s174, %s176
    %p180 = scmp.eq.s32.totalorder %s12, 0
    %p181 = por %p179, %p180
    %p182 = scmp.ne.s32.totalorder %s174, %s176
    %p183 = scmp.eq.s32.totalorder %s17, 1
    %p184 = por %p182, %p183
    %p185 = scmp.ne.s32.totalorder %s176, %s177
    %p186 = scmp.eq.s32.totalorder %s17, 0
    %p187 = por %p185, %p186
    %p188 = scmp.ne.s32.totalorder %s176, %s177
    %p189 = scmp.eq.s32.totalorder %s18, 1
    %p190 = por %p188, %p189
    %p192 = scmp.ne.s32.totalorder %s177, %s191
    %p193 = scmp.eq.s32.totalorder %s18, 0
    %p194 = por %p192, %p193
    %s195 = ssub.s32 %s19, %s31
    %s196 = ssub.s32 %s20, %s27
    %s197 = sor.u32 %s195, %s196
    %p198 = scmp.eq.s32.totalorder %s197, 0
    %s200 = sadd.s32 %s199, 1
    %s201 = scalar_select %p198, %s199, %s200
    %p204 = pneg %p198
    %p205 = scmp.eq.s32.totalorder %s12, 1
    %p206 = por %p204, %p205
    %p207 = scmp.ne.s32.totalorder %s199, %s202
    %p208 = scmp.eq.s32.totalorder %s12, 0
    %p209 = por %p207, %p208
    %p210 = scmp.ne.s32.totalorder %s199, %s202
    %p211 = scmp.eq.s32.totalorder %s17, 1
    %p212 = por %p210, %p211
    %p213 = scmp.ne.s32.totalorder %s202, %s203
    %p214 = scmp.eq.s32.totalorder %s17, 0
    %p215 = por %p213, %p214
    %p216 = scmp.ne.s32.totalorder %s202, %s203
    %p217 = scmp.eq.s32.totalorder %s18, 1
    %p218 = por %p216, %p217
    %p220 = scmp.ne.s32.totalorder %s203, %s219
    %p221 = scmp.eq.s32.totalorder %s18, 0
    %p222 = por %p220, %p221
    %p223 = scmp.le.s32.totalorder 1, %s12
    %p224 = scmp.lt.s32.totalorder %s12, 3
    %p225 = pnand %p223, %p224
    %p226 = pneg %p225
    // Predicated region
    $region9: #{detail_branch.11} parent=5 // pred_check
      _
    $region10: #{detail_branch.11} parent=5 // pred_check_branch
      %228 = sbr.rel (%p225) target = $region12
    $region11: #{detail_branch.11} parent=5 // pred_region
      %s229 = ssub.s32 %s12, 1
      // Predicated region
      $region13: #{detail_branch.11} parent=11 // pred_check
        %p230 = pneg %p145
      $region14: #{detail_branch.11} parent=11 // pred_check_branch
        %232 = sbr.rel (%p230) target = $region16
      $region15: #{detail_branch.11} parent=11 // pred_region
        _
      $region16: #{detail_branch.11} parent=11 // pred_fallthru
        _
      // Predicated region
      $region17: #{detail_branch.11} parent=11 // pred_check
        %p233 = pneg %p166
      $region18: #{detail_branch.11} parent=11 // pred_check_branch
        %235 = sbr.rel (%p233) target = $region20
      $region19: #{detail_branch.11} parent=11 // pred_region
        _
      $region20: #{detail_branch.11} parent=11 // pred_fallthru
        _
      // Predicated region
      $region21: #{detail_branch.11} parent=11 // pred_check
        %p236 = pneg %p187
      $region22: #{detail_branch.11} parent=11 // pred_check_branch
        %238 = sbr.rel (%p236) target = $region24
      $region23: #{detail_branch.11} parent=11 // pred_region
        _
      $region24: #{detail_branch.11} parent=11 // pred_fallthru
        _
    $region12: #{detail_branch.11} parent=5 // pred_fallthru
      _
    %p239 = scmp.lt.s32.totalorder %s12, 2
    // Predicated region
    $region25: #{detail_branch.11} parent=5 // pred_check
      %p240 = pneg %p239
    $region26: #{detail_branch.11} parent=5 // pred_check_branch
      %242 = sbr.rel (%p240) target = $region28
    $region27: #{detail_branch.11} parent=5 // pred_region
      // Predicated region
      $region29: #{detail_branch.11} parent=27 // pred_check
        %p243 = pneg %p46
      $region30: #{detail_branch.11} parent=27 // pred_check_branch
        %245 = sbr.rel (%p243) target = $region32
      $region31: #{detail_branch.11} parent=27 // pred_region
        %s246 = smul.u32 4, %s20
        %p247 = scmp.lt.s32.totalorder %s19, 1
        %s248 = scalar_select %p247, %s19, 1
        %p249 = scmp.lt.s32.totalorder %s246, 3
        %s250 = scalar_select %p249, %s246, 3
        %s251 = smul.addr %s248, 4
        %s252 = sadd.s32 %s250, %s251
        %s253 = smul.addr %s252, 2
        %s254 = scalar_lea.vmem %s0, %s253
        %s255 = smul.u32 4, %s20
      $region32: #{detail_branch.11} parent=27 // pred_fallthru
        _
      // Predicated region
      $region33: #{detail_branch.11} parent=27 // pred_check
        %p256 = pneg %p82
      $region34: #{detail_branch.11} parent=27 // pred_check_branch
        %258 = sbr.rel (%p256) target = $region36
      $region35: #{detail_branch.11} parent=27 // pred_region
        %s259 = smul.u32 %s20, 4
        %s260 = ssub.s32 %s259, 1
        %p261 = scmp.gt.s32.totalorder %s260, 0
        %s262 = scalar_select %p261, %s260, 0
        %p263 = scmp.lt.s32.totalorder %s19, 1
        %s264 = scalar_select %p263, %s19, 1
        %p265 = scmp.lt.s32.totalorder %s262, 3
        %s266 = scalar_select %p265, %s262, 3
        %s267 = smul.addr %s264, 4
        %s268 = sadd.s32 %s266, %s267
        %s269 = smul.addr %s268, 2
        %s270 = scalar_lea.vmem %s1, %s269
        %s271 = smul.u32 %s20, 4
        %s272 = ssub.s32 %s271, 1
        %p273 = scmp.gt.s32.totalorder %s272, 0
        %s274 = scalar_select %p273, %s272, 0
      $region36: #{detail_branch.11} parent=27 // pred_fallthru
        _
      // Predicated region
      $region37: #{detail_branch.11} parent=27 // pred_check
        %p275 = pneg %p118
      $region38: #{detail_branch.11} parent=27 // pred_check_branch
        %277 = sbr.rel (%p275) target = $region40
      $region39: #{detail_branch.11} parent=27 // pred_region
        %s278 = sadd.s32 %s20, 1
        %s279 = smul.u32 %s278, 4
        %p280 = scmp.lt.s32.totalorder %s279, 3
        %s281 = scalar_select %p280, %s279, 3
        %p282 = scmp.lt.s32.totalorder %s19, 1
        %s283 = scalar_select %p282, %s19, 1
        %p284 = scmp.lt.s32.totalorder %s281, 3
        %s285 = scalar_select %p284, %s281, 3
        %s286 = smul.addr %s283, 4
        %s287 = sadd.s32 %s285, %s286
        %s288 = smul.addr %s287, 2
        %s289 = scalar_lea.vmem %s2, %s288
        %s290 = sadd.s32 %s20, 1
        %s291 = smul.u32 %s290, 4
        %p292 = scmp.lt.s32.totalorder %s291, 3
        %s293 = scalar_select %p292, %s291, 3
      $region40: #{detail_branch.11} parent=27 // pred_fallthru
        _
    $region28: #{detail_branch.11} parent=5 // pred_fallthru
      _
    %p294 = scmp.le.s32.totalorder 1, %s12
    %p295 = scmp.lt.s32.totalorder %s12, 3
    %p296 = pnand %p294, %p295
    %p297 = pneg %p296
    // Predicated region
    $region41: #{detail_branch.11} parent=5 // pred_check
      _
    $region42: #{detail_branch.11} parent=5 // pred_check_branch
      %299 = sbr.rel (%p296) target = $region44
    $region43: #{detail_branch.11} parent=5 // pred_region
      %s300 = ssub.s32 %s12, 1
      %s301 = smul.u32 4, %s22
      %p302 = scmp.lt.s32.totalorder %s21, 1
      %s303 = scalar_select %p302, %s21, 1
      %p304 = scmp.lt.s32.totalorder %s301, 3
      %s305 = scalar_select %p304, %s301, 3
      %s306 = smul.addr %s303, 4
      %s307 = sadd.s32 %s305, %s306
      %s308 = smul.addr %s307, 2
      %s309 = scalar_lea.vmem %s0, %s308
      %p310 = pneg %p52
      %p311 = pneg %p49
      %s312 = smul.u32 %s22, 4
      %s313 = ssub.s32 %s312, 1
      %p314 = scmp.gt.s32.totalorder %s313, 0
      %s315 = scalar_select %p314, %s313, 0
      %p316 = scmp.lt.s32.totalorder %s21, 1
      %s317 = scalar_select %p316, %s21, 1
      %p318 = scmp.lt.s32.totalorder %s315, 3
      %s319 = scalar_select %p318, %s315, 3
      %s320 = smul.addr %s317, 4
      %s321 = sadd.s32 %s319, %s320
      %s322 = smul.addr %s321, 2
      %s323 = scalar_lea.vmem %s1, %s322
      %p324 = pneg %p88
      %p325 = pneg %p85
      %s326 = sadd.s32 %s22, 1
      %s327 = smul.u32 %s326, 4
      %p328 = scmp.lt.s32.totalorder %s327, 3
      %s329 = scalar_select %p328, %s327, 3
      %p330 = scmp.lt.s32.totalorder %s21, 1
      %s331 = scalar_select %p330, %s21, 1
      %p332 = scmp.lt.s32.totalorder %s329, 3
      %s333 = scalar_select %p332, %s329, 3
      %s334 = smul.addr %s331, 4
      %s335 = sadd.s32 %s333, %s334
      %s336 = smul.addr %s335, 2
      %s337 = scalar_lea.vmem %s2, %s336
      %p338 = pneg %p124
      %p339 = pneg %p121
      %p340 = pneg %p145
      %p341 = pneg %p142
      %p342 = pneg %p166
      %p343 = pneg %p163
      %p344 = pneg %p187
      %p345 = pneg %p184
      %p346 = pneg %p215
      %p347 = pneg %p212
      %s348 = smul.u32 2, %s22
      %p349 = scmp.lt.s32.totalorder %s21, 1
      %s350 = scalar_select %p349, %s21, 1
      %p351 = scmp.lt.s32.totalorder %s348, 1
      %s352 = scalar_select %p351, %s348, 1
      %s353 = smul.addr %s350, 2
      %s354 = sadd.s32 %s352, %s353
      %s355 = smul.addr %s354, 4
      %s356 = scalar_lea.vmem %s6, %s355
      %s357 = smul.u32 4, %s22
      %p358 = scmp.lt.s32.totalorder %s21, 1
      %s359 = scalar_select %p358, %s21, 1
      %p360 = scmp.lt.s32.totalorder %s357, 3
      %s361 = scalar_select %p360, %s357, 3
      %s362 = smul.addr %s359, 4
      %s363 = sadd.s32 %s361, %s362
      %s364 = smul.addr %s363, 2
      %s365 = scalar_lea.vmem %s0, %s364
      %s366 = smul.u32 4, %s22
      %s367 = smul.u32 %s22, 4
      %s368 = ssub.s32 %s367, 1
      %p369 = scmp.gt.s32.totalorder %s368, 0
      %s370 = scalar_select %p369, %s368, 0
      %p371 = scmp.lt.s32.totalorder %s21, 1
      %s372 = scalar_select %p371, %s21, 1
      %p373 = scmp.lt.s32.totalorder %s370, 3
      %s374 = scalar_select %p373, %s370, 3
      %s375 = smul.addr %s372, 4
      %s376 = sadd.s32 %s374, %s375
      %s377 = smul.addr %s376, 2
      %s378 = scalar_lea.vmem %s1, %s377
      %s379 = smul.u32 %s22, 4
      %s380 = ssub.s32 %s379, 1
      %p381 = scmp.gt.s32.totalorder %s380, 0
      %s382 = scalar_select %p381, %s380, 0
      %s383 = sadd.s32 %s22, 1
      %s384 = smul.u32 %s383, 4
      %p385 = scmp.lt.s32.totalorder %s384, 3
      %s386 = scalar_select %p385, %s384, 3
      %p387 = scmp.lt.s32.totalorder %s21, 1
      %s388 = scalar_select %p387, %s21, 1
      %p389 = scmp.lt.s32.totalorder %s386, 3
      %s390 = scalar_select %p389, %s386, 3
      %s391 = smul.addr %s388, 4
      %s392 = sadd.s32 %s390, %s391
      %s393 = smul.addr %s392, 2
      %s394 = scalar_lea.vmem %s2, %s393
      %s395 = sadd.s32 %s22, 1
      %s396 = smul.u32 %s395, 4
      %p397 = scmp.lt.s32.totalorder %s396, 3
      %s398 = scalar_select %p397, %s396, 3
      %s399 = smul.u32 2, %s22
      %p400 = scmp.lt.s32.totalorder %s21, 1
      %s401 = scalar_select %p400, %s21, 1
      %p402 = scmp.lt.s32.totalorder %s399, 1
      %s403 = scalar_select %p402, %s399, 1
      %s404 = smul.addr %s401, 2
      %s405 = sadd.s32 %s403, %s404
      %s406 = smul.addr %s405, 4
      %s407 = scalar_lea.vmem %s6, %s406
      %s408 = smul.u32 2, %s22
      %vm410 = vcmask 516096
      %vm411 = vsmask.f32 256
      %vm412 = vmand %vm410, %vm411
      %v413 = vld [vmem:[#allocation2] sm:$0x1]
      %v414 = vsel %vm412, 0, %v413
      %415 = vst [vmem:[#allocation2] sm:$0x1] %v414
      %v416 = vld [vmem:[#allocation2 + $0x4] sm:$0x1]
      %v417 = vsel %vm412, 0, %v416
      %418 = vst [vmem:[#allocation2 + $0x4] sm:$0x1] %v417
      %v419 = vld [vmem:[#allocation2 + $0x8] sm:$0x1]
      %v420 = vsel %vm412, 0, %v419
      %421 = vst [vmem:[#allocation2 + $0x8] sm:$0x1] %v420
      %v422 = vld [vmem:[#allocation2 + $0xc] sm:$0x1]
      %v423 = vsel %vm412, 0, %v422
      %424 = vst [vmem:[#allocation2 + $0xc] sm:$0x1] %v423
      %v425 = vld [vmem:[#allocation2 + $0x10] sm:$0x1]
      %v426 = vsel %vm412, 0, %v425
      %427 = vst [vmem:[#allocation2 + $0x10] sm:$0x1] %v426
      %v428 = vld [vmem:[#allocation2 + $0x14] sm:$0x1]
      %v429 = vsel %vm412, 0, %v428
      %430 = vst [vmem:[#allocation2 + $0x14] sm:$0x1] %v429
      %vm431 = vcmask 517121
      %vm432 = vsmask.f32 7942
      %vm433 = vmand %vm431, %vm432
      %v434 = vld [vmem:[#allocation2 + $0x2] sm:$0x2]
      %v435 = vsel %vm433, 0, %v434
      %436 = vst [vmem:[#allocation2 + $0x2] sm:$0x2] %v435
      %v437 = vld [vmem:[#allocation2 + $0x6] sm:$0x2]
      %v438 = vsel %vm433, 0, %v437
      %439 = vst [vmem:[#allocation2 + $0x6] sm:$0x2] %v438
      %v440 = vld [vmem:[#allocation2 + $0xa] sm:$0x2]
      %v441 = vsel %vm433, 0, %v440
      %442 = vst [vmem:[#allocation2 + $0xa] sm:$0x2] %v441
      %v443 = vld [vmem:[#allocation2 + $0xe] sm:$0x2]
      %v444 = vsel %vm433, 0, %v443
      %445 = vst [vmem:[#allocation2 + $0xe] sm:$0x2] %v444
      %v446 = vld [vmem:[#allocation2 + $0x12] sm:$0x2]
      %v447 = vsel %vm433, 0, %v446
      %448 = vst [vmem:[#allocation2 + $0x12] sm:$0x2] %v447
      %v449 = vld [vmem:[#allocation2 + $0x16] sm:$0x2]
      %v450 = vsel %vm433, 0, %v449
      %451 = vst [vmem:[#allocation2 + $0x16] sm:$0x2] %v450
      %v452 = vld [vmem:[%s365] sm:$0x3]
      %v453 = vld [vmem:[%s365 + $0x2] sm:$0x3]
      %v454 = vld [vmem:[%s365 + $0x4] sm:$0x3]
      %v455 = vld [vmem:[%s365 + $0x6] sm:$0x3]
      %v457 = vshrl.u32 %v452, 16
      %v459 = vrot.slane %v457, 7
      %v460 = vshll.u32 %v452, 16
      %v462 = vor.u32 %v459, %v460
      %v464 = vshrl.u32 %v453, 16
      %v466 = vrot.slane %v464, 7
      %v467 = vshll.u32 %v453, 16
      %v469 = vor.u32 %v466, %v467
      %v471 = vshrl.u32 %v454, 16
      %v473 = vrot.slane %v471, 7
      %v474 = vshll.u32 %v454, 16
      %v476 = vor.u32 %v473, %v474
      %v478 = vshrl.u32 %v455, 16
      %v480 = vrot.slane %v478, 7
      %v481 = vshll.u32 %v455, 16
      %v483 = vor.u32 %v480, %v481
      %s488 = scalar_lea.vmem [#allocation2], 4
      %vm489 = vcmask 517120
      %vm490 = vsmask.f32 7938
      %vm491 = vmand %vm489, %vm490
      %v492 = vld [vmem:[%s488] sm:$0x3]
      %v493 = vsel %vm491, %v462, %v492
      %494 = vst [vmem:[%s488] sm:$0x3] %v493
      %v495 = vld [vmem:[%s488 + $0x4] sm:$0x3]
      %v496 = vsel %vm491, %v469, %v495
      %497 = vst [vmem:[%s488 + $0x4] sm:$0x3] %v496
      %v498 = vld [vmem:[%s488 + $0x8] sm:$0x3]
      %v499 = vsel %vm491, %v476, %v498
      %500 = vst [vmem:[%s488 + $0x8] sm:$0x3] %v499
      %v501 = vld [vmem:[%s488 + $0xc] sm:$0x3]
      %v502 = vsel %vm491, %v483, %v501
      %503 = vst [vmem:[%s488 + $0xc] sm:$0x3] %v502
      %v504 = vrot.slane %v457, 6
      %v505 = vrot.slane %v460, 7
      %v506 = vor.u32 %v504, %v505
      %v507 = vrot.slane %v506, 2
      %v508 = vrot.slane %v464, 6
      %v509 = vrot.slane %v467, 7
      %v510 = vor.u32 %v508, %v509
      %v511 = vrot.slane %v510, 2
      %v512 = vrot.slane %v471, 6
      %v513 = vrot.slane %v474, 7
      %v514 = vor.u32 %v512, %v513
      %v515 = vrot.slane %v514, 2
      %v516 = vrot.slane %v478, 6
      %v517 = vrot.slane %v481, 7
      %v518 = vor.u32 %v516, %v517
      %v519 = vrot.slane %v518, 2
      %vm524 = vsmask.f32 1280
      %vm525 = vmand %vm489, %vm524
      %v526 = vld [vmem:[%s488 + $0x2] sm:$0x3]
      %v527 = vsel %vm525, %v507, %v526
      %528 = vst [vmem:[%s488 + $0x2] sm:$0x3] %v527
      %v529 = vld [vmem:[%s488 + $0x6] sm:$0x3]
      %v530 = vsel %vm525, %v511, %v529
      %531 = vst [vmem:[%s488 + $0x6] sm:$0x3] %v530
      %v532 = vld [vmem:[%s488 + $0xa] sm:$0x3]
      %v533 = vsel %vm525, %v515, %v532
      %534 = vst [vmem:[%s488 + $0xa] sm:$0x3] %v533
      %v535 = vld [vmem:[%s488 + $0xe] sm:$0x3]
      %v536 = vsel %vm525, %v519, %v535
      %537 = vst [vmem:[%s488 + $0xe] sm:$0x3] %v536
      %542 = vrot.lane.b32.xlu0 %v452, 64
      %v543 = vpop.permute.xlu0 %542
      %544 = vrot.lane.b32.xlu0 %v453, 64
      %v545 = vpop.permute.xlu0 %544
      %546 = vrot.lane.b32.xlu0 %v454, 64
      %v547 = vpop.permute.xlu0 %546
      %548 = vrot.lane.b32.xlu0 %v455, 64
      %v549 = vpop.permute.xlu0 %548
      %vm554 = vcmask 1041920
      %555 = vst.msk [vmem:[%s488] sm:$0x3] %vm554, %v543
      %556 = vst.msk [vmem:[%s488 + $0x4] sm:$0x3] %vm554, %v545
      %557 = vst.msk [vmem:[%s488 + $0x8] sm:$0x3] %vm554, %v547
      %558 = vst.msk [vmem:[%s488 + $0xc] sm:$0x3] %vm554, %v549
      %v559 = vld [vmem:[%s378] sm:$0x3]
      %v561 = vshrl.u32 %v559, 16
      %v563 = vrot.slane %v561, 7
      %v564 = vshll.u32 %v559, 16
      %v566 = vor.u32 %v563, %v564
      %v568 = vld [vmem:[#allocation2] sm:$0x3]
      %v569 = vsel %vm491, %v566, %v568
      %570 = vst [vmem:[#allocation2] sm:$0x3] %v569
      %v571 = vrot.slane %v561, 6
      %v572 = vrot.slane %v564, 7
      %v573 = vor.u32 %v571, %v572
      %v574 = vrot.slane %v573, 2
      %v576 = vld [vmem:[#allocation2 + $0x2] sm:$0x3]
      %v577 = vsel %vm525, %v574, %v576
      %578 = vst [vmem:[#allocation2 + $0x2] sm:$0x3] %v577
      %580 = vrot.lane.b32.xlu0 %v559, 64
      %v581 = vpop.permute.xlu0 %580
      %583 = vst.msk [vmem:[#allocation2] sm:$0x3] %vm554, %v581
      %v584 = vld [vmem:[%s394] sm:$0x3]
      %v586 = vshrl.u32 %v584, 16
      %v588 = vrot.slane %v586, 7
      %v589 = vshll.u32 %v584, 16
      %v591 = vor.u32 %v588, %v589
      %s593 = scalar_lea.vmem [#allocation2], 20
      %v594 = vld [vmem:[%s593] sm:$0x3]
      %v595 = vsel %vm491, %v591, %v594
      %596 = vst [vmem:[%s593] sm:$0x3] %v595
      %v597 = vrot.slane %v586, 6
      %v598 = vrot.slane %v589, 7
      %v599 = vor.u32 %v597, %v598
      %v600 = vrot.slane %v599, 2
      %v602 = vld [vmem:[%s593 + $0x2] sm:$0x3]
      %v603 = vsel %vm525, %v600, %v602
      %604 = vst [vmem:[%s593 + $0x2] sm:$0x3] %v603
      %606 = vrot.lane.b32.xlu0 %v584, 64
      %v607 = vpop.permute.xlu0 %606
      %609 = vst.msk [vmem:[%s593] sm:$0x3] %vm554, %v607
      %p610 = scmp.eq.s32.totalorder %s22, 0
      // Predicated region
      $region45: #{detail_branch.11} parent=43 // pred_check
        %p611 = pneg %p610
      $region46: #{detail_branch.11} parent=43 // pred_check_branch
        %613 = sbr.rel (%p611) target = $region48
      $region47: #{detail_branch.11} parent=43 // pred_region
        %vm614 = vcmask 1041408
        %vm615 = vcmask 519170
        %vm616 = vmor %vm615, %vm614
        %617 = vst.msk [vmem:[#allocation2] sm:$0xf] %vm616, 0
        %618 = vst.msk [vmem:[%s593] sm:$0xf] %vm616, 0
      $region48: #{detail_branch.11} parent=43 // pred_fallthru
        _
      %v619 = vld [vmem:[#allocation2] sm:$0xf]
      %v620 = vld [vmem:[#allocation2 + $0x4] sm:$0xf]
      %v621 = vld [vmem:[#allocation2 + $0x8] sm:$0xf]
      %v622 = vld [vmem:[#allocation2 + $0xc] sm:$0xf]
      %v623 = vld [vmem:[%s3] sm:$0xf]
      %v624 = vld [vmem:[%s3 + $0x4] sm:$0xf]
      %v625 = vld [vmem:[%s3 + $0x8] sm:$0xf]
      %v626 = vld [vmem:[%s3 + $0xc] sm:$0xf]
      %v627 = vld [vmem:[%s3 + $0x10] sm:$0xf]
      %v628 = vld [vmem:[%s3 + $0x14] sm:$0xf]
      %v629 = vld [vmem:[%s3 + $0x18] sm:$0xf]
      %v630 = vld [vmem:[%s3 + $0x1c] sm:$0xf]
      %v631 = vld [vmem:[%s3 + $0x20] sm:$0xf]
      %v632 = vld [vmem:[%s3 + $0x24] sm:$0xf]
      %v633 = vld [vmem:[%s3 + $0x28] sm:$0xf]
      %v634 = vld [vmem:[%s3 + $0x2c] sm:$0xf]
      %v635 = vld [vmem:[%s3 + $0x30] sm:$0xf]
      %v636 = vld [vmem:[%s3 + $0x34] sm:$0xf]
      %v637 = vld [vmem:[%s3 + $0x38] sm:$0xf]
      %v638 = vld [vmem:[%s3 + $0x3c] sm:$0xf]
      %v639 = vld [vmem:[%s3 + $0x40] sm:$0xf]
      %v640 = vld [vmem:[%s3 + $0x44] sm:$0xf]
      %v641 = vld [vmem:[%s3 + $0x48] sm:$0xf]
      %v642 = vld [vmem:[%s3 + $0x4c] sm:$0xf]
      %v643 = vld [vmem:[%s3 + $0x50] sm:$0xf]
      %v644 = vld [vmem:[%s3 + $0x54] sm:$0xf]
      %v645 = vld [vmem:[%s3 + $0x58] sm:$0xf]
      %v646 = vld [vmem:[%s3 + $0x5c] sm:$0xf]
      %v647 = vld [vmem:[%s488] sm:$0xf]
      %v648 = vld [vmem:[%s488 + $0x4] sm:$0xf]
      %v649 = vld [vmem:[%s488 + $0x8] sm:$0xf]
      %v650 = vld [vmem:[%s488 + $0xc] sm:$0xf]
      %s651 = scalar_lea.vmem %s3, 96
      %v652 = vld [vmem:[%s651] sm:$0xf]
      %v653 = vld [vmem:[%s651 + $0x4] sm:$0xf]
      %v654 = vld [vmem:[%s651 + $0x8] sm:$0xf]
      %v655 = vld [vmem:[%s651 + $0xc] sm:$0xf]
      %v656 = vld [vmem:[%s651 + $0x10] sm:$0xf]
      %v657 = vld [vmem:[%s651 + $0x14] sm:$0xf]
      %v658 = vld [vmem:[%s651 + $0x18] sm:$0xf]
      %v659 = vld [vmem:[%s651 + $0x1c] sm:$0xf]
      %v660 = vld [vmem:[%s651 + $0x20] sm:$0xf]
      %v661 = vld [vmem:[%s651 + $0x24] sm:$0xf]
      %v662 = vld [vmem:[%s651 + $0x28] sm:$0xf]
      %v663 = vld [vmem:[%s651 + $0x2c] sm:$0xf]
      %v664 = vld [vmem:[%s651 + $0x30] sm:$0xf]
      %v665 = vld [vmem:[%s651 + $0x34] sm:$0xf]
      %v666 = vld [vmem:[%s651 + $0x38] sm:$0xf]
      %v667 = vld [vmem:[%s651 + $0x3c] sm:$0xf]
      %v668 = vld [vmem:[%s651 + $0x40] sm:$0xf]
      %v669 = vld [vmem:[%s651 + $0x44] sm:$0xf]
      %v670 = vld [vmem:[%s651 + $0x48] sm:$0xf]
      %v671 = vld [vmem:[%s651 + $0x4c] sm:$0xf]
      %v672 = vld [vmem:[%s651 + $0x50] sm:$0xf]
      %v673 = vld [vmem:[%s651 + $0x54] sm:$0xf]
      %v674 = vld [vmem:[%s651 + $0x58] sm:$0xf]
      %v675 = vld [vmem:[%s651 + $0x5c] sm:$0xf]
      %v680 = vcombine.low %v647, %v648
      %v681 = vcombine.low %v649, %v650
      %v683 = vunpack.c.l.s4 1983009808
      %v684 = vunpack.c.0.s8 %v683
      %v685 = vlaneseq
      %v686 = vshrl.u32 %v685, 7
      %v687 = vsub.s32 %v684, %v686
      %v688 = vrot.slane %v680, %v687
      %v690 = vunpack.c.l.s4 1983009808
      %v691 = vunpack.c.0.s8 %v690
      %v692 = vlaneseq
      %v693 = vshrl.u32 %v692, 7
      %v694 = vsub.s32 %v691, %v693
      %v695 = vrot.slane %v681, %v694
      %v696 = vcombine.low %v688, %v695
      %v697 = vcombine.high %v688, %v695
      %v723 = vunpack.c.l.b16 %v652
      %v724 = vunpack.c.l.b16 %v653
      %v725 = vunpack.c.l.b16 %v654
      %v726 = vunpack.c.l.b16 %v655
      %v727 = vunpack.c.l.b16 %v656
      %v728 = vunpack.c.l.b16 %v657
      %v729 = vunpack.c.l.b16 %v658
      %v730 = vunpack.c.l.b16 %v659
      %v731 = vunpack.c.l.b16 %v660
      %v732 = vunpack.c.l.b16 %v661
      %v733 = vunpack.c.l.b16 %v662
      %v734 = vunpack.c.l.b16 %v663
      %v735 = vunpack.c.l.b16 %v664
      %v736 = vunpack.c.l.b16 %v665
      %v737 = vunpack.c.l.b16 %v666
      %v738 = vunpack.c.l.b16 %v667
      %v739 = vunpack.c.l.b16 %v668
      %v740 = vunpack.c.l.b16 %v669
      %v741 = vunpack.c.l.b16 %v670
      %v742 = vunpack.c.l.b16 %v671
      %v743 = vunpack.c.l.b16 %v672
      %v744 = vunpack.c.l.b16 %v673
      %v745 = vunpack.c.l.b16 %v674
      %v746 = vunpack.c.l.b16 %v675
      %v747 = vpack.c.b16 %v724, %v723
      %v748 = vpack.c.b16 %v726, %v725
      %v749 = vpack.c.b16 %v728, %v727
      %v750 = vpack.c.b16 %v730, %v729
      %v751 = vpack.c.b16 %v732, %v731
      %v752 = vpack.c.b16 %v734, %v733
      %v753 = vpack.c.b16 %v736, %v735
      %v754 = vpack.c.b16 %v738, %v737
      %v755 = vpack.c.b16 %v740, %v739
      %v756 = vpack.c.b16 %v742, %v741
      %v757 = vpack.c.b16 %v744, %v743
      %v758 = vpack.c.b16 %v746, %v745
      %vm771 = vcmask 523264
      %v773 = vsel %vm771, %v697, 0
      %775 = vmatprep.subr.bf16.mxu0 0
      %776 = vmatpush1.bf16.msra.mxu0 %v754
      %777 = vmatprep.subr.bf16.mxu0 0
      %778 = vmatpush1.bf16.msra.mxu0 %v753
      %779 = vmatprep.subr.bf16.mxu0 0
      %780 = vmatpush1.bf16.msra.mxu0 %v752
      %781 = vmatprep.subr.bf16.mxu0 0
      %782 = vmatpush1.bf16.msra.mxu0 %v751
      %783 = vmatprep.subr.bf16.mxu0 0
      %784 = vmatpush1.bf16.msra.mxu0 %v750
      %785 = vmatprep.subr.bf16.mxu0 0
      %786 = vmatpush1.bf16.msra.mxu0 %v749
      %787 = vmatprep.subr.bf16.mxu0 0
      %788 = vmatpush1.bf16.msra.mxu0 %v748
      %789 = vmatprep.subr.bf16.mxu0 0
      %790 = vmatpush1.bf16.msra.mxu0 %v747
      %791 = vmatprep.subr.bf16.mxu0 0
      %792 = vmatpush2.bf16.msra.mxu0 0
      %793 = vmatprep.subr.bf16.mxu0 0
      %794 = vmatpush2.bf16.msra.mxu0 0
      %795 = vmatprep.subr.bf16.mxu0 0
      %796 = vmatpush2.bf16.msra.mxu0 0
      %797 = vmatprep.subr.bf16.mxu0 0
      %798 = vmatpush2.bf16.msra.mxu0 0
      %799 = vmatprep.subr.bf16.mxu0 0
      %800 = vmatpush2.bf16.msra.mxu0 %v758
      %801 = vmatprep.subr.bf16.mxu0 0
      %802 = vmatpush2.bf16.msra.mxu0 %v757
      %803 = vmatprep.subr.bf16.mxu0 0
      %804 = vmatpush2.bf16.msra.mxu0 %v756
      %805 = vmatprep.subr.bf16.mxu0 0
      %806 = vmatpush2.bf16.msra.mxu0 %v755
      %807 = vmatprep.mubr.bf16.mxu0 %v773
      %808 = vmatmul.mubr.bf16.gmra.mxu0 %v696
      %v809 = vpop.f32.mrf.mxu0
      %v810 = vadd.f32 0.0, %v809
      %v811 = vpop.f32.mrf.mxu0
      %v812 = vpop.f32.mrf.mxu0
      %v813 = vadd.f32 0.0, %v812
      %v814 = vpop.f32.mrf.mxu0
      %815 = vdwg.mxu0
      %v820 = vcombine.low %v619, %v620
      %v821 = vcombine.low %v621, %v622
      %v823 = vunpack.c.l.s4 1983009808
      %v824 = vunpack.c.0.s8 %v823
      %v825 = vlaneseq
      %v826 = vshrl.u32 %v825, 7
      %v827 = vsub.s32 %v824, %v826
      %v828 = vrot.slane %v820, %v827
      %v830 = vunpack.c.l.s4 1983009808
      %v831 = vunpack.c.0.s8 %v830
      %v832 = vlaneseq
      %v833 = vshrl.u32 %v832, 7
      %v834 = vsub.s32 %v831, %v833
      %v835 = vrot.slane %v821, %v834
      %v836 = vcombine.low %v828, %v835
      %v837 = vcombine.high %v828, %v835
      %v863 = vunpack.c.l.b16 %v623
      %v864 = vunpack.c.l.b16 %v624
      %v865 = vunpack.c.l.b16 %v625
      %v866 = vunpack.c.l.b16 %v626
      %v867 = vunpack.c.l.b16 %v627
      %v868 = vunpack.c.l.b16 %v628
      %v869 = vunpack.c.l.b16 %v629
      %v870 = vunpack.c.l.b16 %v630
      %v871 = vunpack.c.l.b16 %v631
      %v872 = vunpack.c.l.b16 %v632
      %v873 = vunpack.c.l.b16 %v633
      %v874 = vunpack.c.l.b16 %v634
      %v875 = vunpack.c.l.b16 %v635
      %v876 = vunpack.c.l.b16 %v636
      %v877 = vunpack.c.l.b16 %v637
      %v878 = vunpack.c.l.b16 %v638
      %v879 = vunpack.c.l.b16 %v639
      %v880 = vunpack.c.l.b16 %v640
      %v881 = vunpack.c.l.b16 %v641
      %v882 = vunpack.c.l.b16 %v642
      %v883 = vunpack.c.l.b16 %v643
      %v884 = vunpack.c.l.b16 %v644
      %v885 = vunpack.c.l.b16 %v645
      %v886 = vunpack.c.l.b16 %v646
      %v887 = vpack.c.b16 %v864, %v863
      %v888 = vpack.c.b16 %v866, %v865
      %v889 = vpack.c.b16 %v868, %v867
      %v890 = vpack.c.b16 %v870, %v869
      %v891 = vpack.c.b16 %v872, %v871
      %v892 = vpack.c.b16 %v874, %v873
      %v893 = vpack.c.b16 %v876, %v875
      %v894 = vpack.c.b16 %v878, %v877
      %v895 = vpack.c.b16 %v880, %v879
      %v896 = vpack.c.b16 %v882, %v881
      %v897 = vpack.c.b16 %v884, %v883
      %v898 = vpack.c.b16 %v886, %v885
      %v912 = vsel %vm771, %v837, 0
      %914 = vmatprep.subr.bf16.mxu0 0
      %915 = vmatpush1.bf16.msra.mxu0 %v894
      %916 = vmatprep.subr.bf16.mxu0 0
      %917 = vmatpush1.bf16.msra.mxu0 %v893
      %918 = vmatprep.subr.bf16.mxu0 0
      %919 = vmatpush1.bf16.msra.mxu0 %v892
      %920 = vmatprep.subr.bf16.mxu0 0
      %921 = vmatpush1.bf16.msra.mxu0 %v891
      %922 = vmatprep.subr.bf16.mxu0 0
      %923 = vmatpush1.bf16.msra.mxu0 %v890
      %924 = vmatprep.subr.bf16.mxu0 0
      %925 = vmatpush1.bf16.msra.mxu0 %v889
      %926 = vmatprep.subr.bf16.mxu0 0
      %927 = vmatpush1.bf16.msra.mxu0 %v888
      %928 = vmatprep.subr.bf16.mxu0 0
      %929 = vmatpush1.bf16.msra.mxu0 %v887
      %930 = vmatprep.subr.bf16.mxu0 0
      %931 = vmatpush2.bf16.msra.mxu0 0
      %932 = vmatprep.subr.bf16.mxu0 0
      %933 = vmatpush2.bf16.msra.mxu0 0
      %934 = vmatprep.subr.bf16.mxu0 0
      %935 = vmatpush2.bf16.msra.mxu0 0
      %936 = vmatprep.subr.bf16.mxu0 0
      %937 = vmatpush2.bf16.msra.mxu0 0
      %938 = vmatprep.subr.bf16.mxu0 0
      %939 = vmatpush2.bf16.msra.mxu0 %v898
      %940 = vmatprep.subr.bf16.mxu0 0
      %941 = vmatpush2.bf16.msra.mxu0 %v897
      %942 = vmatprep.subr.bf16.mxu0 0
      %943 = vmatpush2.bf16.msra.mxu0 %v896
      %944 = vmatprep.subr.bf16.mxu0 0
      %945 = vmatpush2.bf16.msra.mxu0 %v895
      %946 = vmatprep.mubr.bf16.mxu0 %v912
      %947 = vmatmul.mubr.bf16.gmra.mxu0 %v836
      %v948 = vpop.f32.mrf.mxu0
      %v949 = vadd.f32 %v810, %v948
      %v950 = vpop.f32.mrf.mxu0
      %v951 = vpop.f32.mrf.mxu0
      %v952 = vadd.f32 %v813, %v951
      %v953 = vpop.f32.mrf.mxu0
      %954 = vdwg.mxu0
      %s955 = scalar_lea.vmem [#allocation2], 8
      %v956 = vld [vmem:[%s955] sm:$0xf]
      %v957 = vld [vmem:[%s955 + $0x4] sm:$0xf]
      %v958 = vld [vmem:[%s955 + $0x8] sm:$0xf]
      %v959 = vld [vmem:[%s955 + $0xc] sm:$0xf]
      %s960 = scalar_lea.vmem %s3, 192
      %v961 = vld [vmem:[%s960] sm:$0xf]
      %v962 = vld [vmem:[%s960 + $0x4] sm:$0xf]
      %v963 = vld [vmem:[%s960 + $0x8] sm:$0xf]
      %v964 = vld [vmem:[%s960 + $0xc] sm:$0xf]
      %v965 = vld [vmem:[%s960 + $0x10] sm:$0xf]
      %v966 = vld [vmem:[%s960 + $0x14] sm:$0xf]
      %v967 = vld [vmem:[%s960 + $0x18] sm:$0xf]
      %v968 = vld [vmem:[%s960 + $0x1c] sm:$0xf]
      %v969 = vld [vmem:[%s960 + $0x20] sm:$0xf]
      %v970 = vld [vmem:[%s960 + $0x24] sm:$0xf]
      %v971 = vld [vmem:[%s960 + $0x28] sm:$0xf]
      %v972 = vld [vmem:[%s960 + $0x2c] sm:$0xf]
      %v973 = vld [vmem:[%s960 + $0x30] sm:$0xf]
      %v974 = vld [vmem:[%s960 + $0x34] sm:$0xf]
      %v975 = vld [vmem:[%s960 + $0x38] sm:$0xf]
      %v976 = vld [vmem:[%s960 + $0x3c] sm:$0xf]
      %v977 = vld [vmem:[%s960 + $0x40] sm:$0xf]
      %v978 = vld [vmem:[%s960 + $0x44] sm:$0xf]
      %v979 = vld [vmem:[%s960 + $0x48] sm:$0xf]
      %v980 = vld [vmem:[%s960 + $0x4c] sm:$0xf]
      %v981 = vld [vmem:[%s960 + $0x50] sm:$0xf]
      %v982 = vld [vmem:[%s960 + $0x54] sm:$0xf]
      %v983 = vld [vmem:[%s960 + $0x58] sm:$0xf]
      %v984 = vld [vmem:[%s960 + $0x5c] sm:$0xf]
      %v989 = vcombine.low %v956, %v957
      %v990 = vcombine.low %v958, %v959
      %v992 = vunpack.c.l.s4 1983009808
      %v993 = vunpack.c.0.s8 %v992
      %v994 = vlaneseq
      %v995 = vshrl.u32 %v994, 7
      %v996 = vsub.s32 %v993, %v995
      %v997 = vrot.slane %v989, %v996
      %v999 = vunpack.c.l.s4 1983009808
      %v1000 = vunpack.c.0.s8 %v999
      %v1001 = vlaneseq
      %v1002 = vshrl.u32 %v1001, 7
      %v1003 = vsub.s32 %v1000, %v1002
      %v1004 = vrot.slane %v990, %v1003
      %v1005 = vcombine.low %v997, %v1004
      %v1006 = vcombine.high %v997, %v1004
      %v1032 = vunpack.c.l.b16 %v961
      %v1033 = vunpack.c.l.b16 %v962
      %v1034 = vunpack.c.l.b16 %v963
      %v1035 = vunpack.c.l.b16 %v964
      %v1036 = vunpack.c.l.b16 %v965
      %v1037 = vunpack.c.l.b16 %v966
      %v1038 = vunpack.c.l.b16 %v967
      %v1039 = vunpack.c.l.b16 %v968
      %v1040 = vunpack.c.l.b16 %v969
      %v1041 = vunpack.c.l.b16 %v970
      %v1042 = vunpack.c.l.b16 %v971
      %v1043 = vunpack.c.l.b16 %v972
      %v1044 = vunpack.c.l.b16 %v973
      %v1045 = vunpack.c.l.b16 %v974
      %v1046 = vunpack.c.l.b16 %v975
      %v1047 = vunpack.c.l.b16 %v976
      %v1048 = vunpack.c.l.b16 %v977
      %v1049 = vunpack.c.l.b16 %v978
      %v1050 = vunpack.c.l.b16 %v979
      %v1051 = vunpack.c.l.b16 %v980
      %v1052 = vunpack.c.l.b16 %v981
      %v1053 = vunpack.c.l.b16 %v982
      %v1054 = vunpack.c.l.b16 %v983
      %v1055 = vunpack.c.l.b16 %v984
      %v1056 = vpack.c.b16 %v1033, %v1032
      %v1057 = vpack.c.b16 %v1035, %v1034
      %v1058 = vpack.c.b16 %v1037, %v1036
      %v1059 = vpack.c.b16 %v1039, %v1038
      %v1060 = vpack.c.b16 %v1041, %v1040
      %v1061 = vpack.c.b16 %v1043, %v1042
      %v1062 = vpack.c.b16 %v1045, %v1044
      %v1063 = vpack.c.b16 %v1047, %v1046
      %v1064 = vpack.c.b16 %v1049, %v1048
      %v1065 = vpack.c.b16 %v1051, %v1050
      %v1066 = vpack.c.b16 %v1053, %v1052
      %v1067 = vpack.c.b16 %v1055, %v1054
      %v1081 = vsel %vm771, %v1006, 0
      %1083 = vmatprep.subr.bf16.mxu0 0
      %1084 = vmatpush1.bf16.msra.mxu0 %v1063
      %1085 = vmatprep.subr.bf16.mxu0 0
      %1086 = vmatpush1.bf16.msra.mxu0 %v1062
      %1087 = vmatprep.subr.bf16.mxu0 0
      %1088 = vmatpush1.bf16.msra.mxu0 %v1061
      %1089 = vmatprep.subr.bf16.mxu0 0
      %1090 = vmatpush1.bf16.msra.mxu0 %v1060
      %1091 = vmatprep.subr.bf16.mxu0 0
      %1092 = vmatpush1.bf16.msra.mxu0 %v1059
      %1093 = vmatprep.subr.bf16.mxu0 0
      %1094 = vmatpush1.bf16.msra.mxu0 %v1058
      %1095 = vmatprep.subr.bf16.mxu0 0
      %1096 = vmatpush1.bf16.msra.mxu0 %v1057
      %1097 = vmatprep.subr.bf16.mxu0 0
      %1098 = vmatpush1.bf16.msra.mxu0 %v1056
      %1099 = vmatprep.subr.bf16.mxu0 0
      %1100 = vmatpush2.bf16.msra.mxu0 0
      %1101 = vmatprep.subr.bf16.mxu0 0
      %1102 = vmatpush2.bf16.msra.mxu0 0
      %1103 = vmatprep.subr.bf16.mxu0 0
      %1104 = vmatpush2.bf16.msra.mxu0 0
      %1105 = vmatprep.subr.bf16.mxu0 0
      %1106 = vmatpush2.bf16.msra.mxu0 0
      %1107 = vmatprep.subr.bf16.mxu0 0
      %1108 = vmatpush2.bf16.msra.mxu0 %v1067
      %1109 = vmatprep.subr.bf16.mxu0 0
      %1110 = vmatpush2.bf16.msra.mxu0 %v1066
      %1111 = vmatprep.subr.bf16.mxu0 0
      %1112 = vmatpush2.bf16.msra.mxu0 %v1065
      %1113 = vmatprep.subr.bf16.mxu0 0
      %1114 = vmatpush2.bf16.msra.mxu0 %v1064
      %1115 = vmatprep.mubr.bf16.mxu0 %v1081
      %1116 = vmatmul.mubr.bf16.gmra.mxu0 %v1005
      %v1117 = vpop.f32.mrf.mxu0
      %v1118 = vadd.f32 0.0, %v1117
      %v1119 = vpop.f32.mrf.mxu0
      %v1120 = vpop.f32.mrf.mxu0
      %v1121 = vadd.f32 0.0, %v1120
      %v1122 = vpop.f32.mrf.mxu0
      %1123 = vdwg.mxu0
      %v1124 = vadd.f32 %v949, %v1118
      %v1125 = vadd.f32 %v952, %v1121
      %v1126 = vld [vmem:[%s4] sm:$0x1]
      %v1128 = vlaneseq
      %v1129 = vshrl.u32 %v1128, 7
      %v1130 = vsub.s32 0, %v1129
      %v1131 = vrot.slane %v1126, %v1130
      %v1133 = vmul.f32 %v1124, %v1131
      %v1134 = vmul.f32 %v1125, %v1131
      %v1135 = vld [vmem:[%s5] sm:$0x1]
      %v1137 = vlaneseq
      %v1138 = vshrl.u32 %v1137, 7
      %v1139 = vsub.s32 0, %v1138
      %v1140 = vrot.slane %v1135, %v1139
      %v1142 = vadd.f32 %v1133, %v1140
      %v1143 = vadd.f32 %v1134, %v1140
      %v1144 = vmax.f32 %v1142, 0.0
      %v1145 = vmax.f32 %v1143, 0.0
      %v1146 = vpack.c.bf16 %v1145, %v1144
      %v1148 = vunpack.c.l.b16 %v1146
      %v1149 = vunpack.c.h.b16 %v1146
      %v1150 = vpack.c.b16 %v1148, %v1148
      %v1151 = vpack.c.b16 %v1149, %v1149
      %vm1154 = vcmask 519168
      %1155 = vst.msk [vmem:[%s407] sm:$0xf] %vm1154, %v1150
      %1156 = vst.msk [vmem:[%s407 + $0x4] sm:$0xf] %vm1154, %v1151
      %s1157 = smul.u32 2, %s22
      %p1158 = scmp.lt.s32.totalorder %s21, 1
      %s1159 = scalar_select %p1158, %s21, 1
      %p1160 = scmp.lt.s32.totalorder %s1157, 1
      %s1161 = scalar_select %p1160, %s1157, 1
      %s1162 = smul.addr %s1159, 2
      %s1163 = sadd.s32 %s1161, %s1162
      %s1164 = smul.addr %s1163, 4
      %s1165 = scalar_lea.vmem %s6, %s1164
      // Predicated region
      $region49: #{detail_branch.11} parent=43 // pred_check
        %p1166 = pneg %p212
      $region50: #{detail_branch.11} parent=43 // pred_check_branch
        %1168 = sbr.rel (%p1166) target = $region52
      $region51: #{detail_branch.11} parent=43 // pred_region
        %s1169 = smul.u32 2, %s22
      $region52: #{detail_branch.11} parent=43 // pred_fallthru
        _
    $region44: #{detail_branch.11} parent=5 // pred_fallthru
      _
    %p1170 = scmp.le.s32.totalorder 2, %s12
    // Predicated region
    $region53: #{detail_branch.11} parent=5 // pred_check
      %p1171 = pneg %p1170
    $region54: #{detail_branch.11} parent=5 // pred_check_branch
      %1173 = sbr.rel (%p1171) target = $region56
    $region55: #{detail_branch.11} parent=5 // pred_region
      %s1174 = ssub.s32 %s12, 2
      // Predicated region
      $region57: #{detail_branch.11} parent=55 // pred_check
        %p1175 = pneg %p218
      $region58: #{detail_branch.11} parent=55 // pred_check_branch
        %1177 = sbr.rel (%p1175) target = $region60
      $region59: #{detail_branch.11} parent=55 // pred_region
        %s1178 = smul.u32 2, %s24
        %p1179 = scmp.lt.s32.totalorder %s23, 1
        %s1180 = scalar_select %p1179, %s23, 1
        %p1181 = scmp.lt.s32.totalorder %s1178, 1
        %s1182 = scalar_select %p1181, %s1178, 1
        %s1183 = smul.addr %s1180, 2
        %s1184 = sadd.s32 %s1182, %s1183
        %s1185 = smul.addr %s1184, 4
        %s1186 = scalar_lea.vmem %s6, %s1185
      $region60: #{detail_branch.11} parent=55 // pred_fallthru
        _
    $region56: #{detail_branch.11} parent=5 // pred_fallthru
      _
  $region6: #{detail_branch.11} parent=0 // loop_footer
    %s16 = sadd.s32 1, %s12
  $region7: #{detail_branch.11} parent=0 // loop_footer_branch
    %11 = sbr.rel target = $region3
  $region8: #{detail_branch.11} parent=0 // loop_exit
    _

// kernel: detail_branch.10
$region0: #{detail_branch.10}
  #allocation0 [shape = 'u32[]', space=smem, size = 0x4, offset = 0x4, fixed_abs, tag = 'smem constant byte address 0x4 - core index']
  #allocation1 [shape = 'u32[144,128]{1,0:T(1,128)}', space=vmem, size = 0x12000, scoped, tag = 'internal scratch']
  #allocation2 [shape = 'bf16[4,4,768]{2,1,0:T(4,128)(2,1)}', space=vmem, size = 0x6000, scoped, tag = 'scratch operand']
  %s0 = inlined_call_operand.vmem [shape: bf16[2,4,2,4,128], index: 0, kind: input, shape index: {}, may-alias: {0,1}]
  %s1 = inlined_call_operand.vmem [shape: bf16[2,4,2,4,128], index: 1, kind: input, shape index: {}, may-alias: {0,1}]
  %s2 = inlined_call_operand.vmem [shape: bf16[768,64], index: 2, kind: input, shape index: {}]
  %s3 = inlined_call_operand.vmem [shape: f32[1,64], index: 3, kind: input, shape index: {}]
  %s4 = inlined_call_operand.vmem [shape: f32[1,64], index: 4, kind: input, shape index: {}]
  %s5 = inlined_call_operand.vmem [shape: bf16[2,16,64], index: 5, kind: output, shape index: {}]
  %s6 = sld [smem:[#allocation0]]
  $region57: #{detail_branch.10} parent=0
    _
  %s8 = ssub.s32 1, %s6
  %s9 = scalar_select 0, %s8, %s6
  loop: start=0, step=1, limit=4
  $region2: #{detail_branch.10} parent=0 // loop_pre_header
    _
  $region3: #{detail_branch.10} parent=0 // loop_header
    %s11 = sphi 0, %s15
    %p12 = scmp.ge.s32.totalorder %s11, 4
    %s18 = sphi 0, %s30
    %s19 = sphi 0, %s26
    %s20 = sphi 0, %s18
    %s21 = sphi 0, %s19
    %s22 = sphi 0, %s20
    %s23 = sphi 0, %s21
    %s35 = sphi 0, %s37
    %s38 = sphi 0, %s35
    %s39 = sphi 0, %s38
    %s55 = sphi 0, %s39
    %s71 = sphi 0, %s73
    %s74 = sphi 0, %s71
    %s75 = sphi 0, %s74
    %s91 = sphi 0, %s75
    %s95 = sphi 0, %s95
    %s97 = sphi 0, %s95
    %s98 = sphi 0, %s97
    %s112 = sphi 0, %s98
    %s116 = sphi 0, %s116
    %s118 = sphi 0, %s116
    %s119 = sphi 0, %s118
    %s133 = sphi 0, %s119
    %s137 = sphi 0, %s137
    %s139 = sphi 0, %s137
    %s140 = sphi 0, %s139
    %s154 = sphi 0, %s140
    %s162 = sphi 0, %s164
    %s165 = sphi 0, %s162
    %s166 = sphi 0, %s165
    %s182 = sphi 0, %s166
  $region4: #{detail_branch.10} parent=0 // loop_header_branch
    %14 = sbr.rel (%p12) target = $region8
  $region5: #{detail_branch.10} parent=0 // loop_body
    %s16 = ssub.s32 %s11, 1
    %s17 = ssub.s32 %s11, 2
    %s24 = sadd.s32 1, %s19
    %p25 = scmp.ge.s32.totalorder %s24, 1
    %s26 = scalar_select %p25, 0, %s24
    %s27 = sadd.s32 1, %s18
    %s28 = scalar_select %p25, %s27, %s18
    %p29 = scmp.ge.s32.totalorder %s28, 2
    %s30 = scalar_select %p29, 0, %s28
    %s31 = ssub.s32 %s18, %s30
    %s32 = ssub.s32 %s19, %s26
    %s33 = sor.u32 %s31, %s32
    %p34 = scmp.eq.s32.totalorder %s33, 0
    %s36 = sadd.s32 %s35, 1
    %s37 = scalar_select %p34, %s35, %s36
    %p40 = pneg %p34
    %p41 = scmp.eq.s32.totalorder %s11, 1
    %p42 = por %p40, %p41
    %p43 = scmp.ne.s32.totalorder %s35, %s38
    %p44 = scmp.eq.s32.totalorder %s11, 0
    %p45 = por %p43, %p44
    %p46 = scmp.ne.s32.totalorder %s35, %s38
    %p47 = scmp.eq.s32.totalorder %s16, 1
    %p48 = por %p46, %p47
    %p49 = scmp.ne.s32.totalorder %s38, %s39
    %p50 = scmp.eq.s32.totalorder %s16, 0
    %p51 = por %p49, %p50
    %p52 = scmp.ne.s32.totalorder %s38, %s39
    %p53 = scmp.eq.s32.totalorder %s17, 1
    %p54 = por %p52, %p53
    %p56 = scmp.ne.s32.totalorder %s39, %s55
    %p57 = scmp.eq.s32.totalorder %s17, 0
    %p58 = por %p56, %p57
    %s59 = smul.u32 %s19, 4
    %s60 = ssub.s32 %s59, 1
    %p61 = scmp.gt.s32.totalorder %s60, 0
    %s62 = scalar_select %p61, %s60, 0
    %s63 = smul.u32 %s26, 4
    %s64 = ssub.s32 %s63, 1
    %p65 = scmp.gt.s32.totalorder %s64, 0
    %s66 = scalar_select %p65, %s64, 0
    %s67 = ssub.s32 %s18, %s30
    %s68 = ssub.s32 %s62, %s66
    %s69 = sor.u32 %s67, %s68
    %p70 = scmp.eq.s32.totalorder %s69, 0
    %s72 = sadd.s32 %s71, 1
    %s73 = scalar_select %p70, %s71, %s72
    %p76 = pneg %p70
    %p77 = scmp.eq.s32.totalorder %s11, 1
    %p78 = por %p76, %p77
    %p79 = scmp.ne.s32.totalorder %s71, %s74
    %p80 = scmp.eq.s32.totalorder %s11, 0
    %p81 = por %p79, %p80
    %p82 = scmp.ne.s32.totalorder %s71, %s74
    %p83 = scmp.eq.s32.totalorder %s16, 1
    %p84 = por %p82, %p83
    %p85 = scmp.ne.s32.totalorder %s74, %s75
    %p86 = scmp.eq.s32.totalorder %s16, 0
    %p87 = por %p85, %p86
    %p88 = scmp.ne.s32.totalorder %s74, %s75
    %p89 = scmp.eq.s32.totalorder %s17, 1
    %p90 = por %p88, %p89
    %p92 = scmp.ne.s32.totalorder %s75, %s91
    %p93 = scmp.eq.s32.totalorder %s17, 0
    %p94 = por %p92, %p93
    %s96 = sadd.s32 %s95, 1
    %p99 = scmp.eq.s32.totalorder %s11, 1
    %p100 = scmp.ne.s32.totalorder %s95, %s97
    %p101 = scmp.eq.s32.totalorder %s11, 0
    %p102 = por %p100, %p101
    %p103 = scmp.ne.s32.totalorder %s95, %s97
    %p104 = scmp.eq.s32.totalorder %s16, 1
    %p105 = por %p103, %p104
    %p106 = scmp.ne.s32.totalorder %s97, %s98
    %p107 = scmp.eq.s32.totalorder %s16, 0
    %p108 = por %p106, %p107
    %p109 = scmp.ne.s32.totalorder %s97, %s98
    %p110 = scmp.eq.s32.totalorder %s17, 1
    %p111 = por %p109, %p110
    %p113 = scmp.ne.s32.totalorder %s98, %s112
    %p114 = scmp.eq.s32.totalorder %s17, 0
    %p115 = por %p113, %p114
    %s117 = sadd.s32 %s116, 1
    %p120 = scmp.eq.s32.totalorder %s11, 1
    %p121 = scmp.ne.s32.totalorder %s116, %s118
    %p122 = scmp.eq.s32.totalorder %s11, 0
    %p123 = por %p121, %p122
    %p124 = scmp.ne.s32.totalorder %s116, %s118
    %p125 = scmp.eq.s32.totalorder %s16, 1
    %p126 = por %p124, %p125
    %p127 = scmp.ne.s32.totalorder %s118, %s119
    %p128 = scmp.eq.s32.totalorder %s16, 0
    %p129 = por %p127, %p128
    %p130 = scmp.ne.s32.totalorder %s118, %s119
    %p131 = scmp.eq.s32.totalorder %s17, 1
    %p132 = por %p130, %p131
    %p134 = scmp.ne.s32.totalorder %s119, %s133
    %p135 = scmp.eq.s32.totalorder %s17, 0
    %p136 = por %p134, %p135
    %s138 = sadd.s32 %s137, 1
    %p141 = scmp.eq.s32.totalorder %s11, 1
    %p142 = scmp.ne.s32.totalorder %s137, %s139
    %p143 = scmp.eq.s32.totalorder %s11, 0
    %p144 = por %p142, %p143
    %p145 = scmp.ne.s32.totalorder %s137, %s139
    %p146 = scmp.eq.s32.totalorder %s16, 1
    %p147 = por %p145, %p146
    %p148 = scmp.ne.s32.totalorder %s139, %s140
    %p149 = scmp.eq.s32.totalorder %s16, 0
    %p150 = por %p148, %p149
    %p151 = scmp.ne.s32.totalorder %s139, %s140
    %p152 = scmp.eq.s32.totalorder %s17, 1
    %p153 = por %p151, %p152
    %p155 = scmp.ne.s32.totalorder %s140, %s154
    %p156 = scmp.eq.s32.totalorder %s17, 0
    %p157 = por %p155, %p156
    %s158 = ssub.s32 %s18, %s30
    %s159 = ssub.s32 %s19, %s26
    %s160 = sor.u32 %s158, %s159
    %p161 = scmp.eq.s32.totalorder %s160, 0
    %s163 = sadd.s32 %s162, 1
    %s164 = scalar_select %p161, %s162, %s163
    %p167 = pneg %p161
    %p168 = scmp.eq.s32.totalorder %s11, 1
    %p169 = por %p167, %p168
    %p170 = scmp.ne.s32.totalorder %s162, %s165
    %p171 = scmp.eq.s32.totalorder %s11, 0
    %p172 = por %p170, %p171
    %p173 = scmp.ne.s32.totalorder %s162, %s165
    %p174 = scmp.eq.s32.totalorder %s16, 1
    %p175 = por %p173, %p174
    %p176 = scmp.ne.s32.totalorder %s165, %s166
    %p177 = scmp.eq.s32.totalorder %s16, 0
    %p178 = por %p176, %p177
    %p179 = scmp.ne.s32.totalorder %s165, %s166
    %p180 = scmp.eq.s32.totalorder %s17, 1
    %p181 = por %p179, %p180
    %p183 = scmp.ne.s32.totalorder %s166, %s182
    %p184 = scmp.eq.s32.totalorder %s17, 0
    %p185 = por %p183, %p184
    %p186 = scmp.le.s32.totalorder 1, %s11
    %p187 = scmp.lt.s32.totalorder %s11, 3
    %p188 = pnand %p186, %p187
    %p189 = pneg %p188
    // Predicated region
    $region9: #{detail_branch.10} parent=5 // pred_check
      _
    $region10: #{detail_branch.10} parent=5 // pred_check_branch
      %191 = sbr.rel (%p188) target = $region12
    $region11: #{detail_branch.10} parent=5 // pred_region
      %s192 = ssub.s32 %s11, 1
      // Predicated region
      $region13: #{detail_branch.10} parent=11 // pred_check
        %p193 = pneg %p108
      $region14: #{detail_branch.10} parent=11 // pred_check_branch
        %195 = sbr.rel (%p193) target = $region16
      $region15: #{detail_branch.10} parent=11 // pred_region
        _
      $region16: #{detail_branch.10} parent=11 // pred_fallthru
        _
      // Predicated region
      $region17: #{detail_branch.10} parent=11 // pred_check
        %p196 = pneg %p129
      $region18: #{detail_branch.10} parent=11 // pred_check_branch
        %198 = sbr.rel (%p196) target = $region20
      $region19: #{detail_branch.10} parent=11 // pred_region
        _
      $region20: #{detail_branch.10} parent=11 // pred_fallthru
        _
      // Predicated region
      $region21: #{detail_branch.10} parent=11 // pred_check
        %p199 = pneg %p150
      $region22: #{detail_branch.10} parent=11 // pred_check_branch
        %201 = sbr.rel (%p199) target = $region24
      $region23: #{detail_branch.10} parent=11 // pred_region
        _
      $region24: #{detail_branch.10} parent=11 // pred_fallthru
        _
    $region12: #{detail_branch.10} parent=5 // pred_fallthru
      _
    %p202 = scmp.lt.s32.totalorder %s11, 2
    // Predicated region
    $region25: #{detail_branch.10} parent=5 // pred_check
      %p203 = pneg %p202
    $region26: #{detail_branch.10} parent=5 // pred_check_branch
      %205 = sbr.rel (%p203) target = $region28
    $region27: #{detail_branch.10} parent=5 // pred_region
      // Predicated region
      $region29: #{detail_branch.10} parent=27 // pred_check
        %p206 = pneg %p45
      $region30: #{detail_branch.10} parent=27 // pred_check_branch
        %208 = sbr.rel (%p206) target = $region32
      $region31: #{detail_branch.10} parent=27 // pred_region
        %s209 = smul.u32 4, %s19
        %p210 = scmp.lt.s32.totalorder %s18, 1
        %s211 = scalar_select %p210, %s18, 1
        %p212 = scmp.lt.s32.totalorder %s209, 3
        %s213 = scalar_select %p212, %s209, 3
        %s214 = smul.addr %s213, 2
        %s215 = smul.addr %s211, 8
        %s216 = sadd.s32 %s214, %s215
        %s217 = smul.addr %s216, 2
        %s218 = scalar_lea.vmem %s0, %s217
        %s219 = smul.u32 4, %s19
      $region32: #{detail_branch.10} parent=27 // pred_fallthru
        _
      // Predicated region
      $region33: #{detail_branch.10} parent=27 // pred_check
        %p220 = pneg %p81
      $region34: #{detail_branch.10} parent=27 // pred_check_branch
        %222 = sbr.rel (%p220) target = $region36
      $region35: #{detail_branch.10} parent=27 // pred_region
        %s223 = smul.u32 %s19, 4
        %s224 = ssub.s32 %s223, 1
        %p225 = scmp.gt.s32.totalorder %s224, 0
        %s226 = scalar_select %p225, %s224, 0
        %p227 = scmp.lt.s32.totalorder %s18, 1
        %s228 = scalar_select %p227, %s18, 1
        %p229 = scmp.lt.s32.totalorder %s226, 3
        %s230 = scalar_select %p229, %s226, 3
        %s231 = smul.addr %s230, 2
        %s232 = sadd.s32 1, %s231
        %s233 = smul.addr %s228, 8
        %s234 = sadd.s32 %s232, %s233
        %s235 = smul.addr %s234, 2
        %s236 = scalar_lea.vmem %s1, %s235
        %s237 = smul.u32 %s19, 4
        %s238 = ssub.s32 %s237, 1
        %p239 = scmp.gt.s32.totalorder %s238, 0
        %s240 = scalar_select %p239, %s238, 0
      $region36: #{detail_branch.10} parent=27 // pred_fallthru
        _
    $region28: #{detail_branch.10} parent=5 // pred_fallthru
      _
    %p241 = scmp.le.s32.totalorder 1, %s11
    %p242 = scmp.lt.s32.totalorder %s11, 3
    %p243 = pnand %p241, %p242
    %p244 = pneg %p243
    // Predicated region
    $region37: #{detail_branch.10} parent=5 // pred_check
      _
    $region38: #{detail_branch.10} parent=5 // pred_check_branch
      %246 = sbr.rel (%p243) target = $region40
    $region39: #{detail_branch.10} parent=5 // pred_region
      %s247 = ssub.s32 %s11, 1
      %s248 = smul.u32 4, %s21
      %p249 = scmp.lt.s32.totalorder %s20, 1
      %s250 = scalar_select %p249, %s20, 1
      %p251 = scmp.lt.s32.totalorder %s248, 3
      %s252 = scalar_select %p251, %s248, 3
      %s253 = smul.addr %s252, 2
      %s254 = smul.addr %s250, 8
      %s255 = sadd.s32 %s253, %s254
      %s256 = smul.addr %s255, 2
      %s257 = scalar_lea.vmem %s0, %s256
      %p258 = pneg %p51
      %p259 = pneg %p48
      %s260 = smul.u32 %s21, 4
      %s261 = ssub.s32 %s260, 1
      %p262 = scmp.gt.s32.totalorder %s261, 0
      %s263 = scalar_select %p262, %s261, 0
      %p264 = scmp.lt.s32.totalorder %s20, 1
      %s265 = scalar_select %p264, %s20, 1
      %p266 = scmp.lt.s32.totalorder %s263, 3
      %s267 = scalar_select %p266, %s263, 3
      %s268 = smul.addr %s267, 2
      %s269 = sadd.s32 1, %s268
      %s270 = smul.addr %s265, 8
      %s271 = sadd.s32 %s269, %s270
      %s272 = smul.addr %s271, 2
      %s273 = scalar_lea.vmem %s1, %s272
      %p274 = pneg %p87
      %p275 = pneg %p84
      %p276 = pneg %p108
      %p277 = pneg %p105
      %p278 = pneg %p129
      %p279 = pneg %p126
      %p280 = pneg %p150
      %p281 = pneg %p147
      %p282 = pneg %p178
      %p283 = pneg %p175
      %s284 = smul.u32 2, %s21
      %p285 = scmp.lt.s32.totalorder %s20, 1
      %s286 = scalar_select %p285, %s20, 1
      %p287 = scmp.lt.s32.totalorder %s284, 1
      %s288 = scalar_select %p287, %s284, 1
      %s289 = smul.addr %s286, 2
      %s290 = sadd.s32 %s288, %s289
      %s291 = smul.addr %s290, 4
      %s292 = scalar_lea.vmem %s5, %s291
      %s293 = smul.u32 4, %s21
      %p294 = scmp.lt.s32.totalorder %s20, 1
      %s295 = scalar_select %p294, %s20, 1
      %p296 = scmp.lt.s32.totalorder %s293, 3
      %s297 = scalar_select %p296, %s293, 3
      %s298 = smul.addr %s297, 2
      %s299 = smul.addr %s295, 8
      %s300 = sadd.s32 %s298, %s299
      %s301 = smul.addr %s300, 2
      %s302 = scalar_lea.vmem %s0, %s301
      %s303 = smul.u32 4, %s21
      %s304 = smul.u32 %s21, 4
      %s305 = ssub.s32 %s304, 1
      %p306 = scmp.gt.s32.totalorder %s305, 0
      %s307 = scalar_select %p306, %s305, 0
      %p308 = scmp.lt.s32.totalorder %s20, 1
      %s309 = scalar_select %p308, %s20, 1
      %p310 = scmp.lt.s32.totalorder %s307, 3
      %s311 = scalar_select %p310, %s307, 3
      %s312 = smul.addr %s311, 2
      %s313 = sadd.s32 1, %s312
      %s314 = smul.addr %s309, 8
      %s315 = sadd.s32 %s313, %s314
      %s316 = smul.addr %s315, 2
      %s317 = scalar_lea.vmem %s1, %s316
      %s318 = smul.u32 %s21, 4
      %s319 = ssub.s32 %s318, 1
      %p320 = scmp.gt.s32.totalorder %s319, 0
      %s321 = scalar_select %p320, %s319, 0
      %s322 = smul.u32 2, %s21
      %p323 = scmp.lt.s32.totalorder %s20, 1
      %s324 = scalar_select %p323, %s20, 1
      %p325 = scmp.lt.s32.totalorder %s322, 1
      %s326 = scalar_select %p325, %s322, 1
      %s327 = smul.addr %s324, 2
      %s328 = sadd.s32 %s326, %s327
      %s329 = smul.addr %s328, 4
      %s330 = scalar_lea.vmem %s5, %s329
      %s331 = smul.u32 2, %s21
      %vm333 = vcmask 1040384
      %vm334 = vsmask.f32 256
      %vm335 = vmand %vm333, %vm334
      %v336 = vld [vmem:[#allocation2] sm:$0x1]
      %v337 = vsel %vm335, 0, %v336
      %338 = vst [vmem:[#allocation2] sm:$0x1] %v337
      %v339 = vld [vmem:[#allocation2 + $0xc] sm:$0x1]
      %v340 = vsel %vm335, 0, %v339
      %341 = vst [vmem:[#allocation2 + $0xc] sm:$0x1] %v340
      %v342 = vld [vmem:[#allocation2 + $0x18] sm:$0x1]
      %v343 = vsel %vm335, 0, %v342
      %344 = vst [vmem:[#allocation2 + $0x18] sm:$0x1] %v343
      %v345 = vld [vmem:[#allocation2 + $0x24] sm:$0x1]
      %v346 = vsel %vm335, 0, %v345
      %347 = vst [vmem:[#allocation2 + $0x24] sm:$0x1] %v346
      %v348 = vld [vmem:[#allocation2 + $0x4] sm:$0x1]
      %v349 = vsel %vm335, 0, %v348
      %350 = vst [vmem:[#allocation2 + $0x4] sm:$0x1] %v349
      %v351 = vld [vmem:[#allocation2 + $0x10] sm:$0x1]
      %v352 = vsel %vm335, 0, %v351
      %353 = vst [vmem:[#allocation2 + $0x10] sm:$0x1] %v352
      %v354 = vld [vmem:[#allocation2 + $0x1c] sm:$0x1]
      %v355 = vsel %vm335, 0, %v354
      %356 = vst [vmem:[#allocation2 + $0x1c] sm:$0x1] %v355
      %v357 = vld [vmem:[#allocation2 + $0x28] sm:$0x1]
      %v358 = vsel %vm335, 0, %v357
      %359 = vst [vmem:[#allocation2 + $0x28] sm:$0x1] %v358
      %v360 = vld [vmem:[#allocation2 + $0x8] sm:$0x1]
      %v361 = vsel %vm335, 0, %v360
      %362 = vst [vmem:[#allocation2 + $0x8] sm:$0x1] %v361
      %v363 = vld [vmem:[#allocation2 + $0x14] sm:$0x1]
      %v364 = vsel %vm335, 0, %v363
      %365 = vst [vmem:[#allocation2 + $0x14] sm:$0x1] %v364
      %v366 = vld [vmem:[#allocation2 + $0x20] sm:$0x1]
      %v367 = vsel %vm335, 0, %v366
      %368 = vst [vmem:[#allocation2 + $0x20] sm:$0x1] %v367
      %v369 = vld [vmem:[#allocation2 + $0x2c] sm:$0x1]
      %v370 = vsel %vm335, 0, %v369
      %371 = vst [vmem:[#allocation2 + $0x2c] sm:$0x1] %v370
      %v372 = vld [vmem:[%s302] sm:$0x3]
      %v373 = vld [vmem:[%s302 + $0x4] sm:$0x3]
      %v374 = vld [vmem:[%s302 + $0x8] sm:$0x3]
      %v375 = vld [vmem:[%s302 + $0xc] sm:$0x3]
      %v377 = vshrl.u32 %v372, 16
      %v379 = vrot.slane %v377, 7
      %v380 = vshll.u32 %v372, 16
      %v382 = vor.u32 %v379, %v380
      %v384 = vshrl.u32 %v373, 16
      %v386 = vrot.slane %v384, 7
      %v387 = vshll.u32 %v373, 16
      %v389 = vor.u32 %v386, %v387
      %v391 = vshrl.u32 %v374, 16
      %v393 = vrot.slane %v391, 7
      %v394 = vshll.u32 %v374, 16
      %v396 = vor.u32 %v393, %v394
      %v398 = vshrl.u32 %v375, 16
      %v400 = vrot.slane %v398, 7
      %v401 = vshll.u32 %v375, 16
      %v403 = vor.u32 %v400, %v401
      %vm408 = vcmask 1041408
      %vm409 = vsmask.f32 7938
      %vm410 = vmand %vm408, %vm409
      %v411 = vld [vmem:[#allocation2 + $0x4] sm:$0x3]
      %v412 = vsel %vm410, %v382, %v411
      %413 = vst [vmem:[#allocation2 + $0x4] sm:$0x3] %v412
      %v414 = vld [vmem:[#allocation2 + $0x10] sm:$0x3]
      %v415 = vsel %vm410, %v389, %v414
      %416 = vst [vmem:[#allocation2 + $0x10] sm:$0x3] %v415
      %v417 = vld [vmem:[#allocation2 + $0x1c] sm:$0x3]
      %v418 = vsel %vm410, %v396, %v417
      %419 = vst [vmem:[#allocation2 + $0x1c] sm:$0x3] %v418
      %v420 = vld [vmem:[#allocation2 + $0x28] sm:$0x3]
      %v421 = vsel %vm410, %v403, %v420
      %422 = vst [vmem:[#allocation2 + $0x28] sm:$0x3] %v421
      %423 = vst [vmem:[#allocation2 + $0x6] sm:$0x3] %v372
      %424 = vst [vmem:[#allocation2 + $0x12] sm:$0x3] %v373
      %425 = vst [vmem:[#allocation2 + $0x1e] sm:$0x3] %v374
      %426 = vst [vmem:[#allocation2 + $0x2a] sm:$0x3] %v375
      %s427 = scalar_lea.vmem %s302, 2
      %v428 = vld [vmem:[%s427] sm:$0x3]
      %v429 = vld [vmem:[%s427 + $0x4] sm:$0x3]
      %v430 = vld [vmem:[%s427 + $0x8] sm:$0x3]
      %v431 = vld [vmem:[%s427 + $0xc] sm:$0x3]
      %v433 = vshrl.u32 %v428, 16
      %v435 = vrot.slane %v433, 7
      %v436 = vshll.u32 %v428, 16
      %v438 = vor.u32 %v435, %v436
      %v440 = vshrl.u32 %v429, 16
      %v442 = vrot.slane %v440, 7
      %v443 = vshll.u32 %v429, 16
      %v445 = vor.u32 %v442, %v443
      %v447 = vshrl.u32 %v430, 16
      %v449 = vrot.slane %v447, 7
      %v450 = vshll.u32 %v430, 16
      %v452 = vor.u32 %v449, %v450
      %v454 = vshrl.u32 %v431, 16
      %v456 = vrot.slane %v454, 7
      %v457 = vshll.u32 %v431, 16
      %v459 = vor.u32 %v456, %v457
      %v464 = vld [vmem:[#allocation2 + $0x8] sm:$0x3]
      %v465 = vsel %vm410, %v438, %v464
      %466 = vst [vmem:[#allocation2 + $0x8] sm:$0x3] %v465
      %v467 = vld [vmem:[#allocation2 + $0x14] sm:$0x3]
      %v468 = vsel %vm410, %v445, %v467
      %469 = vst [vmem:[#allocation2 + $0x14] sm:$0x3] %v468
      %v470 = vld [vmem:[#allocation2 + $0x20] sm:$0x3]
      %v471 = vsel %vm410, %v452, %v470
      %472 = vst [vmem:[#allocation2 + $0x20] sm:$0x3] %v471
      %v473 = vld [vmem:[#allocation2 + $0x2c] sm:$0x3]
      %v474 = vsel %vm410, %v459, %v473
      %475 = vst [vmem:[#allocation2 + $0x2c] sm:$0x3] %v474
      %476 = vst [vmem:[#allocation2 + $0xa] sm:$0x3] %v428
      %477 = vst [vmem:[#allocation2 + $0x16] sm:$0x3] %v429
      %478 = vst [vmem:[#allocation2 + $0x22] sm:$0x3] %v430
      %479 = vst [vmem:[#allocation2 + $0x2e] sm:$0x3] %v431
      %v480 = vld [vmem:[%s317] sm:$0x3]
      %v482 = vshrl.u32 %v480, 16
      %v484 = vrot.slane %v482, 7
      %v485 = vshll.u32 %v480, 16
      %v487 = vor.u32 %v484, %v485
      %v489 = vld [vmem:[#allocation2] sm:$0x3]
      %v490 = vsel %vm410, %v487, %v489
      %491 = vst [vmem:[#allocation2] sm:$0x3] %v490
      %492 = vst [vmem:[#allocation2 + $0x2] sm:$0x3] %v480
      %v493 = vld [vmem:[%s427] sm:$0x3]
      %v494 = vld [vmem:[%s427 + $0x4] sm:$0x3]
      %v495 = vld [vmem:[%s427 + $0x8] sm:$0x3]
      %v497 = vshrl.u32 %v493, 16
      %v499 = vrot.slane %v497, 7
      %v500 = vshll.u32 %v493, 16
      %v502 = vor.u32 %v499, %v500
      %v504 = vshrl.u32 %v494, 16
      %v506 = vrot.slane %v504, 7
      %v507 = vshll.u32 %v494, 16
      %v509 = vor.u32 %v506, %v507
      %v511 = vshrl.u32 %v495, 16
      %v513 = vrot.slane %v511, 7
      %v514 = vshll.u32 %v495, 16
      %v516 = vor.u32 %v513, %v514
      %s520 = scalar_lea.vmem [#allocation2], 12
      %v521 = vld [vmem:[%s520] sm:$0x3]
      %v522 = vsel %vm410, %v502, %v521
      %523 = vst [vmem:[%s520] sm:$0x3] %v522
      %v524 = vld [vmem:[%s520 + $0xc] sm:$0x3]
      %v525 = vsel %vm410, %v509, %v524
      %526 = vst [vmem:[%s520 + $0xc] sm:$0x3] %v525
      %v527 = vld [vmem:[%s520 + $0x18] sm:$0x3]
      %v528 = vsel %vm410, %v516, %v527
      %529 = vst [vmem:[%s520 + $0x18] sm:$0x3] %v528
      %530 = vst [vmem:[%s520 + $0x2] sm:$0x3] %v493
      %531 = vst [vmem:[%s520 + $0xe] sm:$0x3] %v494
      %532 = vst [vmem:[%s520 + $0x1a] sm:$0x3] %v495
      %p533 = scmp.eq.s32.totalorder %s21, 0
      // Predicated region
      $region41: #{detail_branch.10} parent=39 // pred_check
        %p534 = pneg %p533
      $region42: #{detail_branch.10} parent=39 // pred_check_branch
        %536 = sbr.rel (%p534) target = $region44
      $region43: #{detail_branch.10} parent=39 // pred_region
        %537 = vst [vmem:[#allocation2] sm:$0xf] 0
      $region44: #{detail_branch.10} parent=39 // pred_fallthru
        _
      %v538 = vld [vmem:[#allocation2] sm:$0xff]
      %v539 = vld [vmem:[#allocation2 + $0x8] sm:$0xf]
      %v540 = vld [vmem:[#allocation2 + $0xc] sm:$0xff]
      %v541 = vld [vmem:[#allocation2 + $0x14] sm:$0xf]
      %v542 = vld [vmem:[#allocation2 + $0x18] sm:$0xff]
      %v543 = vld [vmem:[#allocation2 + $0x20] sm:$0xf]
      %v544 = vld [vmem:[#allocation2 + $0x24] sm:$0xff]
      %v545 = vld [vmem:[#allocation2 + $0x2c] sm:$0xf]
      %v546 = vld [vmem:[%s2] sm:$0xf]
      %v547 = vld [vmem:[%s2 + $0x4] sm:$0xf]
      %v548 = vld [vmem:[%s2 + $0x8] sm:$0xf]
      %v549 = vld [vmem:[%s2 + $0xc] sm:$0xf]
      %v550 = vld [vmem:[%s2 + $0x10] sm:$0xf]
      %v551 = vld [vmem:[%s2 + $0x14] sm:$0xf]
      %v552 = vld [vmem:[%s2 + $0x18] sm:$0xf]
      %v553 = vld [vmem:[%s2 + $0x1c] sm:$0xf]
      %v554 = vld [vmem:[%s2 + $0x20] sm:$0xf]
      %v555 = vld [vmem:[%s2 + $0x24] sm:$0xf]
      %v556 = vld [vmem:[%s2 + $0x28] sm:$0xf]
      %v557 = vld [vmem:[%s2 + $0x2c] sm:$0xf]
      %v558 = vld [vmem:[%s2 + $0x30] sm:$0xf]
      %v559 = vld [vmem:[%s2 + $0x34] sm:$0xf]
      %v560 = vld [vmem:[%s2 + $0x38] sm:$0xf]
      %v561 = vld [vmem:[%s2 + $0x3c] sm:$0xf]
      %v562 = vld [vmem:[%s2 + $0x40] sm:$0xf]
      %v563 = vld [vmem:[%s2 + $0x44] sm:$0xf]
      %v564 = vld [vmem:[%s2 + $0x48] sm:$0xf]
      %v565 = vld [vmem:[%s2 + $0x4c] sm:$0xf]
      %v566 = vld [vmem:[%s2 + $0x50] sm:$0xf]
      %v567 = vld [vmem:[%s2 + $0x54] sm:$0xf]
      %v568 = vld [vmem:[%s2 + $0x58] sm:$0xf]
      %v569 = vld [vmem:[%s2 + $0x5c] sm:$0xf]
      %v570 = vld [vmem:[%s2 + $0x60] sm:$0xf]
      %v571 = vld [vmem:[%s2 + $0x64] sm:$0xf]
      %v572 = vld [vmem:[%s2 + $0x68] sm:$0xf]
      %v573 = vld [vmem:[%s2 + $0x6c] sm:$0xf]
      %v574 = vld [vmem:[%s2 + $0x70] sm:$0xf]
      %v575 = vld [vmem:[%s2 + $0x74] sm:$0xf]
      %v576 = vld [vmem:[%s2 + $0x78] sm:$0xf]
      %v577 = vld [vmem:[%s2 + $0x7c] sm:$0xf]
      %v578 = vld [vmem:[%s2 + $0x80] sm:$0xf]
      %v579 = vld [vmem:[%s2 + $0x84] sm:$0xf]
      %v580 = vld [vmem:[%s2 + $0x88] sm:$0xf]
      %v581 = vld [vmem:[%s2 + $0x8c] sm:$0xf]
      %v582 = vld [vmem:[%s2 + $0x90] sm:$0xf]
      %v583 = vld [vmem:[%s2 + $0x94] sm:$0xf]
      %v584 = vld [vmem:[%s2 + $0x98] sm:$0xf]
      %v585 = vld [vmem:[%s2 + $0x9c] sm:$0xf]
      %v586 = vld [vmem:[%s2 + $0xa0] sm:$0xf]
      %v587 = vld [vmem:[%s2 + $0xa4] sm:$0xf]
      %v588 = vld [vmem:[%s2 + $0xa8] sm:$0xf]
      %v589 = vld [vmem:[%s2 + $0xac] sm:$0xf]
      %v590 = vld [vmem:[%s2 + $0xb0] sm:$0xf]
      %v591 = vld [vmem:[%s2 + $0xb4] sm:$0xf]
      %v592 = vld [vmem:[%s2 + $0xb8] sm:$0xf]
      %v593 = vld [vmem:[%s2 + $0xbc] sm:$0xf]
      %v594 = vld [vmem:[%s2 + $0xc0] sm:$0xf]
      %v595 = vld [vmem:[%s2 + $0xc4] sm:$0xf]
      %v596 = vld [vmem:[%s2 + $0xc8] sm:$0xf]
      %v597 = vld [vmem:[%s2 + $0xcc] sm:$0xf]
      %v598 = vld [vmem:[%s2 + $0xd0] sm:$0xf]
      %v599 = vld [vmem:[%s2 + $0xd4] sm:$0xf]
      %v600 = vld [vmem:[%s2 + $0xd8] sm:$0xf]
      %v601 = vld [vmem:[%s2 + $0xdc] sm:$0xf]
      %v602 = vld [vmem:[%s2 + $0xe0] sm:$0xf]
      %v603 = vld [vmem:[%s2 + $0xe4] sm:$0xf]
      %v604 = vld [vmem:[%s2 + $0xe8] sm:$0xf]
      %v605 = vld [vmem:[%s2 + $0xec] sm:$0xf]
      %v606 = vld [vmem:[%s2 + $0xf0] sm:$0xf]
      %v607 = vld [vmem:[%s2 + $0xf4] sm:$0xf]
      %v608 = vld [vmem:[%s2 + $0xf8] sm:$0xf]
      %v609 = vld [vmem:[%s2 + $0xfc] sm:$0xf]
      %v610 = vld [vmem:[%s2 + $0x100] sm:$0xf]
      %v611 = vld [vmem:[%s2 + $0x104] sm:$0xf]
      %v612 = vld [vmem:[%s2 + $0x108] sm:$0xf]
      %v613 = vld [vmem:[%s2 + $0x10c] sm:$0xf]
      %v614 = vld [vmem:[%s2 + $0x110] sm:$0xf]
      %v615 = vld [vmem:[%s2 + $0x114] sm:$0xf]
      %v616 = vld [vmem:[%s2 + $0x118] sm:$0xf]
      %v617 = vld [vmem:[%s2 + $0x11c] sm:$0xf]
      %v618 = vld [vmem:[%s2 + $0x120] sm:$0xf]
      %v619 = vld [vmem:[%s2 + $0x124] sm:$0xf]
      %v620 = vld [vmem:[%s2 + $0x128] sm:$0xf]
      %v621 = vld [vmem:[%s2 + $0x12c] sm:$0xf]
      %v622 = vld [vmem:[%s2 + $0x130] sm:$0xf]
      %v623 = vld [vmem:[%s2 + $0x134] sm:$0xf]
      %v624 = vld [vmem:[%s2 + $0x138] sm:$0xf]
      %v625 = vld [vmem:[%s2 + $0x13c] sm:$0xf]
      %v626 = vld [vmem:[%s2 + $0x140] sm:$0xf]
      %v627 = vld [vmem:[%s2 + $0x144] sm:$0xf]
      %v628 = vld [vmem:[%s2 + $0x148] sm:$0xf]
      %v629 = vld [vmem:[%s2 + $0x14c] sm:$0xf]
      %v630 = vld [vmem:[%s2 + $0x150] sm:$0xf]
      %v631 = vld [vmem:[%s2 + $0x154] sm:$0xf]
      %v632 = vld [vmem:[%s2 + $0x158] sm:$0xf]
      %v633 = vld [vmem:[%s2 + $0x15c] sm:$0xf]
      %v634 = vld [vmem:[%s2 + $0x160] sm:$0xf]
      %v635 = vld [vmem:[%s2 + $0x164] sm:$0xf]
      %v636 = vld [vmem:[%s2 + $0x168] sm:$0xf]
      %v637 = vld [vmem:[%s2 + $0x16c] sm:$0xf]
      %v638 = vld [vmem:[%s2 + $0x170] sm:$0xf]
      %v639 = vld [vmem:[%s2 + $0x174] sm:$0xf]
      %v640 = vld [vmem:[%s2 + $0x178] sm:$0xf]
      %v641 = vld [vmem:[%s2 + $0x17c] sm:$0xf]
      %v650 = vcombine.low %v538, %v540
      %v651 = vcombine.high %v538, %v540
      %v652 = vcombine.low %v542, %v544
      %v653 = vcombine.high %v542, %v544
      %v655 = vunpack.c.l.s4 1983009808
      %v656 = vunpack.c.0.s8 %v655
      %v657 = vlaneseq
      %v658 = vshrl.u32 %v657, 7
      %v659 = vsub.s32 %v656, %v658
      %v660 = vrot.slane %v650, %v659
      %v662 = vunpack.c.l.s4 1983009808
      %v663 = vunpack.c.0.s8 %v662
      %v664 = vlaneseq
      %v665 = vshrl.u32 %v664, 7
      %v666 = vsub.s32 %v663, %v665
      %v667 = vrot.slane %v651, %v666
      %v669 = vunpack.c.l.s4 1983009808
      %v670 = vunpack.c.0.s8 %v669
      %v671 = vlaneseq
      %v672 = vshrl.u32 %v671, 7
      %v673 = vsub.s32 %v670, %v672
      %v674 = vrot.slane %v652, %v673
      %v676 = vunpack.c.l.s4 1983009808
      %v677 = vunpack.c.0.s8 %v676
      %v678 = vlaneseq
      %v679 = vshrl.u32 %v678, 7
      %v680 = vsub.s32 %v677, %v679
      %v681 = vrot.slane %v653, %v680
      %v682 = vcombine.low %v660, %v674
      %v683 = vcombine.high %v660, %v674
      %v684 = vcombine.low %v667, %v681
      %v685 = vcombine.high %v667, %v681
      %v686 = vcombine.low %v539, %v541
      %v687 = vcombine.low %v543, %v545
      %v689 = vunpack.c.l.s4 1983009808
      %v690 = vunpack.c.0.s8 %v689
      %v691 = vlaneseq
      %v692 = vshrl.u32 %v691, 7
      %v693 = vsub.s32 %v690, %v692
      %v694 = vrot.slane %v686, %v693
      %v696 = vunpack.c.l.s4 1983009808
      %v697 = vunpack.c.0.s8 %v696
      %v698 = vlaneseq
      %v699 = vshrl.u32 %v698, 7
      %v700 = vsub.s32 %v697, %v699
      %v701 = vrot.slane %v687, %v700
      %v702 = vcombine.low %v694, %v701
      %v703 = vcombine.high %v694, %v701
      %v806 = vunpack.c.l.b16 %v546
      %v807 = vunpack.c.l.b16 %v547
      %v808 = vunpack.c.l.b16 %v548
      %v809 = vunpack.c.l.b16 %v549
      %v810 = vunpack.c.l.b16 %v550
      %v811 = vunpack.c.l.b16 %v551
      %v812 = vunpack.c.l.b16 %v552
      %v813 = vunpack.c.l.b16 %v553
      %v814 = vunpack.c.l.b16 %v554
      %v815 = vunpack.c.l.b16 %v555
      %v816 = vunpack.c.l.b16 %v556
      %v817 = vunpack.c.l.b16 %v557
      %v818 = vunpack.c.l.b16 %v558
      %v819 = vunpack.c.l.b16 %v559
      %v820 = vunpack.c.l.b16 %v560
      %v821 = vunpack.c.l.b16 %v561
      %v822 = vunpack.c.l.b16 %v562
      %v823 = vunpack.c.l.b16 %v563
      %v824 = vunpack.c.l.b16 %v564
      %v825 = vunpack.c.l.b16 %v565
      %v826 = vunpack.c.l.b16 %v566
      %v827 = vunpack.c.l.b16 %v567
      %v828 = vunpack.c.l.b16 %v568
      %v829 = vunpack.c.l.b16 %v569
      %v830 = vunpack.c.l.b16 %v570
      %v831 = vunpack.c.l.b16 %v571
      %v832 = vunpack.c.l.b16 %v572
      %v833 = vunpack.c.l.b16 %v573
      %v834 = vunpack.c.l.b16 %v574
      %v835 = vunpack.c.l.b16 %v575
      %v836 = vunpack.c.l.b16 %v576
      %v837 = vunpack.c.l.b16 %v577
      %v838 = vunpack.c.l.b16 %v578
      %v839 = vunpack.c.l.b16 %v579
      %v840 = vunpack.c.l.b16 %v580
      %v841 = vunpack.c.l.b16 %v581
      %v842 = vunpack.c.l.b16 %v582
      %v843 = vunpack.c.l.b16 %v583
      %v844 = vunpack.c.l.b16 %v584
      %v845 = vunpack.c.l.b16 %v585
      %v846 = vunpack.c.l.b16 %v586
      %v847 = vunpack.c.l.b16 %v587
      %v848 = vunpack.c.l.b16 %v588
      %v849 = vunpack.c.l.b16 %v589
      %v850 = vunpack.c.l.b16 %v590
      %v851 = vunpack.c.l.b16 %v591
      %v852 = vunpack.c.l.b16 %v592
      %v853 = vunpack.c.l.b16 %v593
      %v854 = vunpack.c.l.b16 %v594
      %v855 = vunpack.c.l.b16 %v595
      %v856 = vunpack.c.l.b16 %v596
      %v857 = vunpack.c.l.b16 %v597
      %v858 = vunpack.c.l.b16 %v598
      %v859 = vunpack.c.l.b16 %v599
      %v860 = vunpack.c.l.b16 %v600
      %v861 = vunpack.c.l.b16 %v601
      %v862 = vunpack.c.l.b16 %v602
      %v863 = vunpack.c.l.b16 %v603
      %v864 = vunpack.c.l.b16 %v604
      %v865 = vunpack.c.l.b16 %v605
      %v866 = vunpack.c.l.b16 %v606
      %v867 = vunpack.c.l.b16 %v607
      %v868 = vunpack.c.l.b16 %v608
      %v869 = vunpack.c.l.b16 %v609
      %v870 = vunpack.c.l.b16 %v610
      %v871 = vunpack.c.l.b16 %v611
      %v872 = vunpack.c.l.b16 %v612
      %v873 = vunpack.c.l.b16 %v613
      %v874 = vunpack.c.l.b16 %v614
      %v875 = vunpack.c.l.b16 %v615
      %v876 = vunpack.c.l.b16 %v616
      %v877 = vunpack.c.l.b16 %v617
      %v878 = vunpack.c.l.b16 %v618
      %v879 = vunpack.c.l.b16 %v619
      %v880 = vunpack.c.l.b16 %v620
      %v881 = vunpack.c.l.b16 %v621
      %v882 = vunpack.c.l.b16 %v622
      %v883 = vunpack.c.l.b16 %v623
      %v884 = vunpack.c.l.b16 %v624
      %v885 = vunpack.c.l.b16 %v625
      %v886 = vunpack.c.l.b16 %v626
      %v887 = vunpack.c.l.b16 %v627
      %v888 = vunpack.c.l.b16 %v628
      %v889 = vunpack.c.l.b16 %v629
      %v890 = vunpack.c.l.b16 %v630
      %v891 = vunpack.c.l.b16 %v631
      %v892 = vunpack.c.l.b16 %v632
      %v893 = vunpack.c.l.b16 %v633
      %v894 = vunpack.c.l.b16 %v634
      %v895 = vunpack.c.l.b16 %v635
      %v896 = vunpack.c.l.b16 %v636
      %v897 = vunpack.c.l.b16 %v637
      %v898 = vunpack.c.l.b16 %v638
      %v899 = vunpack.c.l.b16 %v639
      %v900 = vunpack.c.l.b16 %v640
      %v901 = vunpack.c.l.b16 %v641
      %v902 = vpack.c.b16 %v807, %v806
      %v903 = vpack.c.b16 %v809, %v808
      %v904 = vpack.c.b16 %v811, %v810
      %v905 = vpack.c.b16 %v813, %v812
      %v906 = vpack.c.b16 %v815, %v814
      %v907 = vpack.c.b16 %v817, %v816
      %v908 = vpack.c.b16 %v819, %v818
      %v909 = vpack.c.b16 %v821, %v820
      %v910 = vpack.c.b16 %v823, %v822
      %v911 = vpack.c.b16 %v825, %v824
      %v912 = vpack.c.b16 %v827, %v826
      %v913 = vpack.c.b16 %v829, %v828
      %v914 = vpack.c.b16 %v831, %v830
      %v915 = vpack.c.b16 %v833, %v832
      %v916 = vpack.c.b16 %v835, %v834
      %v917 = vpack.c.b16 %v837, %v836
      %v918 = vpack.c.b16 %v839, %v838
      %v919 = vpack.c.b16 %v841, %v840
      %v920 = vpack.c.b16 %v843, %v842
      %v921 = vpack.c.b16 %v845, %v844
      %v922 = vpack.c.b16 %v847, %v846
      %v923 = vpack.c.b16 %v849, %v848
      %v924 = vpack.c.b16 %v851, %v850
      %v925 = vpack.c.b16 %v853, %v852
      %v926 = vpack.c.b16 %v855, %v854
      %v927 = vpack.c.b16 %v857, %v856
      %v928 = vpack.c.b16 %v859, %v858
      %v929 = vpack.c.b16 %v861, %v860
      %v930 = vpack.c.b16 %v863, %v862
      %v931 = vpack.c.b16 %v865, %v864
      %v932 = vpack.c.b16 %v867, %v866
      %v933 = vpack.c.b16 %v869, %v868
      %v934 = vpack.c.b16 %v871, %v870
      %v935 = vpack.c.b16 %v873, %v872
      %v936 = vpack.c.b16 %v875, %v874
      %v937 = vpack.c.b16 %v877, %v876
      %v938 = vpack.c.b16 %v879, %v878
      %v939 = vpack.c.b16 %v881, %v880
      %v940 = vpack.c.b16 %v883, %v882
      %v941 = vpack.c.b16 %v885, %v884
      %v942 = vpack.c.b16 %v887, %v886
      %v943 = vpack.c.b16 %v889, %v888
      %v944 = vpack.c.b16 %v891, %v890
      %v945 = vpack.c.b16 %v893, %v892
      %v946 = vpack.c.b16 %v895, %v894
      %v947 = vpack.c.b16 %v897, %v896
      %v948 = vpack.c.b16 %v899, %v898
      %v949 = vpack.c.b16 %v901, %v900
      %998 = vmatprep.subr.bf16.mxu0 0
      %999 = vmatpush1.bf16.msra.mxu0 %v909
      %1000 = vmatprep.subr.bf16.mxu0 0
      %1001 = vmatpush1.bf16.msra.mxu0 %v908
      %1002 = vmatprep.subr.bf16.mxu0 0
      %1003 = vmatpush1.bf16.msra.mxu0 %v907
      %1004 = vmatprep.subr.bf16.mxu0 0
      %1005 = vmatpush1.bf16.msra.mxu0 %v906
      %1006 = vmatprep.subr.bf16.mxu0 0
      %1007 = vmatpush1.bf16.msra.mxu0 %v905
      %1008 = vmatprep.subr.bf16.mxu0 0
      %1009 = vmatpush1.bf16.msra.mxu0 %v904
      %1010 = vmatprep.subr.bf16.mxu0 0
      %1011 = vmatpush1.bf16.msra.mxu0 %v903
      %1012 = vmatprep.subr.bf16.mxu0 0
      %1013 = vmatpush1.bf16.msra.mxu0 %v902
      %1014 = vmatprep.subr.bf16.mxu0 0
      %1015 = vmatpush2.bf16.msra.mxu0 %v917
      %1016 = vmatprep.subr.bf16.mxu0 0
      %1017 = vmatpush2.bf16.msra.mxu0 %v916
      %1018 = vmatprep.subr.bf16.mxu0 0
      %1019 = vmatpush2.bf16.msra.mxu0 %v915
      %1020 = vmatprep.subr.bf16.mxu0 0
      %1021 = vmatpush2.bf16.msra.mxu0 %v914
      %1022 = vmatprep.subr.bf16.mxu0 0
      %1023 = vmatpush2.bf16.msra.mxu0 %v913
      %1024 = vmatprep.subr.bf16.mxu0 0
      %1025 = vmatpush2.bf16.msra.mxu0 %v912
      %1026 = vmatprep.subr.bf16.mxu0 0
      %1027 = vmatpush2.bf16.msra.mxu0 %v911
      %1028 = vmatprep.subr.bf16.mxu0 0
      %1029 = vmatpush2.bf16.msra.mxu0 %v910
      %1030 = vmatprep.mubr.bf16.mxu0 %v683
      %1031 = vmatmul.mubr.bf16.gmra.mxu0 %v682
      %v1032 = vpop.f32.mrf.mxu0
      %v1033 = vadd.f32 0.0, %v1032
      %v1034 = vpop.f32.mrf.mxu0
      %v1035 = vpop.f32.mrf.mxu0
      %v1036 = vadd.f32 0.0, %v1035
      %v1037 = vpop.f32.mrf.mxu0
      %1038 = vdwg.mxu0
      %1039 = vmatprep.subr.bf16.mxu0 0
      %1040 = vmatpush1.bf16.msra.mxu0 %v925
      %1041 = vmatprep.subr.bf16.mxu0 0
      %1042 = vmatpush1.bf16.msra.mxu0 %v924
      %1043 = vmatprep.subr.bf16.mxu0 0
      %1044 = vmatpush1.bf16.msra.mxu0 %v923
      %1045 = vmatprep.subr.bf16.mxu0 0
      %1046 = vmatpush1.bf16.msra.mxu0 %v922
      %1047 = vmatprep.subr.bf16.mxu0 0
      %1048 = vmatpush1.bf16.msra.mxu0 %v921
      %1049 = vmatprep.subr.bf16.mxu0 0
      %1050 = vmatpush1.bf16.msra.mxu0 %v920
      %1051 = vmatprep.subr.bf16.mxu0 0
      %1052 = vmatpush1.bf16.msra.mxu0 %v919
      %1053 = vmatprep.subr.bf16.mxu0 0
      %1054 = vmatpush1.bf16.msra.mxu0 %v918
      %1055 = vmatprep.subr.bf16.mxu0 0
      %1056 = vmatpush2.bf16.msra.mxu0 %v933
      %1057 = vmatprep.subr.bf16.mxu0 0
      %1058 = vmatpush2.bf16.msra.mxu0 %v932
      %1059 = vmatprep.subr.bf16.mxu0 0
      %1060 = vmatpush2.bf16.msra.mxu0 %v931
      %1061 = vmatprep.subr.bf16.mxu0 0
      %1062 = vmatpush2.bf16.msra.mxu0 %v930
      %1063 = vmatprep.subr.bf16.mxu0 0
      %1064 = vmatpush2.bf16.msra.mxu0 %v929
      %1065 = vmatprep.subr.bf16.mxu0 0
      %1066 = vmatpush2.bf16.msra.mxu0 %v928
      %1067 = vmatprep.subr.bf16.mxu0 0
      %1068 = vmatpush2.bf16.msra.mxu0 %v927
      %1069 = vmatprep.subr.bf16.mxu0 0
      %1070 = vmatpush2.bf16.msra.mxu0 %v926
      %1071 = vmatprep.mubr.bf16.mxu0 %v685
      %1072 = vmatmul.mubr.bf16.gmra.mxu0 %v684
      %v1073 = vpop.f32.mrf.mxu0
      %v1074 = vadd.f32 %v1033, %v1073
      %v1075 = vpop.f32.mrf.mxu0
      %v1076 = vpop.f32.mrf.mxu0
      %v1077 = vadd.f32 %v1036, %v1076
      %v1078 = vpop.f32.mrf.mxu0
      %1079 = vdwg.mxu0
      %1080 = vmatprep.subr.bf16.mxu0 0
      %1081 = vmatpush1.bf16.msra.mxu0 %v941
      %1082 = vmatprep.subr.bf16.mxu0 0
      %1083 = vmatpush1.bf16.msra.mxu0 %v940
      %1084 = vmatprep.subr.bf16.mxu0 0
      %1085 = vmatpush1.bf16.msra.mxu0 %v939
      %1086 = vmatprep.subr.bf16.mxu0 0
      %1087 = vmatpush1.bf16.msra.mxu0 %v938
      %1088 = vmatprep.subr.bf16.mxu0 0
      %1089 = vmatpush1.bf16.msra.mxu0 %v937
      %1090 = vmatprep.subr.bf16.mxu0 0
      %1091 = vmatpush1.bf16.msra.mxu0 %v936
      %1092 = vmatprep.subr.bf16.mxu0 0
      %1093 = vmatpush1.bf16.msra.mxu0 %v935
      %1094 = vmatprep.subr.bf16.mxu0 0
      %1095 = vmatpush1.bf16.msra.mxu0 %v934
      %1096 = vmatprep.subr.bf16.mxu0 0
      %1097 = vmatpush2.bf16.msra.mxu0 %v949
      %1098 = vmatprep.subr.bf16.mxu0 0
      %1099 = vmatpush2.bf16.msra.mxu0 %v948
      %1100 = vmatprep.subr.bf16.mxu0 0
      %1101 = vmatpush2.bf16.msra.mxu0 %v947
      %1102 = vmatprep.subr.bf16.mxu0 0
      %1103 = vmatpush2.bf16.msra.mxu0 %v946
      %1104 = vmatprep.subr.bf16.mxu0 0
      %1105 = vmatpush2.bf16.msra.mxu0 %v945
      %1106 = vmatprep.subr.bf16.mxu0 0
      %1107 = vmatpush2.bf16.msra.mxu0 %v944
      %1108 = vmatprep.subr.bf16.mxu0 0
      %1109 = vmatpush2.bf16.msra.mxu0 %v943
      %1110 = vmatprep.subr.bf16.mxu0 0
      %1111 = vmatpush2.bf16.msra.mxu0 %v942
      %1112 = vmatprep.mubr.bf16.mxu0 %v703
      %1113 = vmatmul.mubr.bf16.gmra.mxu0 %v702
      %v1114 = vpop.f32.mrf.mxu0
      %v1115 = vadd.f32 %v1074, %v1114
      %v1116 = vpop.f32.mrf.mxu0
      %v1117 = vpop.f32.mrf.mxu0
      %v1118 = vadd.f32 %v1077, %v1117
      %v1119 = vpop.f32.mrf.mxu0
      %1120 = vdwg.mxu0
      %v1121 = vld [vmem:[%s3] sm:$0x1]
      %v1123 = vlaneseq
      %v1124 = vshrl.u32 %v1123, 7
      %v1125 = vsub.s32 0, %v1124
      %v1126 = vrot.slane %v1121, %v1125
      %v1128 = vmul.f32 %v1115, %v1126
      %v1129 = vmul.f32 %v1118, %v1126
      %v1130 = vld [vmem:[%s4] sm:$0x1]
      %v1132 = vlaneseq
      %v1133 = vshrl.u32 %v1132, 7
      %v1134 = vsub.s32 0, %v1133
      %v1135 = vrot.slane %v1130, %v1134
      %v1137 = vadd.f32 %v1128, %v1135
      %v1138 = vadd.f32 %v1129, %v1135
      %v1139 = vmax.f32 %v1137, 0.0
      %v1140 = vmax.f32 %v1138, 0.0
      %v1141 = vpack.c.bf16 %v1140, %v1139
      %v1143 = vunpack.c.l.b16 %v1141
      %v1144 = vunpack.c.h.b16 %v1141
      %v1145 = vpack.c.b16 %v1143, %v1143
      %v1146 = vpack.c.b16 %v1144, %v1144
      %vm1149 = vcmask 519168
      %1150 = vst.msk [vmem:[%s330] sm:$0xf] %vm1149, %v1145
      %1151 = vst.msk [vmem:[%s330 + $0x4] sm:$0xf] %vm1149, %v1146
      %s1152 = smul.u32 2, %s21
      %p1153 = scmp.lt.s32.totalorder %s20, 1
      %s1154 = scalar_select %p1153, %s20, 1
      %p1155 = scmp.lt.s32.totalorder %s1152, 1
      %s1156 = scalar_select %p1155, %s1152, 1
      %s1157 = smul.addr %s1154, 2
      %s1158 = sadd.s32 %s1156, %s1157
      %s1159 = smul.addr %s1158, 4
      %s1160 = scalar_lea.vmem %s5, %s1159
      // Predicated region
      $region45: #{detail_branch.10} parent=39 // pred_check
        %p1161 = pneg %p175
      $region46: #{detail_branch.10} parent=39 // pred_check_branch
        %1163 = sbr.rel (%p1161) target = $region48
      $region47: #{detail_branch.10} parent=39 // pred_region
        %s1164 = smul.u32 2, %s21
      $region48: #{detail_branch.10} parent=39 // pred_fallthru
        _
    $region40: #{detail_branch.10} parent=5 // pred_fallthru
      _
    %p1165 = scmp.le.s32.totalorder 2, %s11
    // Predicated region
    $region49: #{detail_branch.10} parent=5 // pred_check
      %p1166 = pneg %p1165
    $region50: #{detail_branch.10} parent=5 // pred_check_branch
      %1168 = sbr.rel (%p1166) target = $region52
    $region51: #{detail_branch.10} parent=5 // pred_region
      %s1169 = ssub.s32 %s11, 2
      // Predicated region
      $region53: #{detail_branch.10} parent=51 // pred_check
        %p1170 = pneg %p181
      $region54: #{detail_branch.10} parent=51 // pred_check_branch
        %1172 = sbr.rel (%p1170) target = $region56
      $region55: #{detail_branch.10} parent=51 // pred_region
        %s1173 = smul.u32 2, %s23
        %p1174 = scmp.lt.s32.totalorder %s22, 1
        %s1175 = scalar_select %p1174, %s22, 1
        %p1176 = scmp.lt.s32.totalorder %s1173, 1
        %s1177 = scalar_select %p1176, %s1173, 1
        %s1178 = smul.addr %s1175, 2
        %s1179 = sadd.s32 %s1177, %s1178
        %s1180 = smul.addr %s1179, 4
        %s1181 = scalar_lea.vmem %s5, %s1180
      $region56: #{detail_branch.10} parent=51 // pred_fallthru
        _
    $region52: #{detail_branch.10} parent=5 // pred_fallthru
      _
  $region6: #{detail_branch.10} parent=0 // loop_footer
    %s15 = sadd.s32 1, %s11
  $region7: #{detail_branch.10} parent=0 // loop_footer_branch
    %10 = sbr.rel target = $region3
  $region8: #{detail_branch.10} parent=0 // loop_exit
    _

// kernel: detail_branch.13
$region0: #{detail_branch.13}
  #allocation0 [shape = 'u32[]', space=smem, size = 0x4, offset = 0x4, fixed_abs, tag = 'smem constant byte address 0x4 - core index']
  #allocation1 [shape = 'u32[144,128]{1,0:T(1,128)}', space=vmem, size = 0x12000, scoped, tag = 'internal scratch']
  #allocation2 [shape = 'bf16[2,2,768]{2,1,0:T(2,128)(2,1)}', space=vmem, size = 0x1800, scoped, tag = 'scratch operand']
  %s0 = inlined_call_operand.vmem [shape: bf16[2,2,2,2,128], index: 0, kind: input, shape index: {}, may-alias: {0,1}]
  %s1 = inlined_call_operand.vmem [shape: bf16[2,2,2,2,128], index: 1, kind: input, shape index: {}, may-alias: {0,1}]
  %s2 = inlined_call_operand.vmem [shape: bf16[768,128], index: 2, kind: input, shape index: {}]
  %s3 = inlined_call_operand.vmem [shape: f32[1,128], index: 3, kind: input, shape index: {}]
  %s4 = inlined_call_operand.vmem [shape: f32[1,128], index: 4, kind: input, shape index: {}]
  %s5 = inlined_call_operand.vmem [shape: bf16[2,4,128], index: 5, kind: output, shape index: {}]
  %s6 = sld [smem:[#allocation0]]
  $region57: #{detail_branch.13} parent=0
    _
  %s8 = ssub.s32 1, %s6
  %s9 = scalar_select 0, %s8, %s6
  loop: start=0, step=1, limit=4
  $region2: #{detail_branch.13} parent=0 // loop_pre_header
    _
  $region3: #{detail_branch.13} parent=0 // loop_header
    %s11 = sphi 0, %s15
    %p12 = scmp.ge.s32.totalorder %s11, 4
    %s18 = sphi 0, %s30
    %s19 = sphi 0, %s26
    %s20 = sphi 0, %s18
    %s21 = sphi 0, %s19
    %s22 = sphi 0, %s20
    %s23 = sphi 0, %s21
    %s35 = sphi 0, %s37
    %s38 = sphi 0, %s35
    %s39 = sphi 0, %s38
    %s55 = sphi 0, %s39
    %s71 = sphi 0, %s73
    %s74 = sphi 0, %s71
    %s75 = sphi 0, %s74
    %s91 = sphi 0, %s75
    %s95 = sphi 0, %s95
    %s97 = sphi 0, %s95
    %s98 = sphi 0, %s97
    %s112 = sphi 0, %s98
    %s116 = sphi 0, %s116
    %s118 = sphi 0, %s116
    %s119 = sphi 0, %s118
    %s133 = sphi 0, %s119
    %s137 = sphi 0, %s137
    %s139 = sphi 0, %s137
    %s140 = sphi 0, %s139
    %s154 = sphi 0, %s140
    %s162 = sphi 0, %s164
    %s165 = sphi 0, %s162
    %s166 = sphi 0, %s165
    %s182 = sphi 0, %s166
  $region4: #{detail_branch.13} parent=0 // loop_header_branch
    %14 = sbr.rel (%p12) target = $region8
  $region5: #{detail_branch.13} parent=0 // loop_body
    %s16 = ssub.s32 %s11, 1
    %s17 = ssub.s32 %s11, 2
    %s24 = sadd.s32 1, %s19
    %p25 = scmp.ge.s32.totalorder %s24, 1
    %s26 = scalar_select %p25, 0, %s24
    %s27 = sadd.s32 1, %s18
    %s28 = scalar_select %p25, %s27, %s18
    %p29 = scmp.ge.s32.totalorder %s28, 2
    %s30 = scalar_select %p29, 0, %s28
    %s31 = ssub.s32 %s18, %s30
    %s32 = ssub.s32 %s19, %s26
    %s33 = sor.u32 %s31, %s32
    %p34 = scmp.eq.s32.totalorder %s33, 0
    %s36 = sadd.s32 %s35, 1
    %s37 = scalar_select %p34, %s35, %s36
    %p40 = pneg %p34
    %p41 = scmp.eq.s32.totalorder %s11, 1
    %p42 = por %p40, %p41
    %p43 = scmp.ne.s32.totalorder %s35, %s38
    %p44 = scmp.eq.s32.totalorder %s11, 0
    %p45 = por %p43, %p44
    %p46 = scmp.ne.s32.totalorder %s35, %s38
    %p47 = scmp.eq.s32.totalorder %s16, 1
    %p48 = por %p46, %p47
    %p49 = scmp.ne.s32.totalorder %s38, %s39
    %p50 = scmp.eq.s32.totalorder %s16, 0
    %p51 = por %p49, %p50
    %p52 = scmp.ne.s32.totalorder %s38, %s39
    %p53 = scmp.eq.s32.totalorder %s17, 1
    %p54 = por %p52, %p53
    %p56 = scmp.ne.s32.totalorder %s39, %s55
    %p57 = scmp.eq.s32.totalorder %s17, 0
    %p58 = por %p56, %p57
    %s59 = smul.u32 %s19, 2
    %s60 = ssub.s32 %s59, 1
    %p61 = scmp.gt.s32.totalorder %s60, 0
    %s62 = scalar_select %p61, %s60, 0
    %s63 = smul.u32 %s26, 2
    %s64 = ssub.s32 %s63, 1
    %p65 = scmp.gt.s32.totalorder %s64, 0
    %s66 = scalar_select %p65, %s64, 0
    %s67 = ssub.s32 %s18, %s30
    %s68 = ssub.s32 %s62, %s66
    %s69 = sor.u32 %s67, %s68
    %p70 = scmp.eq.s32.totalorder %s69, 0
    %s72 = sadd.s32 %s71, 1
    %s73 = scalar_select %p70, %s71, %s72
    %p76 = pneg %p70
    %p77 = scmp.eq.s32.totalorder %s11, 1
    %p78 = por %p76, %p77
    %p79 = scmp.ne.s32.totalorder %s71, %s74
    %p80 = scmp.eq.s32.totalorder %s11, 0
    %p81 = por %p79, %p80
    %p82 = scmp.ne.s32.totalorder %s71, %s74
    %p83 = scmp.eq.s32.totalorder %s16, 1
    %p84 = por %p82, %p83
    %p85 = scmp.ne.s32.totalorder %s74, %s75
    %p86 = scmp.eq.s32.totalorder %s16, 0
    %p87 = por %p85, %p86
    %p88 = scmp.ne.s32.totalorder %s74, %s75
    %p89 = scmp.eq.s32.totalorder %s17, 1
    %p90 = por %p88, %p89
    %p92 = scmp.ne.s32.totalorder %s75, %s91
    %p93 = scmp.eq.s32.totalorder %s17, 0
    %p94 = por %p92, %p93
    %s96 = sadd.s32 %s95, 1
    %p99 = scmp.eq.s32.totalorder %s11, 1
    %p100 = scmp.ne.s32.totalorder %s95, %s97
    %p101 = scmp.eq.s32.totalorder %s11, 0
    %p102 = por %p100, %p101
    %p103 = scmp.ne.s32.totalorder %s95, %s97
    %p104 = scmp.eq.s32.totalorder %s16, 1
    %p105 = por %p103, %p104
    %p106 = scmp.ne.s32.totalorder %s97, %s98
    %p107 = scmp.eq.s32.totalorder %s16, 0
    %p108 = por %p106, %p107
    %p109 = scmp.ne.s32.totalorder %s97, %s98
    %p110 = scmp.eq.s32.totalorder %s17, 1
    %p111 = por %p109, %p110
    %p113 = scmp.ne.s32.totalorder %s98, %s112
    %p114 = scmp.eq.s32.totalorder %s17, 0
    %p115 = por %p113, %p114
    %s117 = sadd.s32 %s116, 1
    %p120 = scmp.eq.s32.totalorder %s11, 1
    %p121 = scmp.ne.s32.totalorder %s116, %s118
    %p122 = scmp.eq.s32.totalorder %s11, 0
    %p123 = por %p121, %p122
    %p124 = scmp.ne.s32.totalorder %s116, %s118
    %p125 = scmp.eq.s32.totalorder %s16, 1
    %p126 = por %p124, %p125
    %p127 = scmp.ne.s32.totalorder %s118, %s119
    %p128 = scmp.eq.s32.totalorder %s16, 0
    %p129 = por %p127, %p128
    %p130 = scmp.ne.s32.totalorder %s118, %s119
    %p131 = scmp.eq.s32.totalorder %s17, 1
    %p132 = por %p130, %p131
    %p134 = scmp.ne.s32.totalorder %s119, %s133
    %p135 = scmp.eq.s32.totalorder %s17, 0
    %p136 = por %p134, %p135
    %s138 = sadd.s32 %s137, 1
    %p141 = scmp.eq.s32.totalorder %s11, 1
    %p142 = scmp.ne.s32.totalorder %s137, %s139
    %p143 = scmp.eq.s32.totalorder %s11, 0
    %p144 = por %p142, %p143
    %p145 = scmp.ne.s32.totalorder %s137, %s139
    %p146 = scmp.eq.s32.totalorder %s16, 1
    %p147 = por %p145, %p146
    %p148 = scmp.ne.s32.totalorder %s139, %s140
    %p149 = scmp.eq.s32.totalorder %s16, 0
    %p150 = por %p148, %p149
    %p151 = scmp.ne.s32.totalorder %s139, %s140
    %p152 = scmp.eq.s32.totalorder %s17, 1
    %p153 = por %p151, %p152
    %p155 = scmp.ne.s32.totalorder %s140, %s154
    %p156 = scmp.eq.s32.totalorder %s17, 0
    %p157 = por %p155, %p156
    %s158 = ssub.s32 %s18, %s30
    %s159 = ssub.s32 %s19, %s26
    %s160 = sor.u32 %s158, %s159
    %p161 = scmp.eq.s32.totalorder %s160, 0
    %s163 = sadd.s32 %s162, 1
    %s164 = scalar_select %p161, %s162, %s163
    %p167 = pneg %p161
    %p168 = scmp.eq.s32.totalorder %s11, 1
    %p169 = por %p167, %p168
    %p170 = scmp.ne.s32.totalorder %s162, %s165
    %p171 = scmp.eq.s32.totalorder %s11, 0
    %p172 = por %p170, %p171
    %p173 = scmp.ne.s32.totalorder %s162, %s165
    %p174 = scmp.eq.s32.totalorder %s16, 1
    %p175 = por %p173, %p174
    %p176 = scmp.ne.s32.totalorder %s165, %s166
    %p177 = scmp.eq.s32.totalorder %s16, 0
    %p178 = por %p176, %p177
    %p179 = scmp.ne.s32.totalorder %s165, %s166
    %p180 = scmp.eq.s32.totalorder %s17, 1
    %p181 = por %p179, %p180
    %p183 = scmp.ne.s32.totalorder %s166, %s182
    %p184 = scmp.eq.s32.totalorder %s17, 0
    %p185 = por %p183, %p184
    %p186 = scmp.le.s32.totalorder 1, %s11
    %p187 = scmp.lt.s32.totalorder %s11, 3
    %p188 = pnand %p186, %p187
    %p189 = pneg %p188
    // Predicated region
    $region9: #{detail_branch.13} parent=5 // pred_check
      _
    $region10: #{detail_branch.13} parent=5 // pred_check_branch
      %191 = sbr.rel (%p188) target = $region12
    $region11: #{detail_branch.13} parent=5 // pred_region
      %s192 = ssub.s32 %s11, 1
      // Predicated region
      $region13: #{detail_branch.13} parent=11 // pred_check
        %p193 = pneg %p108
      $region14: #{detail_branch.13} parent=11 // pred_check_branch
        %195 = sbr.rel (%p193) target = $region16
      $region15: #{detail_branch.13} parent=11 // pred_region
        _
      $region16: #{detail_branch.13} parent=11 // pred_fallthru
        _
      // Predicated region
      $region17: #{detail_branch.13} parent=11 // pred_check
        %p196 = pneg %p129
      $region18: #{detail_branch.13} parent=11 // pred_check_branch
        %198 = sbr.rel (%p196) target = $region20
      $region19: #{detail_branch.13} parent=11 // pred_region
        _
      $region20: #{detail_branch.13} parent=11 // pred_fallthru
        _
      // Predicated region
      $region21: #{detail_branch.13} parent=11 // pred_check
        %p199 = pneg %p150
      $region22: #{detail_branch.13} parent=11 // pred_check_branch
        %201 = sbr.rel (%p199) target = $region24
      $region23: #{detail_branch.13} parent=11 // pred_region
        _
      $region24: #{detail_branch.13} parent=11 // pred_fallthru
        _
    $region12: #{detail_branch.13} parent=5 // pred_fallthru
      _
    %p202 = scmp.lt.s32.totalorder %s11, 2
    // Predicated region
    $region25: #{detail_branch.13} parent=5 // pred_check
      %p203 = pneg %p202
    $region26: #{detail_branch.13} parent=5 // pred_check_branch
      %205 = sbr.rel (%p203) target = $region28
    $region27: #{detail_branch.13} parent=5 // pred_region
      // Predicated region
      $region29: #{detail_branch.13} parent=27 // pred_check
        %p206 = pneg %p45
      $region30: #{detail_branch.13} parent=27 // pred_check_branch
        %208 = sbr.rel (%p206) target = $region32
      $region31: #{detail_branch.13} parent=27 // pred_region
        %s209 = smul.u32 2, %s19
        %p210 = scmp.lt.s32.totalorder %s18, 1
        %s211 = scalar_select %p210, %s18, 1
        %p212 = scmp.lt.s32.totalorder %s209, 1
        %s213 = scalar_select %p212, %s209, 1
        %s214 = smul.addr %s213, 2
        %s215 = smul.addr %s211, 4
        %s216 = sadd.s32 %s214, %s215
        %s217 = scalar_lea.vmem %s0, %s216
        %s218 = smul.u32 2, %s19
      $region32: #{detail_branch.13} parent=27 // pred_fallthru
        _
      // Predicated region
      $region33: #{detail_branch.13} parent=27 // pred_check
        %p219 = pneg %p81
      $region34: #{detail_branch.13} parent=27 // pred_check_branch
        %221 = sbr.rel (%p219) target = $region36
      $region35: #{detail_branch.13} parent=27 // pred_region
        %s222 = smul.u32 %s19, 2
        %s223 = ssub.s32 %s222, 1
        %p224 = scmp.gt.s32.totalorder %s223, 0
        %s225 = scalar_select %p224, %s223, 0
        %p226 = scmp.lt.s32.totalorder %s18, 1
        %s227 = scalar_select %p226, %s18, 1
        %p228 = scmp.lt.s32.totalorder %s225, 1
        %s229 = scalar_select %p228, %s225, 1
        %s230 = smul.addr %s229, 2
        %s231 = sadd.s32 1, %s230
        %s232 = smul.addr %s227, 4
        %s233 = sadd.s32 %s231, %s232
        %s234 = scalar_lea.vmem %s1, %s233
        %s235 = smul.u32 %s19, 2
        %s236 = ssub.s32 %s235, 1
        %p237 = scmp.gt.s32.totalorder %s236, 0
        %s238 = scalar_select %p237, %s236, 0
      $region36: #{detail_branch.13} parent=27 // pred_fallthru
        _
    $region28: #{detail_branch.13} parent=5 // pred_fallthru
      _
    %p239 = scmp.le.s32.totalorder 1, %s11
    %p240 = scmp.lt.s32.totalorder %s11, 3
    %p241 = pnand %p239, %p240
    %p242 = pneg %p241
    // Predicated region
    $region37: #{detail_branch.13} parent=5 // pred_check
      _
    $region38: #{detail_branch.13} parent=5 // pred_check_branch
      %244 = sbr.rel (%p241) target = $region40
    $region39: #{detail_branch.13} parent=5 // pred_region
      %s245 = ssub.s32 %s11, 1
      %s246 = smul.u32 2, %s21
      %p247 = scmp.lt.s32.totalorder %s20, 1
      %s248 = scalar_select %p247, %s20, 1
      %p249 = scmp.lt.s32.totalorder %s246, 1
      %s250 = scalar_select %p249, %s246, 1
      %s251 = smul.addr %s250, 2
      %s252 = smul.addr %s248, 4
      %s253 = sadd.s32 %s251, %s252
      %s254 = scalar_lea.vmem %s0, %s253
      %p255 = pneg %p51
      %p256 = pneg %p48
      %s257 = smul.u32 %s21, 2
      %s258 = ssub.s32 %s257, 1
      %p259 = scmp.gt.s32.totalorder %s258, 0
      %s260 = scalar_select %p259, %s258, 0
      %p261 = scmp.lt.s32.totalorder %s20, 1
      %s262 = scalar_select %p261, %s20, 1
      %p263 = scmp.lt.s32.totalorder %s260, 1
      %s264 = scalar_select %p263, %s260, 1
      %s265 = smul.addr %s264, 2
      %s266 = sadd.s32 1, %s265
      %s267 = smul.addr %s262, 4
      %s268 = sadd.s32 %s266, %s267
      %s269 = scalar_lea.vmem %s1, %s268
      %p270 = pneg %p87
      %p271 = pneg %p84
      %p272 = pneg %p108
      %p273 = pneg %p105
      %p274 = pneg %p129
      %p275 = pneg %p126
      %p276 = pneg %p150
      %p277 = pneg %p147
      %p278 = pneg %p178
      %p279 = pneg %p175
      %p280 = scmp.lt.s32.totalorder %s20, 1
      %s281 = scalar_select %p280, %s20, 1
      %p282 = scmp.lt.s32.totalorder %s21, 0
      %s283 = scalar_select %p282, %s21, 0
      %s284 = sadd.s32 %s283, %s281
      %s285 = smul.addr %s284, 2
      %s286 = scalar_lea.vmem %s5, %s285
      %s287 = smul.u32 2, %s21
      %p288 = scmp.lt.s32.totalorder %s20, 1
      %s289 = scalar_select %p288, %s20, 1
      %p290 = scmp.lt.s32.totalorder %s287, 1
      %s291 = scalar_select %p290, %s287, 1
      %s292 = smul.addr %s291, 2
      %s293 = smul.addr %s289, 4
      %s294 = sadd.s32 %s292, %s293
      %s295 = scalar_lea.vmem %s0, %s294
      %s296 = smul.u32 2, %s21
      %s297 = smul.u32 %s21, 2
      %s298 = ssub.s32 %s297, 1
      %p299 = scmp.gt.s32.totalorder %s298, 0
      %s300 = scalar_select %p299, %s298, 0
      %p301 = scmp.lt.s32.totalorder %s20, 1
      %s302 = scalar_select %p301, %s20, 1
      %p303 = scmp.lt.s32.totalorder %s300, 1
      %s304 = scalar_select %p303, %s300, 1
      %s305 = smul.addr %s304, 2
      %s306 = sadd.s32 1, %s305
      %s307 = smul.addr %s302, 4
      %s308 = sadd.s32 %s306, %s307
      %s309 = scalar_lea.vmem %s1, %s308
      %s310 = smul.u32 %s21, 2
      %s311 = ssub.s32 %s310, 1
      %p312 = scmp.gt.s32.totalorder %s311, 0
      %s313 = scalar_select %p312, %s311, 0
      %p314 = scmp.lt.s32.totalorder %s20, 1
      %s315 = scalar_select %p314, %s20, 1
      %p316 = scmp.lt.s32.totalorder %s21, 0
      %s317 = scalar_select %p316, %s21, 0
      %s318 = sadd.s32 %s317, %s315
      %s319 = smul.addr %s318, 2
      %s320 = scalar_lea.vmem %s5, %s319
      %vm322 = vcmask 1040384
      %vm323 = vsmask.f32 256
      %vm324 = vmand %vm322, %vm323
      %v325 = vld [vmem:[#allocation2] sm:$0x1]
      %v326 = vsel %vm324, 0, %v325
      %327 = vst [vmem:[#allocation2] sm:$0x1] %v326
      %v328 = vld [vmem:[#allocation2 + $0x6] sm:$0x1]
      %v329 = vsel %vm324, 0, %v328
      %330 = vst [vmem:[#allocation2 + $0x6] sm:$0x1] %v329
      %v331 = vld [vmem:[#allocation2 + $0x2] sm:$0x1]
      %v332 = vsel %vm324, 0, %v331
      %333 = vst [vmem:[#allocation2 + $0x2] sm:$0x1] %v332
      %v334 = vld [vmem:[#allocation2 + $0x8] sm:$0x1]
      %v335 = vsel %vm324, 0, %v334
      %336 = vst [vmem:[#allocation2 + $0x8] sm:$0x1] %v335
      %v337 = vld [vmem:[#allocation2 + $0x4] sm:$0x1]
      %v338 = vsel %vm324, 0, %v337
      %339 = vst [vmem:[#allocation2 + $0x4] sm:$0x1] %v338
      %v340 = vld [vmem:[#allocation2 + $0xa] sm:$0x1]
      %v341 = vsel %vm324, 0, %v340
      %342 = vst [vmem:[#allocation2 + $0xa] sm:$0x1] %v341
      %v343 = vld [vmem:[%s295] sm:$0x1]
      %v344 = vld [vmem:[%s295 + $0x2] sm:$0x1]
      %v346 = vshll.u32 %v343, 16
      %v349 = vshll.u32 %v344, 16
      %vm353 = vsmask.f32 7938
      %vm354 = vmand %vm322, %vm353
      %v355 = vld [vmem:[#allocation2 + $0x2] sm:$0x1]
      %v356 = vsel %vm354, %v346, %v355
      %357 = vst [vmem:[#allocation2 + $0x2] sm:$0x1] %v356
      %v358 = vld [vmem:[#allocation2 + $0x8] sm:$0x1]
      %v359 = vsel %vm354, %v349, %v358
      %360 = vst [vmem:[#allocation2 + $0x8] sm:$0x1] %v359
      %361 = vst [vmem:[#allocation2 + $0x3] sm:$0x1] %v343
      %362 = vst [vmem:[#allocation2 + $0x9] sm:$0x1] %v344
      %s363 = scalar_lea.vmem %s295, 1
      %v364 = vld [vmem:[%s363] sm:$0x1]
      %v365 = vld [vmem:[%s363 + $0x2] sm:$0x1]
      %v367 = vshll.u32 %v364, 16
      %v370 = vshll.u32 %v365, 16
      %v374 = vld [vmem:[#allocation2 + $0x4] sm:$0x1]
      %v375 = vsel %vm354, %v367, %v374
      %376 = vst [vmem:[#allocation2 + $0x4] sm:$0x1] %v375
      %v377 = vld [vmem:[#allocation2 + $0xa] sm:$0x1]
      %v378 = vsel %vm354, %v370, %v377
      %379 = vst [vmem:[#allocation2 + $0xa] sm:$0x1] %v378
      %380 = vst [vmem:[#allocation2 + $0x5] sm:$0x1] %v364
      %381 = vst [vmem:[#allocation2 + $0xb] sm:$0x1] %v365
      %v382 = vld [vmem:[%s309] sm:$0x1]
      %v384 = vshll.u32 %v382, 16
      %v387 = vld [vmem:[#allocation2] sm:$0x1]
      %v388 = vsel %vm354, %v384, %v387
      %389 = vst [vmem:[#allocation2] sm:$0x1] %v388
      %390 = vst [vmem:[#allocation2 + $0x1] sm:$0x1] %v382
      %v391 = vld [vmem:[%s363] sm:$0x1]
      %v393 = vshll.u32 %v391, 16
      %s396 = scalar_lea.vmem [#allocation2], 6
      %v397 = vld [vmem:[%s396] sm:$0x1]
      %v398 = vsel %vm354, %v393, %v397
      %399 = vst [vmem:[%s396] sm:$0x1] %v398
      %400 = vst [vmem:[%s396 + $0x1] sm:$0x1] %v391
      %p401 = scmp.eq.s32.totalorder %s21, 0
      // Predicated region
      $region41: #{detail_branch.13} parent=39 // pred_check
        %p402 = pneg %p401
      $region42: #{detail_branch.13} parent=39 // pred_check_branch
        %404 = sbr.rel (%p402) target = $region44
      $region43: #{detail_branch.13} parent=39 // pred_region
        %405 = vst [vmem:[#allocation2] sm:$0x3] 0
      $region44: #{detail_branch.13} parent=39 // pred_fallthru
        _
      %v406 = vld [vmem:[#allocation2] sm:$0x3f]
      %v407 = vld [vmem:[#allocation2 + $0x6] sm:$0x3f]
      %v408 = vld [vmem:[%s2] sm:$0xf]
      %v409 = vld [vmem:[%s2 + $0x4] sm:$0xf]
      %v410 = vld [vmem:[%s2 + $0x8] sm:$0xf]
      %v411 = vld [vmem:[%s2 + $0xc] sm:$0xf]
      %v412 = vld [vmem:[%s2 + $0x10] sm:$0xf]
      %v413 = vld [vmem:[%s2 + $0x14] sm:$0xf]
      %v414 = vld [vmem:[%s2 + $0x18] sm:$0xf]
      %v415 = vld [vmem:[%s2 + $0x1c] sm:$0xf]
      %v416 = vld [vmem:[%s2 + $0x20] sm:$0xf]
      %v417 = vld [vmem:[%s2 + $0x24] sm:$0xf]
      %v418 = vld [vmem:[%s2 + $0x28] sm:$0xf]
      %v419 = vld [vmem:[%s2 + $0x2c] sm:$0xf]
      %v420 = vld [vmem:[%s2 + $0x30] sm:$0xf]
      %v421 = vld [vmem:[%s2 + $0x34] sm:$0xf]
      %v422 = vld [vmem:[%s2 + $0x38] sm:$0xf]
      %v423 = vld [vmem:[%s2 + $0x3c] sm:$0xf]
      %v424 = vld [vmem:[%s2 + $0x40] sm:$0xf]
      %v425 = vld [vmem:[%s2 + $0x44] sm:$0xf]
      %v426 = vld [vmem:[%s2 + $0x48] sm:$0xf]
      %v427 = vld [vmem:[%s2 + $0x4c] sm:$0xf]
      %v428 = vld [vmem:[%s2 + $0x50] sm:$0xf]
      %v429 = vld [vmem:[%s2 + $0x54] sm:$0xf]
      %v430 = vld [vmem:[%s2 + $0x58] sm:$0xf]
      %v431 = vld [vmem:[%s2 + $0x5c] sm:$0xf]
      %v432 = vld [vmem:[%s2 + $0x60] sm:$0xf]
      %v433 = vld [vmem:[%s2 + $0x64] sm:$0xf]
      %v434 = vld [vmem:[%s2 + $0x68] sm:$0xf]
      %v435 = vld [vmem:[%s2 + $0x6c] sm:$0xf]
      %v436 = vld [vmem:[%s2 + $0x70] sm:$0xf]
      %v437 = vld [vmem:[%s2 + $0x74] sm:$0xf]
      %v438 = vld [vmem:[%s2 + $0x78] sm:$0xf]
      %v439 = vld [vmem:[%s2 + $0x7c] sm:$0xf]
      %v440 = vld [vmem:[%s2 + $0x80] sm:$0xf]
      %v441 = vld [vmem:[%s2 + $0x84] sm:$0xf]
      %v442 = vld [vmem:[%s2 + $0x88] sm:$0xf]
      %v443 = vld [vmem:[%s2 + $0x8c] sm:$0xf]
      %v444 = vld [vmem:[%s2 + $0x90] sm:$0xf]
      %v445 = vld [vmem:[%s2 + $0x94] sm:$0xf]
      %v446 = vld [vmem:[%s2 + $0x98] sm:$0xf]
      %v447 = vld [vmem:[%s2 + $0x9c] sm:$0xf]
      %v448 = vld [vmem:[%s2 + $0xa0] sm:$0xf]
      %v449 = vld [vmem:[%s2 + $0xa4] sm:$0xf]
      %v450 = vld [vmem:[%s2 + $0xa8] sm:$0xf]
      %v451 = vld [vmem:[%s2 + $0xac] sm:$0xf]
      %v452 = vld [vmem:[%s2 + $0xb0] sm:$0xf]
      %v453 = vld [vmem:[%s2 + $0xb4] sm:$0xf]
      %v454 = vld [vmem:[%s2 + $0xb8] sm:$0xf]
      %v455 = vld [vmem:[%s2 + $0xbc] sm:$0xf]
      %v456 = vld [vmem:[%s2 + $0xc0] sm:$0xf]
      %v457 = vld [vmem:[%s2 + $0xc4] sm:$0xf]
      %v458 = vld [vmem:[%s2 + $0xc8] sm:$0xf]
      %v459 = vld [vmem:[%s2 + $0xcc] sm:$0xf]
      %v460 = vld [vmem:[%s2 + $0xd0] sm:$0xf]
      %v461 = vld [vmem:[%s2 + $0xd4] sm:$0xf]
      %v462 = vld [vmem:[%s2 + $0xd8] sm:$0xf]
      %v463 = vld [vmem:[%s2 + $0xdc] sm:$0xf]
      %v464 = vld [vmem:[%s2 + $0xe0] sm:$0xf]
      %v465 = vld [vmem:[%s2 + $0xe4] sm:$0xf]
      %v466 = vld [vmem:[%s2 + $0xe8] sm:$0xf]
      %v467 = vld [vmem:[%s2 + $0xec] sm:$0xf]
      %v468 = vld [vmem:[%s2 + $0xf0] sm:$0xf]
      %v469 = vld [vmem:[%s2 + $0xf4] sm:$0xf]
      %v470 = vld [vmem:[%s2 + $0xf8] sm:$0xf]
      %v471 = vld [vmem:[%s2 + $0xfc] sm:$0xf]
      %v472 = vld [vmem:[%s2 + $0x100] sm:$0xf]
      %v473 = vld [vmem:[%s2 + $0x104] sm:$0xf]
      %v474 = vld [vmem:[%s2 + $0x108] sm:$0xf]
      %v475 = vld [vmem:[%s2 + $0x10c] sm:$0xf]
      %v476 = vld [vmem:[%s2 + $0x110] sm:$0xf]
      %v477 = vld [vmem:[%s2 + $0x114] sm:$0xf]
      %v478 = vld [vmem:[%s2 + $0x118] sm:$0xf]
      %v479 = vld [vmem:[%s2 + $0x11c] sm:$0xf]
      %v480 = vld [vmem:[%s2 + $0x120] sm:$0xf]
      %v481 = vld [vmem:[%s2 + $0x124] sm:$0xf]
      %v482 = vld [vmem:[%s2 + $0x128] sm:$0xf]
      %v483 = vld [vmem:[%s2 + $0x12c] sm:$0xf]
      %v484 = vld [vmem:[%s2 + $0x130] sm:$0xf]
      %v485 = vld [vmem:[%s2 + $0x134] sm:$0xf]
      %v486 = vld [vmem:[%s2 + $0x138] sm:$0xf]
      %v487 = vld [vmem:[%s2 + $0x13c] sm:$0xf]
      %v488 = vld [vmem:[%s2 + $0x140] sm:$0xf]
      %v489 = vld [vmem:[%s2 + $0x144] sm:$0xf]
      %v490 = vld [vmem:[%s2 + $0x148] sm:$0xf]
      %v491 = vld [vmem:[%s2 + $0x14c] sm:$0xf]
      %v492 = vld [vmem:[%s2 + $0x150] sm:$0xf]
      %v493 = vld [vmem:[%s2 + $0x154] sm:$0xf]
      %v494 = vld [vmem:[%s2 + $0x158] sm:$0xf]
      %v495 = vld [vmem:[%s2 + $0x15c] sm:$0xf]
      %v496 = vld [vmem:[%s2 + $0x160] sm:$0xf]
      %v497 = vld [vmem:[%s2 + $0x164] sm:$0xf]
      %v498 = vld [vmem:[%s2 + $0x168] sm:$0xf]
      %v499 = vld [vmem:[%s2 + $0x16c] sm:$0xf]
      %v500 = vld [vmem:[%s2 + $0x170] sm:$0xf]
      %v501 = vld [vmem:[%s2 + $0x174] sm:$0xf]
      %v502 = vld [vmem:[%s2 + $0x178] sm:$0xf]
      %v503 = vld [vmem:[%s2 + $0x17c] sm:$0xf]
      %v506 = vcombine.low %v406, %v407
      %v507 = vcombine.high %v406, %v407
      %v509 = vunpack.c.l.s4 1966171168
      %v510 = vunpack.c.0.s8 %v509
      %v511 = vlaneseq
      %v512 = vshrl.u32 %v511, 7
      %v513 = vsub.s32 %v510, %v512
      %v514 = vrot.slane %v506, %v513
      %v516 = vunpack.c.l.s4 1966171168
      %v517 = vunpack.c.0.s8 %v516
      %v518 = vlaneseq
      %v519 = vshrl.u32 %v518, 7
      %v520 = vsub.s32 %v517, %v519
      %v521 = vrot.slane %v507, %v520
      %v522 = vcombine.high %v514, %v514
      %v523 = vcombine.high %v521, %v521
      %v525 = vunpack.c.l.s4 1966171168
      %v526 = vunpack.c.0.s8 %v525
      %v527 = vlaneseq
      %v528 = vshrl.u32 %v527, 7
      %v529 = vsub.s32 %v526, %v528
      %v530 = vrot.slane %v514, %v529
      %v532 = vunpack.c.l.s4 1966171168
      %v533 = vunpack.c.0.s8 %v532
      %v534 = vlaneseq
      %v535 = vshrl.u32 %v534, 7
      %v536 = vsub.s32 %v533, %v535
      %v537 = vrot.slane %v521, %v536
      %v539 = vunpack.c.l.s4 1966171168
      %v540 = vunpack.c.0.s8 %v539
      %v541 = vlaneseq
      %v542 = vshrl.u32 %v541, 7
      %v543 = vsub.s32 %v540, %v542
      %v544 = vrot.slane %v522, %v543
      %v546 = vunpack.c.l.s4 1966171168
      %v547 = vunpack.c.0.s8 %v546
      %v548 = vlaneseq
      %v549 = vshrl.u32 %v548, 7
      %v550 = vsub.s32 %v547, %v549
      %v551 = vrot.slane %v523, %v550
      %v552 = vcombine.high %v530, %v530
      %v553 = vcombine.high %v544, %v544
      %v656 = vunpack.c.l.b16 %v408
      %v657 = vunpack.c.l.b16 %v409
      %v658 = vunpack.c.l.b16 %v410
      %v659 = vunpack.c.l.b16 %v411
      %v660 = vunpack.c.l.b16 %v412
      %v661 = vunpack.c.l.b16 %v413
      %v662 = vunpack.c.l.b16 %v414
      %v663 = vunpack.c.l.b16 %v415
      %v664 = vunpack.c.l.b16 %v416
      %v665 = vunpack.c.l.b16 %v417
      %v666 = vunpack.c.l.b16 %v418
      %v667 = vunpack.c.l.b16 %v419
      %v668 = vunpack.c.l.b16 %v420
      %v669 = vunpack.c.l.b16 %v421
      %v670 = vunpack.c.l.b16 %v422
      %v671 = vunpack.c.l.b16 %v423
      %v672 = vunpack.c.l.b16 %v424
      %v673 = vunpack.c.l.b16 %v425
      %v674 = vunpack.c.l.b16 %v426
      %v675 = vunpack.c.l.b16 %v427
      %v676 = vunpack.c.l.b16 %v428
      %v677 = vunpack.c.l.b16 %v429
      %v678 = vunpack.c.l.b16 %v430
      %v679 = vunpack.c.l.b16 %v431
      %v680 = vunpack.c.l.b16 %v432
      %v681 = vunpack.c.l.b16 %v433
      %v682 = vunpack.c.l.b16 %v434
      %v683 = vunpack.c.l.b16 %v435
      %v684 = vunpack.c.l.b16 %v436
      %v685 = vunpack.c.l.b16 %v437
      %v686 = vunpack.c.l.b16 %v438
      %v687 = vunpack.c.l.b16 %v439
      %v688 = vunpack.c.l.b16 %v440
      %v689 = vunpack.c.l.b16 %v441
      %v690 = vunpack.c.l.b16 %v442
      %v691 = vunpack.c.l.b16 %v443
      %v692 = vunpack.c.l.b16 %v444
      %v693 = vunpack.c.l.b16 %v445
      %v694 = vunpack.c.l.b16 %v446
      %v695 = vunpack.c.l.b16 %v447
      %v696 = vunpack.c.l.b16 %v448
      %v697 = vunpack.c.l.b16 %v449
      %v698 = vunpack.c.l.b16 %v450
      %v699 = vunpack.c.l.b16 %v451
      %v700 = vunpack.c.l.b16 %v452
      %v701 = vunpack.c.l.b16 %v453
      %v702 = vunpack.c.l.b16 %v454
      %v703 = vunpack.c.l.b16 %v455
      %v704 = vunpack.c.l.b16 %v456
      %v705 = vunpack.c.l.b16 %v457
      %v706 = vunpack.c.l.b16 %v458
      %v707 = vunpack.c.l.b16 %v459
      %v708 = vunpack.c.l.b16 %v460
      %v709 = vunpack.c.l.b16 %v461
      %v710 = vunpack.c.l.b16 %v462
      %v711 = vunpack.c.l.b16 %v463
      %v712 = vunpack.c.l.b16 %v464
      %v713 = vunpack.c.l.b16 %v465
      %v714 = vunpack.c.l.b16 %v466
      %v715 = vunpack.c.l.b16 %v467
      %v716 = vunpack.c.l.b16 %v468
      %v717 = vunpack.c.l.b16 %v469
      %v718 = vunpack.c.l.b16 %v470
      %v719 = vunpack.c.l.b16 %v471
      %v720 = vunpack.c.l.b16 %v472
      %v721 = vunpack.c.l.b16 %v473
      %v722 = vunpack.c.l.b16 %v474
      %v723 = vunpack.c.l.b16 %v475
      %v724 = vunpack.c.l.b16 %v476
      %v725 = vunpack.c.l.b16 %v477
      %v726 = vunpack.c.l.b16 %v478
      %v727 = vunpack.c.l.b16 %v479
      %v728 = vunpack.c.l.b16 %v480
      %v729 = vunpack.c.l.b16 %v481
      %v730 = vunpack.c.l.b16 %v482
      %v731 = vunpack.c.l.b16 %v483
      %v732 = vunpack.c.l.b16 %v484
      %v733 = vunpack.c.l.b16 %v485
      %v734 = vunpack.c.l.b16 %v486
      %v735 = vunpack.c.l.b16 %v487
      %v736 = vunpack.c.l.b16 %v488
      %v737 = vunpack.c.l.b16 %v489
      %v738 = vunpack.c.l.b16 %v490
      %v739 = vunpack.c.l.b16 %v491
      %v740 = vunpack.c.l.b16 %v492
      %v741 = vunpack.c.l.b16 %v493
      %v742 = vunpack.c.l.b16 %v494
      %v743 = vunpack.c.l.b16 %v495
      %v744 = vunpack.c.l.b16 %v496
      %v745 = vunpack.c.l.b16 %v497
      %v746 = vunpack.c.l.b16 %v498
      %v747 = vunpack.c.l.b16 %v499
      %v748 = vunpack.c.l.b16 %v500
      %v749 = vunpack.c.l.b16 %v501
      %v750 = vunpack.c.l.b16 %v502
      %v751 = vunpack.c.l.b16 %v503
      %v752 = vpack.c.b16 %v657, %v656
      %v753 = vpack.c.b16 %v659, %v658
      %v754 = vpack.c.b16 %v661, %v660
      %v755 = vpack.c.b16 %v663, %v662
      %v756 = vpack.c.b16 %v665, %v664
      %v757 = vpack.c.b16 %v667, %v666
      %v758 = vpack.c.b16 %v669, %v668
      %v759 = vpack.c.b16 %v671, %v670
      %v760 = vpack.c.b16 %v673, %v672
      %v761 = vpack.c.b16 %v675, %v674
      %v762 = vpack.c.b16 %v677, %v676
      %v763 = vpack.c.b16 %v679, %v678
      %v764 = vpack.c.b16 %v681, %v680
      %v765 = vpack.c.b16 %v683, %v682
      %v766 = vpack.c.b16 %v685, %v684
      %v767 = vpack.c.b16 %v687, %v686
      %v768 = vpack.c.b16 %v689, %v688
      %v769 = vpack.c.b16 %v691, %v690
      %v770 = vpack.c.b16 %v693, %v692
      %v771 = vpack.c.b16 %v695, %v694
      %v772 = vpack.c.b16 %v697, %v696
      %v773 = vpack.c.b16 %v699, %v698
      %v774 = vpack.c.b16 %v701, %v700
      %v775 = vpack.c.b16 %v703, %v702
      %v776 = vpack.c.b16 %v705, %v704
      %v777 = vpack.c.b16 %v707, %v706
      %v778 = vpack.c.b16 %v709, %v708
      %v779 = vpack.c.b16 %v711, %v710
      %v780 = vpack.c.b16 %v713, %v712
      %v781 = vpack.c.b16 %v715, %v714
      %v782 = vpack.c.b16 %v717, %v716
      %v783 = vpack.c.b16 %v719, %v718
      %v784 = vpack.c.b16 %v721, %v720
      %v785 = vpack.c.b16 %v723, %v722
      %v786 = vpack.c.b16 %v725, %v724
      %v787 = vpack.c.b16 %v727, %v726
      %v788 = vpack.c.b16 %v729, %v728
      %v789 = vpack.c.b16 %v731, %v730
      %v790 = vpack.c.b16 %v733, %v732
      %v791 = vpack.c.b16 %v735, %v734
      %v792 = vpack.c.b16 %v737, %v736
      %v793 = vpack.c.b16 %v739, %v738
      %v794 = vpack.c.b16 %v741, %v740
      %v795 = vpack.c.b16 %v743, %v742
      %v796 = vpack.c.b16 %v745, %v744
      %v797 = vpack.c.b16 %v747, %v746
      %v798 = vpack.c.b16 %v749, %v748
      %v799 = vpack.c.b16 %v751, %v750
      %848 = vmatprep.subr.bf16.mxu0 0
      %849 = vmatpush1.bf16.msra.mxu0 %v759
      %850 = vmatprep.subr.bf16.mxu0 0
      %851 = vmatpush1.bf16.msra.mxu0 %v758
      %852 = vmatprep.subr.bf16.mxu0 0
      %853 = vmatpush1.bf16.msra.mxu0 %v757
      %854 = vmatprep.subr.bf16.mxu0 0
      %855 = vmatpush1.bf16.msra.mxu0 %v756
      %856 = vmatprep.subr.bf16.mxu0 0
      %857 = vmatpush1.bf16.msra.mxu0 %v755
      %858 = vmatprep.subr.bf16.mxu0 0
      %859 = vmatpush1.bf16.msra.mxu0 %v754
      %860 = vmatprep.subr.bf16.mxu0 0
      %861 = vmatpush1.bf16.msra.mxu0 %v753
      %862 = vmatprep.subr.bf16.mxu0 0
      %863 = vmatpush1.bf16.msra.mxu0 %v752
      %864 = vmatprep.subr.bf16.mxu0 0
      %865 = vmatpush2.bf16.msra.mxu0 %v767
      %866 = vmatprep.subr.bf16.mxu0 0
      %867 = vmatpush2.bf16.msra.mxu0 %v766
      %868 = vmatprep.subr.bf16.mxu0 0
      %869 = vmatpush2.bf16.msra.mxu0 %v765
      %870 = vmatprep.subr.bf16.mxu0 0
      %871 = vmatpush2.bf16.msra.mxu0 %v764
      %872 = vmatprep.subr.bf16.mxu0 0
      %873 = vmatpush2.bf16.msra.mxu0 %v763
      %874 = vmatprep.subr.bf16.mxu0 0
      %875 = vmatpush2.bf16.msra.mxu0 %v762
      %876 = vmatprep.subr.bf16.mxu0 0
      %877 = vmatpush2.bf16.msra.mxu0 %v761
      %878 = vmatprep.subr.bf16.mxu0 0
      %879 = vmatpush2.bf16.msra.mxu0 %v760
      %880 = vmatprep.mubr.bf16.mxu0 %v544
      %881 = vmatmul.mubr.bf16.gmra.mxu0 %v530
      %v882 = vpop.f32.mrf.mxu0
      %v883 = vadd.f32 0.0, %v882
      %v884 = vpop.f32.mrf.mxu0
      %v885 = vpop.f32.mrf.mxu0
      %v886 = vpop.f32.mrf.mxu0
      %887 = vdwg.mxu0
      %888 = vmatprep.subr.bf16.mxu0 0
      %889 = vmatpush1.bf16.msra.mxu0 %v775
      %890 = vmatprep.subr.bf16.mxu0 0
      %891 = vmatpush1.bf16.msra.mxu0 %v774
      %892 = vmatprep.subr.bf16.mxu0 0
      %893 = vmatpush1.bf16.msra.mxu0 %v773
      %894 = vmatprep.subr.bf16.mxu0 0
      %895 = vmatpush1.bf16.msra.mxu0 %v772
      %896 = vmatprep.subr.bf16.mxu0 0
      %897 = vmatpush1.bf16.msra.mxu0 %v771
      %898 = vmatprep.subr.bf16.mxu0 0
      %899 = vmatpush1.bf16.msra.mxu0 %v770
      %900 = vmatprep.subr.bf16.mxu0 0
      %901 = vmatpush1.bf16.msra.mxu0 %v769
      %902 = vmatprep.subr.bf16.mxu0 0
      %903 = vmatpush1.bf16.msra.mxu0 %v768
      %904 = vmatprep.subr.bf16.mxu0 0
      %905 = vmatpush2.bf16.msra.mxu0 %v783
      %906 = vmatprep.subr.bf16.mxu0 0
      %907 = vmatpush2.bf16.msra.mxu0 %v782
      %908 = vmatprep.subr.bf16.mxu0 0
      %909 = vmatpush2.bf16.msra.mxu0 %v781
      %910 = vmatprep.subr.bf16.mxu0 0
      %911 = vmatpush2.bf16.msra.mxu0 %v780
      %912 = vmatprep.subr.bf16.mxu0 0
      %913 = vmatpush2.bf16.msra.mxu0 %v779
      %914 = vmatprep.subr.bf16.mxu0 0
      %915 = vmatpush2.bf16.msra.mxu0 %v778
      %916 = vmatprep.subr.bf16.mxu0 0
      %917 = vmatpush2.bf16.msra.mxu0 %v777
      %918 = vmatprep.subr.bf16.mxu0 0
      %919 = vmatpush2.bf16.msra.mxu0 %v776
      %920 = vmatprep.mubr.bf16.mxu0 %v553
      %921 = vmatmul.mubr.bf16.gmra.mxu0 %v552
      %v922 = vpop.f32.mrf.mxu0
      %v923 = vadd.f32 %v883, %v922
      %v924 = vpop.f32.mrf.mxu0
      %v925 = vpop.f32.mrf.mxu0
      %v926 = vpop.f32.mrf.mxu0
      %927 = vdwg.mxu0
      %928 = vmatprep.subr.bf16.mxu0 0
      %929 = vmatpush1.bf16.msra.mxu0 %v791
      %930 = vmatprep.subr.bf16.mxu0 0
      %931 = vmatpush1.bf16.msra.mxu0 %v790
      %932 = vmatprep.subr.bf16.mxu0 0
      %933 = vmatpush1.bf16.msra.mxu0 %v789
      %934 = vmatprep.subr.bf16.mxu0 0
      %935 = vmatpush1.bf16.msra.mxu0 %v788
      %936 = vmatprep.subr.bf16.mxu0 0
      %937 = vmatpush1.bf16.msra.mxu0 %v787
      %938 = vmatprep.subr.bf16.mxu0 0
      %939 = vmatpush1.bf16.msra.mxu0 %v786
      %940 = vmatprep.subr.bf16.mxu0 0
      %941 = vmatpush1.bf16.msra.mxu0 %v785
      %942 = vmatprep.subr.bf16.mxu0 0
      %943 = vmatpush1.bf16.msra.mxu0 %v784
      %944 = vmatprep.subr.bf16.mxu0 0
      %945 = vmatpush2.bf16.msra.mxu0 %v799
      %946 = vmatprep.subr.bf16.mxu0 0
      %947 = vmatpush2.bf16.msra.mxu0 %v798
      %948 = vmatprep.subr.bf16.mxu0 0
      %949 = vmatpush2.bf16.msra.mxu0 %v797
      %950 = vmatprep.subr.bf16.mxu0 0
      %951 = vmatpush2.bf16.msra.mxu0 %v796
      %952 = vmatprep.subr.bf16.mxu0 0
      %953 = vmatpush2.bf16.msra.mxu0 %v795
      %954 = vmatprep.subr.bf16.mxu0 0
      %955 = vmatpush2.bf16.msra.mxu0 %v794
      %956 = vmatprep.subr.bf16.mxu0 0
      %957 = vmatpush2.bf16.msra.mxu0 %v793
      %958 = vmatprep.subr.bf16.mxu0 0
      %959 = vmatpush2.bf16.msra.mxu0 %v792
      %960 = vmatprep.mubr.bf16.mxu0 %v551
      %961 = vmatmul.mubr.bf16.gmra.mxu0 %v537
      %v962 = vpop.f32.mrf.mxu0
      %v963 = vadd.f32 %v923, %v962
      %v964 = vpop.f32.mrf.mxu0
      %v965 = vpop.f32.mrf.mxu0
      %v966 = vpop.f32.mrf.mxu0
      %967 = vdwg.mxu0
      %v968 = vld [vmem:[%s3] sm:$0x1]
      %v970 = vlaneseq
      %v971 = vshrl.u32 %v970, 7
      %v972 = vsub.s32 0, %v971
      %v973 = vrot.slane %v968, %v972
      %v975 = vmul.f32 %v963, %v973
      %v976 = vld [vmem:[%s4] sm:$0x1]
      %v978 = vlaneseq
      %v979 = vshrl.u32 %v978, 7
      %v980 = vsub.s32 0, %v979
      %v981 = vrot.slane %v976, %v980
      %v983 = vadd.f32 %v975, %v981
      %v984 = vmax.f32 %v983, 0.0
      %v985 = vpack.c.bf16 %v984, %v984
      %986 = vst [vmem:[%s320] sm:$0x3] %v985
      %p987 = scmp.lt.s32.totalorder %s20, 1
      %s988 = scalar_select %p987, %s20, 1
      %p989 = scmp.lt.s32.totalorder %s21, 0
      %s990 = scalar_select %p989, %s21, 0
      %s991 = sadd.s32 %s990, %s988
      %s992 = smul.addr %s991, 2
      %s993 = scalar_lea.vmem %s5, %s992
      // Predicated region
      $region45: #{detail_branch.13} parent=39 // pred_check
        %p994 = pneg %p175
      $region46: #{detail_branch.13} parent=39 // pred_check_branch
        %996 = sbr.rel (%p994) target = $region48
      $region47: #{detail_branch.13} parent=39 // pred_region
        _
      $region48: #{detail_branch.13} parent=39 // pred_fallthru
        _
    $region40: #{detail_branch.13} parent=5 // pred_fallthru
      _
    %p997 = scmp.le.s32.totalorder 2, %s11
    // Predicated region
    $region49: #{detail_branch.13} parent=5 // pred_check
      %p998 = pneg %p997
    $region50: #{detail_branch.13} parent=5 // pred_check_branch
      %1000 = sbr.rel (%p998) target = $region52
    $region51: #{detail_branch.13} parent=5 // pred_region
      %s1001 = ssub.s32 %s11, 2
      // Predicated region
      $region53: #{detail_branch.13} parent=51 // pred_check
        %p1002 = pneg %p181
      $region54: #{detail_branch.13} parent=51 // pred_check_branch
        %1004 = sbr.rel (%p1002) target = $region56
      $region55: #{detail_branch.13} parent=51 // pred_region
        %p1005 = scmp.lt.s32.totalorder %s22, 1
        %s1006 = scalar_select %p1005, %s22, 1
        %p1007 = scmp.lt.s32.totalorder %s23, 0
        %s1008 = scalar_select %p1007, %s23, 0
        %s1009 = sadd.s32 %s1008, %s1006
        %s1010 = smul.addr %s1009, 2
        %s1011 = scalar_lea.vmem %s5, %s1010
      $region56: #{detail_branch.13} parent=51 // pred_fallthru
        _
    $region52: #{detail_branch.13} parent=5 // pred_fallthru
      _
  $region6: #{detail_branch.13} parent=0 // loop_footer
    %s15 = sadd.s32 1, %s11
  $region7: #{detail_branch.13} parent=0 // loop_footer_branch
    %10 = sbr.rel target = $region3
  $region8: #{detail_branch.13} parent=0 // loop_exit
    _

// kernel: detail_branch.14
$region0: #{detail_branch.14}
  #allocation0 [shape = 'u32[]', space=smem, size = 0x4, offset = 0x4, fixed_abs, tag = 'smem constant byte address 0x4 - core index']
  #allocation1 [shape = 'u32[144,128]{1,0:T(1,128)}', space=vmem, size = 0x12000, scoped, tag = 'internal scratch']
  #allocation2 [shape = 'bf16[4,2,384]{2,1,0:T(2,128)(2,1)}', space=vmem, size = 0x1800, scoped, tag = 'scratch operand']
  %s0 = inlined_call_operand.vmem [shape: bf16[2,2,2,128], index: 0, kind: input, shape index: {}, may-alias: {0,1,2}]
  %s1 = inlined_call_operand.vmem [shape: bf16[2,2,2,128], index: 1, kind: input, shape index: {}, may-alias: {0,1,2}]
  %s2 = inlined_call_operand.vmem [shape: bf16[2,2,2,128], index: 2, kind: input, shape index: {}, may-alias: {0,1,2}]
  %s3 = inlined_call_operand.vmem [shape: bf16[3,384,128], index: 3, kind: input, shape index: {}]
  %s4 = inlined_call_operand.vmem [shape: f32[1,128], index: 4, kind: input, shape index: {}]
  %s5 = inlined_call_operand.vmem [shape: f32[1,128], index: 5, kind: input, shape index: {}]
  %s6 = inlined_call_operand.vmem [shape: bf16[2,4,128], index: 6, kind: output, shape index: {}]
  %s7 = sld [smem:[#allocation0]]
  $region61: #{detail_branch.14} parent=0
    _
  %s9 = ssub.s32 1, %s7
  %s10 = scalar_select 0, %s9, %s7
  loop: start=0, step=1, limit=4
  $region2: #{detail_branch.14} parent=0 // loop_pre_header
    _
  $region3: #{detail_branch.14} parent=0 // loop_header
    %s12 = sphi 0, %s16
    %p13 = scmp.ge.s32.totalorder %s12, 4
    %s19 = sphi 0, %s31
    %s20 = sphi 0, %s27
    %s21 = sphi 0, %s19
    %s22 = sphi 0, %s20
    %s23 = sphi 0, %s21
    %s24 = sphi 0, %s22
    %s36 = sphi 0, %s38
    %s39 = sphi 0, %s36
    %s40 = sphi 0, %s39
    %s56 = sphi 0, %s40
    %s72 = sphi 0, %s74
    %s75 = sphi 0, %s72
    %s76 = sphi 0, %s75
    %s92 = sphi 0, %s76
    %s108 = sphi 0, %s110
    %s111 = sphi 0, %s108
    %s112 = sphi 0, %s111
    %s128 = sphi 0, %s112
    %s132 = sphi 0, %s132
    %s134 = sphi 0, %s132
    %s135 = sphi 0, %s134
    %s149 = sphi 0, %s135
    %s153 = sphi 0, %s153
    %s155 = sphi 0, %s153
    %s156 = sphi 0, %s155
    %s170 = sphi 0, %s156
    %s174 = sphi 0, %s174
    %s176 = sphi 0, %s174
    %s177 = sphi 0, %s176
    %s191 = sphi 0, %s177
    %s199 = sphi 0, %s201
    %s202 = sphi 0, %s199
    %s203 = sphi 0, %s202
    %s219 = sphi 0, %s203
  $region4: #{detail_branch.14} parent=0 // loop_header_branch
    %15 = sbr.rel (%p13) target = $region8
  $region5: #{detail_branch.14} parent=0 // loop_body
    %s17 = ssub.s32 %s12, 1
    %s18 = ssub.s32 %s12, 2
    %s25 = sadd.s32 1, %s20
    %p26 = scmp.ge.s32.totalorder %s25, 1
    %s27 = scalar_select %p26, 0, %s25
    %s28 = sadd.s32 1, %s19
    %s29 = scalar_select %p26, %s28, %s19
    %p30 = scmp.ge.s32.totalorder %s29, 2
    %s31 = scalar_select %p30, 0, %s29
    %s32 = ssub.s32 %s19, %s31
    %s33 = ssub.s32 %s20, %s27
    %s34 = sor.u32 %s32, %s33
    %p35 = scmp.eq.s32.totalorder %s34, 0
    %s37 = sadd.s32 %s36, 1
    %s38 = scalar_select %p35, %s36, %s37
    %p41 = pneg %p35
    %p42 = scmp.eq.s32.totalorder %s12, 1
    %p43 = por %p41, %p42
    %p44 = scmp.ne.s32.totalorder %s36, %s39
    %p45 = scmp.eq.s32.totalorder %s12, 0
    %p46 = por %p44, %p45
    %p47 = scmp.ne.s32.totalorder %s36, %s39
    %p48 = scmp.eq.s32.totalorder %s17, 1
    %p49 = por %p47, %p48
    %p50 = scmp.ne.s32.totalorder %s39, %s40
    %p51 = scmp.eq.s32.totalorder %s17, 0
    %p52 = por %p50, %p51
    %p53 = scmp.ne.s32.totalorder %s39, %s40
    %p54 = scmp.eq.s32.totalorder %s18, 1
    %p55 = por %p53, %p54
    %p57 = scmp.ne.s32.totalorder %s40, %s56
    %p58 = scmp.eq.s32.totalorder %s18, 0
    %p59 = por %p57, %p58
    %s60 = smul.u32 %s20, 2
    %s61 = ssub.s32 %s60, 1
    %p62 = scmp.gt.s32.totalorder %s61, 0
    %s63 = scalar_select %p62, %s61, 0
    %s64 = smul.u32 %s27, 2
    %s65 = ssub.s32 %s64, 1
    %p66 = scmp.gt.s32.totalorder %s65, 0
    %s67 = scalar_select %p66, %s65, 0
    %s68 = ssub.s32 %s19, %s31
    %s69 = ssub.s32 %s63, %s67
    %s70 = sor.u32 %s68, %s69
    %p71 = scmp.eq.s32.totalorder %s70, 0
    %s73 = sadd.s32 %s72, 1
    %s74 = scalar_select %p71, %s72, %s73
    %p77 = pneg %p71
    %p78 = scmp.eq.s32.totalorder %s12, 1
    %p79 = por %p77, %p78
    %p80 = scmp.ne.s32.totalorder %s72, %s75
    %p81 = scmp.eq.s32.totalorder %s12, 0
    %p82 = por %p80, %p81
    %p83 = scmp.ne.s32.totalorder %s72, %s75
    %p84 = scmp.eq.s32.totalorder %s17, 1
    %p85 = por %p83, %p84
    %p86 = scmp.ne.s32.totalorder %s75, %s76
    %p87 = scmp.eq.s32.totalorder %s17, 0
    %p88 = por %p86, %p87
    %p89 = scmp.ne.s32.totalorder %s75, %s76
    %p90 = scmp.eq.s32.totalorder %s18, 1
    %p91 = por %p89, %p90
    %p93 = scmp.ne.s32.totalorder %s76, %s92
    %p94 = scmp.eq.s32.totalorder %s18, 0
    %p95 = por %p93, %p94
    %s96 = sadd.s32 %s20, 1
    %s97 = smul.u32 %s96, 2
    %p98 = scmp.lt.s32.totalorder %s97, 1
    %s99 = scalar_select %p98, %s97, 1
    %s100 = sadd.s32 %s27, 1
    %s101 = smul.u32 %s100, 2
    %p102 = scmp.lt.s32.totalorder %s101, 1
    %s103 = scalar_select %p102, %s101, 1
    %s104 = ssub.s32 %s19, %s31
    %s105 = ssub.s32 %s99, %s103
    %s106 = sor.u32 %s104, %s105
    %p107 = scmp.eq.s32.totalorder %s106, 0
    %s109 = sadd.s32 %s108, 1
    %s110 = scalar_select %p107, %s108, %s109
    %p113 = pneg %p107
    %p114 = scmp.eq.s32.totalorder %s12, 1
    %p115 = por %p113, %p114
    %p116 = scmp.ne.s32.totalorder %s108, %s111
    %p117 = scmp.eq.s32.totalorder %s12, 0
    %p118 = por %p116, %p117
    %p119 = scmp.ne.s32.totalorder %s108, %s111
    %p120 = scmp.eq.s32.totalorder %s17, 1
    %p121 = por %p119, %p120
    %p122 = scmp.ne.s32.totalorder %s111, %s112
    %p123 = scmp.eq.s32.totalorder %s17, 0
    %p124 = por %p122, %p123
    %p125 = scmp.ne.s32.totalorder %s111, %s112
    %p126 = scmp.eq.s32.totalorder %s18, 1
    %p127 = por %p125, %p126
    %p129 = scmp.ne.s32.totalorder %s112, %s128
    %p130 = scmp.eq.s32.totalorder %s18, 0
    %p131 = por %p129, %p130
    %s133 = sadd.s32 %s132, 1
    %p136 = scmp.eq.s32.totalorder %s12, 1
    %p137 = scmp.ne.s32.totalorder %s132, %s134
    %p138 = scmp.eq.s32.totalorder %s12, 0
    %p139 = por %p137, %p138
    %p140 = scmp.ne.s32.totalorder %s132, %s134
    %p141 = scmp.eq.s32.totalorder %s17, 1
    %p142 = por %p140, %p141
    %p143 = scmp.ne.s32.totalorder %s134, %s135
    %p144 = scmp.eq.s32.totalorder %s17, 0
    %p145 = por %p143, %p144
    %p146 = scmp.ne.s32.totalorder %s134, %s135
    %p147 = scmp.eq.s32.totalorder %s18, 1
    %p148 = por %p146, %p147
    %p150 = scmp.ne.s32.totalorder %s135, %s149
    %p151 = scmp.eq.s32.totalorder %s18, 0
    %p152 = por %p150, %p151
    %s154 = sadd.s32 %s153, 1
    %p157 = scmp.eq.s32.totalorder %s12, 1
    %p158 = scmp.ne.s32.totalorder %s153, %s155
    %p159 = scmp.eq.s32.totalorder %s12, 0
    %p160 = por %p158, %p159
    %p161 = scmp.ne.s32.totalorder %s153, %s155
    %p162 = scmp.eq.s32.totalorder %s17, 1
    %p163 = por %p161, %p162
    %p164 = scmp.ne.s32.totalorder %s155, %s156
    %p165 = scmp.eq.s32.totalorder %s17, 0
    %p166 = por %p164, %p165
    %p167 = scmp.ne.s32.totalorder %s155, %s156
    %p168 = scmp.eq.s32.totalorder %s18, 1
    %p169 = por %p167, %p168
    %p171 = scmp.ne.s32.totalorder %s156, %s170
    %p172 = scmp.eq.s32.totalorder %s18, 0
    %p173 = por %p171, %p172
    %s175 = sadd.s32 %s174, 1
    %p178 = scmp.eq.s32.totalorder %s12, 1
    %p179 = scmp.ne.s32.totalorder %s174, %s176
    %p180 = scmp.eq.s32.totalorder %s12, 0
    %p181 = por %p179, %p180
    %p182 = scmp.ne.s32.totalorder %s174, %s176
    %p183 = scmp.eq.s32.totalorder %s17, 1
    %p184 = por %p182, %p183
    %p185 = scmp.ne.s32.totalorder %s176, %s177
    %p186 = scmp.eq.s32.totalorder %s17, 0
    %p187 = por %p185, %p186
    %p188 = scmp.ne.s32.totalorder %s176, %s177
    %p189 = scmp.eq.s32.totalorder %s18, 1
    %p190 = por %p188, %p189
    %p192 = scmp.ne.s32.totalorder %s177, %s191
    %p193 = scmp.eq.s32.totalorder %s18, 0
    %p194 = por %p192, %p193
    %s195 = ssub.s32 %s19, %s31
    %s196 = ssub.s32 %s20, %s27
    %s197 = sor.u32 %s195, %s196
    %p198 = scmp.eq.s32.totalorder %s197, 0
    %s200 = sadd.s32 %s199, 1
    %s201 = scalar_select %p198, %s199, %s200
    %p204 = pneg %p198
    %p205 = scmp.eq.s32.totalorder %s12, 1
    %p206 = por %p204, %p205
    %p207 = scmp.ne.s32.totalorder %s199, %s202
    %p208 = scmp.eq.s32.totalorder %s12, 0
    %p209 = por %p207, %p208
    %p210 = scmp.ne.s32.totalorder %s199, %s202
    %p211 = scmp.eq.s32.totalorder %s17, 1
    %p212 = por %p210, %p211
    %p213 = scmp.ne.s32.totalorder %s202, %s203
    %p214 = scmp.eq.s32.totalorder %s17, 0
    %p215 = por %p213, %p214
    %p216 = scmp.ne.s32.totalorder %s202, %s203
    %p217 = scmp.eq.s32.totalorder %s18, 1
    %p218 = por %p216, %p217
    %p220 = scmp.ne.s32.totalorder %s203, %s219
    %p221 = scmp.eq.s32.totalorder %s18, 0
    %p222 = por %p220, %p221
    %p223 = scmp.le.s32.totalorder 1, %s12
    %p224 = scmp.lt.s32.totalorder %s12, 3
    %p225 = pnand %p223, %p224
    %p226 = pneg %p225
    // Predicated region
    $region9: #{detail_branch.14} parent=5 // pred_check
      _
    $region10: #{detail_branch.14} parent=5 // pred_check_branch
      %228 = sbr.rel (%p225) target = $region12
    $region11: #{detail_branch.14} parent=5 // pred_region
      %s229 = ssub.s32 %s12, 1
      // Predicated region
      $region13: #{detail_branch.14} parent=11 // pred_check
        %p230 = pneg %p145
      $region14: #{detail_branch.14} parent=11 // pred_check_branch
        %232 = sbr.rel (%p230) target = $region16
      $region15: #{detail_branch.14} parent=11 // pred_region
        _
      $region16: #{detail_branch.14} parent=11 // pred_fallthru
        _
      // Predicated region
      $region17: #{detail_branch.14} parent=11 // pred_check
        %p233 = pneg %p166
      $region18: #{detail_branch.14} parent=11 // pred_check_branch
        %235 = sbr.rel (%p233) target = $region20
      $region19: #{detail_branch.14} parent=11 // pred_region
        _
      $region20: #{detail_branch.14} parent=11 // pred_fallthru
        _
      // Predicated region
      $region21: #{detail_branch.14} parent=11 // pred_check
        %p236 = pneg %p187
      $region22: #{detail_branch.14} parent=11 // pred_check_branch
        %238 = sbr.rel (%p236) target = $region24
      $region23: #{detail_branch.14} parent=11 // pred_region
        _
      $region24: #{detail_branch.14} parent=11 // pred_fallthru
        _
    $region12: #{detail_branch.14} parent=5 // pred_fallthru
      _
    %p239 = scmp.lt.s32.totalorder %s12, 2
    // Predicated region
    $region25: #{detail_branch.14} parent=5 // pred_check
      %p240 = pneg %p239
    $region26: #{detail_branch.14} parent=5 // pred_check_branch
      %242 = sbr.rel (%p240) target = $region28
    $region27: #{detail_branch.14} parent=5 // pred_region
      // Predicated region
      $region29: #{detail_branch.14} parent=27 // pred_check
        %p243 = pneg %p46
      $region30: #{detail_branch.14} parent=27 // pred_check_branch
        %245 = sbr.rel (%p243) target = $region32
      $region31: #{detail_branch.14} parent=27 // pred_region
        %s246 = smul.u32 2, %s20
        %p247 = scmp.lt.s32.totalorder %s19, 1
        %s248 = scalar_select %p247, %s19, 1
        %p249 = scmp.lt.s32.totalorder %s246, 1
        %s250 = scalar_select %p249, %s246, 1
        %s251 = smul.addr %s248, 2
        %s252 = sadd.s32 %s250, %s251
        %s253 = scalar_lea.vmem %s0, %s252
        %s254 = smul.u32 2, %s20
      $region32: #{detail_branch.14} parent=27 // pred_fallthru
        _
      // Predicated region
      $region33: #{detail_branch.14} parent=27 // pred_check
        %p255 = pneg %p82
      $region34: #{detail_branch.14} parent=27 // pred_check_branch
        %257 = sbr.rel (%p255) target = $region36
      $region35: #{detail_branch.14} parent=27 // pred_region
        %s258 = smul.u32 %s20, 2
        %s259 = ssub.s32 %s258, 1
        %p260 = scmp.gt.s32.totalorder %s259, 0
        %s261 = scalar_select %p260, %s259, 0
        %p262 = scmp.lt.s32.totalorder %s19, 1
        %s263 = scalar_select %p262, %s19, 1
        %p264 = scmp.lt.s32.totalorder %s261, 1
        %s265 = scalar_select %p264, %s261, 1
        %s266 = smul.addr %s263, 2
        %s267 = sadd.s32 %s265, %s266
        %s268 = scalar_lea.vmem %s1, %s267
        %s269 = smul.u32 %s20, 2
        %s270 = ssub.s32 %s269, 1
        %p271 = scmp.gt.s32.totalorder %s270, 0
        %s272 = scalar_select %p271, %s270, 0
      $region36: #{detail_branch.14} parent=27 // pred_fallthru
        _
      // Predicated region
      $region37: #{detail_branch.14} parent=27 // pred_check
        %p273 = pneg %p118
      $region38: #{detail_branch.14} parent=27 // pred_check_branch
        %275 = sbr.rel (%p273) target = $region40
      $region39: #{detail_branch.14} parent=27 // pred_region
        %s276 = sadd.s32 %s20, 1
        %s277 = smul.u32 %s276, 2
        %p278 = scmp.lt.s32.totalorder %s277, 1
        %s279 = scalar_select %p278, %s277, 1
        %p280 = scmp.lt.s32.totalorder %s19, 1
        %s281 = scalar_select %p280, %s19, 1
        %p282 = scmp.lt.s32.totalorder %s279, 1
        %s283 = scalar_select %p282, %s279, 1
        %s284 = smul.addr %s281, 2
        %s285 = sadd.s32 %s283, %s284
        %s286 = scalar_lea.vmem %s2, %s285
        %s287 = sadd.s32 %s20, 1
        %s288 = smul.u32 %s287, 2
        %p289 = scmp.lt.s32.totalorder %s288, 1
        %s290 = scalar_select %p289, %s288, 1
      $region40: #{detail_branch.14} parent=27 // pred_fallthru
        _
    $region28: #{detail_branch.14} parent=5 // pred_fallthru
      _
    %p291 = scmp.le.s32.totalorder 1, %s12
    %p292 = scmp.lt.s32.totalorder %s12, 3
    %p293 = pnand %p291, %p292
    %p294 = pneg %p293
    // Predicated region
    $region41: #{detail_branch.14} parent=5 // pred_check
      _
    $region42: #{detail_branch.14} parent=5 // pred_check_branch
      %296 = sbr.rel (%p293) target = $region44
    $region43: #{detail_branch.14} parent=5 // pred_region
      %s297 = ssub.s32 %s12, 1
      %s298 = smul.u32 2, %s22
      %p299 = scmp.lt.s32.totalorder %s21, 1
      %s300 = scalar_select %p299, %s21, 1
      %p301 = scmp.lt.s32.totalorder %s298, 1
      %s302 = scalar_select %p301, %s298, 1
      %s303 = smul.addr %s300, 2
      %s304 = sadd.s32 %s302, %s303
      %s305 = scalar_lea.vmem %s0, %s304
      %p306 = pneg %p52
      %p307 = pneg %p49
      %s308 = smul.u32 %s22, 2
      %s309 = ssub.s32 %s308, 1
      %p310 = scmp.gt.s32.totalorder %s309, 0
      %s311 = scalar_select %p310, %s309, 0
      %p312 = scmp.lt.s32.totalorder %s21, 1
      %s313 = scalar_select %p312, %s21, 1
      %p314 = scmp.lt.s32.totalorder %s311, 1
      %s315 = scalar_select %p314, %s311, 1
      %s316 = smul.addr %s313, 2
      %s317 = sadd.s32 %s315, %s316
      %s318 = scalar_lea.vmem %s1, %s317
      %p319 = pneg %p88
      %p320 = pneg %p85
      %s321 = sadd.s32 %s22, 1
      %s322 = smul.u32 %s321, 2
      %p323 = scmp.lt.s32.totalorder %s322, 1
      %s324 = scalar_select %p323, %s322, 1
      %p325 = scmp.lt.s32.totalorder %s21, 1
      %s326 = scalar_select %p325, %s21, 1
      %p327 = scmp.lt.s32.totalorder %s324, 1
      %s328 = scalar_select %p327, %s324, 1
      %s329 = smul.addr %s326, 2
      %s330 = sadd.s32 %s328, %s329
      %s331 = scalar_lea.vmem %s2, %s330
      %p332 = pneg %p124
      %p333 = pneg %p121
      %p334 = pneg %p145
      %p335 = pneg %p142
      %p336 = pneg %p166
      %p337 = pneg %p163
      %p338 = pneg %p187
      %p339 = pneg %p184
      %p340 = pneg %p215
      %p341 = pneg %p212
      %p342 = scmp.lt.s32.totalorder %s21, 1
      %s343 = scalar_select %p342, %s21, 1
      %p344 = scmp.lt.s32.totalorder %s22, 0
      %s345 = scalar_select %p344, %s22, 0
      %s346 = sadd.s32 %s345, %s343
      %s347 = smul.addr %s346, 2
      %s348 = scalar_lea.vmem %s6, %s347
      %s349 = smul.u32 2, %s22
      %p350 = scmp.lt.s32.totalorder %s21, 1
      %s351 = scalar_select %p350, %s21, 1
      %p352 = scmp.lt.s32.totalorder %s349, 1
      %s353 = scalar_select %p352, %s349, 1
      %s354 = smul.addr %s351, 2
      %s355 = sadd.s32 %s353, %s354
      %s356 = scalar_lea.vmem %s0, %s355
      %s357 = smul.u32 2, %s22
      %s358 = smul.u32 %s22, 2
      %s359 = ssub.s32 %s358, 1
      %p360 = scmp.gt.s32.totalorder %s359, 0
      %s361 = scalar_select %p360, %s359, 0
      %p362 = scmp.lt.s32.totalorder %s21, 1
      %s363 = scalar_select %p362, %s21, 1
      %p364 = scmp.lt.s32.totalorder %s361, 1
      %s365 = scalar_select %p364, %s361, 1
      %s366 = smul.addr %s363, 2
      %s367 = sadd.s32 %s365, %s366
      %s368 = scalar_lea.vmem %s1, %s367
      %s369 = smul.u32 %s22, 2
      %s370 = ssub.s32 %s369, 1
      %p371 = scmp.gt.s32.totalorder %s370, 0
      %s372 = scalar_select %p371, %s370, 0
      %s373 = sadd.s32 %s22, 1
      %s374 = smul.u32 %s373, 2
      %p375 = scmp.lt.s32.totalorder %s374, 1
      %s376 = scalar_select %p375, %s374, 1
      %p377 = scmp.lt.s32.totalorder %s21, 1
      %s378 = scalar_select %p377, %s21, 1
      %p379 = scmp.lt.s32.totalorder %s376, 1
      %s380 = scalar_select %p379, %s376, 1
      %s381 = smul.addr %s378, 2
      %s382 = sadd.s32 %s380, %s381
      %s383 = scalar_lea.vmem %s2, %s382
      %s384 = sadd.s32 %s22, 1
      %s385 = smul.u32 %s384, 2
      %p386 = scmp.lt.s32.totalorder %s385, 1
      %s387 = scalar_select %p386, %s385, 1
      %p388 = scmp.lt.s32.totalorder %s21, 1
      %s389 = scalar_select %p388, %s21, 1
      %p390 = scmp.lt.s32.totalorder %s22, 0
      %s391 = scalar_select %p390, %s22, 0
      %s392 = sadd.s32 %s391, %s389
      %s393 = smul.addr %s392, 2
      %s394 = scalar_lea.vmem %s6, %s393
      %vm396 = vcmask 1040384
      %vm397 = vsmask.f32 256
      %vm398 = vmand %vm396, %vm397
      %v399 = vld [vmem:[#allocation2] sm:$0x1]
      %v400 = vsel %vm398, 0, %v399
      %401 = vst [vmem:[#allocation2] sm:$0x1] %v400
      %v402 = vld [vmem:[#allocation2 + $0x3] sm:$0x1]
      %v403 = vsel %vm398, 0, %v402
      %404 = vst [vmem:[#allocation2 + $0x3] sm:$0x1] %v403
      %v405 = vld [vmem:[#allocation2 + $0x6] sm:$0x1]
      %v406 = vsel %vm398, 0, %v405
      %407 = vst [vmem:[#allocation2 + $0x6] sm:$0x1] %v406
      %v408 = vld [vmem:[#allocation2 + $0x9] sm:$0x1]
      %v409 = vsel %vm398, 0, %v408
      %410 = vst [vmem:[#allocation2 + $0x9] sm:$0x1] %v409
      %vm411 = vsmask.f32 7938
      %vm412 = vmand %vm396, %vm411
      %v413 = vld [vmem:[#allocation2 + $0x2] sm:$0x1]
      %v414 = vsel %vm412, 0, %v413
      %415 = vst [vmem:[#allocation2 + $0x2] sm:$0x1] %v414
      %v416 = vld [vmem:[#allocation2 + $0x5] sm:$0x1]
      %v417 = vsel %vm412, 0, %v416
      %418 = vst [vmem:[#allocation2 + $0x5] sm:$0x1] %v417
      %v419 = vld [vmem:[#allocation2 + $0x8] sm:$0x1]
      %v420 = vsel %vm412, 0, %v419
      %421 = vst [vmem:[#allocation2 + $0x8] sm:$0x1] %v420
      %v422 = vld [vmem:[#allocation2 + $0xb] sm:$0x1]
      %v423 = vsel %vm412, 0, %v422
      %424 = vst [vmem:[#allocation2 + $0xb] sm:$0x1] %v423
      %v425 = vld [vmem:[%s356] sm:$0x1]
      %v426 = vld [vmem:[%s356 + $0x1] sm:$0x1]
      %v428 = vshll.u32 %v425, 16
      %v431 = vshll.u32 %v426, 16
      %s435 = scalar_lea.vmem [#allocation2], 3
      %v436 = vld [vmem:[%s435] sm:$0x1]
      %v437 = vsel %vm412, %v428, %v436
      %438 = vst [vmem:[%s435] sm:$0x1] %v437
      %v439 = vld [vmem:[%s435 + $0x3] sm:$0x1]
      %v440 = vsel %vm412, %v431, %v439
      %441 = vst [vmem:[%s435 + $0x3] sm:$0x1] %v440
      %v442 = vshrl.u32 %v425, 16
      %v444 = vrot.slane %v442, 7
      %v445 = vrot.slane %v444, 1
      %v446 = vshrl.u32 %v426, 16
      %v448 = vrot.slane %v446, 7
      %v449 = vrot.slane %v448, 1
      %v452 = vld [vmem:[%s435 + $0x2] sm:$0x1]
      %v453 = vsel %vm398, %v445, %v452
      %454 = vst [vmem:[%s435 + $0x2] sm:$0x1] %v453
      %v455 = vld [vmem:[%s435 + $0x5] sm:$0x1]
      %v456 = vsel %vm398, %v449, %v455
      %457 = vst [vmem:[%s435 + $0x5] sm:$0x1] %v456
      %458 = vst [vmem:[%s435 + $0x1] sm:$0x1] %v425
      %459 = vst [vmem:[%s435 + $0x4] sm:$0x1] %v426
      %v460 = vld [vmem:[%s368] sm:$0x1]
      %v462 = vshll.u32 %v460, 16
      %v465 = vld [vmem:[#allocation2] sm:$0x1]
      %v466 = vsel %vm412, %v462, %v465
      %467 = vst [vmem:[#allocation2] sm:$0x1] %v466
      %v468 = vshrl.u32 %v460, 16
      %v470 = vrot.slane %v468, 7
      %v471 = vrot.slane %v470, 1
      %v473 = vld [vmem:[#allocation2 + $0x2] sm:$0x1]
      %v474 = vsel %vm398, %v471, %v473
      %475 = vst [vmem:[#allocation2 + $0x2] sm:$0x1] %v474
      %476 = vst [vmem:[#allocation2 + $0x1] sm:$0x1] %v460
      %v477 = vld [vmem:[%s383] sm:$0x1]
      %v479 = vshll.u32 %v477, 16
      %s482 = scalar_lea.vmem [#allocation2], 9
      %v483 = vld [vmem:[%s482] sm:$0x1]
      %v484 = vsel %vm412, %v479, %v483
      %485 = vst [vmem:[%s482] sm:$0x1] %v484
      %v486 = vshrl.u32 %v477, 16
      %v488 = vrot.slane %v486, 7
      %v489 = vrot.slane %v488, 1
      %v491 = vld [vmem:[%s482 + $0x2] sm:$0x1]
      %v492 = vsel %vm398, %v489, %v491
      %493 = vst [vmem:[%s482 + $0x2] sm:$0x1] %v492
      %494 = vst [vmem:[%s482 + $0x1] sm:$0x1] %v477
      %p495 = scmp.eq.s32.totalorder %s22, 0
      // Predicated region
      $region45: #{detail_branch.14} parent=43 // pred_check
        %p496 = pneg %p495
      $region46: #{detail_branch.14} parent=43 // pred_check_branch
        %498 = sbr.rel (%p496) target = $region48
      $region47: #{detail_branch.14} parent=43 // pred_region
        %499 = vst [vmem:[#allocation2] sm:$0x7] 0
        %500 = vst [vmem:[%s482] sm:$0x7] 0
      $region48: #{detail_branch.14} parent=43 // pred_fallthru
        _
      %v501 = vld [vmem:[#allocation2] sm:$0x7]
      %v502 = vld [vmem:[#allocation2 + $0x3] sm:$0x7]
      %v503 = vld [vmem:[%s3] sm:$0xf]
      %v504 = vld [vmem:[%s3 + $0x4] sm:$0xf]
      %v505 = vld [vmem:[%s3 + $0x8] sm:$0xf]
      %v506 = vld [vmem:[%s3 + $0xc] sm:$0xf]
      %v507 = vld [vmem:[%s3 + $0x10] sm:$0xf]
      %v508 = vld [vmem:[%s3 + $0x14] sm:$0xf]
      %v509 = vld [vmem:[%s3 + $0x18] sm:$0xf]
      %v510 = vld [vmem:[%s3 + $0x1c] sm:$0xf]
      %v511 = vld [vmem:[%s3 + $0x20] sm:$0xf]
      %v512 = vld [vmem:[%s3 + $0x24] sm:$0xf]
      %v513 = vld [vmem:[%s3 + $0x28] sm:$0xf]
      %v514 = vld [vmem:[%s3 + $0x2c] sm:$0xf]
      %v515 = vld [vmem:[%s3 + $0x30] sm:$0xf]
      %v516 = vld [vmem:[%s3 + $0x34] sm:$0xf]
      %v517 = vld [vmem:[%s3 + $0x38] sm:$0xf]
      %v518 = vld [vmem:[%s3 + $0x3c] sm:$0xf]
      %v519 = vld [vmem:[%s3 + $0x40] sm:$0xf]
      %v520 = vld [vmem:[%s3 + $0x44] sm:$0xf]
      %v521 = vld [vmem:[%s3 + $0x48] sm:$0xf]
      %v522 = vld [vmem:[%s3 + $0x4c] sm:$0xf]
      %v523 = vld [vmem:[%s3 + $0x50] sm:$0xf]
      %v524 = vld [vmem:[%s3 + $0x54] sm:$0xf]
      %v525 = vld [vmem:[%s3 + $0x58] sm:$0xf]
      %v526 = vld [vmem:[%s3 + $0x5c] sm:$0xf]
      %v527 = vld [vmem:[%s3 + $0x60] sm:$0xf]
      %v528 = vld [vmem:[%s3 + $0x64] sm:$0xf]
      %v529 = vld [vmem:[%s3 + $0x68] sm:$0xf]
      %v530 = vld [vmem:[%s3 + $0x6c] sm:$0xf]
      %v531 = vld [vmem:[%s3 + $0x70] sm:$0xf]
      %v532 = vld [vmem:[%s3 + $0x74] sm:$0xf]
      %v533 = vld [vmem:[%s3 + $0x78] sm:$0xf]
      %v534 = vld [vmem:[%s3 + $0x7c] sm:$0xf]
      %v535 = vld [vmem:[%s3 + $0x80] sm:$0xf]
      %v536 = vld [vmem:[%s3 + $0x84] sm:$0xf]
      %v537 = vld [vmem:[%s3 + $0x88] sm:$0xf]
      %v538 = vld [vmem:[%s3 + $0x8c] sm:$0xf]
      %v539 = vld [vmem:[%s3 + $0x90] sm:$0xf]
      %v540 = vld [vmem:[%s3 + $0x94] sm:$0xf]
      %v541 = vld [vmem:[%s3 + $0x98] sm:$0xf]
      %v542 = vld [vmem:[%s3 + $0x9c] sm:$0xf]
      %v543 = vld [vmem:[%s3 + $0xa0] sm:$0xf]
      %v544 = vld [vmem:[%s3 + $0xa4] sm:$0xf]
      %v545 = vld [vmem:[%s3 + $0xa8] sm:$0xf]
      %v546 = vld [vmem:[%s3 + $0xac] sm:$0xf]
      %v547 = vld [vmem:[%s3 + $0xb0] sm:$0xf]
      %v548 = vld [vmem:[%s3 + $0xb4] sm:$0xf]
      %v549 = vld [vmem:[%s3 + $0xb8] sm:$0xf]
      %v550 = vld [vmem:[%s3 + $0xbc] sm:$0xf]
      %v551 = vld [vmem:[%s435] sm:$0x7]
      %v552 = vld [vmem:[%s435 + $0x3] sm:$0x7]
      %s553 = scalar_lea.vmem %s3, 192
      %v554 = vld [vmem:[%s553] sm:$0xf]
      %v555 = vld [vmem:[%s553 + $0x4] sm:$0xf]
      %v556 = vld [vmem:[%s553 + $0x8] sm:$0xf]
      %v557 = vld [vmem:[%s553 + $0xc] sm:$0xf]
      %v558 = vld [vmem:[%s553 + $0x10] sm:$0xf]
      %v559 = vld [vmem:[%s553 + $0x14] sm:$0xf]
      %v560 = vld [vmem:[%s553 + $0x18] sm:$0xf]
      %v561 = vld [vmem:[%s553 + $0x1c] sm:$0xf]
      %v562 = vld [vmem:[%s553 + $0x20] sm:$0xf]
      %v563 = vld [vmem:[%s553 + $0x24] sm:$0xf]
      %v564 = vld [vmem:[%s553 + $0x28] sm:$0xf]
      %v565 = vld [vmem:[%s553 + $0x2c] sm:$0xf]
      %v566 = vld [vmem:[%s553 + $0x30] sm:$0xf]
      %v567 = vld [vmem:[%s553 + $0x34] sm:$0xf]
      %v568 = vld [vmem:[%s553 + $0x38] sm:$0xf]
      %v569 = vld [vmem:[%s553 + $0x3c] sm:$0xf]
      %v570 = vld [vmem:[%s553 + $0x40] sm:$0xf]
      %v571 = vld [vmem:[%s553 + $0x44] sm:$0xf]
      %v572 = vld [vmem:[%s553 + $0x48] sm:$0xf]
      %v573 = vld [vmem:[%s553 + $0x4c] sm:$0xf]
      %v574 = vld [vmem:[%s553 + $0x50] sm:$0xf]
      %v575 = vld [vmem:[%s553 + $0x54] sm:$0xf]
      %v576 = vld [vmem:[%s553 + $0x58] sm:$0xf]
      %v577 = vld [vmem:[%s553 + $0x5c] sm:$0xf]
      %v578 = vld [vmem:[%s553 + $0x60] sm:$0xf]
      %v579 = vld [vmem:[%s553 + $0x64] sm:$0xf]
      %v580 = vld [vmem:[%s553 + $0x68] sm:$0xf]
      %v581 = vld [vmem:[%s553 + $0x6c] sm:$0xf]
      %v582 = vld [vmem:[%s553 + $0x70] sm:$0xf]
      %v583 = vld [vmem:[%s553 + $0x74] sm:$0xf]
      %v584 = vld [vmem:[%s553 + $0x78] sm:$0xf]
      %v585 = vld [vmem:[%s553 + $0x7c] sm:$0xf]
      %v586 = vld [vmem:[%s553 + $0x80] sm:$0xf]
      %v587 = vld [vmem:[%s553 + $0x84] sm:$0xf]
      %v588 = vld [vmem:[%s553 + $0x88] sm:$0xf]
      %v589 = vld [vmem:[%s553 + $0x8c] sm:$0xf]
      %v590 = vld [vmem:[%s553 + $0x90] sm:$0xf]
      %v591 = vld [vmem:[%s553 + $0x94] sm:$0xf]
      %v592 = vld [vmem:[%s553 + $0x98] sm:$0xf]
      %v593 = vld [vmem:[%s553 + $0x9c] sm:$0xf]
      %v594 = vld [vmem:[%s553 + $0xa0] sm:$0xf]
      %v595 = vld [vmem:[%s553 + $0xa4] sm:$0xf]
      %v596 = vld [vmem:[%s553 + $0xa8] sm:$0xf]
      %v597 = vld [vmem:[%s553 + $0xac] sm:$0xf]
      %v598 = vld [vmem:[%s553 + $0xb0] sm:$0xf]
      %v599 = vld [vmem:[%s553 + $0xb4] sm:$0xf]
      %v600 = vld [vmem:[%s553 + $0xb8] sm:$0xf]
      %v601 = vld [vmem:[%s553 + $0xbc] sm:$0xf]
      %v604 = vcombine.low %v551, %v552
      %v606 = vunpack.c.l.s4 1966171168
      %v607 = vunpack.c.0.s8 %v606
      %v608 = vlaneseq
      %v609 = vshrl.u32 %v608, 7
      %v610 = vsub.s32 %v607, %v609
      %v611 = vrot.slane %v604, %v610
      %v612 = vcombine.high %v611, %v611
      %v614 = vunpack.c.l.s4 1966171168
      %v615 = vunpack.c.0.s8 %v614
      %v616 = vlaneseq
      %v617 = vshrl.u32 %v616, 7
      %v618 = vsub.s32 %v615, %v617
      %v619 = vrot.slane %v611, %v618
      %v621 = vunpack.c.l.s4 1966171168
      %v622 = vunpack.c.0.s8 %v621
      %v623 = vlaneseq
      %v624 = vshrl.u32 %v623, 7
      %v625 = vsub.s32 %v622, %v624
      %v626 = vrot.slane %v612, %v625
      %v627 = vcombine.high %v619, %v619
      %v679 = vunpack.c.l.b16 %v554
      %v680 = vunpack.c.l.b16 %v555
      %v681 = vunpack.c.l.b16 %v556
      %v682 = vunpack.c.l.b16 %v557
      %v683 = vunpack.c.l.b16 %v558
      %v684 = vunpack.c.l.b16 %v559
      %v685 = vunpack.c.l.b16 %v560
      %v686 = vunpack.c.l.b16 %v561
      %v687 = vunpack.c.l.b16 %v562
      %v688 = vunpack.c.l.b16 %v563
      %v689 = vunpack.c.l.b16 %v564
      %v690 = vunpack.c.l.b16 %v565
      %v691 = vunpack.c.l.b16 %v566
      %v692 = vunpack.c.l.b16 %v567
      %v693 = vunpack.c.l.b16 %v568
      %v694 = vunpack.c.l.b16 %v569
      %v695 = vunpack.c.l.b16 %v570
      %v696 = vunpack.c.l.b16 %v571
      %v697 = vunpack.c.l.b16 %v572
      %v698 = vunpack.c.l.b16 %v573
      %v699 = vunpack.c.l.b16 %v574
      %v700 = vunpack.c.l.b16 %v575
      %v701 = vunpack.c.l.b16 %v576
      %v702 = vunpack.c.l.b16 %v577
      %v703 = vunpack.c.l.b16 %v578
      %v704 = vunpack.c.l.b16 %v579
      %v705 = vunpack.c.l.b16 %v580
      %v706 = vunpack.c.l.b16 %v581
      %v707 = vunpack.c.l.b16 %v582
      %v708 = vunpack.c.l.b16 %v583
      %v709 = vunpack.c.l.b16 %v584
      %v710 = vunpack.c.l.b16 %v585
      %v711 = vunpack.c.l.b16 %v586
      %v712 = vunpack.c.l.b16 %v587
      %v713 = vunpack.c.l.b16 %v588
      %v714 = vunpack.c.l.b16 %v589
      %v715 = vunpack.c.l.b16 %v590
      %v716 = vunpack.c.l.b16 %v591
      %v717 = vunpack.c.l.b16 %v592
      %v718 = vunpack.c.l.b16 %v593
      %v719 = vunpack.c.l.b16 %v594
      %v720 = vunpack.c.l.b16 %v595
      %v721 = vunpack.c.l.b16 %v596
      %v722 = vunpack.c.l.b16 %v597
      %v723 = vunpack.c.l.b16 %v598
      %v724 = vunpack.c.l.b16 %v599
      %v725 = vunpack.c.l.b16 %v600
      %v726 = vunpack.c.l.b16 %v601
      %v727 = vpack.c.b16 %v680, %v679
      %v728 = vpack.c.b16 %v682, %v681
      %v729 = vpack.c.b16 %v684, %v683
      %v730 = vpack.c.b16 %v686, %v685
      %v731 = vpack.c.b16 %v688, %v687
      %v732 = vpack.c.b16 %v690, %v689
      %v733 = vpack.c.b16 %v692, %v691
      %v734 = vpack.c.b16 %v694, %v693
      %v735 = vpack.c.b16 %v696, %v695
      %v736 = vpack.c.b16 %v698, %v697
      %v737 = vpack.c.b16 %v700, %v699
      %v738 = vpack.c.b16 %v702, %v701
      %v739 = vpack.c.b16 %v704, %v703
      %v740 = vpack.c.b16 %v706, %v705
      %v741 = vpack.c.b16 %v708, %v707
      %v742 = vpack.c.b16 %v710, %v709
      %v743 = vpack.c.b16 %v712, %v711
      %v744 = vpack.c.b16 %v714, %v713
      %v745 = vpack.c.b16 %v716, %v715
      %v746 = vpack.c.b16 %v718, %v717
      %v747 = vpack.c.b16 %v720, %v719
      %v748 = vpack.c.b16 %v722, %v721
      %v749 = vpack.c.b16 %v724, %v723
      %v750 = vpack.c.b16 %v726, %v725
      %775 = vmatprep.subr.bf16.mxu0 0
      %776 = vmatpush1.bf16.msra.mxu0 %v734
      %777 = vmatprep.subr.bf16.mxu0 0
      %778 = vmatpush1.bf16.msra.mxu0 %v733
      %779 = vmatprep.subr.bf16.mxu0 0
      %780 = vmatpush1.bf16.msra.mxu0 %v732
      %781 = vmatprep.subr.bf16.mxu0 0
      %782 = vmatpush1.bf16.msra.mxu0 %v731
      %783 = vmatprep.subr.bf16.mxu0 0
      %784 = vmatpush1.bf16.msra.mxu0 %v730
      %785 = vmatprep.subr.bf16.mxu0 0
      %786 = vmatpush1.bf16.msra.mxu0 %v729
      %787 = vmatprep.subr.bf16.mxu0 0
      %788 = vmatpush1.bf16.msra.mxu0 %v728
      %789 = vmatprep.subr.bf16.mxu0 0
      %790 = vmatpush1.bf16.msra.mxu0 %v727
      %791 = vmatprep.subr.bf16.mxu0 0
      %792 = vmatpush2.bf16.msra.mxu0 %v742
      %793 = vmatprep.subr.bf16.mxu0 0
      %794 = vmatpush2.bf16.msra.mxu0 %v741
      %795 = vmatprep.subr.bf16.mxu0 0
      %796 = vmatpush2.bf16.msra.mxu0 %v740
      %797 = vmatprep.subr.bf16.mxu0 0
      %798 = vmatpush2.bf16.msra.mxu0 %v739
      %799 = vmatprep.subr.bf16.mxu0 0
      %800 = vmatpush2.bf16.msra.mxu0 %v738
      %801 = vmatprep.subr.bf16.mxu0 0
      %802 = vmatpush2.bf16.msra.mxu0 %v737
      %803 = vmatprep.subr.bf16.mxu0 0
      %804 = vmatpush2.bf16.msra.mxu0 %v736
      %805 = vmatprep.subr.bf16.mxu0 0
      %806 = vmatpush2.bf16.msra.mxu0 %v735
      %807 = vmatprep.mubr.bf16.mxu0 %v626
      %808 = vmatmul.mubr.bf16.gmra.mxu0 %v619
      %v809 = vpop.f32.mrf.mxu0
      %v810 = vadd.f32 0.0, %v809
      %v811 = vpop.f32.mrf.mxu0
      %v812 = vpop.f32.mrf.mxu0
      %v813 = vpop.f32.mrf.mxu0
      %814 = vdwg.mxu0
      %815 = vmatprep.subr.bf16.mxu0 0
      %816 = vmatpush1.bf16.msra.mxu0 %v750
      %817 = vmatprep.subr.bf16.mxu0 0
      %818 = vmatpush1.bf16.msra.mxu0 %v749
      %819 = vmatprep.subr.bf16.mxu0 0
      %820 = vmatpush1.bf16.msra.mxu0 %v748
      %821 = vmatprep.subr.bf16.mxu0 0
      %822 = vmatpush1.bf16.msra.mxu0 %v747
      %823 = vmatprep.subr.bf16.mxu0 0
      %824 = vmatpush1.bf16.msra.mxu0 %v746
      %825 = vmatprep.subr.bf16.mxu0 0
      %826 = vmatpush1.bf16.msra.mxu0 %v745
      %827 = vmatprep.subr.bf16.mxu0 0
      %828 = vmatpush1.bf16.msra.mxu0 %v744
      %829 = vmatprep.subr.bf16.mxu0 0
      %830 = vmatpush1.bf16.msra.mxu0 %v743
      %831 = vmatprep.subr.bf16.mxu0 0
      %832 = vmatpush2.bf16.msra.mxu0 0
      %833 = vmatprep.subr.bf16.mxu0 0
      %834 = vmatpush2.bf16.msra.mxu0 0
      %835 = vmatprep.subr.bf16.mxu0 0
      %836 = vmatpush2.bf16.msra.mxu0 0
      %837 = vmatprep.subr.bf16.mxu0 0
      %838 = vmatpush2.bf16.msra.mxu0 0
      %839 = vmatprep.subr.bf16.mxu0 0
      %840 = vmatpush2.bf16.msra.mxu0 0
      %841 = vmatprep.subr.bf16.mxu0 0
      %842 = vmatpush2.bf16.msra.mxu0 0
      %843 = vmatprep.subr.bf16.mxu0 0
      %844 = vmatpush2.bf16.msra.mxu0 0
      %845 = vmatprep.subr.bf16.mxu0 0
      %846 = vmatpush2.bf16.msra.mxu0 0
      %847 = vmatprep.mubr.bf16.mxu0 0
      %848 = vmatmul.mubr.bf16.gmra.mxu0 %v627
      %v849 = vpop.f32.mrf.mxu0
      %v850 = vadd.f32 %v810, %v849
      %v851 = vpop.f32.mrf.mxu0
      %v852 = vpop.f32.mrf.mxu0
      %v853 = vpop.f32.mrf.mxu0
      %854 = vdwg.mxu0
      %v857 = vcombine.low %v501, %v502
      %v859 = vunpack.c.l.s4 1966171168
      %v860 = vunpack.c.0.s8 %v859
      %v861 = vlaneseq
      %v862 = vshrl.u32 %v861, 7
      %v863 = vsub.s32 %v860, %v862
      %v864 = vrot.slane %v857, %v863
      %v865 = vcombine.high %v864, %v864
      %v867 = vunpack.c.l.s4 1966171168
      %v868 = vunpack.c.0.s8 %v867
      %v869 = vlaneseq
      %v870 = vshrl.u32 %v869, 7
      %v871 = vsub.s32 %v868, %v870
      %v872 = vrot.slane %v864, %v871
      %v874 = vunpack.c.l.s4 1966171168
      %v875 = vunpack.c.0.s8 %v874
      %v876 = vlaneseq
      %v877 = vshrl.u32 %v876, 7
      %v878 = vsub.s32 %v875, %v877
      %v879 = vrot.slane %v865, %v878
      %v880 = vcombine.high %v872, %v872
      %v932 = vunpack.c.l.b16 %v503
      %v933 = vunpack.c.l.b16 %v504
      %v934 = vunpack.c.l.b16 %v505
      %v935 = vunpack.c.l.b16 %v506
      %v936 = vunpack.c.l.b16 %v507
      %v937 = vunpack.c.l.b16 %v508
      %v938 = vunpack.c.l.b16 %v509
      %v939 = vunpack.c.l.b16 %v510
      %v940 = vunpack.c.l.b16 %v511
      %v941 = vunpack.c.l.b16 %v512
      %v942 = vunpack.c.l.b16 %v513
      %v943 = vunpack.c.l.b16 %v514
      %v944 = vunpack.c.l.b16 %v515
      %v945 = vunpack.c.l.b16 %v516
      %v946 = vunpack.c.l.b16 %v517
      %v947 = vunpack.c.l.b16 %v518
      %v948 = vunpack.c.l.b16 %v519
      %v949 = vunpack.c.l.b16 %v520
      %v950 = vunpack.c.l.b16 %v521
      %v951 = vunpack.c.l.b16 %v522
      %v952 = vunpack.c.l.b16 %v523
      %v953 = vunpack.c.l.b16 %v524
      %v954 = vunpack.c.l.b16 %v525
      %v955 = vunpack.c.l.b16 %v526
      %v956 = vunpack.c.l.b16 %v527
      %v957 = vunpack.c.l.b16 %v528
      %v958 = vunpack.c.l.b16 %v529
      %v959 = vunpack.c.l.b16 %v530
      %v960 = vunpack.c.l.b16 %v531
      %v961 = vunpack.c.l.b16 %v532
      %v962 = vunpack.c.l.b16 %v533
      %v963 = vunpack.c.l.b16 %v534
      %v964 = vunpack.c.l.b16 %v535
      %v965 = vunpack.c.l.b16 %v536
      %v966 = vunpack.c.l.b16 %v537
      %v967 = vunpack.c.l.b16 %v538
      %v968 = vunpack.c.l.b16 %v539
      %v969 = vunpack.c.l.b16 %v540
      %v970 = vunpack.c.l.b16 %v541
      %v971 = vunpack.c.l.b16 %v542
      %v972 = vunpack.c.l.b16 %v543
      %v973 = vunpack.c.l.b16 %v544
      %v974 = vunpack.c.l.b16 %v545
      %v975 = vunpack.c.l.b16 %v546
      %v976 = vunpack.c.l.b16 %v547
      %v977 = vunpack.c.l.b16 %v548
      %v978 = vunpack.c.l.b16 %v549
      %v979 = vunpack.c.l.b16 %v550
      %v980 = vpack.c.b16 %v933, %v932
      %v981 = vpack.c.b16 %v935, %v934
      %v982 = vpack.c.b16 %v937, %v936
      %v983 = vpack.c.b16 %v939, %v938
      %v984 = vpack.c.b16 %v941, %v940
      %v985 = vpack.c.b16 %v943, %v942
      %v986 = vpack.c.b16 %v945, %v944
      %v987 = vpack.c.b16 %v947, %v946
      %v988 = vpack.c.b16 %v949, %v948
      %v989 = vpack.c.b16 %v951, %v950
      %v990 = vpack.c.b16 %v953, %v952
      %v991 = vpack.c.b16 %v955, %v954
      %v992 = vpack.c.b16 %v957, %v956
      %v993 = vpack.c.b16 %v959, %v958
      %v994 = vpack.c.b16 %v961, %v960
      %v995 = vpack.c.b16 %v963, %v962
      %v996 = vpack.c.b16 %v965, %v964
      %v997 = vpack.c.b16 %v967, %v966
      %v998 = vpack.c.b16 %v969, %v968
      %v999 = vpack.c.b16 %v971, %v970
      %v1000 = vpack.c.b16 %v973, %v972
      %v1001 = vpack.c.b16 %v975, %v974
      %v1002 = vpack.c.b16 %v977, %v976
      %v1003 = vpack.c.b16 %v979, %v978
      %1028 = vmatprep.subr.bf16.mxu0 0
      %1029 = vmatpush1.bf16.msra.mxu0 %v987
      %1030 = vmatprep.subr.bf16.mxu0 0
      %1031 = vmatpush1.bf16.msra.mxu0 %v986
      %1032 = vmatprep.subr.bf16.mxu0 0
      %1033 = vmatpush1.bf16.msra.mxu0 %v985
      %1034 = vmatprep.subr.bf16.mxu0 0
      %1035 = vmatpush1.bf16.msra.mxu0 %v984
      %1036 = vmatprep.subr.bf16.mxu0 0
      %1037 = vmatpush1.bf16.msra.mxu0 %v983
      %1038 = vmatprep.subr.bf16.mxu0 0
      %1039 = vmatpush1.bf16.msra.mxu0 %v982
      %1040 = vmatprep.subr.bf16.mxu0 0
      %1041 = vmatpush1.bf16.msra.mxu0 %v981
      %1042 = vmatprep.subr.bf16.mxu0 0
      %1043 = vmatpush1.bf16.msra.mxu0 %v980
      %1044 = vmatprep.subr.bf16.mxu0 0
      %1045 = vmatpush2.bf16.msra.mxu0 %v995
      %1046 = vmatprep.subr.bf16.mxu0 0
      %1047 = vmatpush2.bf16.msra.mxu0 %v994
      %1048 = vmatprep.subr.bf16.mxu0 0
      %1049 = vmatpush2.bf16.msra.mxu0 %v993
      %1050 = vmatprep.subr.bf16.mxu0 0
      %1051 = vmatpush2.bf16.msra.mxu0 %v992
      %1052 = vmatprep.subr.bf16.mxu0 0
      %1053 = vmatpush2.bf16.msra.mxu0 %v991
      %1054 = vmatprep.subr.bf16.mxu0 0
      %1055 = vmatpush2.bf16.msra.mxu0 %v990
      %1056 = vmatprep.subr.bf16.mxu0 0
      %1057 = vmatpush2.bf16.msra.mxu0 %v989
      %1058 = vmatprep.subr.bf16.mxu0 0
      %1059 = vmatpush2.bf16.msra.mxu0 %v988
      %1060 = vmatprep.mubr.bf16.mxu0 %v879
      %1061 = vmatmul.mubr.bf16.gmra.mxu0 %v872
      %v1062 = vpop.f32.mrf.mxu0
      %v1063 = vadd.f32 %v850, %v1062
      %v1064 = vpop.f32.mrf.mxu0
      %v1065 = vpop.f32.mrf.mxu0
      %v1066 = vpop.f32.mrf.mxu0
      %1067 = vdwg.mxu0
      %1068 = vmatprep.subr.bf16.mxu0 0
      %1069 = vmatpush1.bf16.msra.mxu0 %v1003
      %1070 = vmatprep.subr.bf16.mxu0 0
      %1071 = vmatpush1.bf16.msra.mxu0 %v1002
      %1072 = vmatprep.subr.bf16.mxu0 0
      %1073 = vmatpush1.bf16.msra.mxu0 %v1001
      %1074 = vmatprep.subr.bf16.mxu0 0
      %1075 = vmatpush1.bf16.msra.mxu0 %v1000
      %1076 = vmatprep.subr.bf16.mxu0 0
      %1077 = vmatpush1.bf16.msra.mxu0 %v999
      %1078 = vmatprep.subr.bf16.mxu0 0
      %1079 = vmatpush1.bf16.msra.mxu0 %v998
      %1080 = vmatprep.subr.bf16.mxu0 0
      %1081 = vmatpush1.bf16.msra.mxu0 %v997
      %1082 = vmatprep.subr.bf16.mxu0 0
      %1083 = vmatpush1.bf16.msra.mxu0 %v996
      %1084 = vmatprep.subr.bf16.mxu0 0
      %1085 = vmatpush2.bf16.msra.mxu0 0
      %1086 = vmatprep.subr.bf16.mxu0 0
      %1087 = vmatpush2.bf16.msra.mxu0 0
      %1088 = vmatprep.subr.bf16.mxu0 0
      %1089 = vmatpush2.bf16.msra.mxu0 0
      %1090 = vmatprep.subr.bf16.mxu0 0
      %1091 = vmatpush2.bf16.msra.mxu0 0
      %1092 = vmatprep.subr.bf16.mxu0 0
      %1093 = vmatpush2.bf16.msra.mxu0 0
      %1094 = vmatprep.subr.bf16.mxu0 0
      %1095 = vmatpush2.bf16.msra.mxu0 0
      %1096 = vmatprep.subr.bf16.mxu0 0
      %1097 = vmatpush2.bf16.msra.mxu0 0
      %1098 = vmatprep.subr.bf16.mxu0 0
      %1099 = vmatpush2.bf16.msra.mxu0 0
      %1100 = vmatprep.mubr.bf16.mxu0 0
      %1101 = vmatmul.mubr.bf16.gmra.mxu0 %v880
      %v1102 = vpop.f32.mrf.mxu0
      %v1103 = vadd.f32 %v1063, %v1102
      %v1104 = vpop.f32.mrf.mxu0
      %v1105 = vpop.f32.mrf.mxu0
      %v1106 = vpop.f32.mrf.mxu0
      %1107 = vdwg.mxu0
      %s1108 = scalar_lea.vmem [#allocation2], 6
      %v1109 = vld [vmem:[%s1108] sm:$0x7]
      %v1110 = vld [vmem:[%s1108 + $0x3] sm:$0x7]
      %s1111 = scalar_lea.vmem %s3, 384
      %v1112 = vld [vmem:[%s1111] sm:$0xf]
      %v1113 = vld [vmem:[%s1111 + $0x4] sm:$0xf]
      %v1114 = vld [vmem:[%s1111 + $0x8] sm:$0xf]
      %v1115 = vld [vmem:[%s1111 + $0xc] sm:$0xf]
      %v1116 = vld [vmem:[%s1111 + $0x10] sm:$0xf]
      %v1117 = vld [vmem:[%s1111 + $0x14] sm:$0xf]
      %v1118 = vld [vmem:[%s1111 + $0x18] sm:$0xf]
      %v1119 = vld [vmem:[%s1111 + $0x1c] sm:$0xf]
      %v1120 = vld [vmem:[%s1111 + $0x20] sm:$0xf]
      %v1121 = vld [vmem:[%s1111 + $0x24] sm:$0xf]
      %v1122 = vld [vmem:[%s1111 + $0x28] sm:$0xf]
      %v1123 = vld [vmem:[%s1111 + $0x2c] sm:$0xf]
      %v1124 = vld [vmem:[%s1111 + $0x30] sm:$0xf]
      %v1125 = vld [vmem:[%s1111 + $0x34] sm:$0xf]
      %v1126 = vld [vmem:[%s1111 + $0x38] sm:$0xf]
      %v1127 = vld [vmem:[%s1111 + $0x3c] sm:$0xf]
      %v1128 = vld [vmem:[%s1111 + $0x40] sm:$0xf]
      %v1129 = vld [vmem:[%s1111 + $0x44] sm:$0xf]
      %v1130 = vld [vmem:[%s1111 + $0x48] sm:$0xf]
      %v1131 = vld [vmem:[%s1111 + $0x4c] sm:$0xf]
      %v1132 = vld [vmem:[%s1111 + $0x50] sm:$0xf]
      %v1133 = vld [vmem:[%s1111 + $0x54] sm:$0xf]
      %v1134 = vld [vmem:[%s1111 + $0x58] sm:$0xf]
      %v1135 = vld [vmem:[%s1111 + $0x5c] sm:$0xf]
      %v1136 = vld [vmem:[%s1111 + $0x60] sm:$0xf]
      %v1137 = vld [vmem:[%s1111 + $0x64] sm:$0xf]
      %v1138 = vld [vmem:[%s1111 + $0x68] sm:$0xf]
      %v1139 = vld [vmem:[%s1111 + $0x6c] sm:$0xf]
      %v1140 = vld [vmem:[%s1111 + $0x70] sm:$0xf]
      %v1141 = vld [vmem:[%s1111 + $0x74] sm:$0xf]
      %v1142 = vld [vmem:[%s1111 + $0x78] sm:$0xf]
      %v1143 = vld [vmem:[%s1111 + $0x7c] sm:$0xf]
      %v1144 = vld [vmem:[%s1111 + $0x80] sm:$0xf]
      %v1145 = vld [vmem:[%s1111 + $0x84] sm:$0xf]
      %v1146 = vld [vmem:[%s1111 + $0x88] sm:$0xf]
      %v1147 = vld [vmem:[%s1111 + $0x8c] sm:$0xf]
      %v1148 = vld [vmem:[%s1111 + $0x90] sm:$0xf]
      %v1149 = vld [vmem:[%s1111 + $0x94] sm:$0xf]
      %v1150 = vld [vmem:[%s1111 + $0x98] sm:$0xf]
      %v1151 = vld [vmem:[%s1111 + $0x9c] sm:$0xf]
      %v1152 = vld [vmem:[%s1111 + $0xa0] sm:$0xf]
      %v1153 = vld [vmem:[%s1111 + $0xa4] sm:$0xf]
      %v1154 = vld [vmem:[%s1111 + $0xa8] sm:$0xf]
      %v1155 = vld [vmem:[%s1111 + $0xac] sm:$0xf]
      %v1156 = vld [vmem:[%s1111 + $0xb0] sm:$0xf]
      %v1157 = vld [vmem:[%s1111 + $0xb4] sm:$0xf]
      %v1158 = vld [vmem:[%s1111 + $0xb8] sm:$0xf]
      %v1159 = vld [vmem:[%s1111 + $0xbc] sm:$0xf]
      %v1162 = vcombine.low %v1109, %v1110
      %v1164 = vunpack.c.l.s4 1966171168
      %v1165 = vunpack.c.0.s8 %v1164
      %v1166 = vlaneseq
      %v1167 = vshrl.u32 %v1166, 7
      %v1168 = vsub.s32 %v1165, %v1167
      %v1169 = vrot.slane %v1162, %v1168
      %v1170 = vcombine.high %v1169, %v1169
      %v1172 = vunpack.c.l.s4 1966171168
      %v1173 = vunpack.c.0.s8 %v1172
      %v1174 = vlaneseq
      %v1175 = vshrl.u32 %v1174, 7
      %v1176 = vsub.s32 %v1173, %v1175
      %v1177 = vrot.slane %v1169, %v1176
      %v1179 = vunpack.c.l.s4 1966171168
      %v1180 = vunpack.c.0.s8 %v1179
      %v1181 = vlaneseq
      %v1182 = vshrl.u32 %v1181, 7
      %v1183 = vsub.s32 %v1180, %v1182
      %v1184 = vrot.slane %v1170, %v1183
      %v1185 = vcombine.high %v1177, %v1177
      %v1237 = vunpack.c.l.b16 %v1112
      %v1238 = vunpack.c.l.b16 %v1113
      %v1239 = vunpack.c.l.b16 %v1114
      %v1240 = vunpack.c.l.b16 %v1115
      %v1241 = vunpack.c.l.b16 %v1116
      %v1242 = vunpack.c.l.b16 %v1117
      %v1243 = vunpack.c.l.b16 %v1118
      %v1244 = vunpack.c.l.b16 %v1119
      %v1245 = vunpack.c.l.b16 %v1120
      %v1246 = vunpack.c.l.b16 %v1121
      %v1247 = vunpack.c.l.b16 %v1122
      %v1248 = vunpack.c.l.b16 %v1123
      %v1249 = vunpack.c.l.b16 %v1124
      %v1250 = vunpack.c.l.b16 %v1125
      %v1251 = vunpack.c.l.b16 %v1126
      %v1252 = vunpack.c.l.b16 %v1127
      %v1253 = vunpack.c.l.b16 %v1128
      %v1254 = vunpack.c.l.b16 %v1129
      %v1255 = vunpack.c.l.b16 %v1130
      %v1256 = vunpack.c.l.b16 %v1131
      %v1257 = vunpack.c.l.b16 %v1132
      %v1258 = vunpack.c.l.b16 %v1133
      %v1259 = vunpack.c.l.b16 %v1134
      %v1260 = vunpack.c.l.b16 %v1135
      %v1261 = vunpack.c.l.b16 %v1136
      %v1262 = vunpack.c.l.b16 %v1137
      %v1263 = vunpack.c.l.b16 %v1138
      %v1264 = vunpack.c.l.b16 %v1139
      %v1265 = vunpack.c.l.b16 %v1140
      %v1266 = vunpack.c.l.b16 %v1141
      %v1267 = vunpack.c.l.b16 %v1142
      %v1268 = vunpack.c.l.b16 %v1143
      %v1269 = vunpack.c.l.b16 %v1144
      %v1270 = vunpack.c.l.b16 %v1145
      %v1271 = vunpack.c.l.b16 %v1146
      %v1272 = vunpack.c.l.b16 %v1147
      %v1273 = vunpack.c.l.b16 %v1148
      %v1274 = vunpack.c.l.b16 %v1149
      %v1275 = vunpack.c.l.b16 %v1150
      %v1276 = vunpack.c.l.b16 %v1151
      %v1277 = vunpack.c.l.b16 %v1152
      %v1278 = vunpack.c.l.b16 %v1153
      %v1279 = vunpack.c.l.b16 %v1154
      %v1280 = vunpack.c.l.b16 %v1155
      %v1281 = vunpack.c.l.b16 %v1156
      %v1282 = vunpack.c.l.b16 %v1157
      %v1283 = vunpack.c.l.b16 %v1158
      %v1284 = vunpack.c.l.b16 %v1159
      %v1285 = vpack.c.b16 %v1238, %v1237
      %v1286 = vpack.c.b16 %v1240, %v1239
      %v1287 = vpack.c.b16 %v1242, %v1241
      %v1288 = vpack.c.b16 %v1244, %v1243
      %v1289 = vpack.c.b16 %v1246, %v1245
      %v1290 = vpack.c.b16 %v1248, %v1247
      %v1291 = vpack.c.b16 %v1250, %v1249
      %v1292 = vpack.c.b16 %v1252, %v1251
      %v1293 = vpack.c.b16 %v1254, %v1253
      %v1294 = vpack.c.b16 %v1256, %v1255
      %v1295 = vpack.c.b16 %v1258, %v1257
      %v1296 = vpack.c.b16 %v1260, %v1259
      %v1297 = vpack.c.b16 %v1262, %v1261
      %v1298 = vpack.c.b16 %v1264, %v1263
      %v1299 = vpack.c.b16 %v1266, %v1265
      %v1300 = vpack.c.b16 %v1268, %v1267
      %v1301 = vpack.c.b16 %v1270, %v1269
      %v1302 = vpack.c.b16 %v1272, %v1271
      %v1303 = vpack.c.b16 %v1274, %v1273
      %v1304 = vpack.c.b16 %v1276, %v1275
      %v1305 = vpack.c.b16 %v1278, %v1277
      %v1306 = vpack.c.b16 %v1280, %v1279
      %v1307 = vpack.c.b16 %v1282, %v1281
      %v1308 = vpack.c.b16 %v1284, %v1283
      %1333 = vmatprep.subr.bf16.mxu0 0
      %1334 = vmatpush1.bf16.msra.mxu0 %v1292
      %1335 = vmatprep.subr.bf16.mxu0 0
      %1336 = vmatpush1.bf16.msra.mxu0 %v1291
      %1337 = vmatprep.subr.bf16.mxu0 0
      %1338 = vmatpush1.bf16.msra.mxu0 %v1290
      %1339 = vmatprep.subr.bf16.mxu0 0
      %1340 = vmatpush1.bf16.msra.mxu0 %v1289
      %1341 = vmatprep.subr.bf16.mxu0 0
      %1342 = vmatpush1.bf16.msra.mxu0 %v1288
      %1343 = vmatprep.subr.bf16.mxu0 0
      %1344 = vmatpush1.bf16.msra.mxu0 %v1287
      %1345 = vmatprep.subr.bf16.mxu0 0
      %1346 = vmatpush1.bf16.msra.mxu0 %v1286
      %1347 = vmatprep.subr.bf16.mxu0 0
      %1348 = vmatpush1.bf16.msra.mxu0 %v1285
      %1349 = vmatprep.subr.bf16.mxu0 0
      %1350 = vmatpush2.bf16.msra.mxu0 %v1300
      %1351 = vmatprep.subr.bf16.mxu0 0
      %1352 = vmatpush2.bf16.msra.mxu0 %v1299
      %1353 = vmatprep.subr.bf16.mxu0 0
      %1354 = vmatpush2.bf16.msra.mxu0 %v1298
      %1355 = vmatprep.subr.bf16.mxu0 0
      %1356 = vmatpush2.bf16.msra.mxu0 %v1297
      %1357 = vmatprep.subr.bf16.mxu0 0
      %1358 = vmatpush2.bf16.msra.mxu0 %v1296
      %1359 = vmatprep.subr.bf16.mxu0 0
      %1360 = vmatpush2.bf16.msra.mxu0 %v1295
      %1361 = vmatprep.subr.bf16.mxu0 0
      %1362 = vmatpush2.bf16.msra.mxu0 %v1294
      %1363 = vmatprep.subr.bf16.mxu0 0
      %1364 = vmatpush2.bf16.msra.mxu0 %v1293
      %1365 = vmatprep.mubr.bf16.mxu0 %v1184
      %1366 = vmatmul.mubr.bf16.gmra.mxu0 %v1177
      %v1367 = vpop.f32.mrf.mxu0
      %v1368 = vadd.f32 0.0, %v1367
      %v1369 = vpop.f32.mrf.mxu0
      %v1370 = vpop.f32.mrf.mxu0
      %v1371 = vpop.f32.mrf.mxu0
      %1372 = vdwg.mxu0
      %1373 = vmatprep.subr.bf16.mxu0 0
      %1374 = vmatpush1.bf16.msra.mxu0 %v1308
      %1375 = vmatprep.subr.bf16.mxu0 0
      %1376 = vmatpush1.bf16.msra.mxu0 %v1307
      %1377 = vmatprep.subr.bf16.mxu0 0
      %1378 = vmatpush1.bf16.msra.mxu0 %v1306
      %1379 = vmatprep.subr.bf16.mxu0 0
      %1380 = vmatpush1.bf16.msra.mxu0 %v1305
      %1381 = vmatprep.subr.bf16.mxu0 0
      %1382 = vmatpush1.bf16.msra.mxu0 %v1304
      %1383 = vmatprep.subr.bf16.mxu0 0
      %1384 = vmatpush1.bf16.msra.mxu0 %v1303
      %1385 = vmatprep.subr.bf16.mxu0 0
      %1386 = vmatpush1.bf16.msra.mxu0 %v1302
      %1387 = vmatprep.subr.bf16.mxu0 0
      %1388 = vmatpush1.bf16.msra.mxu0 %v1301
      %1389 = vmatprep.subr.bf16.mxu0 0
      %1390 = vmatpush2.bf16.msra.mxu0 0
      %1391 = vmatprep.subr.bf16.mxu0 0
      %1392 = vmatpush2.bf16.msra.mxu0 0
      %1393 = vmatprep.subr.bf16.mxu0 0
      %1394 = vmatpush2.bf16.msra.mxu0 0
      %1395 = vmatprep.subr.bf16.mxu0 0
      %1396 = vmatpush2.bf16.msra.mxu0 0
      %1397 = vmatprep.subr.bf16.mxu0 0
      %1398 = vmatpush2.bf16.msra.mxu0 0
      %1399 = vmatprep.subr.bf16.mxu0 0
      %1400 = vmatpush2.bf16.msra.mxu0 0
      %1401 = vmatprep.subr.bf16.mxu0 0
      %1402 = vmatpush2.bf16.msra.mxu0 0
      %1403 = vmatprep.subr.bf16.mxu0 0
      %1404 = vmatpush2.bf16.msra.mxu0 0
      %1405 = vmatprep.mubr.bf16.mxu0 0
      %1406 = vmatmul.mubr.bf16.gmra.mxu0 %v1185
      %v1407 = vpop.f32.mrf.mxu0
      %v1408 = vadd.f32 %v1368, %v1407
      %v1409 = vpop.f32.mrf.mxu0
      %v1410 = vpop.f32.mrf.mxu0
      %v1411 = vpop.f32.mrf.mxu0
      %1412 = vdwg.mxu0
      %v1413 = vadd.f32 %v1103, %v1408
      %v1414 = vld [vmem:[%s4] sm:$0x1]
      %v1416 = vlaneseq
      %v1417 = vshrl.u32 %v1416, 7
      %v1418 = vsub.s32 0, %v1417
      %v1419 = vrot.slane %v1414, %v1418
      %v1421 = vmul.f32 %v1413, %v1419
      %v1422 = vld [vmem:[%s5] sm:$0x1]
      %v1424 = vlaneseq
      %v1425 = vshrl.u32 %v1424, 7
      %v1426 = vsub.s32 0, %v1425
      %v1427 = vrot.slane %v1422, %v1426
      %v1429 = vadd.f32 %v1421, %v1427
      %v1430 = vmax.f32 %v1429, 0.0
      %v1431 = vpack.c.bf16 %v1430, %v1430
      %1432 = vst [vmem:[%s394] sm:$0x3] %v1431
      %p1433 = scmp.lt.s32.totalorder %s21, 1
      %s1434 = scalar_select %p1433, %s21, 1
      %p1435 = scmp.lt.s32.totalorder %s22, 0
      %s1436 = scalar_select %p1435, %s22, 0
      %s1437 = sadd.s32 %s1436, %s1434
      %s1438 = smul.addr %s1437, 2
      %s1439 = scalar_lea.vmem %s6, %s1438
      // Predicated region
      $region49: #{detail_branch.14} parent=43 // pred_check
        %p1440 = pneg %p212
      $region50: #{detail_branch.14} parent=43 // pred_check_branch
        %1442 = sbr.rel (%p1440) target = $region52
      $region51: #{detail_branch.14} parent=43 // pred_region
        _
      $region52: #{detail_branch.14} parent=43 // pred_fallthru
        _
    $region44: #{detail_branch.14} parent=5 // pred_fallthru
      _
    %p1443 = scmp.le.s32.totalorder 2, %s12
    // Predicated region
    $region53: #{detail_branch.14} parent=5 // pred_check
      %p1444 = pneg %p1443
    $region54: #{detail_branch.14} parent=5 // pred_check_branch
      %1446 = sbr.rel (%p1444) target = $region56
    $region55: #{detail_branch.14} parent=5 // pred_region
      %s1447 = ssub.s32 %s12, 2
      // Predicated region
      $region57: #{detail_branch.14} parent=55 // pred_check
        %p1448 = pneg %p218
      $region58: #{detail_branch.14} parent=55 // pred_check_branch
        %1450 = sbr.rel (%p1448) target = $region60
      $region59: #{detail_branch.14} parent=55 // pred_region
        %p1451 = scmp.lt.s32.totalorder %s23, 1
        %s1452 = scalar_select %p1451, %s23, 1
        %p1453 = scmp.lt.s32.totalorder %s24, 0
        %s1454 = scalar_select %p1453, %s24, 0
        %s1455 = sadd.s32 %s1454, %s1452
        %s1456 = smul.addr %s1455, 2
        %s1457 = scalar_lea.vmem %s6, %s1456
      $region60: #{detail_branch.14} parent=55 // pred_fallthru
        _
    $region56: #{detail_branch.14} parent=5 // pred_fallthru
      _
  $region6: #{detail_branch.14} parent=0 // loop_footer
    %s16 = sadd.s32 1, %s12
  $region7: #{detail_branch.14} parent=0 // loop_footer_branch
    %11 = sbr.rel target = $region3
  $region8: #{detail_branch.14} parent=0 // loop_exit
    _

// kernel: detail_branch.15
$region0: #{detail_branch.15}
  #allocation0 [shape = 'u32[]', space=smem, size = 0x4, offset = 0x4, fixed_abs, tag = 'smem constant byte address 0x4 - core index']
  #allocation1 [shape = 'u32[144,128]{1,0:T(1,128)}', space=vmem, size = 0x12000, scoped, tag = 'internal scratch']
  #allocation2 [shape = 'bf16[4,2,384]{2,1,0:T(2,128)(2,1)}', space=vmem, size = 0x1800, scoped, tag = 'scratch operand']
  %s0 = inlined_call_operand.vmem [shape: bf16[2,2,2,128], index: 0, kind: input, shape index: {}, may-alias: {0,1,2}]
  %s1 = inlined_call_operand.vmem [shape: bf16[2,2,2,128], index: 1, kind: input, shape index: {}, may-alias: {0,1,2}]
  %s2 = inlined_call_operand.vmem [shape: bf16[2,2,2,128], index: 2, kind: input, shape index: {}, may-alias: {0,1,2}]
  %s3 = inlined_call_operand.vmem [shape: bf16[3,384,128], index: 3, kind: input, shape index: {}]
  %s4 = inlined_call_operand.vmem [shape: f32[1,128], index: 4, kind: input, shape index: {}]
  %s5 = inlined_call_operand.vmem [shape: f32[1,128], index: 5, kind: input, shape index: {}]
  %s6 = inlined_call_operand.hbm [shape: bf16[2,4,128], index: 6, kind: output, shape index: {}]
  %s7 = sld [smem:[#allocation0]]
  $region61: #{detail_branch.15} parent=0
    _
  %s9 = ssub.s32 1, %s7
  %s10 = scalar_select 0, %s9, %s7
  $region1: #{detail_branch.15} parent=0
    #allocation3 [shape = 'u8[2048]{0}', space=vmem, size = 0x800, scoped, tag = 'output window, operand 0']
    #allocation4 [shape = 's32[2]{0}', space=sflag, size = 0x8, scoped, tag = 'scoped memory for detail_branch.15']
    %11 = vsyncpa [#allocation4], 0
    %s12 = scalar_lea.sflag [#allocation4], 1
    %13 = vsyncpa %s12, 0
    loop: start=0, step=1, limit=4
    $region2: #{detail_branch.15} parent=1 // loop_pre_header
      _
    $region3: #{detail_branch.15} parent=1 // loop_header
      %s15 = sphi 0, %s19
      %p16 = scmp.ge.s32.totalorder %s15, 4
      %s22 = sphi 0, %s34
      %s23 = sphi 0, %s30
      %s24 = sphi 0, %s22
      %s25 = sphi 0, %s23
      %s26 = sphi 0, %s24
      %s27 = sphi 0, %s25
      %s39 = sphi 0, %s41
      %s42 = sphi 0, %s39
      %s43 = sphi 0, %s42
      %s59 = sphi 0, %s43
      %s75 = sphi 0, %s77
      %s78 = sphi 0, %s75
      %s79 = sphi 0, %s78
      %s95 = sphi 0, %s79
      %s111 = sphi 0, %s113
      %s114 = sphi 0, %s111
      %s115 = sphi 0, %s114
      %s131 = sphi 0, %s115
      %s135 = sphi 0, %s135
      %s137 = sphi 0, %s135
      %s138 = sphi 0, %s137
      %s152 = sphi 0, %s138
      %s156 = sphi 0, %s156
      %s158 = sphi 0, %s156
      %s159 = sphi 0, %s158
      %s173 = sphi 0, %s159
      %s177 = sphi 0, %s177
      %s179 = sphi 0, %s177
      %s180 = sphi 0, %s179
      %s194 = sphi 0, %s180
      %s202 = sphi 0, %s204
      %s205 = sphi 0, %s202
      %s206 = sphi 0, %s205
      %s222 = sphi 0, %s206
    $region4: #{detail_branch.15} parent=1 // loop_header_branch
      %18 = sbr.rel (%p16) target = $region8
    $region5: #{detail_branch.15} parent=1 // loop_body
      %s20 = ssub.s32 %s15, 1
      %s21 = ssub.s32 %s15, 2
      %s28 = sadd.s32 1, %s23
      %p29 = scmp.ge.s32.totalorder %s28, 1
      %s30 = scalar_select %p29, 0, %s28
      %s31 = sadd.s32 1, %s22
      %s32 = scalar_select %p29, %s31, %s22
      %p33 = scmp.ge.s32.totalorder %s32, 2
      %s34 = scalar_select %p33, 0, %s32
      %s35 = ssub.s32 %s22, %s34
      %s36 = ssub.s32 %s23, %s30
      %s37 = sor.u32 %s35, %s36
      %p38 = scmp.eq.s32.totalorder %s37, 0
      %s40 = sadd.s32 %s39, 1
      %s41 = scalar_select %p38, %s39, %s40
      %p44 = pneg %p38
      %p45 = scmp.eq.s32.totalorder %s15, 1
      %p46 = por %p44, %p45
      %p47 = scmp.ne.s32.totalorder %s39, %s42
      %p48 = scmp.eq.s32.totalorder %s15, 0
      %p49 = por %p47, %p48
      %p50 = scmp.ne.s32.totalorder %s39, %s42
      %p51 = scmp.eq.s32.totalorder %s20, 1
      %p52 = por %p50, %p51
      %p53 = scmp.ne.s32.totalorder %s42, %s43
      %p54 = scmp.eq.s32.totalorder %s20, 0
      %p55 = por %p53, %p54
      %p56 = scmp.ne.s32.totalorder %s42, %s43
      %p57 = scmp.eq.s32.totalorder %s21, 1
      %p58 = por %p56, %p57
      %p60 = scmp.ne.s32.totalorder %s43, %s59
      %p61 = scmp.eq.s32.totalorder %s21, 0
      %p62 = por %p60, %p61
      %s63 = smul.u32 %s23, 2
      %s64 = ssub.s32 %s63, 1
      %p65 = scmp.gt.s32.totalorder %s64, 0
      %s66 = scalar_select %p65, %s64, 0
      %s67 = smul.u32 %s30, 2
      %s68 = ssub.s32 %s67, 1
      %p69 = scmp.gt.s32.totalorder %s68, 0
      %s70 = scalar_select %p69, %s68, 0
      %s71 = ssub.s32 %s22, %s34
      %s72 = ssub.s32 %s66, %s70
      %s73 = sor.u32 %s71, %s72
      %p74 = scmp.eq.s32.totalorder %s73, 0
      %s76 = sadd.s32 %s75, 1
      %s77 = scalar_select %p74, %s75, %s76
      %p80 = pneg %p74
      %p81 = scmp.eq.s32.totalorder %s15, 1
      %p82 = por %p80, %p81
      %p83 = scmp.ne.s32.totalorder %s75, %s78
      %p84 = scmp.eq.s32.totalorder %s15, 0
      %p85 = por %p83, %p84
      %p86 = scmp.ne.s32.totalorder %s75, %s78
      %p87 = scmp.eq.s32.totalorder %s20, 1
      %p88 = por %p86, %p87
      %p89 = scmp.ne.s32.totalorder %s78, %s79
      %p90 = scmp.eq.s32.totalorder %s20, 0
      %p91 = por %p89, %p90
      %p92 = scmp.ne.s32.totalorder %s78, %s79
      %p93 = scmp.eq.s32.totalorder %s21, 1
      %p94 = por %p92, %p93
      %p96 = scmp.ne.s32.totalorder %s79, %s95
      %p97 = scmp.eq.s32.totalorder %s21, 0
      %p98 = por %p96, %p97
      %s99 = sadd.s32 %s23, 1
      %s100 = smul.u32 %s99, 2
      %p101 = scmp.lt.s32.totalorder %s100, 1
      %s102 = scalar_select %p101, %s100, 1
      %s103 = sadd.s32 %s30, 1
      %s104 = smul.u32 %s103, 2
      %p105 = scmp.lt.s32.totalorder %s104, 1
      %s106 = scalar_select %p105, %s104, 1
      %s107 = ssub.s32 %s22, %s34
      %s108 = ssub.s32 %s102, %s106
      %s109 = sor.u32 %s107, %s108
      %p110 = scmp.eq.s32.totalorder %s109, 0
      %s112 = sadd.s32 %s111, 1
      %s113 = scalar_select %p110, %s111, %s112
      %p116 = pneg %p110
      %p117 = scmp.eq.s32.totalorder %s15, 1
      %p118 = por %p116, %p117
      %p119 = scmp.ne.s32.totalorder %s111, %s114
      %p120 = scmp.eq.s32.totalorder %s15, 0
      %p121 = por %p119, %p120
      %p122 = scmp.ne.s32.totalorder %s111, %s114
      %p123 = scmp.eq.s32.totalorder %s20, 1
      %p124 = por %p122, %p123
      %p125 = scmp.ne.s32.totalorder %s114, %s115
      %p126 = scmp.eq.s32.totalorder %s20, 0
      %p127 = por %p125, %p126
      %p128 = scmp.ne.s32.totalorder %s114, %s115
      %p129 = scmp.eq.s32.totalorder %s21, 1
      %p130 = por %p128, %p129
      %p132 = scmp.ne.s32.totalorder %s115, %s131
      %p133 = scmp.eq.s32.totalorder %s21, 0
      %p134 = por %p132, %p133
      %s136 = sadd.s32 %s135, 1
      %p139 = scmp.eq.s32.totalorder %s15, 1
      %p140 = scmp.ne.s32.totalorder %s135, %s137
      %p141 = scmp.eq.s32.totalorder %s15, 0
      %p142 = por %p140, %p141
      %p143 = scmp.ne.s32.totalorder %s135, %s137
      %p144 = scmp.eq.s32.totalorder %s20, 1
      %p145 = por %p143, %p144
      %p146 = scmp.ne.s32.totalorder %s137, %s138
      %p147 = scmp.eq.s32.totalorder %s20, 0
      %p148 = por %p146, %p147
      %p149 = scmp.ne.s32.totalorder %s137, %s138
      %p150 = scmp.eq.s32.totalorder %s21, 1
      %p151 = por %p149, %p150
      %p153 = scmp.ne.s32.totalorder %s138, %s152
      %p154 = scmp.eq.s32.totalorder %s21, 0
      %p155 = por %p153, %p154
      %s157 = sadd.s32 %s156, 1
      %p160 = scmp.eq.s32.totalorder %s15, 1
      %p161 = scmp.ne.s32.totalorder %s156, %s158
      %p162 = scmp.eq.s32.totalorder %s15, 0
      %p163 = por %p161, %p162
      %p164 = scmp.ne.s32.totalorder %s156, %s158
      %p165 = scmp.eq.s32.totalorder %s20, 1
      %p166 = por %p164, %p165
      %p167 = scmp.ne.s32.totalorder %s158, %s159
      %p168 = scmp.eq.s32.totalorder %s20, 0
      %p169 = por %p167, %p168
      %p170 = scmp.ne.s32.totalorder %s158, %s159
      %p171 = scmp.eq.s32.totalorder %s21, 1
      %p172 = por %p170, %p171
      %p174 = scmp.ne.s32.totalorder %s159, %s173
      %p175 = scmp.eq.s32.totalorder %s21, 0
      %p176 = por %p174, %p175
      %s178 = sadd.s32 %s177, 1
      %p181 = scmp.eq.s32.totalorder %s15, 1
      %p182 = scmp.ne.s32.totalorder %s177, %s179
      %p183 = scmp.eq.s32.totalorder %s15, 0
      %p184 = por %p182, %p183
      %p185 = scmp.ne.s32.totalorder %s177, %s179
      %p186 = scmp.eq.s32.totalorder %s20, 1
      %p187 = por %p185, %p186
      %p188 = scmp.ne.s32.totalorder %s179, %s180
      %p189 = scmp.eq.s32.totalorder %s20, 0
      %p190 = por %p188, %p189
      %p191 = scmp.ne.s32.totalorder %s179, %s180
      %p192 = scmp.eq.s32.totalorder %s21, 1
      %p193 = por %p191, %p192
      %p195 = scmp.ne.s32.totalorder %s180, %s194
      %p196 = scmp.eq.s32.totalorder %s21, 0
      %p197 = por %p195, %p196
      %s198 = ssub.s32 %s22, %s34
      %s199 = ssub.s32 %s23, %s30
      %s200 = sor.u32 %s198, %s199
      %p201 = scmp.eq.s32.totalorder %s200, 0
      %s203 = sadd.s32 %s202, 1
      %s204 = scalar_select %p201, %s202, %s203
      %p207 = pneg %p201
      %p208 = scmp.eq.s32.totalorder %s15, 1
      %p209 = por %p207, %p208
      %p210 = scmp.ne.s32.totalorder %s202, %s205
      %p211 = scmp.eq.s32.totalorder %s15, 0
      %p212 = por %p210, %p211
      %p213 = scmp.ne.s32.totalorder %s202, %s205
      %p214 = scmp.eq.s32.totalorder %s20, 1
      %p215 = por %p213, %p214
      %p216 = scmp.ne.s32.totalorder %s205, %s206
      %p217 = scmp.eq.s32.totalorder %s20, 0
      %p218 = por %p216, %p217
      %p219 = scmp.ne.s32.totalorder %s205, %s206
      %p220 = scmp.eq.s32.totalorder %s21, 1
      %p221 = por %p219, %p220
      %p223 = scmp.ne.s32.totalorder %s206, %s222
      %p224 = scmp.eq.s32.totalorder %s21, 0
      %p225 = por %p223, %p224
      %p226 = scmp.le.s32.totalorder 1, %s15
      %p227 = scmp.lt.s32.totalorder %s15, 3
      %p228 = pnand %p226, %p227
      %p229 = pneg %p228
      // Predicated region
      $region9: #{detail_branch.15} parent=5 // pred_check
        _
      $region10: #{detail_branch.15} parent=5 // pred_check_branch
        %231 = sbr.rel (%p228) target = $region12
      $region11: #{detail_branch.15} parent=5 // pred_region
        %s232 = ssub.s32 %s15, 1
        // Predicated region
        $region13: #{detail_branch.15} parent=11 // pred_check
          %p233 = pneg %p148
        $region14: #{detail_branch.15} parent=11 // pred_check_branch
          %235 = sbr.rel (%p233) target = $region16
        $region15: #{detail_branch.15} parent=11 // pred_region
          _
        $region16: #{detail_branch.15} parent=11 // pred_fallthru
          _
        // Predicated region
        $region17: #{detail_branch.15} parent=11 // pred_check
          %p236 = pneg %p169
        $region18: #{detail_branch.15} parent=11 // pred_check_branch
          %238 = sbr.rel (%p236) target = $region20
        $region19: #{detail_branch.15} parent=11 // pred_region
          _
        $region20: #{detail_branch.15} parent=11 // pred_fallthru
          _
        // Predicated region
        $region21: #{detail_branch.15} parent=11 // pred_check
          %p239 = pneg %p190
        $region22: #{detail_branch.15} parent=11 // pred_check_branch
          %241 = sbr.rel (%p239) target = $region24
        $region23: #{detail_branch.15} parent=11 // pred_region
          _
        $region24: #{detail_branch.15} parent=11 // pred_fallthru
          _
      $region12: #{detail_branch.15} parent=5 // pred_fallthru
        _
      %p242 = scmp.lt.s32.totalorder %s15, 2
      // Predicated region
      $region25: #{detail_branch.15} parent=5 // pred_check
        %p243 = pneg %p242
      $region26: #{detail_branch.15} parent=5 // pred_check_branch
        %245 = sbr.rel (%p243) target = $region28
      $region27: #{detail_branch.15} parent=5 // pred_region
        // Predicated region
        $region29: #{detail_branch.15} parent=27 // pred_check
          %p246 = pneg %p49
        $region30: #{detail_branch.15} parent=27 // pred_check_branch
          %248 = sbr.rel (%p246) target = $region32
        $region31: #{detail_branch.15} parent=27 // pred_region
          %s249 = smul.u32 2, %s23
          %p250 = scmp.lt.s32.totalorder %s22, 1
          %s251 = scalar_select %p250, %s22, 1
          %p252 = scmp.lt.s32.totalorder %s249, 1
          %s253 = scalar_select %p252, %s249, 1
          %s254 = smul.addr %s251, 2
          %s255 = sadd.s32 %s253, %s254
          %s256 = scalar_lea.vmem %s0, %s255
          %s257 = smul.u32 2, %s23
        $region32: #{detail_branch.15} parent=27 // pred_fallthru
          _
        // Predicated region
        $region33: #{detail_branch.15} parent=27 // pred_check
          %p258 = pneg %p85
        $region34: #{detail_branch.15} parent=27 // pred_check_branch
          %260 = sbr.rel (%p258) target = $region36
        $region35: #{detail_branch.15} parent=27 // pred_region
          %s261 = smul.u32 %s23, 2
          %s262 = ssub.s32 %s261, 1
          %p263 = scmp.gt.s32.totalorder %s262, 0
          %s264 = scalar_select %p263, %s262, 0
          %p265 = scmp.lt.s32.totalorder %s22, 1
          %s266 = scalar_select %p265, %s22, 1
          %p267 = scmp.lt.s32.totalorder %s264, 1
          %s268 = scalar_select %p267, %s264, 1
          %s269 = smul.addr %s266, 2
          %s270 = sadd.s32 %s268, %s269
          %s271 = scalar_lea.vmem %s1, %s270
          %s272 = smul.u32 %s23, 2
          %s273 = ssub.s32 %s272, 1
          %p274 = scmp.gt.s32.totalorder %s273, 0
          %s275 = scalar_select %p274, %s273, 0
        $region36: #{detail_branch.15} parent=27 // pred_fallthru
          _
        // Predicated region
        $region37: #{detail_branch.15} parent=27 // pred_check
          %p276 = pneg %p121
        $region38: #{detail_branch.15} parent=27 // pred_check_branch
          %278 = sbr.rel (%p276) target = $region40
        $region39: #{detail_branch.15} parent=27 // pred_region
          %s279 = sadd.s32 %s23, 1
          %s280 = smul.u32 %s279, 2
          %p281 = scmp.lt.s32.totalorder %s280, 1
          %s282 = scalar_select %p281, %s280, 1
          %p283 = scmp.lt.s32.totalorder %s22, 1
          %s284 = scalar_select %p283, %s22, 1
          %p285 = scmp.lt.s32.totalorder %s282, 1
          %s286 = scalar_select %p285, %s282, 1
          %s287 = smul.addr %s284, 2
          %s288 = sadd.s32 %s286, %s287
          %s289 = scalar_lea.vmem %s2, %s288
          %s290 = sadd.s32 %s23, 1
          %s291 = smul.u32 %s290, 2
          %p292 = scmp.lt.s32.totalorder %s291, 1
          %s293 = scalar_select %p292, %s291, 1
        $region40: #{detail_branch.15} parent=27 // pred_fallthru
          _
      $region28: #{detail_branch.15} parent=5 // pred_fallthru
        _
      %p294 = scmp.le.s32.totalorder 1, %s15
      %p295 = scmp.lt.s32.totalorder %s15, 3
      %p296 = pnand %p294, %p295
      %p297 = pneg %p296
      // Predicated region
      $region41: #{detail_branch.15} parent=5 // pred_check
        _
      $region42: #{detail_branch.15} parent=5 // pred_check_branch
        %299 = sbr.rel (%p296) target = $region44
      $region43: #{detail_branch.15} parent=5 // pred_region
        %s300 = ssub.s32 %s15, 1
        %s301 = smul.u32 2, %s25
        %p302 = scmp.lt.s32.totalorder %s24, 1
        %s303 = scalar_select %p302, %s24, 1
        %p304 = scmp.lt.s32.totalorder %s301, 1
        %s305 = scalar_select %p304, %s301, 1
        %s306 = smul.addr %s303, 2
        %s307 = sadd.s32 %s305, %s306
        %s308 = scalar_lea.vmem %s0, %s307
        %p309 = pneg %p55
        %p310 = pneg %p52
        %s311 = smul.u32 %s25, 2
        %s312 = ssub.s32 %s311, 1
        %p313 = scmp.gt.s32.totalorder %s312, 0
        %s314 = scalar_select %p313, %s312, 0
        %p315 = scmp.lt.s32.totalorder %s24, 1
        %s316 = scalar_select %p315, %s24, 1
        %p317 = scmp.lt.s32.totalorder %s314, 1
        %s318 = scalar_select %p317, %s314, 1
        %s319 = smul.addr %s316, 2
        %s320 = sadd.s32 %s318, %s319
        %s321 = scalar_lea.vmem %s1, %s320
        %p322 = pneg %p91
        %p323 = pneg %p88
        %s324 = sadd.s32 %s25, 1
        %s325 = smul.u32 %s324, 2
        %p326 = scmp.lt.s32.totalorder %s325, 1
        %s327 = scalar_select %p326, %s325, 1
        %p328 = scmp.lt.s32.totalorder %s24, 1
        %s329 = scalar_select %p328, %s24, 1
        %p330 = scmp.lt.s32.totalorder %s327, 1
        %s331 = scalar_select %p330, %s327, 1
        %s332 = smul.addr %s329, 2
        %s333 = sadd.s32 %s331, %s332
        %s334 = scalar_lea.vmem %s2, %s333
        %p335 = pneg %p127
        %p336 = pneg %p124
        %p337 = pneg %p148
        %p338 = pneg %p145
        %p339 = pneg %p169
        %p340 = pneg %p166
        %p341 = pneg %p190
        %p342 = pneg %p187
        %p343 = pneg %p218
        %p344 = pneg %p215
        %s345 = sand.u32 %s205, 1
        %s346 = scalar_lea.sflag [#allocation4], %s345
        %s347 = sand.u32 %s205, 1
        %s348 = smul.addr %s347, 2
        %s349 = scalar_lea.vmem [#allocation3], %s348
        %s350 = smul.u32 2, %s25
        %p351 = scmp.lt.s32.totalorder %s24, 1
        %s352 = scalar_select %p351, %s24, 1
        %p353 = scmp.lt.s32.totalorder %s350, 1
        %s354 = scalar_select %p353, %s350, 1
        %s355 = smul.addr %s352, 2
        %s356 = sadd.s32 %s354, %s355
        %s357 = scalar_lea.vmem %s0, %s356
        %s358 = smul.u32 2, %s25
        %s359 = smul.u32 %s25, 2
        %s360 = ssub.s32 %s359, 1
        %p361 = scmp.gt.s32.totalorder %s360, 0
        %s362 = scalar_select %p361, %s360, 0
        %p363 = scmp.lt.s32.totalorder %s24, 1
        %s364 = scalar_select %p363, %s24, 1
        %p365 = scmp.lt.s32.totalorder %s362, 1
        %s366 = scalar_select %p365, %s362, 1
        %s367 = smul.addr %s364, 2
        %s368 = sadd.s32 %s366, %s367
        %s369 = scalar_lea.vmem %s1, %s368
        %s370 = smul.u32 %s25, 2
        %s371 = ssub.s32 %s370, 1
        %p372 = scmp.gt.s32.totalorder %s371, 0
        %s373 = scalar_select %p372, %s371, 0
        %s374 = sadd.s32 %s25, 1
        %s375 = smul.u32 %s374, 2
        %p376 = scmp.lt.s32.totalorder %s375, 1
        %s377 = scalar_select %p376, %s375, 1
        %p378 = scmp.lt.s32.totalorder %s24, 1
        %s379 = scalar_select %p378, %s24, 1
        %p380 = scmp.lt.s32.totalorder %s377, 1
        %s381 = scalar_select %p380, %s377, 1
        %s382 = smul.addr %s379, 2
        %s383 = sadd.s32 %s381, %s382
        %s384 = scalar_lea.vmem %s2, %s383
        %s385 = sadd.s32 %s25, 1
        %s386 = smul.u32 %s385, 2
        %p387 = scmp.lt.s32.totalorder %s386, 1
        %s388 = scalar_select %p387, %s386, 1
        %vm390 = vcmask 1040384
        %vm391 = vsmask.f32 256
        %vm392 = vmand %vm390, %vm391
        %v393 = vld [vmem:[#allocation2] sm:$0x1]
        %v394 = vsel %vm392, 0, %v393
        %395 = vst [vmem:[#allocation2] sm:$0x1] %v394
        %v396 = vld [vmem:[#allocation2 + $0x3] sm:$0x1]
        %v397 = vsel %vm392, 0, %v396
        %398 = vst [vmem:[#allocation2 + $0x3] sm:$0x1] %v397
        %v399 = vld [vmem:[#allocation2 + $0x6] sm:$0x1]
        %v400 = vsel %vm392, 0, %v399
        %401 = vst [vmem:[#allocation2 + $0x6] sm:$0x1] %v400
        %v402 = vld [vmem:[#allocation2 + $0x9] sm:$0x1]
        %v403 = vsel %vm392, 0, %v402
        %404 = vst [vmem:[#allocation2 + $0x9] sm:$0x1] %v403
        %vm405 = vsmask.f32 7938
        %vm406 = vmand %vm390, %vm405
        %v407 = vld [vmem:[#allocation2 + $0x2] sm:$0x1]
        %v408 = vsel %vm406, 0, %v407
        %409 = vst [vmem:[#allocation2 + $0x2] sm:$0x1] %v408
        %v410 = vld [vmem:[#allocation2 + $0x5] sm:$0x1]
        %v411 = vsel %vm406, 0, %v410
        %412 = vst [vmem:[#allocation2 + $0x5] sm:$0x1] %v411
        %v413 = vld [vmem:[#allocation2 + $0x8] sm:$0x1]
        %v414 = vsel %vm406, 0, %v413
        %415 = vst [vmem:[#allocation2 + $0x8] sm:$0x1] %v414
        %v416 = vld [vmem:[#allocation2 + $0xb] sm:$0x1]
        %v417 = vsel %vm406, 0, %v416
        %418 = vst [vmem:[#allocation2 + $0xb] sm:$0x1] %v417
        %v419 = vld [vmem:[%s357] sm:$0x1]
        %v420 = vld [vmem:[%s357 + $0x1] sm:$0x1]
        %v422 = vshll.u32 %v419, 16
        %v425 = vshll.u32 %v420, 16
        %s429 = scalar_lea.vmem [#allocation2], 3
        %v430 = vld [vmem:[%s429] sm:$0x1]
        %v431 = vsel %vm406, %v422, %v430
        %432 = vst [vmem:[%s429] sm:$0x1] %v431
        %v433 = vld [vmem:[%s429 + $0x3] sm:$0x1]
        %v434 = vsel %vm406, %v425, %v433
        %435 = vst [vmem:[%s429 + $0x3] sm:$0x1] %v434
        %v436 = vshrl.u32 %v419, 16
        %v438 = vrot.slane %v436, 7
        %v439 = vrot.slane %v438, 1
        %v440 = vshrl.u32 %v420, 16
        %v442 = vrot.slane %v440, 7
        %v443 = vrot.slane %v442, 1
        %v446 = vld [vmem:[%s429 + $0x2] sm:$0x1]
        %v447 = vsel %vm392, %v439, %v446
        %448 = vst [vmem:[%s429 + $0x2] sm:$0x1] %v447
        %v449 = vld [vmem:[%s429 + $0x5] sm:$0x1]
        %v450 = vsel %vm392, %v443, %v449
        %451 = vst [vmem:[%s429 + $0x5] sm:$0x1] %v450
        %452 = vst [vmem:[%s429 + $0x1] sm:$0x1] %v419
        %453 = vst [vmem:[%s429 + $0x4] sm:$0x1] %v420
        %v454 = vld [vmem:[%s369] sm:$0x1]
        %v456 = vshll.u32 %v454, 16
        %v459 = vld [vmem:[#allocation2] sm:$0x1]
        %v460 = vsel %vm406, %v456, %v459
        %461 = vst [vmem:[#allocation2] sm:$0x1] %v460
        %v462 = vshrl.u32 %v454, 16
        %v464 = vrot.slane %v462, 7
        %v465 = vrot.slane %v464, 1
        %v467 = vld [vmem:[#allocation2 + $0x2] sm:$0x1]
        %v468 = vsel %vm392, %v465, %v467
        %469 = vst [vmem:[#allocation2 + $0x2] sm:$0x1] %v468
        %470 = vst [vmem:[#allocation2 + $0x1] sm:$0x1] %v454
        %v471 = vld [vmem:[%s384] sm:$0x1]
        %v473 = vshll.u32 %v471, 16
        %s476 = scalar_lea.vmem [#allocation2], 9
        %v477 = vld [vmem:[%s476] sm:$0x1]
        %v478 = vsel %vm406, %v473, %v477
        %479 = vst [vmem:[%s476] sm:$0x1] %v478
        %v480 = vshrl.u32 %v471, 16
        %v482 = vrot.slane %v480, 7
        %v483 = vrot.slane %v482, 1
        %v485 = vld [vmem:[%s476 + $0x2] sm:$0x1]
        %v486 = vsel %vm392, %v483, %v485
        %487 = vst [vmem:[%s476 + $0x2] sm:$0x1] %v486
        %488 = vst [vmem:[%s476 + $0x1] sm:$0x1] %v471
        %p489 = scmp.eq.s32.totalorder %s25, 0
        // Predicated region
        $region45: #{detail_branch.15} parent=43 // pred_check
          %p490 = pneg %p489
        $region46: #{detail_branch.15} parent=43 // pred_check_branch
          %492 = sbr.rel (%p490) target = $region48
        $region47: #{detail_branch.15} parent=43 // pred_region
          %493 = vst [vmem:[#allocation2] sm:$0x7] 0
          %494 = vst [vmem:[%s476] sm:$0x7] 0
        $region48: #{detail_branch.15} parent=43 // pred_fallthru
          _
        %v495 = vld [vmem:[#allocation2] sm:$0x7]
        %v496 = vld [vmem:[#allocation2 + $0x3] sm:$0x7]
        %v497 = vld [vmem:[%s3] sm:$0xf]
        %v498 = vld [vmem:[%s3 + $0x4] sm:$0xf]
        %v499 = vld [vmem:[%s3 + $0x8] sm:$0xf]
        %v500 = vld [vmem:[%s3 + $0xc] sm:$0xf]
        %v501 = vld [vmem:[%s3 + $0x10] sm:$0xf]
        %v502 = vld [vmem:[%s3 + $0x14] sm:$0xf]
        %v503 = vld [vmem:[%s3 + $0x18] sm:$0xf]
        %v504 = vld [vmem:[%s3 + $0x1c] sm:$0xf]
        %v505 = vld [vmem:[%s3 + $0x20] sm:$0xf]
        %v506 = vld [vmem:[%s3 + $0x24] sm:$0xf]
        %v507 = vld [vmem:[%s3 + $0x28] sm:$0xf]
        %v508 = vld [vmem:[%s3 + $0x2c] sm:$0xf]
        %v509 = vld [vmem:[%s3 + $0x30] sm:$0xf]
        %v510 = vld [vmem:[%s3 + $0x34] sm:$0xf]
        %v511 = vld [vmem:[%s3 + $0x38] sm:$0xf]
        %v512 = vld [vmem:[%s3 + $0x3c] sm:$0xf]
        %v513 = vld [vmem:[%s3 + $0x40] sm:$0xf]
        %v514 = vld [vmem:[%s3 + $0x44] sm:$0xf]
        %v515 = vld [vmem:[%s3 + $0x48] sm:$0xf]
        %v516 = vld [vmem:[%s3 + $0x4c] sm:$0xf]
        %v517 = vld [vmem:[%s3 + $0x50] sm:$0xf]
        %v518 = vld [vmem:[%s3 + $0x54] sm:$0xf]
        %v519 = vld [vmem:[%s3 + $0x58] sm:$0xf]
        %v520 = vld [vmem:[%s3 + $0x5c] sm:$0xf]
        %v521 = vld [vmem:[%s3 + $0x60] sm:$0xf]
        %v522 = vld [vmem:[%s3 + $0x64] sm:$0xf]
        %v523 = vld [vmem:[%s3 + $0x68] sm:$0xf]
        %v524 = vld [vmem:[%s3 + $0x6c] sm:$0xf]
        %v525 = vld [vmem:[%s3 + $0x70] sm:$0xf]
        %v526 = vld [vmem:[%s3 + $0x74] sm:$0xf]
        %v527 = vld [vmem:[%s3 + $0x78] sm:$0xf]
        %v528 = vld [vmem:[%s3 + $0x7c] sm:$0xf]
        %v529 = vld [vmem:[%s3 + $0x80] sm:$0xf]
        %v530 = vld [vmem:[%s3 + $0x84] sm:$0xf]
        %v531 = vld [vmem:[%s3 + $0x88] sm:$0xf]
        %v532 = vld [vmem:[%s3 + $0x8c] sm:$0xf]
        %v533 = vld [vmem:[%s3 + $0x90] sm:$0xf]
        %v534 = vld [vmem:[%s3 + $0x94] sm:$0xf]
        %v535 = vld [vmem:[%s3 + $0x98] sm:$0xf]
        %v536 = vld [vmem:[%s3 + $0x9c] sm:$0xf]
        %v537 = vld [vmem:[%s3 + $0xa0] sm:$0xf]
        %v538 = vld [vmem:[%s3 + $0xa4] sm:$0xf]
        %v539 = vld [vmem:[%s3 + $0xa8] sm:$0xf]
        %v540 = vld [vmem:[%s3 + $0xac] sm:$0xf]
        %v541 = vld [vmem:[%s3 + $0xb0] sm:$0xf]
        %v542 = vld [vmem:[%s3 + $0xb4] sm:$0xf]
        %v543 = vld [vmem:[%s3 + $0xb8] sm:$0xf]
        %v544 = vld [vmem:[%s3 + $0xbc] sm:$0xf]
        %v545 = vld [vmem:[%s429] sm:$0x7]
        %v546 = vld [vmem:[%s429 + $0x3] sm:$0x7]
        %s547 = scalar_lea.vmem %s3, 192
        %v548 = vld [vmem:[%s547] sm:$0xf]
        %v549 = vld [vmem:[%s547 + $0x4] sm:$0xf]
        %v550 = vld [vmem:[%s547 + $0x8] sm:$0xf]
        %v551 = vld [vmem:[%s547 + $0xc] sm:$0xf]
        %v552 = vld [vmem:[%s547 + $0x10] sm:$0xf]
        %v553 = vld [vmem:[%s547 + $0x14] sm:$0xf]
        %v554 = vld [vmem:[%s547 + $0x18] sm:$0xf]
        %v555 = vld [vmem:[%s547 + $0x1c] sm:$0xf]
        %v556 = vld [vmem:[%s547 + $0x20] sm:$0xf]
        %v557 = vld [vmem:[%s547 + $0x24] sm:$0xf]
        %v558 = vld [vmem:[%s547 + $0x28] sm:$0xf]
        %v559 = vld [vmem:[%s547 + $0x2c] sm:$0xf]
        %v560 = vld [vmem:[%s547 + $0x30] sm:$0xf]
        %v561 = vld [vmem:[%s547 + $0x34] sm:$0xf]
        %v562 = vld [vmem:[%s547 + $0x38] sm:$0xf]
        %v563 = vld [vmem:[%s547 + $0x3c] sm:$0xf]
        %v564 = vld [vmem:[%s547 + $0x40] sm:$0xf]
        %v565 = vld [vmem:[%s547 + $0x44] sm:$0xf]
        %v566 = vld [vmem:[%s547 + $0x48] sm:$0xf]
        %v567 = vld [vmem:[%s547 + $0x4c] sm:$0xf]
        %v568 = vld [vmem:[%s547 + $0x50] sm:$0xf]
        %v569 = vld [vmem:[%s547 + $0x54] sm:$0xf]
        %v570 = vld [vmem:[%s547 + $0x58] sm:$0xf]
        %v571 = vld [vmem:[%s547 + $0x5c] sm:$0xf]
        %v572 = vld [vmem:[%s547 + $0x60] sm:$0xf]
        %v573 = vld [vmem:[%s547 + $0x64] sm:$0xf]
        %v574 = vld [vmem:[%s547 + $0x68] sm:$0xf]
        %v575 = vld [vmem:[%s547 + $0x6c] sm:$0xf]
        %v576 = vld [vmem:[%s547 + $0x70] sm:$0xf]
        %v577 = vld [vmem:[%s547 + $0x74] sm:$0xf]
        %v578 = vld [vmem:[%s547 + $0x78] sm:$0xf]
        %v579 = vld [vmem:[%s547 + $0x7c] sm:$0xf]
        %v580 = vld [vmem:[%s547 + $0x80] sm:$0xf]
        %v581 = vld [vmem:[%s547 + $0x84] sm:$0xf]
        %v582 = vld [vmem:[%s547 + $0x88] sm:$0xf]
        %v583 = vld [vmem:[%s547 + $0x8c] sm:$0xf]
        %v584 = vld [vmem:[%s547 + $0x90] sm:$0xf]
        %v585 = vld [vmem:[%s547 + $0x94] sm:$0xf]
        %v586 = vld [vmem:[%s547 + $0x98] sm:$0xf]
        %v587 = vld [vmem:[%s547 + $0x9c] sm:$0xf]
        %v588 = vld [vmem:[%s547 + $0xa0] sm:$0xf]
        %v589 = vld [vmem:[%s547 + $0xa4] sm:$0xf]
        %v590 = vld [vmem:[%s547 + $0xa8] sm:$0xf]
        %v591 = vld [vmem:[%s547 + $0xac] sm:$0xf]
        %v592 = vld [vmem:[%s547 + $0xb0] sm:$0xf]
        %v593 = vld [vmem:[%s547 + $0xb4] sm:$0xf]
        %v594 = vld [vmem:[%s547 + $0xb8] sm:$0xf]
        %v595 = vld [vmem:[%s547 + $0xbc] sm:$0xf]
        %v598 = vcombine.low %v545, %v546
        %v600 = vunpack.c.l.s4 1966171168
        %v601 = vunpack.c.0.s8 %v600
        %v602 = vlaneseq
        %v603 = vshrl.u32 %v602, 7
        %v604 = vsub.s32 %v601, %v603
        %v605 = vrot.slane %v598, %v604
        %v606 = vcombine.high %v605, %v605
        %v608 = vunpack.c.l.s4 1966171168
        %v609 = vunpack.c.0.s8 %v608
        %v610 = vlaneseq
        %v611 = vshrl.u32 %v610, 7
        %v612 = vsub.s32 %v609, %v611
        %v613 = vrot.slane %v605, %v612
        %v615 = vunpack.c.l.s4 1966171168
        %v616 = vunpack.c.0.s8 %v615
        %v617 = vlaneseq
        %v618 = vshrl.u32 %v617, 7
        %v619 = vsub.s32 %v616, %v618
        %v620 = vrot.slane %v606, %v619
        %v621 = vcombine.high %v613, %v613
        %v673 = vunpack.c.l.b16 %v548
        %v674 = vunpack.c.l.b16 %v549
        %v675 = vunpack.c.l.b16 %v550
        %v676 = vunpack.c.l.b16 %v551
        %v677 = vunpack.c.l.b16 %v552
        %v678 = vunpack.c.l.b16 %v553
        %v679 = vunpack.c.l.b16 %v554
        %v680 = vunpack.c.l.b16 %v555
        %v681 = vunpack.c.l.b16 %v556
        %v682 = vunpack.c.l.b16 %v557
        %v683 = vunpack.c.l.b16 %v558
        %v684 = vunpack.c.l.b16 %v559
        %v685 = vunpack.c.l.b16 %v560
        %v686 = vunpack.c.l.b16 %v561
        %v687 = vunpack.c.l.b16 %v562
        %v688 = vunpack.c.l.b16 %v563
        %v689 = vunpack.c.l.b16 %v564
        %v690 = vunpack.c.l.b16 %v565
        %v691 = vunpack.c.l.b16 %v566
        %v692 = vunpack.c.l.b16 %v567
        %v693 = vunpack.c.l.b16 %v568
        %v694 = vunpack.c.l.b16 %v569
        %v695 = vunpack.c.l.b16 %v570
        %v696 = vunpack.c.l.b16 %v571
        %v697 = vunpack.c.l.b16 %v572
        %v698 = vunpack.c.l.b16 %v573
        %v699 = vunpack.c.l.b16 %v574
        %v700 = vunpack.c.l.b16 %v575
        %v701 = vunpack.c.l.b16 %v576
        %v702 = vunpack.c.l.b16 %v577
        %v703 = vunpack.c.l.b16 %v578
        %v704 = vunpack.c.l.b16 %v579
        %v705 = vunpack.c.l.b16 %v580
        %v706 = vunpack.c.l.b16 %v581
        %v707 = vunpack.c.l.b16 %v582
        %v708 = vunpack.c.l.b16 %v583
        %v709 = vunpack.c.l.b16 %v584
        %v710 = vunpack.c.l.b16 %v585
        %v711 = vunpack.c.l.b16 %v586
        %v712 = vunpack.c.l.b16 %v587
        %v713 = vunpack.c.l.b16 %v588
        %v714 = vunpack.c.l.b16 %v589
        %v715 = vunpack.c.l.b16 %v590
        %v716 = vunpack.c.l.b16 %v591
        %v717 = vunpack.c.l.b16 %v592
        %v718 = vunpack.c.l.b16 %v593
        %v719 = vunpack.c.l.b16 %v594
        %v720 = vunpack.c.l.b16 %v595
        %v721 = vpack.c.b16 %v674, %v673
        %v722 = vpack.c.b16 %v676, %v675
        %v723 = vpack.c.b16 %v678, %v677
        %v724 = vpack.c.b16 %v680, %v679
        %v725 = vpack.c.b16 %v682, %v681
        %v726 = vpack.c.b16 %v684, %v683
        %v727 = vpack.c.b16 %v686, %v685
        %v728 = vpack.c.b16 %v688, %v687
        %v729 = vpack.c.b16 %v690, %v689
        %v730 = vpack.c.b16 %v692, %v691
        %v731 = vpack.c.b16 %v694, %v693
        %v732 = vpack.c.b16 %v696, %v695
        %v733 = vpack.c.b16 %v698, %v697
        %v734 = vpack.c.b16 %v700, %v699
        %v735 = vpack.c.b16 %v702, %v701
        %v736 = vpack.c.b16 %v704, %v703
        %v737 = vpack.c.b16 %v706, %v705
        %v738 = vpack.c.b16 %v708, %v707
        %v739 = vpack.c.b16 %v710, %v709
        %v740 = vpack.c.b16 %v712, %v711
        %v741 = vpack.c.b16 %v714, %v713
        %v742 = vpack.c.b16 %v716, %v715
        %v743 = vpack.c.b16 %v718, %v717
        %v744 = vpack.c.b16 %v720, %v719
        %769 = vmatprep.subr.bf16.mxu0 0
        %770 = vmatpush1.bf16.msra.mxu0 %v728
        %771 = vmatprep.subr.bf16.mxu0 0
        %772 = vmatpush1.bf16.msra.mxu0 %v727
        %773 = vmatprep.subr.bf16.mxu0 0
        %774 = vmatpush1.bf16.msra.mxu0 %v726
        %775 = vmatprep.subr.bf16.mxu0 0
        %776 = vmatpush1.bf16.msra.mxu0 %v725
        %777 = vmatprep.subr.bf16.mxu0 0
        %778 = vmatpush1.bf16.msra.mxu0 %v724
        %779 = vmatprep.subr.bf16.mxu0 0
        %780 = vmatpush1.bf16.msra.mxu0 %v723
        %781 = vmatprep.subr.bf16.mxu0 0
        %782 = vmatpush1.bf16.msra.mxu0 %v722
        %783 = vmatprep.subr.bf16.mxu0 0
        %784 = vmatpush1.bf16.msra.mxu0 %v721
        %785 = vmatprep.subr.bf16.mxu0 0
        %786 = vmatpush2.bf16.msra.mxu0 %v736
        %787 = vmatprep.subr.bf16.mxu0 0
        %788 = vmatpush2.bf16.msra.mxu0 %v735
        %789 = vmatprep.subr.bf16.mxu0 0
        %790 = vmatpush2.bf16.msra.mxu0 %v734
        %791 = vmatprep.subr.bf16.mxu0 0
        %792 = vmatpush2.bf16.msra.mxu0 %v733
        %793 = vmatprep.subr.bf16.mxu0 0
        %794 = vmatpush2.bf16.msra.mxu0 %v732
        %795 = vmatprep.subr.bf16.mxu0 0
        %796 = vmatpush2.bf16.msra.mxu0 %v731
        %797 = vmatprep.subr.bf16.mxu0 0
        %798 = vmatpush2.bf16.msra.mxu0 %v730
        %799 = vmatprep.subr.bf16.mxu0 0
        %800 = vmatpush2.bf16.msra.mxu0 %v729
        %801 = vmatprep.mubr.bf16.mxu0 %v620
        %802 = vmatmul.mubr.bf16.gmra.mxu0 %v613
        %v803 = vpop.f32.mrf.mxu0
        %v804 = vadd.f32 0.0, %v803
        %v805 = vpop.f32.mrf.mxu0
        %v806 = vpop.f32.mrf.mxu0
        %v807 = vpop.f32.mrf.mxu0
        %808 = vdwg.mxu0
        %809 = vmatprep.subr.bf16.mxu0 0
        %810 = vmatpush1.bf16.msra.mxu0 %v744
        %811 = vmatprep.subr.bf16.mxu0 0
        %812 = vmatpush1.bf16.msra.mxu0 %v743
        %813 = vmatprep.subr.bf16.mxu0 0
        %814 = vmatpush1.bf16.msra.mxu0 %v742
        %815 = vmatprep.subr.bf16.mxu0 0
        %816 = vmatpush1.bf16.msra.mxu0 %v741
        %817 = vmatprep.subr.bf16.mxu0 0
        %818 = vmatpush1.bf16.msra.mxu0 %v740
        %819 = vmatprep.subr.bf16.mxu0 0
        %820 = vmatpush1.bf16.msra.mxu0 %v739
        %821 = vmatprep.subr.bf16.mxu0 0
        %822 = vmatpush1.bf16.msra.mxu0 %v738
        %823 = vmatprep.subr.bf16.mxu0 0
        %824 = vmatpush1.bf16.msra.mxu0 %v737
        %825 = vmatprep.subr.bf16.mxu0 0
        %826 = vmatpush2.bf16.msra.mxu0 0
        %827 = vmatprep.subr.bf16.mxu0 0
        %828 = vmatpush2.bf16.msra.mxu0 0
        %829 = vmatprep.subr.bf16.mxu0 0
        %830 = vmatpush2.bf16.msra.mxu0 0
        %831 = vmatprep.subr.bf16.mxu0 0
        %832 = vmatpush2.bf16.msra.mxu0 0
        %833 = vmatprep.subr.bf16.mxu0 0
        %834 = vmatpush2.bf16.msra.mxu0 0
        %835 = vmatprep.subr.bf16.mxu0 0
        %836 = vmatpush2.bf16.msra.mxu0 0
        %837 = vmatprep.subr.bf16.mxu0 0
        %838 = vmatpush2.bf16.msra.mxu0 0
        %839 = vmatprep.subr.bf16.mxu0 0
        %840 = vmatpush2.bf16.msra.mxu0 0
        %841 = vmatprep.mubr.bf16.mxu0 0
        %842 = vmatmul.mubr.bf16.gmra.mxu0 %v621
        %v843 = vpop.f32.mrf.mxu0
        %v844 = vadd.f32 %v804, %v843
        %v845 = vpop.f32.mrf.mxu0
        %v846 = vpop.f32.mrf.mxu0
        %v847 = vpop.f32.mrf.mxu0
        %848 = vdwg.mxu0
        %v851 = vcombine.low %v495, %v496
        %v853 = vunpack.c.l.s4 1966171168
        %v854 = vunpack.c.0.s8 %v853
        %v855 = vlaneseq
        %v856 = vshrl.u32 %v855, 7
        %v857 = vsub.s32 %v854, %v856
        %v858 = vrot.slane %v851, %v857
        %v859 = vcombine.high %v858, %v858
        %v861 = vunpack.c.l.s4 1966171168
        %v862 = vunpack.c.0.s8 %v861
        %v863 = vlaneseq
        %v864 = vshrl.u32 %v863, 7
        %v865 = vsub.s32 %v862, %v864
        %v866 = vrot.slane %v858, %v865
        %v868 = vunpack.c.l.s4 1966171168
        %v869 = vunpack.c.0.s8 %v868
        %v870 = vlaneseq
        %v871 = vshrl.u32 %v870, 7
        %v872 = vsub.s32 %v869, %v871
        %v873 = vrot.slane %v859, %v872
        %v874 = vcombine.high %v866, %v866
        %v926 = vunpack.c.l.b16 %v497
        %v927 = vunpack.c.l.b16 %v498
        %v928 = vunpack.c.l.b16 %v499
        %v929 = vunpack.c.l.b16 %v500
        %v930 = vunpack.c.l.b16 %v501
        %v931 = vunpack.c.l.b16 %v502
        %v932 = vunpack.c.l.b16 %v503
        %v933 = vunpack.c.l.b16 %v504
        %v934 = vunpack.c.l.b16 %v505
        %v935 = vunpack.c.l.b16 %v506
        %v936 = vunpack.c.l.b16 %v507
        %v937 = vunpack.c.l.b16 %v508
        %v938 = vunpack.c.l.b16 %v509
        %v939 = vunpack.c.l.b16 %v510
        %v940 = vunpack.c.l.b16 %v511
        %v941 = vunpack.c.l.b16 %v512
        %v942 = vunpack.c.l.b16 %v513
        %v943 = vunpack.c.l.b16 %v514
        %v944 = vunpack.c.l.b16 %v515
        %v945 = vunpack.c.l.b16 %v516
        %v946 = vunpack.c.l.b16 %v517
        %v947 = vunpack.c.l.b16 %v518
        %v948 = vunpack.c.l.b16 %v519
        %v949 = vunpack.c.l.b16 %v520
        %v950 = vunpack.c.l.b16 %v521
        %v951 = vunpack.c.l.b16 %v522
        %v952 = vunpack.c.l.b16 %v523
        %v953 = vunpack.c.l.b16 %v524
        %v954 = vunpack.c.l.b16 %v525
        %v955 = vunpack.c.l.b16 %v526
        %v956 = vunpack.c.l.b16 %v527
        %v957 = vunpack.c.l.b16 %v528
        %v958 = vunpack.c.l.b16 %v529
        %v959 = vunpack.c.l.b16 %v530
        %v960 = vunpack.c.l.b16 %v531
        %v961 = vunpack.c.l.b16 %v532
        %v962 = vunpack.c.l.b16 %v533
        %v963 = vunpack.c.l.b16 %v534
        %v964 = vunpack.c.l.b16 %v535
        %v965 = vunpack.c.l.b16 %v536
        %v966 = vunpack.c.l.b16 %v537
        %v967 = vunpack.c.l.b16 %v538
        %v968 = vunpack.c.l.b16 %v539
        %v969 = vunpack.c.l.b16 %v540
        %v970 = vunpack.c.l.b16 %v541
        %v971 = vunpack.c.l.b16 %v542
        %v972 = vunpack.c.l.b16 %v543
        %v973 = vunpack.c.l.b16 %v544
        %v974 = vpack.c.b16 %v927, %v926
        %v975 = vpack.c.b16 %v929, %v928
        %v976 = vpack.c.b16 %v931, %v930
        %v977 = vpack.c.b16 %v933, %v932
        %v978 = vpack.c.b16 %v935, %v934
        %v979 = vpack.c.b16 %v937, %v936
        %v980 = vpack.c.b16 %v939, %v938
        %v981 = vpack.c.b16 %v941, %v940
        %v982 = vpack.c.b16 %v943, %v942
        %v983 = vpack.c.b16 %v945, %v944
        %v984 = vpack.c.b16 %v947, %v946
        %v985 = vpack.c.b16 %v949, %v948
        %v986 = vpack.c.b16 %v951, %v950
        %v987 = vpack.c.b16 %v953, %v952
        %v988 = vpack.c.b16 %v955, %v954
        %v989 = vpack.c.b16 %v957, %v956
        %v990 = vpack.c.b16 %v959, %v958
        %v991 = vpack.c.b16 %v961, %v960
        %v992 = vpack.c.b16 %v963, %v962
        %v993 = vpack.c.b16 %v965, %v964
        %v994 = vpack.c.b16 %v967, %v966
        %v995 = vpack.c.b16 %v969, %v968
        %v996 = vpack.c.b16 %v971, %v970
        %v997 = vpack.c.b16 %v973, %v972
        %1022 = vmatprep.subr.bf16.mxu0 0
        %1023 = vmatpush1.bf16.msra.mxu0 %v981
        %1024 = vmatprep.subr.bf16.mxu0 0
        %1025 = vmatpush1.bf16.msra.mxu0 %v980
        %1026 = vmatprep.subr.bf16.mxu0 0
        %1027 = vmatpush1.bf16.msra.mxu0 %v979
        %1028 = vmatprep.subr.bf16.mxu0 0
        %1029 = vmatpush1.bf16.msra.mxu0 %v978
        %1030 = vmatprep.subr.bf16.mxu0 0
        %1031 = vmatpush1.bf16.msra.mxu0 %v977
        %1032 = vmatprep.subr.bf16.mxu0 0
        %1033 = vmatpush1.bf16.msra.mxu0 %v976
        %1034 = vmatprep.subr.bf16.mxu0 0
        %1035 = vmatpush1.bf16.msra.mxu0 %v975
        %1036 = vmatprep.subr.bf16.mxu0 0
        %1037 = vmatpush1.bf16.msra.mxu0 %v974
        %1038 = vmatprep.subr.bf16.mxu0 0
        %1039 = vmatpush2.bf16.msra.mxu0 %v989
        %1040 = vmatprep.subr.bf16.mxu0 0
        %1041 = vmatpush2.bf16.msra.mxu0 %v988
        %1042 = vmatprep.subr.bf16.mxu0 0
        %1043 = vmatpush2.bf16.msra.mxu0 %v987
        %1044 = vmatprep.subr.bf16.mxu0 0
        %1045 = vmatpush2.bf16.msra.mxu0 %v986
        %1046 = vmatprep.subr.bf16.mxu0 0
        %1047 = vmatpush2.bf16.msra.mxu0 %v985
        %1048 = vmatprep.subr.bf16.mxu0 0
        %1049 = vmatpush2.bf16.msra.mxu0 %v984
        %1050 = vmatprep.subr.bf16.mxu0 0
        %1051 = vmatpush2.bf16.msra.mxu0 %v983
        %1052 = vmatprep.subr.bf16.mxu0 0
        %1053 = vmatpush2.bf16.msra.mxu0 %v982
        %1054 = vmatprep.mubr.bf16.mxu0 %v873
        %1055 = vmatmul.mubr.bf16.gmra.mxu0 %v866
        %v1056 = vpop.f32.mrf.mxu0
        %v1057 = vadd.f32 %v844, %v1056
        %v1058 = vpop.f32.mrf.mxu0
        %v1059 = vpop.f32.mrf.mxu0
        %v1060 = vpop.f32.mrf.mxu0
        %1061 = vdwg.mxu0
        %1062 = vmatprep.subr.bf16.mxu0 0
        %1063 = vmatpush1.bf16.msra.mxu0 %v997
        %1064 = vmatprep.subr.bf16.mxu0 0
        %1065 = vmatpush1.bf16.msra.mxu0 %v996
        %1066 = vmatprep.subr.bf16.mxu0 0
        %1067 = vmatpush1.bf16.msra.mxu0 %v995
        %1068 = vmatprep.subr.bf16.mxu0 0
        %1069 = vmatpush1.bf16.msra.mxu0 %v994
        %1070 = vmatprep.subr.bf16.mxu0 0
        %1071 = vmatpush1.bf16.msra.mxu0 %v993
        %1072 = vmatprep.subr.bf16.mxu0 0
        %1073 = vmatpush1.bf16.msra.mxu0 %v992
        %1074 = vmatprep.subr.bf16.mxu0 0
        %1075 = vmatpush1.bf16.msra.mxu0 %v991
        %1076 = vmatprep.subr.bf16.mxu0 0
        %1077 = vmatpush1.bf16.msra.mxu0 %v990
        %1078 = vmatprep.subr.bf16.mxu0 0
        %1079 = vmatpush2.bf16.msra.mxu0 0
        %1080 = vmatprep.subr.bf16.mxu0 0
        %1081 = vmatpush2.bf16.msra.mxu0 0
        %1082 = vmatprep.subr.bf16.mxu0 0
        %1083 = vmatpush2.bf16.msra.mxu0 0
        %1084 = vmatprep.subr.bf16.mxu0 0
        %1085 = vmatpush2.bf16.msra.mxu0 0
        %1086 = vmatprep.subr.bf16.mxu0 0
        %1087 = vmatpush2.bf16.msra.mxu0 0
        %1088 = vmatprep.subr.bf16.mxu0 0
        %1089 = vmatpush2.bf16.msra.mxu0 0
        %1090 = vmatprep.subr.bf16.mxu0 0
        %1091 = vmatpush2.bf16.msra.mxu0 0
        %1092 = vmatprep.subr.bf16.mxu0 0
        %1093 = vmatpush2.bf16.msra.mxu0 0
        %1094 = vmatprep.mubr.bf16.mxu0 0
        %1095 = vmatmul.mubr.bf16.gmra.mxu0 %v874
        %v1096 = vpop.f32.mrf.mxu0
        %v1097 = vadd.f32 %v1057, %v1096
        %v1098 = vpop.f32.mrf.mxu0
        %v1099 = vpop.f32.mrf.mxu0
        %v1100 = vpop.f32.mrf.mxu0
        %1101 = vdwg.mxu0
        %s1102 = scalar_lea.vmem [#allocation2], 6
        %v1103 = vld [vmem:[%s1102] sm:$0x7]
        %v1104 = vld [vmem:[%s1102 + $0x3] sm:$0x7]
        %s1105 = scalar_lea.vmem %s3, 384
        %v1106 = vld [vmem:[%s1105] sm:$0xf]
        %v1107 = vld [vmem:[%s1105 + $0x4] sm:$0xf]
        %v1108 = vld [vmem:[%s1105 + $0x8] sm:$0xf]
        %v1109 = vld [vmem:[%s1105 + $0xc] sm:$0xf]
        %v1110 = vld [vmem:[%s1105 + $0x10] sm:$0xf]
        %v1111 = vld [vmem:[%s1105 + $0x14] sm:$0xf]
        %v1112 = vld [vmem:[%s1105 + $0x18] sm:$0xf]
        %v1113 = vld [vmem:[%s1105 + $0x1c] sm:$0xf]
        %v1114 = vld [vmem:[%s1105 + $0x20] sm:$0xf]
        %v1115 = vld [vmem:[%s1105 + $0x24] sm:$0xf]
        %v1116 = vld [vmem:[%s1105 + $0x28] sm:$0xf]
        %v1117 = vld [vmem:[%s1105 + $0x2c] sm:$0xf]
        %v1118 = vld [vmem:[%s1105 + $0x30] sm:$0xf]
        %v1119 = vld [vmem:[%s1105 + $0x34] sm:$0xf]
        %v1120 = vld [vmem:[%s1105 + $0x38] sm:$0xf]
        %v1121 = vld [vmem:[%s1105 + $0x3c] sm:$0xf]
        %v1122 = vld [vmem:[%s1105 + $0x40] sm:$0xf]
        %v1123 = vld [vmem:[%s1105 + $0x44] sm:$0xf]
        %v1124 = vld [vmem:[%s1105 + $0x48] sm:$0xf]
        %v1125 = vld [vmem:[%s1105 + $0x4c] sm:$0xf]
        %v1126 = vld [vmem:[%s1105 + $0x50] sm:$0xf]
        %v1127 = vld [vmem:[%s1105 + $0x54] sm:$0xf]
        %v1128 = vld [vmem:[%s1105 + $0x58] sm:$0xf]
        %v1129 = vld [vmem:[%s1105 + $0x5c] sm:$0xf]
        %v1130 = vld [vmem:[%s1105 + $0x60] sm:$0xf]
        %v1131 = vld [vmem:[%s1105 + $0x64] sm:$0xf]
        %v1132 = vld [vmem:[%s1105 + $0x68] sm:$0xf]
        %v1133 = vld [vmem:[%s1105 + $0x6c] sm:$0xf]
        %v1134 = vld [vmem:[%s1105 + $0x70] sm:$0xf]
        %v1135 = vld [vmem:[%s1105 + $0x74] sm:$0xf]
        %v1136 = vld [vmem:[%s1105 + $0x78] sm:$0xf]
        %v1137 = vld [vmem:[%s1105 + $0x7c] sm:$0xf]
        %v1138 = vld [vmem:[%s1105 + $0x80] sm:$0xf]
        %v1139 = vld [vmem:[%s1105 + $0x84] sm:$0xf]
        %v1140 = vld [vmem:[%s1105 + $0x88] sm:$0xf]
        %v1141 = vld [vmem:[%s1105 + $0x8c] sm:$0xf]
        %v1142 = vld [vmem:[%s1105 + $0x90] sm:$0xf]
        %v1143 = vld [vmem:[%s1105 + $0x94] sm:$0xf]
        %v1144 = vld [vmem:[%s1105 + $0x98] sm:$0xf]
        %v1145 = vld [vmem:[%s1105 + $0x9c] sm:$0xf]
        %v1146 = vld [vmem:[%s1105 + $0xa0] sm:$0xf]
        %v1147 = vld [vmem:[%s1105 + $0xa4] sm:$0xf]
        %v1148 = vld [vmem:[%s1105 + $0xa8] sm:$0xf]
        %v1149 = vld [vmem:[%s1105 + $0xac] sm:$0xf]
        %v1150 = vld [vmem:[%s1105 + $0xb0] sm:$0xf]
        %v1151 = vld [vmem:[%s1105 + $0xb4] sm:$0xf]
        %v1152 = vld [vmem:[%s1105 + $0xb8] sm:$0xf]
        %v1153 = vld [vmem:[%s1105 + $0xbc] sm:$0xf]
        %v1156 = vcombine.low %v1103, %v1104
        %v1158 = vunpack.c.l.s4 1966171168
        %v1159 = vunpack.c.0.s8 %v1158
        %v1160 = vlaneseq
        %v1161 = vshrl.u32 %v1160, 7
        %v1162 = vsub.s32 %v1159, %v1161
        %v1163 = vrot.slane %v1156, %v1162
        %v1164 = vcombine.high %v1163, %v1163
        %v1166 = vunpack.c.l.s4 1966171168
        %v1167 = vunpack.c.0.s8 %v1166
        %v1168 = vlaneseq
        %v1169 = vshrl.u32 %v1168, 7
        %v1170 = vsub.s32 %v1167, %v1169
        %v1171 = vrot.slane %v1163, %v1170
        %v1173 = vunpack.c.l.s4 1966171168
        %v1174 = vunpack.c.0.s8 %v1173
        %v1175 = vlaneseq
        %v1176 = vshrl.u32 %v1175, 7
        %v1177 = vsub.s32 %v1174, %v1176
        %v1178 = vrot.slane %v1164, %v1177
        %v1179 = vcombine.high %v1171, %v1171
        %v1231 = vunpack.c.l.b16 %v1106
        %v1232 = vunpack.c.l.b16 %v1107
        %v1233 = vunpack.c.l.b16 %v1108
        %v1234 = vunpack.c.l.b16 %v1109
        %v1235 = vunpack.c.l.b16 %v1110
        %v1236 = vunpack.c.l.b16 %v1111
        %v1237 = vunpack.c.l.b16 %v1112
        %v1238 = vunpack.c.l.b16 %v1113
        %v1239 = vunpack.c.l.b16 %v1114
        %v1240 = vunpack.c.l.b16 %v1115
        %v1241 = vunpack.c.l.b16 %v1116
        %v1242 = vunpack.c.l.b16 %v1117
        %v1243 = vunpack.c.l.b16 %v1118
        %v1244 = vunpack.c.l.b16 %v1119
        %v1245 = vunpack.c.l.b16 %v1120
        %v1246 = vunpack.c.l.b16 %v1121
        %v1247 = vunpack.c.l.b16 %v1122
        %v1248 = vunpack.c.l.b16 %v1123
        %v1249 = vunpack.c.l.b16 %v1124
        %v1250 = vunpack.c.l.b16 %v1125
        %v1251 = vunpack.c.l.b16 %v1126
        %v1252 = vunpack.c.l.b16 %v1127
        %v1253 = vunpack.c.l.b16 %v1128
        %v1254 = vunpack.c.l.b16 %v1129
        %v1255 = vunpack.c.l.b16 %v1130
        %v1256 = vunpack.c.l.b16 %v1131
        %v1257 = vunpack.c.l.b16 %v1132
        %v1258 = vunpack.c.l.b16 %v1133
        %v1259 = vunpack.c.l.b16 %v1134
        %v1260 = vunpack.c.l.b16 %v1135
        %v1261 = vunpack.c.l.b16 %v1136
        %v1262 = vunpack.c.l.b16 %v1137
        %v1263 = vunpack.c.l.b16 %v1138
        %v1264 = vunpack.c.l.b16 %v1139
        %v1265 = vunpack.c.l.b16 %v1140
        %v1266 = vunpack.c.l.b16 %v1141
        %v1267 = vunpack.c.l.b16 %v1142
        %v1268 = vunpack.c.l.b16 %v1143
        %v1269 = vunpack.c.l.b16 %v1144
        %v1270 = vunpack.c.l.b16 %v1145
        %v1271 = vunpack.c.l.b16 %v1146
        %v1272 = vunpack.c.l.b16 %v1147
        %v1273 = vunpack.c.l.b16 %v1148
        %v1274 = vunpack.c.l.b16 %v1149
        %v1275 = vunpack.c.l.b16 %v1150
        %v1276 = vunpack.c.l.b16 %v1151
        %v1277 = vunpack.c.l.b16 %v1152
        %v1278 = vunpack.c.l.b16 %v1153
        %v1279 = vpack.c.b16 %v1232, %v1231
        %v1280 = vpack.c.b16 %v1234, %v1233
        %v1281 = vpack.c.b16 %v1236, %v1235
        %v1282 = vpack.c.b16 %v1238, %v1237
        %v1283 = vpack.c.b16 %v1240, %v1239
        %v1284 = vpack.c.b16 %v1242, %v1241
        %v1285 = vpack.c.b16 %v1244, %v1243
        %v1286 = vpack.c.b16 %v1246, %v1245
        %v1287 = vpack.c.b16 %v1248, %v1247
        %v1288 = vpack.c.b16 %v1250, %v1249
        %v1289 = vpack.c.b16 %v1252, %v1251
        %v1290 = vpack.c.b16 %v1254, %v1253
        %v1291 = vpack.c.b16 %v1256, %v1255
        %v1292 = vpack.c.b16 %v1258, %v1257
        %v1293 = vpack.c.b16 %v1260, %v1259
        %v1294 = vpack.c.b16 %v1262, %v1261
        %v1295 = vpack.c.b16 %v1264, %v1263
        %v1296 = vpack.c.b16 %v1266, %v1265
        %v1297 = vpack.c.b16 %v1268, %v1267
        %v1298 = vpack.c.b16 %v1270, %v1269
        %v1299 = vpack.c.b16 %v1272, %v1271
        %v1300 = vpack.c.b16 %v1274, %v1273
        %v1301 = vpack.c.b16 %v1276, %v1275
        %v1302 = vpack.c.b16 %v1278, %v1277
        %1327 = vmatprep.subr.bf16.mxu0 0
        %1328 = vmatpush1.bf16.msra.mxu0 %v1286
        %1329 = vmatprep.subr.bf16.mxu0 0
        %1330 = vmatpush1.bf16.msra.mxu0 %v1285
        %1331 = vmatprep.subr.bf16.mxu0 0
        %1332 = vmatpush1.bf16.msra.mxu0 %v1284
        %1333 = vmatprep.subr.bf16.mxu0 0
        %1334 = vmatpush1.bf16.msra.mxu0 %v1283
        %1335 = vmatprep.subr.bf16.mxu0 0
        %1336 = vmatpush1.bf16.msra.mxu0 %v1282
        %1337 = vmatprep.subr.bf16.mxu0 0
        %1338 = vmatpush1.bf16.msra.mxu0 %v1281
        %1339 = vmatprep.subr.bf16.mxu0 0
        %1340 = vmatpush1.bf16.msra.mxu0 %v1280
        %1341 = vmatprep.subr.bf16.mxu0 0
        %1342 = vmatpush1.bf16.msra.mxu0 %v1279
        %1343 = vmatprep.subr.bf16.mxu0 0
        %1344 = vmatpush2.bf16.msra.mxu0 %v1294
        %1345 = vmatprep.subr.bf16.mxu0 0
        %1346 = vmatpush2.bf16.msra.mxu0 %v1293
        %1347 = vmatprep.subr.bf16.mxu0 0
        %1348 = vmatpush2.bf16.msra.mxu0 %v1292
        %1349 = vmatprep.subr.bf16.mxu0 0
        %1350 = vmatpush2.bf16.msra.mxu0 %v1291
        %1351 = vmatprep.subr.bf16.mxu0 0
        %1352 = vmatpush2.bf16.msra.mxu0 %v1290
        %1353 = vmatprep.subr.bf16.mxu0 0
        %1354 = vmatpush2.bf16.msra.mxu0 %v1289
        %1355 = vmatprep.subr.bf16.mxu0 0
        %1356 = vmatpush2.bf16.msra.mxu0 %v1288
        %1357 = vmatprep.subr.bf16.mxu0 0
        %1358 = vmatpush2.bf16.msra.mxu0 %v1287
        %1359 = vmatprep.mubr.bf16.mxu0 %v1178
        %1360 = vmatmul.mubr.bf16.gmra.mxu0 %v1171
        %v1361 = vpop.f32.mrf.mxu0
        %v1362 = vadd.f32 0.0, %v1361
        %v1363 = vpop.f32.mrf.mxu0
        %v1364 = vpop.f32.mrf.mxu0
        %v1365 = vpop.f32.mrf.mxu0
        %1366 = vdwg.mxu0
        %1367 = vmatprep.subr.bf16.mxu0 0
        %1368 = vmatpush1.bf16.msra.mxu0 %v1302
        %1369 = vmatprep.subr.bf16.mxu0 0
        %1370 = vmatpush1.bf16.msra.mxu0 %v1301
        %1371 = vmatprep.subr.bf16.mxu0 0
        %1372 = vmatpush1.bf16.msra.mxu0 %v1300
        %1373 = vmatprep.subr.bf16.mxu0 0
        %1374 = vmatpush1.bf16.msra.mxu0 %v1299
        %1375 = vmatprep.subr.bf16.mxu0 0
        %1376 = vmatpush1.bf16.msra.mxu0 %v1298
        %1377 = vmatprep.subr.bf16.mxu0 0
        %1378 = vmatpush1.bf16.msra.mxu0 %v1297
        %1379 = vmatprep.subr.bf16.mxu0 0
        %1380 = vmatpush1.bf16.msra.mxu0 %v1296
        %1381 = vmatprep.subr.bf16.mxu0 0
        %1382 = vmatpush1.bf16.msra.mxu0 %v1295
        %1383 = vmatprep.subr.bf16.mxu0 0
        %1384 = vmatpush2.bf16.msra.mxu0 0
        %1385 = vmatprep.subr.bf16.mxu0 0
        %1386 = vmatpush2.bf16.msra.mxu0 0
        %1387 = vmatprep.subr.bf16.mxu0 0
        %1388 = vmatpush2.bf16.msra.mxu0 0
        %1389 = vmatprep.subr.bf16.mxu0 0
        %1390 = vmatpush2.bf16.msra.mxu0 0
        %1391 = vmatprep.subr.bf16.mxu0 0
        %1392 = vmatpush2.bf16.msra.mxu0 0
        %1393 = vmatprep.subr.bf16.mxu0 0
        %1394 = vmatpush2.bf16.msra.mxu0 0
        %1395 = vmatprep.subr.bf16.mxu0 0
        %1396 = vmatpush2.bf16.msra.mxu0 0
        %1397 = vmatprep.subr.bf16.mxu0 0
        %1398 = vmatpush2.bf16.msra.mxu0 0
        %1399 = vmatprep.mubr.bf16.mxu0 0
        %1400 = vmatmul.mubr.bf16.gmra.mxu0 %v1179
        %v1401 = vpop.f32.mrf.mxu0
        %v1402 = vadd.f32 %v1362, %v1401
        %v1403 = vpop.f32.mrf.mxu0
        %v1404 = vpop.f32.mrf.mxu0
        %v1405 = vpop.f32.mrf.mxu0
        %1406 = vdwg.mxu0
        %v1407 = vadd.f32 %v1097, %v1402
        %v1408 = vld [vmem:[%s4] sm:$0x1]
        %v1410 = vlaneseq
        %v1411 = vshrl.u32 %v1410, 7
        %v1412 = vsub.s32 0, %v1411
        %v1413 = vrot.slane %v1408, %v1412
        %v1415 = vmul.f32 %v1407, %v1413
        %v1416 = vld [vmem:[%s5] sm:$0x1]
        %v1418 = vlaneseq
        %v1419 = vshrl.u32 %v1418, 7
        %v1420 = vsub.s32 0, %v1419
        %v1421 = vrot.slane %v1416, %v1420
        %v1423 = vadd.f32 %v1415, %v1421
        %v1424 = vmax.f32 %v1423, 0.0
        %v1425 = vpack.c.bf16 %v1424, %v1424
        %1426 = vst [vmem:[%s349] sm:$0x3] %v1425
        %s1427 = sand.u32 %s205, 1
        %s1428 = scalar_lea.sflag [#allocation4], %s1427
        %s1429 = sand.u32 %s205, 1
        %s1430 = smul.addr %s1429, 2
        %s1431 = scalar_lea.vmem [#allocation3], %s1430
        // Predicated region
        $region49: #{detail_branch.15} parent=43 // pred_check
          %p1432 = pneg %p215
        $region50: #{detail_branch.15} parent=43 // pred_check_branch
          %1434 = sbr.rel (%p1432) target = $region52
        $region51: #{detail_branch.15} parent=43 // pred_region
          %s1436 = ssub.s32 32, 32
          %1437 = vsyncadd %s1428, %s1436
          %s1438 = sadd.s32 %s25, %s24
          %s1439 = smul.addr %s1438, 32
          %s1440 = scalar_lea.hbm %s6, %s1439
          %s1442 = sshll.u32 %s1431, 4
          %s1443 = int_to_ptr.vmem [resolvable:$true] %s1442
          %1445 = dma.vmem_to_hbm [thread:$0]  %s1443, 32, %s1440, %s1428
        $region52: #{detail_branch.15} parent=43 // pred_fallthru
          _
      $region44: #{detail_branch.15} parent=5 // pred_fallthru
        _
      %p1446 = scmp.le.s32.totalorder 2, %s15
      // Predicated region
      $region53: #{detail_branch.15} parent=5 // pred_check
        %p1447 = pneg %p1446
      $region54: #{detail_branch.15} parent=5 // pred_check_branch
        %1449 = sbr.rel (%p1447) target = $region56
      $region55: #{detail_branch.15} parent=5 // pred_region
        %s1450 = ssub.s32 %s15, 2
        // Predicated region
        $region57: #{detail_branch.15} parent=55 // pred_check
          %p1451 = pneg %p221
        $region58: #{detail_branch.15} parent=55 // pred_check_branch
          %1453 = sbr.rel (%p1451) target = $region60
        $region59: #{detail_branch.15} parent=55 // pred_region
          %s1454 = sand.u32 %s206, 1
          %s1455 = scalar_lea.sflag [#allocation4], %s1454
          %s1456 = sand.u32 %s206, 1
          %s1457 = smul.addr %s1456, 2
          %s1458 = scalar_lea.vmem [#allocation3], %s1457
          %1459 = dma.done %s1455, 32
        $region60: #{detail_branch.15} parent=55 // pred_fallthru
          _
      $region56: #{detail_branch.15} parent=5 // pred_fallthru
        _
    $region6: #{detail_branch.15} parent=1 // loop_footer
      %s19 = sadd.s32 1, %s15
    $region7: #{detail_branch.15} parent=1 // loop_footer_branch
      %14 = sbr.rel target = $region3
    $region8: #{detail_branch.15} parent=1 // loop_exit
      _
    %1460 = vsyncpa [#allocation4], 1
    %s1461 = scalar_lea.sflag [#allocation4], 1
    %1462 = vsyncpa %s1461, 1

</llo_original>
